<compile_context>
chip_gen: v7x
topology: tpu7x:2x2x1
jax: 0.10.0
libtpu: 0.0.40
codegen_flags: <defaults>
</compile_context>

<pallas_src>
import jax
import jax.numpy as jnp
from jax.experimental import pallas as pl
from jax.experimental.pallas import tpu as pltpu


# ----------------------------------------------------------------------------
# Kernel 1: pointwise (1x1) Conv1d over (B, C, T), grid=(B,)
# ----------------------------------------------------------------------------
def _pconv_kernel(x_ref, w_ref, b_ref, o_ref):
    o_ref[0] = (jnp.dot(w_ref[...], x_ref[0], preferred_element_type=jnp.float32)
                + b_ref[...]).astype(o_ref.dtype)


def pointwise_conv(x, w, b):
    """x: (B, Cin, T); w: (Cout, Cin); b: (Cout,) -> (B, Cout, T)."""
    B, Cin, T = x.shape
    Cout = w.shape[0]
    return pl.pallas_call(
        _pconv_kernel,
        grid=(B,),
        out_shape=jax.ShapeDtypeStruct((B, Cout, T), x.dtype),
        in_specs=[
            pl.BlockSpec((1, Cin, T), lambda b_: (b_, 0, 0)),
            pl.BlockSpec((Cout, Cin), lambda b_: (0, 0)),
            pl.BlockSpec((Cout, 1), lambda b_: (0, 0)),
        ],
        out_specs=pl.BlockSpec((1, Cout, T), lambda b_: (b_, 0, 0)),
        compiler_params=pltpu.CompilerParams(dimension_semantics=("parallel",)),
    )(x, w, b.reshape(Cout, 1))


# ----------------------------------------------------------------------------
# Kernel 2: Predictor layer = grouped 1x1 conv [+ BatchNorm(train) + tanh]
#           [+ residual add], fused into one kernel, grid=(groups,).
# Activations live in (channels, B*steps) layout (channels group-major), so
# per-channel batch statistics are a reduction over the lane axis.
# ----------------------------------------------------------------------------
def _make_pred_kernel(apply_bn_tanh, has_residual, eps):
    def kernel(*refs):
        i = 0
        x_ref = refs[i]; i += 1
        w_ref = refs[i]; i += 1
        b_ref = refs[i]; i += 1
        if apply_bn_tanh:
            g_ref = refs[i]; i += 1
            be_ref = refs[i]; i += 1
        if has_residual:
            r_ref = refs[i]; i += 1
        o_ref = refs[i]

        h = (jnp.dot(w_ref[0], x_ref[...], preferred_element_type=jnp.float32)
             + b_ref[...])                                      # (cout_g, N)
        if apply_bn_tanh:
            mean = jnp.mean(h, axis=1, keepdims=True)           # batch stats
            d = h - mean
            var = jnp.mean(d * d, axis=1, keepdims=True)        # biased var
            h = jnp.tanh(d * (g_ref[...] * jax.lax.rsqrt(var + eps)) + be_ref[...])
        if has_residual:
            h = h + r_ref[...]
        o_ref[...] = h.astype(o_ref.dtype)
    return kernel


def pred_layer(x, w, b, groups, gamma=None, beta=None, residual=None,
               input_grouped=True, eps=1e-5):
    """x: (Cin_total, N); w: (Cout_total, Cin/groups); b/gamma/beta: (Cout_total,)."""
    Cin_total, N = x.shape
    Cout_total = w.shape[0]
    G = groups
    cout_g = Cout_total // G
    cin_g = w.shape[1]
    wg = w.reshape(G, cout_g, cin_g)

    apply_bn = gamma is not None
    has_res = residual is not None

    if input_grouped:
        x_spec = pl.BlockSpec((cin_g, N), lambda g: (g, 0))
    else:                               # groups only split the output channels
        x_spec = pl.BlockSpec((Cin_total, N), lambda g: (0, 0))

    in_specs = [
        x_spec,
        pl.BlockSpec((1, cout_g, cin_g), lambda g: (g, 0, 0)),
        pl.BlockSpec((cout_g, 1), lambda g: (g, 0)),
    ]
    inputs = [x, wg, b.reshape(Cout_total, 1)]
    if apply_bn:
        in_specs += [pl.BlockSpec((cout_g, 1), lambda g: (g, 0))] * 2
        inputs += [gamma.reshape(Cout_total, 1), beta.reshape(Cout_total, 1)]
    if has_res:
        in_specs.append(pl.BlockSpec((cout_g, N), lambda g: (g, 0)))
        inputs.append(residual)

    return pl.pallas_call(
        _make_pred_kernel(apply_bn, has_res, eps),
        grid=(G,),
        out_shape=jax.ShapeDtypeStruct((Cout_total, N), x.dtype),
        in_specs=in_specs,
        out_specs=pl.BlockSpec((cout_g, N), lambda g: (g, 0)),
        compiler_params=pltpu.CompilerParams(dimension_semantics=("parallel",)),
    )(*inputs)


# ----------------------------------------------------------------------------
# Kernel 3: NonCausalLayerLVC — location-variable dilated conv + gate + W_o
#           + residual + in-place skip accumulation.  grid=(B,).
# ----------------------------------------------------------------------------
def _make_lvc_kernel(dil, res, offset, steps, dilation, radix, pad, T, last,
                     accumulate):
    def kernel(*refs):
        i = 0
        xpad_ref = refs[i]; i += 1
        w_ref = refs[i]; i += 1
        wo_ref = refs[i]; i += 1
        bo_ref = refs[i]; i += 1
        skip_in_ref = None
        if accumulate:
            skip_in_ref = refs[i]; i += 1
        if last:
            ores_ref = None
            oskip_ref = refs[i]; i += 1
        else:
            ores_ref = refs[i]; i += 1
            oskip_ref = refs[i]; i += 1
        xstack_ref = refs[i]; i += 1                  # (radix*res, T) scratch
        gate_ref = refs[i]                            # (dil, T) scratch

        xp = xpad_ref[0]                              # (res, T + 2*pad)

        # Stack the radix dilated taps once: row block k is x shifted by k*dilation.
        for k in range(radix):
            xstack_ref[k * res:(k + 1) * res, :] = xp[:, k * dilation:k * dilation + T]
        xstack = xstack_ref[...]                      # (radix*res, T)

        # One K = radix*res MXU dot per step (weights vary per step) + fused gate.
        for s in range(steps):
            ws = w_ref[0, s]                          # (2*dil, radix*res)
            xs = xstack[:, s * offset:(s + 1) * offset]
            z = jnp.dot(ws, xs, preferred_element_type=jnp.float32)
            gate_ref[:, s * offset:(s + 1) * offset] = (
                jnp.tanh(z[:dil]) * jax.nn.sigmoid(z[dil:]))

        # W_o 1x1 conv over the full lane-dense time axis, then residual / skip.
        out = (jnp.dot(wo_ref[...], gate_ref[...], preferred_element_type=jnp.float32)
               + bo_ref[...])                         # (cout, T)
        if last:
            sk = out
        else:
            ores_ref[0] = (out[:res] + xp[:, pad:pad + T]).astype(ores_ref.dtype)
            sk = out[res:]
        if accumulate:
            sk = sk + skip_in_ref[0]                  # cum_skip += skip (in place)
        oskip_ref[0] = sk.astype(oskip_ref.dtype)
    return kernel


def lvc_layer(x, w, wo_w, wo_b, dilation, radix, last, skip_in=None):
    """x: (B, res, T); w: (B, steps, 2*dil, radix*res) (contraction idx k*res+i);
    wo_w: (cout, dil); wo_b: (cout,); skip_in: (B, skip, T) running skip sum."""
    B, res, T = x.shape
    steps = w.shape[1]
    dil = w.shape[2] // 2
    offset = T // steps
    pad = dilation * (radix - 1) // 2
    Tp = T + 2 * pad
    cout = wo_w.shape[0]
    skip = cout if last else cout - res
    accumulate = skip_in is not None

    xpad = jnp.pad(x, ((0, 0), (0, 0), (pad, pad)))

    in_specs = [
        pl.BlockSpec((1, res, Tp), lambda b_: (b_, 0, 0)),
        pl.BlockSpec((1, steps, 2 * dil, radix * res), lambda b_: (b_, 0, 0, 0)),
        pl.BlockSpec((cout, dil), lambda b_: (0, 0)),
        pl.BlockSpec((cout, 1), lambda b_: (0, 0)),
    ]
    inputs = [xpad, w, wo_w, wo_b.reshape(cout, 1)]
    io_aliases = {}
    if accumulate:
        in_specs.append(pl.BlockSpec((1, skip, T), lambda b_: (b_, 0, 0)))
        inputs.append(skip_in)
        io_aliases = {4: (0 if last else 1)}          # cum_skip updated in place

    if last:
        out_shape = jax.ShapeDtypeStruct((B, skip, T), x.dtype)
        out_specs = pl.BlockSpec((1, skip, T), lambda b_: (b_, 0, 0))
    else:
        out_shape = (jax.ShapeDtypeStruct((B, res, T), x.dtype),
                     jax.ShapeDtypeStruct((B, skip, T), x.dtype))
        out_specs = (pl.BlockSpec((1, res, T), lambda b_: (b_, 0, 0)),
                     pl.BlockSpec((1, skip, T), lambda b_: (b_, 0, 0)))

    outs = pl.pallas_call(
        _make_lvc_kernel(dil, res, offset, steps, dilation, radix, pad, T,
                         last, accumulate),
        grid=(B,),
        out_shape=out_shape,
        in_specs=in_specs,
        out_specs=out_specs,
        scratch_shapes=[pltpu.VMEM((radix * res, T), jnp.float32),
                        pltpu.VMEM((dil, T), jnp.float32)],
        input_output_aliases=io_aliases,
        compiler_params=pltpu.CompilerParams(dimension_semantics=("parallel",)),
    )(*inputs)

    if last:
        return None, outs
    return outs[0], outs[1]


# ----------------------------------------------------------------------------
# WN_LVC forward (Pallas path)
# ----------------------------------------------------------------------------
def wn_lvc_forward_pallas(x, y, p, cfg):
    B, _, T = x.shape
    steps = y.shape[2]
    G, dilch, resch, rdx = cfg["depth"], cfg["dil_chs"], cfg["res_chs"], cfg["radix"]
    N = B * steps

    # ---- start 1x1 conv (weight_norm at init is a forward no-op) ----
    h = pointwise_conv(x, p["start_w"], p["start_b"])

    # ---- Predictor (activations kept in (channels, B*steps) layout) ----
    a = jnp.transpose(y, (1, 0, 2)).reshape(y.shape[1], N)
    t = pred_layer(a, p["pred_start_w"], p["pred_start_b"], G,
                   gamma=p["pred_bn0_g"], beta=p["pred_bn0_b"], input_grouped=False)
    for blk in p["pred_blocks"]:
        u = pred_layer(t, blk["w1"], blk["b1"], G, gamma=blk["g1"], beta=blk["be1"])
        t = pred_layer(u, blk["w2"], blk["b2"], G, gamma=blk["g2"], beta=blk["be2"],
                       residual=t)
    wout = pred_layer(t, p["pred_end_w"], p["pred_end_b"], G)   # (G*out_ch, N)

    # ---- reshape predicted weights for the LVC layers ----
    out_ch = 2 * dilch * resch * rdx
    wall = wout.reshape(G, out_ch, B, steps)
    wall = jnp.transpose(wall, (0, 2, 3, 1)).reshape(G, B, steps, 2 * dilch, resch, rdx)
    wall = jnp.transpose(wall, (0, 1, 2, 3, 5, 4)).reshape(G, B, steps, 2 * dilch,
                                                           rdx * resch)

    # ---- LVC layers (skip accumulated in place inside the kernels) ----
    xr, cum_skip = h, None
    for i, d in enumerate(cfg["dilations"]):
        last = i == len(cfg["dilations"]) - 1
        xr, cum_skip = lvc_layer(xr, wall[i], p["wo_w"][i], p["wo_b"][i],
                                 d, rdx, last, skip_in=cum_skip)

    # ---- end 1x1 conv + chunk(2, 1) ----
    out = pointwise_conv(cum_skip, p["end_w"], p["end_b"])
    C = out.shape[1] // 2
    return out[:, :C], out[:, C:]


# ----------------------------------------------------------------------------
# Pure-JAX reference (mirrors the PyTorch module, NCW layout)
# ----------------------------------------------------------------------------
def _conv_ref(x, w, b, groups):
    B, Cin, T = x.shape
    Cout = w.shape[0]
    G = groups
    xg = x.reshape(B, G, Cin // G, T)
    wg = w.reshape(G, Cout // G, w.shape[1])
    out = jnp.einsum("goi,bgit->bgot", wg, xg, precision="highest")
    return out.reshape(B, Cout, T) + b[None, :, None]


def _bn_tanh_ref(h, gamma, beta, eps=1e-5):
    mean = jnp.mean(h, axis=(0, 2), keepdims=True)
    var = jnp.var(h, axis=(0, 2), keepdims=True)
    return jnp.tanh((h - mean) / jnp.sqrt(var + eps) * gamma[None, :, None]
                    + beta[None, :, None])


def _lvc_ref(x, w, wo_w, wo_b, dilation, radix, last):
    B, res, T = x.shape
    steps, dil2 = w.shape[1], w.shape[2]
    dil = dil2 // 2
    offset = T // steps
    pad = dilation * (radix - 1) // 2
    xpad = jnp.pad(x, ((0, 0), (0, 0), (pad, pad)))
    idx = ((jnp.arange(steps) * offset)[:, None, None]
           + jnp.arange(offset)[None, :, None]
           + dilation * jnp.arange(radix)[None, None, :])       # (steps, offset, radix)
    xg = xpad[:, :, idx]                                        # (B, res, steps, offset, radix)
    z = jnp.einsum("bsoik,bistk->bsot", w, xg, precision="highest")
    z = jnp.transpose(z, (0, 2, 1, 3)).reshape(B, dil2, T)
    g = jnp.tanh(z[:, :dil]) * jax.nn.sigmoid(z[:, dil:])
    out = jnp.einsum("od,bdt->bot", wo_w, g, precision="highest") + wo_b[None, :, None]
    if last:
        return None, out
    return out[:, :res] + x, out[:, res:]


def wn_lvc_forward_ref(x, y, p, cfg):
    G = cfg["depth"]
    h = _conv_ref(x, p["start_w"], p["start_b"], 1)
    t = _conv_ref(y, p["pred_start_w"], p["pred_start_b"], 1)
    t = _bn_tanh_ref(t, p["pred_bn0_g"], p["pred_bn0_b"])
    for blk in p["pred_blocks"]:
        u = _conv_ref(t, blk["w1"], blk["b1"], G)
        u = _bn_tanh_ref(u, blk["g1"], blk["be1"])
        u = _conv_ref(u, blk["w2"], blk["b2"], G)
        u = _bn_tanh_ref(u, blk["g2"], blk["be2"])
        t = u + t
    weights = _conv_ref(t, p["pred_end_w"], p["pred_end_b"], G)
    B, steps = x.shape[0], y.shape[2]
    dilch, resch, rdx = cfg["dil_chs"], cfg["res_chs"], cfg["radix"]
    out_ch = 2 * dilch * resch * rdx
    weights = weights.reshape(B, G, out_ch, steps).transpose(1, 0, 3, 2)
    cum_skip = 0.0
    xr = h
    for i, d in enumerate(cfg["dilations"]):
        wi = weights[i].reshape(B, steps, 2 * dilch, resch, rdx)
        last = i == len(cfg["dilations"]) - 1
        xr, skip = _lvc_ref(xr, wi, p["wo_w"][i], p["wo_b"][i], d, rdx, last)
        cum_skip = cum_skip + skip
    out = _conv_ref(cum_skip, p["end_w"], p["end_b"], 1)
    C = out.shape[1] // 2
    return out[:, :C], out[:, C:]


# ----------------------------------------------------------------------------
# Deterministic parameter initialization (shapes per the module __init__)
# ----------------------------------------------------------------------------
def init_params(key, cfg, zero_init=False):
    ks = iter(jax.random.split(key, 64))

    def nrm(shape, scale=0.1):
        return jax.random.normal(next(ks), shape, jnp.float32) * scale

    in_ch, aux, depth = cfg["in_ch"], cfg["aux_ch"], cfg["depth"]
    dilch, resch, skp = cfg["dil_chs"], cfg["res_chs"], cfg["skip_chs"]
    rdx, hid, nlayers = cfg["radix"], cfg["pred_hidden"], cfg["pred_layers"]
    out_ch = 2 * dilch * resch * rdx

    p = {
        "start_w": nrm((resch, in_ch)), "start_b": nrm((resch,)),
        "wo_w": [], "wo_b": [],
        "pred_start_w": nrm((hid * depth, aux)), "pred_start_b": nrm((hid * depth,)),
        "pred_bn0_g": jnp.ones((hid * depth,), jnp.float32),
        "pred_bn0_b": jnp.zeros((hid * depth,), jnp.float32),
        "pred_blocks": [],
        "pred_end_w": nrm((out_ch * depth, hid)), "pred_end_b": nrm((out_ch * depth,)),
    }
    for i in range(depth):
        cout = skp if i == depth - 1 else resch + skp
        p["wo_w"].append(nrm((cout, dilch)))
        p["wo_b"].append(nrm((cout,)))
    for _ in range(nlayers):
        p["pred_blocks"].append(dict(
            w1=nrm((hid * depth, hid)), b1=nrm((hid * depth,)),
            g1=jnp.ones((hid * depth,), jnp.float32),
            be1=jnp.zeros((hid * depth,), jnp.float32),
            w2=nrm((hid * depth, hid)), b2=nrm((hid * depth,)),
            g2=jnp.ones((hid * depth,), jnp.float32),
            be2=jnp.zeros((hid * depth,), jnp.float32)))
    if zero_init:
        p["end_w"] = jnp.zeros((2 * in_ch, skp), jnp.float32)
        p["end_b"] = jnp.zeros((2 * in_ch,), jnp.float32)
    else:
        p["end_w"] = nrm((2 * in_ch, skp))
        p["end_b"] = nrm((2 * in_ch,))
    return p


if __name__ == "__main__":
    cfg = dict(in_ch=2, aux_ch=5, depth=4, dil_chs=4, res_chs=4, skip_chs=4,
               pred_hidden=8, pred_layers=1, radix=3)
    cfg["dilations"] = [2 ** i for i in range(cfg["depth"])]

    key = jax.random.PRNGKey(0)
    kp, kx, ky = jax.random.split(key, 3)
    params = init_params(kp, cfg, zero_init=False)

    B, T, steps = 2, 64, 8
    x = jax.random.normal(kx, (B, cfg["in_ch"], T), jnp.float32)
    y = jax.random.normal(ky, (B, cfg["aux_ch"], steps), jnp.float32)

    fwd = jax.jit(lambda x_, y_, p_: wn_lvc_forward_pallas(x_, y_, p_, cfg))
    out_a, out_b = fwd(x, y, params)
    jax.block_until_ready((out_a, out_b))

    ref_a, ref_b = wn_lvc_forward_ref(x, y, params, cfg)
    jax.block_until_ready((ref_a, ref_b))

    assert out_a.shape == (B, cfg["in_ch"], T) and out_b.shape == (B, cfg["in_ch"], T)
    assert bool(jnp.max(jnp.abs(out_a - ref_a)) < 2e-3)
    assert bool(jnp.max(jnp.abs(out_b - ref_b)) < 2e-3)
    print("KERNEL_OK")
</pallas_src>

<mosaic_0001>
module attributes {stable_mosaic.version = 11 : i64} {
  func.func @_pconv_kernel(%arg0: i32, %arg1: memref<1x2x64xf32, #tpu.memory_space<vmem>>, %arg2: memref<4x2xf32, #tpu.memory_space<vmem>>, %arg3: memref<4x1xf32, #tpu.memory_space<vmem>>, %arg4: memref<1x4x64xf32, #tpu.memory_space<vmem>>) attributes {dimension_semantics = [#tpu.dimension_semantics<parallel>], iteration_bounds = array<i64: 2>, scalar_prefetch = 0 : i64, scratch_operands = 0 : i64, tpu.core_type = #tpu.core_type<tc>, window_params = [{transform_indices = @transform_0, window_bounds = array<i64: 1, 2, 64>}, {pipeline_mode = #tpu.pipeline_mode<synchronous>, transform_indices = @transform_1, window_bounds = array<i64: 4, 2>}, {pipeline_mode = #tpu.pipeline_mode<synchronous>, transform_indices = @transform_2, window_bounds = array<i64: 4, 1>}, {transform_indices = @transform_3, window_bounds = array<i64: 1, 4, 64>}]} {
    %c0 = arith.constant 0 : index
    %c0_0 = arith.constant 0 : index
    %0 = vector.load %arg2[%c0, %c0_0] : memref<4x2xf32, #tpu.memory_space<vmem>>, vector<4x2xf32>
    %c0_1 = arith.constant 0 : index
    %c0_2 = arith.constant 0 : index
    %c0_3 = arith.constant 0 : index
    %1 = vector.load %arg1[%c0_1, %c0_2, %c0_3] : memref<1x2x64xf32, #tpu.memory_space<vmem>>, vector<1x2x64xf32>
    %2 = vector.shape_cast %1 : vector<1x2x64xf32> to vector<2x64xf32>
    %cst = arith.constant dense<0.000000e+00> : vector<4x64xf32>
    %3 = tpu.matmul %0, %2, %cst {dimension_numbers = #tpu.dot_dimension_numbers<[1], [0], [0], [1], [0, 0, 1, 1], [], []>} : vector<4x2xf32>, vector<2x64xf32>, vector<4x64xf32> -> vector<4x64xf32>
    %c0_4 = arith.constant 0 : index
    %c0_5 = arith.constant 0 : index
    %4 = vector.load %arg3[%c0_4, %c0_5] : memref<4x1xf32, #tpu.memory_space<vmem>>, vector<4x1xf32>
    %5 = vector.broadcast %4 : vector<4x1xf32> to vector<4x64xf32>
    %6 = arith.addf %3, %5 : vector<4x64xf32>
    %c0_6 = arith.constant 0 : index
    %c0_7 = arith.constant 0 : index
    %c0_8 = arith.constant 0 : index
    %7 = vector.load %arg4[%c0_6, %c0_7, %c0_8] : memref<1x4x64xf32, #tpu.memory_space<vmem>>, vector<1x4x64xf32>
    %8 = vector.shape_cast %7 : vector<1x4x64xf32> to vector<4x64xf32>
    %9 = vector.shape_cast %6 : vector<4x64xf32> to vector<1x4x64xf32>
    tpu.vector_store %arg4[%c0_6, %c0_7, %c0_8], %9 {strides = array<i32>} : memref<1x4x64xf32, #tpu.memory_space<vmem>>, vector<1x4x64xf32>,
    return
  }
  func.func @transform_0(%arg0: i32) -> (i32, i32, i32) {
    %c0_i32 = arith.constant 0 : i32
    %c0_i32_0 = arith.constant 0 : i32
    %c0_i32_1 = arith.constant 0 : i32
    return %arg0, %c0_i32, %c0_i32_0 : i32, i32, i32
  }
  func.func @transform_1(%arg0: i32) -> (i32, i32) {
    %c0_i32 = arith.constant 0 : i32
    %c0_i32_0 = arith.constant 0 : i32
    %c0_i32_1 = arith.constant 0 : i32
    return %c0_i32, %c0_i32_0 : i32, i32
  }
  func.func @transform_2(%arg0: i32) -> (i32, i32) {
    %c0_i32 = arith.constant 0 : i32
    %c0_i32_0 = arith.constant 0 : i32
    %c0_i32_1 = arith.constant 0 : i32
    return %c0_i32, %c0_i32_0 : i32, i32
  }
  func.func @transform_3(%arg0: i32) -> (i32, i32, i32) {
    %c0_i32 = arith.constant 0 : i32
    %c0_i32_0 = arith.constant 0 : i32
    %c0_i32_1 = arith.constant 0 : i32
    return %arg0, %c0_i32, %c0_i32_0 : i32, i32, i32
  }
}

module attributes {stable_mosaic.version = 11 : i64} {
  func.func @kernel(%arg0: i32, %arg1: memref<5x16xf32, #tpu.memory_space<vmem>>, %arg2: memref<1x8x5xf32, #tpu.memory_space<vmem>>, %arg3: memref<8x1xf32, #tpu.memory_space<vmem>>, %arg4: memref<8x1xf32, #tpu.memory_space<vmem>>, %arg5: memref<8x1xf32, #tpu.memory_space<vmem>>, %arg6: memref<8x16xf32, #tpu.memory_space<vmem>>) attributes {dimension_semantics = [#tpu.dimension_semantics<parallel>], iteration_bounds = array<i64: 4>, scalar_prefetch = 0 : i64, scratch_operands = 0 : i64, tpu.core_type = #tpu.core_type<tc>, window_params = [{pipeline_mode = #tpu.pipeline_mode<synchronous>, transform_indices = @transform_0, window_bounds = array<i64: 5, 16>}, {transform_indices = @transform_1, window_bounds = array<i64: 1, 8, 5>}, {transform_indices = @transform_2, window_bounds = array<i64: 8, 1>}, {transform_indices = @transform_3, window_bounds = array<i64: 8, 1>}, {transform_indices = @transform_4, window_bounds = array<i64: 8, 1>}, {transform_indices = @transform_5, window_bounds = array<i64: 8, 16>}]} {
    %c0 = arith.constant 0 : index
    %c0_0 = arith.constant 0 : index
    %c0_1 = arith.constant 0 : index
    %0 = vector.load %arg2[%c0, %c0_0, %c0_1] : memref<1x8x5xf32, #tpu.memory_space<vmem>>, vector<1x8x5xf32>
    %1 = vector.shape_cast %0 : vector<1x8x5xf32> to vector<8x5xf32>
    %c0_2 = arith.constant 0 : index
    %c0_3 = arith.constant 0 : index
    %2 = vector.load %arg1[%c0_2, %c0_3] : memref<5x16xf32, #tpu.memory_space<vmem>>, vector<5x16xf32>
    %cst = arith.constant dense<0.000000e+00> : vector<8x16xf32>
    %3 = tpu.matmul %1, %2, %cst {dimension_numbers = #tpu.dot_dimension_numbers<[1], [0], [0], [1], [0, 0, 1, 1], [], []>} : vector<8x5xf32>, vector<5x16xf32>, vector<8x16xf32> -> vector<8x16xf32>
    %c0_4 = arith.constant 0 : index
    %c0_5 = arith.constant 0 : index
    %4 = vector.load %arg3[%c0_4, %c0_5] : memref<8x1xf32, #tpu.memory_space<vmem>>, vector<8x1xf32>
    %5 = vector.broadcast %4 : vector<8x1xf32> to vector<8x16xf32>
    %6 = arith.addf %3, %5 : vector<8x16xf32>
    %cst_6 = arith.constant dense<0.000000e+00> : vector<8xf32>
    %7 = vector.multi_reduction <add>, %6, %cst_6 [1] : vector<8x16xf32> to vector<8xf32>
    %8 = vector.shape_cast %7 : vector<8xf32> to vector<8x1xf32>
    %cst_7 = arith.constant 1.600000e+01 : f32
    %9 = vector.broadcast %cst_7 : f32 to vector<8x1xf32>
    %10 = arith.divf %8, %9 : vector<8x1xf32>
    %11 = vector.broadcast %10 : vector<8x1xf32> to vector<8x16xf32>
    %12 = arith.subf %6, %11 : vector<8x16xf32>
    %13 = arith.mulf %12, %12 : vector<8x16xf32>
    %cst_8 = arith.constant dense<0.000000e+00> : vector<8xf32>
    %14 = vector.multi_reduction <add>, %13, %cst_8 [1] : vector<8x16xf32> to vector<8xf32>
    %15 = vector.shape_cast %14 : vector<8xf32> to vector<8x1xf32>
    %cst_9 = arith.constant 1.600000e+01 : f32
    %16 = vector.broadcast %cst_9 : f32 to vector<8x1xf32>
    %17 = arith.divf %15, %16 : vector<8x1xf32>
    %c0_10 = arith.constant 0 : index
    %c0_11 = arith.constant 0 : index
    %18 = vector.load %arg4[%c0_10, %c0_11] : memref<8x1xf32, #tpu.memory_space<vmem>>, vector<8x1xf32>
    %cst_12 = arith.constant 9.99999974E-6 : f32
    %19 = vector.broadcast %cst_12 : f32 to vector<8x1xf32>
    %20 = arith.addf %17, %19 : vector<8x1xf32>
    %21 = math.rsqrt %20 : vector<8x1xf32>
    %22 = arith.mulf %18, %21 : vector<8x1xf32>
    %23 = vector.broadcast %22 : vector<8x1xf32> to vector<8x16xf32>
    %24 = arith.mulf %12, %23 : vector<8x16xf32>
    %c0_13 = arith.constant 0 : index
    %c0_14 = arith.constant 0 : index
    %25 = vector.load %arg5[%c0_13, %c0_14] : memref<8x1xf32, #tpu.memory_space<vmem>>, vector<8x1xf32>
    %26 = vector.broadcast %25 : vector<8x1xf32> to vector<8x16xf32>
    %27 = arith.addf %24, %26 : vector<8x16xf32>
    %28 = math.tanh %27 : vector<8x16xf32>
    %c0_15 = arith.constant 0 : index
    %c0_16 = arith.constant 0 : index
    %29 = vector.load %arg6[%c0_15, %c0_16] : memref<8x16xf32, #tpu.memory_space<vmem>>, vector<8x16xf32>
    tpu.vector_store %arg6[%c0_15, %c0_16], %28 {strides = array<i32>} : memref<8x16xf32, #tpu.memory_space<vmem>>, vector<8x16xf32>,
    return
  }
  func.func @transform_0(%arg0: i32) -> (i32, i32) {
    %c0_i32 = arith.constant 0 : i32
    %c0_i32_0 = arith.constant 0 : i32
    %c0_i32_1 = arith.constant 0 : i32
    return %c0_i32, %c0_i32_0 : i32, i32
  }
  func.func @transform_1(%arg0: i32) -> (i32, i32, i32) {
    %c0_i32 = arith.constant 0 : i32
    %c0_i32_0 = arith.constant 0 : i32
    %c0_i32_1 = arith.constant 0 : i32
    return %arg0, %c0_i32, %c0_i32_0 : i32, i32, i32
  }
  func.func @transform_2(%arg0: i32) -> (i32, i32) {
    %c0_i32 = arith.constant 0 : i32
    %c0_i32_0 = arith.constant 0 : i32
    return %arg0, %c0_i32 : i32, i32
  }
  func.func @transform_3(%arg0: i32) -> (i32, i32) {
    %c0_i32 = arith.constant 0 : i32
    %c0_i32_0 = arith.constant 0 : i32
    return %arg0, %c0_i32 : i32, i32
  }
  func.func @transform_4(%arg0: i32) -> (i32, i32) {
    %c0_i32 = arith.constant 0 : i32
    %c0_i32_0 = arith.constant 0 : i32
    return %arg0, %c0_i32 : i32, i32
  }
  func.func @transform_5(%arg0: i32) -> (i32, i32) {
    %c0_i32 = arith.constant 0 : i32
    %c0_i32_0 = arith.constant 0 : i32
    return %arg0, %c0_i32 : i32, i32
  }
}

module attributes {stable_mosaic.version = 11 : i64} {
  func.func @kernel(%arg0: i32, %arg1: memref<8x16xf32, #tpu.memory_space<vmem>>, %arg2: memref<1x8x8xf32, #tpu.memory_space<vmem>>, %arg3: memref<8x1xf32, #tpu.memory_space<vmem>>, %arg4: memref<8x1xf32, #tpu.memory_space<vmem>>, %arg5: memref<8x1xf32, #tpu.memory_space<vmem>>, %arg6: memref<8x16xf32, #tpu.memory_space<vmem>>) attributes {dimension_semantics = [#tpu.dimension_semantics<parallel>], iteration_bounds = array<i64: 4>, scalar_prefetch = 0 : i64, scratch_operands = 0 : i64, tpu.core_type = #tpu.core_type<tc>, window_params = [{transform_indices = @transform_0, window_bounds = array<i64: 8, 16>}, {transform_indices = @transform_1, window_bounds = array<i64: 1, 8, 8>}, {transform_indices = @transform_2, window_bounds = array<i64: 8, 1>}, {transform_indices = @transform_3, window_bounds = array<i64: 8, 1>}, {transform_indices = @transform_4, window_bounds = array<i64: 8, 1>}, {transform_indices = @transform_5, window_bounds = array<i64: 8, 16>}]} {
    %c0 = arith.constant 0 : index
    %c0_0 = arith.constant 0 : index
    %c0_1 = arith.constant 0 : index
    %0 = vector.load %arg2[%c0, %c0_0, %c0_1] : memref<1x8x8xf32, #tpu.memory_space<vmem>>, vector<1x8x8xf32>
    %1 = vector.shape_cast %0 : vector<1x8x8xf32> to vector<8x8xf32>
    %c0_2 = arith.constant 0 : index
    %c0_3 = arith.constant 0 : index
    %2 = vector.load %arg1[%c0_2, %c0_3] : memref<8x16xf32, #tpu.memory_space<vmem>>, vector<8x16xf32>
    %cst = arith.constant dense<0.000000e+00> : vector<8x16xf32>
    %3 = tpu.matmul %1, %2, %cst {dimension_numbers = #tpu.dot_dimension_numbers<[1], [0], [0], [1], [0, 0, 1, 1], [], []>} : vector<8x8xf32>, vector<8x16xf32>, vector<8x16xf32> -> vector<8x16xf32>
    %c0_4 = arith.constant 0 : index
    %c0_5 = arith.constant 0 : index
    %4 = vector.load %arg3[%c0_4, %c0_5] : memref<8x1xf32, #tpu.memory_space<vmem>>, vector<8x1xf32>
    %5 = vector.broadcast %4 : vector<8x1xf32> to vector<8x16xf32>
    %6 = arith.addf %3, %5 : vector<8x16xf32>
    %cst_6 = arith.constant dense<0.000000e+00> : vector<8xf32>
    %7 = vector.multi_reduction <add>, %6, %cst_6 [1] : vector<8x16xf32> to vector<8xf32>
    %8 = vector.shape_cast %7 : vector<8xf32> to vector<8x1xf32>
    %cst_7 = arith.constant 1.600000e+01 : f32
    %9 = vector.broadcast %cst_7 : f32 to vector<8x1xf32>
    %10 = arith.divf %8, %9 : vector<8x1xf32>
    %11 = vector.broadcast %10 : vector<8x1xf32> to vector<8x16xf32>
    %12 = arith.subf %6, %11 : vector<8x16xf32>
    %13 = arith.mulf %12, %12 : vector<8x16xf32>
    %cst_8 = arith.constant dense<0.000000e+00> : vector<8xf32>
    %14 = vector.multi_reduction <add>, %13, %cst_8 [1] : vector<8x16xf32> to vector<8xf32>
    %15 = vector.shape_cast %14 : vector<8xf32> to vector<8x1xf32>
    %cst_9 = arith.constant 1.600000e+01 : f32
    %16 = vector.broadcast %cst_9 : f32 to vector<8x1xf32>
    %17 = arith.divf %15, %16 : vector<8x1xf32>
    %c0_10 = arith.constant 0 : index
    %c0_11 = arith.constant 0 : index
    %18 = vector.load %arg4[%c0_10, %c0_11] : memref<8x1xf32, #tpu.memory_space<vmem>>, vector<8x1xf32>
    %cst_12 = arith.constant 9.99999974E-6 : f32
    %19 = vector.broadcast %cst_12 : f32 to vector<8x1xf32>
    %20 = arith.addf %17, %19 : vector<8x1xf32>
    %21 = math.rsqrt %20 : vector<8x1xf32>
    %22 = arith.mulf %18, %21 : vector<8x1xf32>
    %23 = vector.broadcast %22 : vector<8x1xf32> to vector<8x16xf32>
    %24 = arith.mulf %12, %23 : vector<8x16xf32>
    %c0_13 = arith.constant 0 : index
    %c0_14 = arith.constant 0 : index
    %25 = vector.load %arg5[%c0_13, %c0_14] : memref<8x1xf32, #tpu.memory_space<vmem>>, vector<8x1xf32>
    %26 = vector.broadcast %25 : vector<8x1xf32> to vector<8x16xf32>
    %27 = arith.addf %24, %26 : vector<8x16xf32>
    %28 = math.tanh %27 : vector<8x16xf32>
    %c0_15 = arith.constant 0 : index
    %c0_16 = arith.constant 0 : index
    %29 = vector.load %arg6[%c0_15, %c0_16] : memref<8x16xf32, #tpu.memory_space<vmem>>, vector<8x16xf32>
    tpu.vector_store %arg6[%c0_15, %c0_16], %28 {strides = array<i32>} : memref<8x16xf32, #tpu.memory_space<vmem>>, vector<8x16xf32>,
    return
  }
  func.func @transform_0(%arg0: i32) -> (i32, i32) {
    %c0_i32 = arith.constant 0 : i32
    %c0_i32_0 = arith.constant 0 : i32
    return %arg0, %c0_i32 : i32, i32
  }
  func.func @transform_1(%arg0: i32) -> (i32, i32, i32) {
    %c0_i32 = arith.constant 0 : i32
    %c0_i32_0 = arith.constant 0 : i32
    %c0_i32_1 = arith.constant 0 : i32
    return %arg0, %c0_i32, %c0_i32_0 : i32, i32, i32
  }
  func.func @transform_2(%arg0: i32) -> (i32, i32) {
    %c0_i32 = arith.constant 0 : i32
    %c0_i32_0 = arith.constant 0 : i32
    return %arg0, %c0_i32 : i32, i32
  }
  func.func @transform_3(%arg0: i32) -> (i32, i32) {
    %c0_i32 = arith.constant 0 : i32
    %c0_i32_0 = arith.constant 0 : i32
    return %arg0, %c0_i32 : i32, i32
  }
  func.func @transform_4(%arg0: i32) -> (i32, i32) {
    %c0_i32 = arith.constant 0 : i32
    %c0_i32_0 = arith.constant 0 : i32
    return %arg0, %c0_i32 : i32, i32
  }
  func.func @transform_5(%arg0: i32) -> (i32, i32) {
    %c0_i32 = arith.constant 0 : i32
    %c0_i32_0 = arith.constant 0 : i32
    return %arg0, %c0_i32 : i32, i32
  }
}

module attributes {stable_mosaic.version = 11 : i64} {
  func.func @kernel(%arg0: i32, %arg1: memref<8x16xf32, #tpu.memory_space<vmem>>, %arg2: memref<1x8x8xf32, #tpu.memory_space<vmem>>, %arg3: memref<8x1xf32, #tpu.memory_space<vmem>>, %arg4: memref<8x1xf32, #tpu.memory_space<vmem>>, %arg5: memref<8x1xf32, #tpu.memory_space<vmem>>, %arg6: memref<8x16xf32, #tpu.memory_space<vmem>>, %arg7: memref<8x16xf32, #tpu.memory_space<vmem>>) attributes {dimension_semantics = [#tpu.dimension_semantics<parallel>], iteration_bounds = array<i64: 4>, scalar_prefetch = 0 : i64, scratch_operands = 0 : i64, tpu.core_type = #tpu.core_type<tc>, window_params = [{transform_indices = @transform_0, window_bounds = array<i64: 8, 16>}, {transform_indices = @transform_1, window_bounds = array<i64: 1, 8, 8>}, {transform_indices = @transform_2, window_bounds = array<i64: 8, 1>}, {transform_indices = @transform_3, window_bounds = array<i64: 8, 1>}, {transform_indices = @transform_4, window_bounds = array<i64: 8, 1>}, {transform_indices = @transform_5, window_bounds = array<i64: 8, 16>}, {transform_indices = @transform_6, window_bounds = array<i64: 8, 16>}]} {
    %c0 = arith.constant 0 : index
    %c0_0 = arith.constant 0 : index
    %c0_1 = arith.constant 0 : index
    %0 = vector.load %arg2[%c0, %c0_0, %c0_1] : memref<1x8x8xf32, #tpu.memory_space<vmem>>, vector<1x8x8xf32>
    %1 = vector.shape_cast %0 : vector<1x8x8xf32> to vector<8x8xf32>
    %c0_2 = arith.constant 0 : index
    %c0_3 = arith.constant 0 : index
    %2 = vector.load %arg1[%c0_2, %c0_3] : memref<8x16xf32, #tpu.memory_space<vmem>>, vector<8x16xf32>
    %cst = arith.constant dense<0.000000e+00> : vector<8x16xf32>
    %3 = tpu.matmul %1, %2, %cst {dimension_numbers = #tpu.dot_dimension_numbers<[1], [0], [0], [1], [0, 0, 1, 1], [], []>} : vector<8x8xf32>, vector<8x16xf32>, vector<8x16xf32> -> vector<8x16xf32>
    %c0_4 = arith.constant 0 : index
    %c0_5 = arith.constant 0 : index
    %4 = vector.load %arg3[%c0_4, %c0_5] : memref<8x1xf32, #tpu.memory_space<vmem>>, vector<8x1xf32>
    %5 = vector.broadcast %4 : vector<8x1xf32> to vector<8x16xf32>
    %6 = arith.addf %3, %5 : vector<8x16xf32>
    %cst_6 = arith.constant dense<0.000000e+00> : vector<8xf32>
    %7 = vector.multi_reduction <add>, %6, %cst_6 [1] : vector<8x16xf32> to vector<8xf32>
    %8 = vector.shape_cast %7 : vector<8xf32> to vector<8x1xf32>
    %cst_7 = arith.constant 1.600000e+01 : f32
    %9 = vector.broadcast %cst_7 : f32 to vector<8x1xf32>
    %10 = arith.divf %8, %9 : vector<8x1xf32>
    %11 = vector.broadcast %10 : vector<8x1xf32> to vector<8x16xf32>
    %12 = arith.subf %6, %11 : vector<8x16xf32>
    %13 = arith.mulf %12, %12 : vector<8x16xf32>
    %cst_8 = arith.constant dense<0.000000e+00> : vector<8xf32>
    %14 = vector.multi_reduction <add>, %13, %cst_8 [1] : vector<8x16xf32> to vector<8xf32>
    %15 = vector.shape_cast %14 : vector<8xf32> to vector<8x1xf32>
    %cst_9 = arith.constant 1.600000e+01 : f32
    %16 = vector.broadcast %cst_9 : f32 to vector<8x1xf32>
    %17 = arith.divf %15, %16 : vector<8x1xf32>
    %c0_10 = arith.constant 0 : index
    %c0_11 = arith.constant 0 : index
    %18 = vector.load %arg4[%c0_10, %c0_11] : memref<8x1xf32, #tpu.memory_space<vmem>>, vector<8x1xf32>
    %cst_12 = arith.constant 9.99999974E-6 : f32
    %19 = vector.broadcast %cst_12 : f32 to vector<8x1xf32>
    %20 = arith.addf %17, %19 : vector<8x1xf32>
    %21 = math.rsqrt %20 : vector<8x1xf32>
    %22 = arith.mulf %18, %21 : vector<8x1xf32>
    %23 = vector.broadcast %22 : vector<8x1xf32> to vector<8x16xf32>
    %24 = arith.mulf %12, %23 : vector<8x16xf32>
    %c0_13 = arith.constant 0 : index
    %c0_14 = arith.constant 0 : index
    %25 = vector.load %arg5[%c0_13, %c0_14] : memref<8x1xf32, #tpu.memory_space<vmem>>, vector<8x1xf32>
    %26 = vector.broadcast %25 : vector<8x1xf32> to vector<8x16xf32>
    %27 = arith.addf %24, %26 : vector<8x16xf32>
    %28 = math.tanh %27 : vector<8x16xf32>
    %c0_15 = arith.constant 0 : index
    %c0_16 = arith.constant 0 : index
    %29 = vector.load %arg6[%c0_15, %c0_16] : memref<8x16xf32, #tpu.memory_space<vmem>>, vector<8x16xf32>
    %30 = arith.addf %28, %29 : vector<8x16xf32>
    %c0_17 = arith.constant 0 : index
    %c0_18 = arith.constant 0 : index
    %31 = vector.load %arg7[%c0_17, %c0_18] : memref<8x16xf32, #tpu.memory_space<vmem>>, vector<8x16xf32>
    tpu.vector_store %arg7[%c0_17, %c0_18], %30 {strides = array<i32>} : memref<8x16xf32, #tpu.memory_space<vmem>>, vector<8x16xf32>,
    return
  }
  func.func @transform_0(%arg0: i32) -> (i32, i32) {
    %c0_i32 = arith.constant 0 : i32
    %c0_i32_0 = arith.constant 0 : i32
    return %arg0, %c0_i32 : i32, i32
  }
  func.func @transform_1(%arg0: i32) -> (i32, i32, i32) {
    %c0_i32 = arith.constant 0 : i32
    %c0_i32_0 = arith.constant 0 : i32
    %c0_i32_1 = arith.constant 0 : i32
    return %arg0, %c0_i32, %c0_i32_0 : i32, i32, i32
  }
  func.func @transform_2(%arg0: i32) -> (i32, i32) {
    %c0_i32 = arith.constant 0 : i32
    %c0_i32_0 = arith.constant 0 : i32
    return %arg0, %c0_i32 : i32, i32
  }
  func.func @transform_3(%arg0: i32) -> (i32, i32) {
    %c0_i32 = arith.constant 0 : i32
    %c0_i32_0 = arith.constant 0 : i32
    return %arg0, %c0_i32 : i32, i32
  }
  func.func @transform_4(%arg0: i32) -> (i32, i32) {
    %c0_i32 = arith.constant 0 : i32
    %c0_i32_0 = arith.constant 0 : i32
    return %arg0, %c0_i32 : i32, i32
  }
  func.func @transform_5(%arg0: i32) -> (i32, i32) {
    %c0_i32 = arith.constant 0 : i32
    %c0_i32_0 = arith.constant 0 : i32
    return %arg0, %c0_i32 : i32, i32
  }
  func.func @transform_6(%arg0: i32) -> (i32, i32) {
    %c0_i32 = arith.constant 0 : i32
    %c0_i32_0 = arith.constant 0 : i32
    return %arg0, %c0_i32 : i32, i32
  }
}

module attributes {stable_mosaic.version = 11 : i64} {
  func.func @kernel(%arg0: i32, %arg1: memref<8x16xf32, #tpu.memory_space<vmem>>, %arg2: memref<1x96x8xf32, #tpu.memory_space<vmem>>, %arg3: memref<96x1xf32, #tpu.memory_space<vmem>>, %arg4: memref<96x16xf32, #tpu.memory_space<vmem>>) attributes {dimension_semantics = [#tpu.dimension_semantics<parallel>], iteration_bounds = array<i64: 4>, scalar_prefetch = 0 : i64, scratch_operands = 0 : i64, tpu.core_type = #tpu.core_type<tc>, window_params = [{transform_indices = @transform_0, window_bounds = array<i64: 8, 16>}, {transform_indices = @transform_1, window_bounds = array<i64: 1, 96, 8>}, {transform_indices = @transform_2, window_bounds = array<i64: 96, 1>}, {transform_indices = @transform_3, window_bounds = array<i64: 96, 16>}]} {
    %c0 = arith.constant 0 : index
    %c0_0 = arith.constant 0 : index
    %c0_1 = arith.constant 0 : index
    %0 = vector.load %arg2[%c0, %c0_0, %c0_1] : memref<1x96x8xf32, #tpu.memory_space<vmem>>, vector<1x96x8xf32>
    %1 = vector.shape_cast %0 : vector<1x96x8xf32> to vector<96x8xf32>
    %c0_2 = arith.constant 0 : index
    %c0_3 = arith.constant 0 : index
    %2 = vector.load %arg1[%c0_2, %c0_3] : memref<8x16xf32, #tpu.memory_space<vmem>>, vector<8x16xf32>
    %cst = arith.constant dense<0.000000e+00> : vector<96x16xf32>
    %3 = tpu.matmul %1, %2, %cst {dimension_numbers = #tpu.dot_dimension_numbers<[1], [0], [0], [1], [0, 0, 1, 1], [], []>} : vector<96x8xf32>, vector<8x16xf32>, vector<96x16xf32> -> vector<96x16xf32>
    %c0_4 = arith.constant 0 : index
    %c0_5 = arith.constant 0 : index
    %4 = vector.load %arg3[%c0_4, %c0_5] : memref<96x1xf32, #tpu.memory_space<vmem>>, vector<96x1xf32>
    %5 = vector.broadcast %4 : vector<96x1xf32> to vector<96x16xf32>
    %6 = arith.addf %3, %5 : vector<96x16xf32>
    %c0_6 = arith.constant 0 : index
    %c0_7 = arith.constant 0 : index
    %7 = vector.load %arg4[%c0_6, %c0_7] : memref<96x16xf32, #tpu.memory_space<vmem>>, vector<96x16xf32>
    tpu.vector_store %arg4[%c0_6, %c0_7], %6 {strides = array<i32>} : memref<96x16xf32, #tpu.memory_space<vmem>>, vector<96x16xf32>,
    return
  }
  func.func @transform_0(%arg0: i32) -> (i32, i32) {
    %c0_i32 = arith.constant 0 : i32
    %c0_i32_0 = arith.constant 0 : i32
    return %arg0, %c0_i32 : i32, i32
  }
  func.func @transform_1(%arg0: i32) -> (i32, i32, i32) {
    %c0_i32 = arith.constant 0 : i32
    %c0_i32_0 = arith.constant 0 : i32
    %c0_i32_1 = arith.constant 0 : i32
    return %arg0, %c0_i32, %c0_i32_0 : i32, i32, i32
  }
  func.func @transform_2(%arg0: i32) -> (i32, i32) {
    %c0_i32 = arith.constant 0 : i32
    %c0_i32_0 = arith.constant 0 : i32
    return %arg0, %c0_i32 : i32, i32
  }
  func.func @transform_3(%arg0: i32) -> (i32, i32) {
    %c0_i32 = arith.constant 0 : i32
    %c0_i32_0 = arith.constant 0 : i32
    return %arg0, %c0_i32 : i32, i32
  }
}

module attributes {stable_mosaic.version = 11 : i64} {
  func.func @kernel(%arg0: i32, %arg1: memref<1x4x66xf32, #tpu.memory_space<vmem>>, %arg2: memref<1x8x8x12xf32, #tpu.memory_space<vmem>>, %arg3: memref<8x4xf32, #tpu.memory_space<vmem>>, %arg4: memref<8x1xf32, #tpu.memory_space<vmem>>, %arg5: memref<1x4x64xf32, #tpu.memory_space<vmem>>, %arg6: memref<1x4x64xf32, #tpu.memory_space<vmem>>, %arg7: memref<12x64xf32, #tpu.memory_space<vmem>>, %arg8: memref<4x64xf32, #tpu.memory_space<vmem>>) attributes {dimension_semantics = [#tpu.dimension_semantics<parallel>], iteration_bounds = array<i64: 2>, scalar_prefetch = 0 : i64, scratch_operands = 2 : i64, tpu.core_type = #tpu.core_type<tc>, window_params = [{transform_indices = @transform_0, window_bounds = array<i64: 1, 4, 66>}, {transform_indices = @transform_1, window_bounds = array<i64: 1, 8, 8, 12>}, {pipeline_mode = #tpu.pipeline_mode<synchronous>, transform_indices = @transform_2, window_bounds = array<i64: 8, 4>}, {pipeline_mode = #tpu.pipeline_mode<synchronous>, transform_indices = @transform_3, window_bounds = array<i64: 8, 1>}, {transform_indices = @transform_4, window_bounds = array<i64: 1, 4, 64>}, {transform_indices = @transform_5, window_bounds = array<i64: 1, 4, 64>}]} {
    %c0 = arith.constant 0 : index
    %c0_0 = arith.constant 0 : index
    %c0_1 = arith.constant 0 : index
    %0 = vector.load %arg1[%c0, %c0_0, %c0_1] : memref<1x4x66xf32, #tpu.memory_space<vmem>>, vector<1x4x66xf32>
    %1 = vector.shape_cast %0 : vector<1x4x66xf32> to vector<4x66xf32>
    %2 = vector.extract_strided_slice %1 {offsets = [0, 0], sizes = [4, 64], strides = [1, 1]} : vector<4x66xf32> to vector<4x64xf32>
    %c0_2 = arith.constant 0 : index
    %c0_3 = arith.constant 0 : index
    %3 = vector.load %arg7[%c0_2, %c0_3] : memref<12x64xf32, #tpu.memory_space<vmem>>, vector<4x64xf32>
    tpu.vector_store %arg7[%c0_2, %c0_3], %2 {strides = array<i32>} : memref<12x64xf32, #tpu.memory_space<vmem>>, vector<4x64xf32>,
    %4 = vector.extract_strided_slice %1 {offsets = [0, 1], sizes = [4, 64], strides = [1, 1]} : vector<4x66xf32> to vector<4x64xf32>
    %c4 = arith.constant 4 : index
    %c0_4 = arith.constant 0 : index
    %5 = vector.load %arg7[%c4, %c0_4] : memref<12x64xf32, #tpu.memory_space<vmem>>, vector<4x64xf32>
    tpu.vector_store %arg7[%c4, %c0_4], %4 {strides = array<i32>} : memref<12x64xf32, #tpu.memory_space<vmem>>, vector<4x64xf32>,
    %6 = vector.extract_strided_slice %1 {offsets = [0, 2], sizes = [4, 64], strides = [1, 1]} : vector<4x66xf32> to vector<4x64xf32>
    %c8 = arith.constant 8 : index
    %c0_5 = arith.constant 0 : index
    %7 = vector.load %arg7[%c8, %c0_5] : memref<12x64xf32, #tpu.memory_space<vmem>>, vector<4x64xf32>
    tpu.vector_store %arg7[%c8, %c0_5], %6 {strides = array<i32>} : memref<12x64xf32, #tpu.memory_space<vmem>>, vector<4x64xf32>,
    %c0_6 = arith.constant 0 : index
    %c0_7 = arith.constant 0 : index
    %8 = vector.load %arg7[%c0_6, %c0_7] : memref<12x64xf32, #tpu.memory_space<vmem>>, vector<12x64xf32>
    %c0_8 = arith.constant 0 : index
    %c0_9 = arith.constant 0 : index
    %c0_10 = arith.constant 0 : index
    %c0_11 = arith.constant 0 : index
    %9 = vector.load %arg2[%c0_8, %c0_9, %c0_10, %c0_11] : memref<1x8x8x12xf32, #tpu.memory_space<vmem>>, vector<1x1x8x12xf32>
    %10 = vector.shape_cast %9 : vector<1x1x8x12xf32> to vector<8x12xf32>
    %11 = vector.extract_strided_slice %8 {offsets = [0, 0], sizes = [12, 8], strides = [1, 1]} : vector<12x64xf32> to vector<12x8xf32>
    %cst = arith.constant dense<0.000000e+00> : vector<8x8xf32>
    %12 = tpu.matmul %10, %11, %cst {dimension_numbers = #tpu.dot_dimension_numbers<[1], [0], [0], [1], [0, 0, 1, 1], [], []>} : vector<8x12xf32>, vector<12x8xf32>, vector<8x8xf32> -> vector<8x8xf32>
    %13 = vector.extract_strided_slice %12 {offsets = [0, 0], sizes = [4, 8], strides = [1, 1]} : vector<8x8xf32> to vector<4x8xf32>
    %14 = math.tanh %13 : vector<4x8xf32>
    %15 = vector.extract_strided_slice %12 {offsets = [4, 0], sizes = [4, 8], strides = [1, 1]} : vector<8x8xf32> to vector<4x8xf32>
    %16 = arith.negf %15 : vector<4x8xf32>
    %17 = math.exp %16 : vector<4x8xf32>
    %cst_12 = arith.constant 1.000000e+00 : f32
    %18 = vector.broadcast %cst_12 : f32 to vector<4x8xf32>
    %19 = arith.addf %18, %17 : vector<4x8xf32>
    %20 = arith.divf %18, %19 : vector<4x8xf32>
    %21 = arith.mulf %14, %20 : vector<4x8xf32>
    %c0_13 = arith.constant 0 : index
    %c0_14 = arith.constant 0 : index
    %22 = vector.load %arg8[%c0_13, %c0_14] : memref<4x64xf32, #tpu.memory_space<vmem>>, vector<4x8xf32>
    tpu.vector_store %arg8[%c0_13, %c0_14], %21 {strides = array<i32>} : memref<4x64xf32, #tpu.memory_space<vmem>>, vector<4x8xf32>,
    %c0_15 = arith.constant 0 : index
    %c1 = arith.constant 1 : index
    %c0_16 = arith.constant 0 : index
    %c0_17 = arith.constant 0 : index
    %23 = vector.load %arg2[%c0_15, %c1, %c0_16, %c0_17] : memref<1x8x8x12xf32, #tpu.memory_space<vmem>>, vector<1x1x8x12xf32>
    %24 = vector.shape_cast %23 : vector<1x1x8x12xf32> to vector<8x12xf32>
    %25 = vector.extract_strided_slice %8 {offsets = [0, 8], sizes = [12, 8], strides = [1, 1]} : vector<12x64xf32> to vector<12x8xf32>
    %cst_18 = arith.constant dense<0.000000e+00> : vector<8x8xf32>
    %26 = tpu.matmul %24, %25, %cst_18 {dimension_numbers = #tpu.dot_dimension_numbers<[1], [0], [0], [1], [0, 0, 1, 1], [], []>} : vector<8x12xf32>, vector<12x8xf32>, vector<8x8xf32> -> vector<8x8xf32>
    %27 = vector.extract_strided_slice %26 {offsets = [0, 0], sizes = [4, 8], strides = [1, 1]} : vector<8x8xf32> to vector<4x8xf32>
    %28 = math.tanh %27 : vector<4x8xf32>
    %29 = vector.extract_strided_slice %26 {offsets = [4, 0], sizes = [4, 8], strides = [1, 1]} : vector<8x8xf32> to vector<4x8xf32>
    %30 = arith.negf %29 : vector<4x8xf32>
    %31 = math.exp %30 : vector<4x8xf32>
    %cst_19 = arith.constant 1.000000e+00 : f32
    %32 = vector.broadcast %cst_19 : f32 to vector<4x8xf32>
    %33 = arith.addf %32, %31 : vector<4x8xf32>
    %34 = arith.divf %32, %33 : vector<4x8xf32>
    %35 = arith.mulf %28, %34 : vector<4x8xf32>
    %c0_20 = arith.constant 0 : index
    %c8_21 = arith.constant 8 : index
    %36 = vector.load %arg8[%c0_20, %c8_21] : memref<4x64xf32, #tpu.memory_space<vmem>>, vector<4x8xf32>
    tpu.vector_store %arg8[%c0_20, %c8_21], %35 {strides = array<i32>} : memref<4x64xf32, #tpu.memory_space<vmem>>, vector<4x8xf32>,
    %c0_22 = arith.constant 0 : index
    %c2 = arith.constant 2 : index
    %c0_23 = arith.constant 0 : index
    %c0_24 = arith.constant 0 : index
    %37 = vector.load %arg2[%c0_22, %c2, %c0_23, %c0_24] : memref<1x8x8x12xf32, #tpu.memory_space<vmem>>, vector<1x1x8x12xf32>
    %38 = vector.shape_cast %37 : vector<1x1x8x12xf32> to vector<8x12xf32>
    %39 = vector.extract_strided_slice %8 {offsets = [0, 16], sizes = [12, 8], strides = [1, 1]} : vector<12x64xf32> to vector<12x8xf32>
    %cst_25 = arith.constant dense<0.000000e+00> : vector<8x8xf32>
    %40 = tpu.matmul %38, %39, %cst_25 {dimension_numbers = #tpu.dot_dimension_numbers<[1], [0], [0], [1], [0, 0, 1, 1], [], []>} : vector<8x12xf32>, vector<12x8xf32>, vector<8x8xf32> -> vector<8x8xf32>
    %41 = vector.extract_strided_slice %40 {offsets = [0, 0], sizes = [4, 8], strides = [1, 1]} : vector<8x8xf32> to vector<4x8xf32>
    %42 = math.tanh %41 : vector<4x8xf32>
    %43 = vector.extract_strided_slice %40 {offsets = [4, 0], sizes = [4, 8], strides = [1, 1]} : vector<8x8xf32> to vector<4x8xf32>
    %44 = arith.negf %43 : vector<4x8xf32>
    %45 = math.exp %44 : vector<4x8xf32>
    %cst_26 = arith.constant 1.000000e+00 : f32
    %46 = vector.broadcast %cst_26 : f32 to vector<4x8xf32>
    %47 = arith.addf %46, %45 : vector<4x8xf32>
    %48 = arith.divf %46, %47 : vector<4x8xf32>
    %49 = arith.mulf %42, %48 : vector<4x8xf32>
    %c0_27 = arith.constant 0 : index
    %c16 = arith.constant 16 : index
    %50 = vector.load %arg8[%c0_27, %c16] : memref<4x64xf32, #tpu.memory_space<vmem>>, vector<4x8xf32>
    tpu.vector_store %arg8[%c0_27, %c16], %49 {strides = array<i32>} : memref<4x64xf32, #tpu.memory_space<vmem>>, vector<4x8xf32>,
    %c0_28 = arith.constant 0 : index
    %c3 = arith.constant 3 : index
    %c0_29 = arith.constant 0 : index
    %c0_30 = arith.constant 0 : index
    %51 = vector.load %arg2[%c0_28, %c3, %c0_29, %c0_30] : memref<1x8x8x12xf32, #tpu.memory_space<vmem>>, vector<1x1x8x12xf32>
    %52 = vector.shape_cast %51 : vector<1x1x8x12xf32> to vector<8x12xf32>
    %53 = vector.extract_strided_slice %8 {offsets = [0, 24], sizes = [12, 8], strides = [1, 1]} : vector<12x64xf32> to vector<12x8xf32>
    %cst_31 = arith.constant dense<0.000000e+00> : vector<8x8xf32>
    %54 = tpu.matmul %52, %53, %cst_31 {dimension_numbers = #tpu.dot_dimension_numbers<[1], [0], [0], [1], [0, 0, 1, 1], [], []>} : vector<8x12xf32>, vector<12x8xf32>, vector<8x8xf32> -> vector<8x8xf32>
    %55 = vector.extract_strided_slice %54 {offsets = [0, 0], sizes = [4, 8], strides = [1, 1]} : vector<8x8xf32> to vector<4x8xf32>
    %56 = math.tanh %55 : vector<4x8xf32>
    %57 = vector.extract_strided_slice %54 {offsets = [4, 0], sizes = [4, 8], strides = [1, 1]} : vector<8x8xf32> to vector<4x8xf32>
    %58 = arith.negf %57 : vector<4x8xf32>
    %59 = math.exp %58 : vector<4x8xf32>
    %cst_32 = arith.constant 1.000000e+00 : f32
    %60 = vector.broadcast %cst_32 : f32 to vector<4x8xf32>
    %61 = arith.addf %60, %59 : vector<4x8xf32>
    %62 = arith.divf %60, %61 : vector<4x8xf32>
    %63 = arith.mulf %56, %62 : vector<4x8xf32>
    %c0_33 = arith.constant 0 : index
    %c24 = arith.constant 24 : index
    %64 = vector.load %arg8[%c0_33, %c24] : memref<4x64xf32, #tpu.memory_space<vmem>>, vector<4x8xf32>
    tpu.vector_store %arg8[%c0_33, %c24], %63 {strides = array<i32>} : memref<4x64xf32, #tpu.memory_space<vmem>>, vector<4x8xf32>,
    %c0_34 = arith.constant 0 : index
    %c4_35 = arith.constant 4 : index
    %c0_36 = arith.constant 0 : index
    %c0_37 = arith.constant 0 : index
    %65 = vector.load %arg2[%c0_34, %c4_35, %c0_36, %c0_37] : memref<1x8x8x12xf32, #tpu.memory_space<vmem>>, vector<1x1x8x12xf32>
    %66 = vector.shape_cast %65 : vector<1x1x8x12xf32> to vector<8x12xf32>
    %67 = vector.extract_strided_slice %8 {offsets = [0, 32], sizes = [12, 8], strides = [1, 1]} : vector<12x64xf32> to vector<12x8xf32>
    %cst_38 = arith.constant dense<0.000000e+00> : vector<8x8xf32>
    %68 = tpu.matmul %66, %67, %cst_38 {dimension_numbers = #tpu.dot_dimension_numbers<[1], [0], [0], [1], [0, 0, 1, 1], [], []>} : vector<8x12xf32>, vector<12x8xf32>, vector<8x8xf32> -> vector<8x8xf32>
    %69 = vector.extract_strided_slice %68 {offsets = [0, 0], sizes = [4, 8], strides = [1, 1]} : vector<8x8xf32> to vector<4x8xf32>
    %70 = math.tanh %69 : vector<4x8xf32>
    %71 = vector.extract_strided_slice %68 {offsets = [4, 0], sizes = [4, 8], strides = [1, 1]} : vector<8x8xf32> to vector<4x8xf32>
    %72 = arith.negf %71 : vector<4x8xf32>
    %73 = math.exp %72 : vector<4x8xf32>
    %cst_39 = arith.constant 1.000000e+00 : f32
    %74 = vector.broadcast %cst_39 : f32 to vector<4x8xf32>
    %75 = arith.addf %74, %73 : vector<4x8xf32>
    %76 = arith.divf %74, %75 : vector<4x8xf32>
    %77 = arith.mulf %70, %76 : vector<4x8xf32>
    %c0_40 = arith.constant 0 : index
    %c32 = arith.constant 32 : index
    %78 = vector.load %arg8[%c0_40, %c32] : memref<4x64xf32, #tpu.memory_space<vmem>>, vector<4x8xf32>
    tpu.vector_store %arg8[%c0_40, %c32], %77 {strides = array<i32>} : memref<4x64xf32, #tpu.memory_space<vmem>>, vector<4x8xf32>,
    %c0_41 = arith.constant 0 : index
    %c5 = arith.constant 5 : index
    %c0_42 = arith.constant 0 : index
    %c0_43 = arith.constant 0 : index
    %79 = vector.load %arg2[%c0_41, %c5, %c0_42, %c0_43] : memref<1x8x8x12xf32, #tpu.memory_space<vmem>>, vector<1x1x8x12xf32>
    %80 = vector.shape_cast %79 : vector<1x1x8x12xf32> to vector<8x12xf32>
    %81 = vector.extract_strided_slice %8 {offsets = [0, 40], sizes = [12, 8], strides = [1, 1]} : vector<12x64xf32> to vector<12x8xf32>
    %cst_44 = arith.constant dense<0.000000e+00> : vector<8x8xf32>
    %82 = tpu.matmul %80, %81, %cst_44 {dimension_numbers = #tpu.dot_dimension_numbers<[1], [0], [0], [1], [0, 0, 1, 1], [], []>} : vector<8x12xf32>, vector<12x8xf32>, vector<8x8xf32> -> vector<8x8xf32>
    %83 = vector.extract_strided_slice %82 {offsets = [0, 0], sizes = [4, 8], strides = [1, 1]} : vector<8x8xf32> to vector<4x8xf32>
    %84 = math.tanh %83 : vector<4x8xf32>
    %85 = vector.extract_strided_slice %82 {offsets = [4, 0], sizes = [4, 8], strides = [1, 1]} : vector<8x8xf32> to vector<4x8xf32>
    %86 = arith.negf %85 : vector<4x8xf32>
    %87 = math.exp %86 : vector<4x8xf32>
    %cst_45 = arith.constant 1.000000e+00 : f32
    %88 = vector.broadcast %cst_45 : f32 to vector<4x8xf32>
    %89 = arith.addf %88, %87 : vector<4x8xf32>
    %90 = arith.divf %88, %89 : vector<4x8xf32>
    %91 = arith.mulf %84, %90 : vector<4x8xf32>
    %c0_46 = arith.constant 0 : index
    %c40 = arith.constant 40 : index
    %92 = vector.load %arg8[%c0_46, %c40] : memref<4x64xf32, #tpu.memory_space<vmem>>, vector<4x8xf32>
    tpu.vector_store %arg8[%c0_46, %c40], %91 {strides = array<i32>} : memref<4x64xf32, #tpu.memory_space<vmem>>, vector<4x8xf32>,
    %c0_47 = arith.constant 0 : index
    %c6 = arith.constant 6 : index
    %c0_48 = arith.constant 0 : index
    %c0_49 = arith.constant 0 : index
    %93 = vector.load %arg2[%c0_47, %c6, %c0_48, %c0_49] : memref<1x8x8x12xf32, #tpu.memory_space<vmem>>, vector<1x1x8x12xf32>
    %94 = vector.shape_cast %93 : vector<1x1x8x12xf32> to vector<8x12xf32>
    %95 = vector.extract_strided_slice %8 {offsets = [0, 48], sizes = [12, 8], strides = [1, 1]} : vector<12x64xf32> to vector<12x8xf32>
    %cst_50 = arith.constant dense<0.000000e+00> : vector<8x8xf32>
    %96 = tpu.matmul %94, %95, %cst_50 {dimension_numbers = #tpu.dot_dimension_numbers<[1], [0], [0], [1], [0, 0, 1, 1], [], []>} : vector<8x12xf32>, vector<12x8xf32>, vector<8x8xf32> -> vector<8x8xf32>
    %97 = vector.extract_strided_slice %96 {offsets = [0, 0], sizes = [4, 8], strides = [1, 1]} : vector<8x8xf32> to vector<4x8xf32>
    %98 = math.tanh %97 : vector<4x8xf32>
    %99 = vector.extract_strided_slice %96 {offsets = [4, 0], sizes = [4, 8], strides = [1, 1]} : vector<8x8xf32> to vector<4x8xf32>
    %100 = arith.negf %99 : vector<4x8xf32>
    %101 = math.exp %100 : vector<4x8xf32>
    %cst_51 = arith.constant 1.000000e+00 : f32
    %102 = vector.broadcast %cst_51 : f32 to vector<4x8xf32>
    %103 = arith.addf %102, %101 : vector<4x8xf32>
    %104 = arith.divf %102, %103 : vector<4x8xf32>
    %105 = arith.mulf %98, %104 : vector<4x8xf32>
    %c0_52 = arith.constant 0 : index
    %c48 = arith.constant 48 : index
    %106 = vector.load %arg8[%c0_52, %c48] : memref<4x64xf32, #tpu.memory_space<vmem>>, vector<4x8xf32>
    tpu.vector_store %arg8[%c0_52, %c48], %105 {strides = array<i32>} : memref<4x64xf32, #tpu.memory_space<vmem>>, vector<4x8xf32>,
    %c0_53 = arith.constant 0 : index
    %c7 = arith.constant 7 : index
    %c0_54 = arith.constant 0 : index
    %c0_55 = arith.constant 0 : index
    %107 = vector.load %arg2[%c0_53, %c7, %c0_54, %c0_55] : memref<1x8x8x12xf32, #tpu.memory_space<vmem>>, vector<1x1x8x12xf32>
    %108 = vector.shape_cast %107 : vector<1x1x8x12xf32> to vector<8x12xf32>
    %109 = vector.extract_strided_slice %8 {offsets = [0, 56], sizes = [12, 8], strides = [1, 1]} : vector<12x64xf32> to vector<12x8xf32>
    %cst_56 = arith.constant dense<0.000000e+00> : vector<8x8xf32>
    %110 = tpu.matmul %108, %109, %cst_56 {dimension_numbers = #tpu.dot_dimension_numbers<[1], [0], [0], [1], [0, 0, 1, 1], [], []>} : vector<8x12xf32>, vector<12x8xf32>, vector<8x8xf32> -> vector<8x8xf32>
    %111 = vector.extract_strided_slice %110 {offsets = [0, 0], sizes = [4, 8], strides = [1, 1]} : vector<8x8xf32> to vector<4x8xf32>
    %112 = math.tanh %111 : vector<4x8xf32>
    %113 = vector.extract_strided_slice %110 {offsets = [4, 0], sizes = [4, 8], strides = [1, 1]} : vector<8x8xf32> to vector<4x8xf32>
    %114 = arith.negf %113 : vector<4x8xf32>
    %115 = math.exp %114 : vector<4x8xf32>
    %cst_57 = arith.constant 1.000000e+00 : f32
    %116 = vector.broadcast %cst_57 : f32 to vector<4x8xf32>
    %117 = arith.addf %116, %115 : vector<4x8xf32>
    %118 = arith.divf %116, %117 : vector<4x8xf32>
    %119 = arith.mulf %112, %118 : vector<4x8xf32>
    %c0_58 = arith.constant 0 : index
    %c56 = arith.constant 56 : index
    %120 = vector.load %arg8[%c0_58, %c56] : memref<4x64xf32, #tpu.memory_space<vmem>>, vector<4x8xf32>
    tpu.vector_store %arg8[%c0_58, %c56], %119 {strides = array<i32>} : memref<4x64xf32, #tpu.memory_space<vmem>>, vector<4x8xf32>,
    %c0_59 = arith.constant 0 : index
    %c0_60 = arith.constant 0 : index
    %121 = vector.load %arg3[%c0_59, %c0_60] : memref<8x4xf32, #tpu.memory_space<vmem>>, vector<8x4xf32>
    %c0_61 = arith.constant 0 : index
    %c0_62 = arith.constant 0 : index
    %122 = vector.load %arg8[%c0_61, %c0_62] : memref<4x64xf32, #tpu.memory_space<vmem>>, vector<4x64xf32>
    %cst_63 = arith.constant dense<0.000000e+00> : vector<8x64xf32>
    %123 = tpu.matmul %121, %122, %cst_63 {dimension_numbers = #tpu.dot_dimension_numbers<[1], [0], [0], [1], [0, 0, 1, 1], [], []>} : vector<8x4xf32>, vector<4x64xf32>, vector<8x64xf32> -> vector<8x64xf32>
    %c0_64 = arith.constant 0 : index
    %c0_65 = arith.constant 0 : index
    %124 = vector.load %arg4[%c0_64, %c0_65] : memref<8x1xf32, #tpu.memory_space<vmem>>, vector<8x1xf32>
    %125 = vector.broadcast %124 : vector<8x1xf32> to vector<8x64xf32>
    %126 = arith.addf %123, %125 : vector<8x64xf32>
    %127 = vector.extract_strided_slice %126 {offsets = [0, 0], sizes = [4, 64], strides = [1, 1]} : vector<8x64xf32> to vector<4x64xf32>
    %128 = vector.extract_strided_slice %1 {offsets = [0, 1], sizes = [4, 64], strides = [1, 1]} : vector<4x66xf32> to vector<4x64xf32>
    %129 = arith.addf %127, %128 : vector<4x64xf32>
    %c0_66 = arith.constant 0 : index
    %c0_67 = arith.constant 0 : index
    %c0_68 = arith.constant 0 : index
    %130 = vector.load %arg5[%c0_66, %c0_67, %c0_68] : memref<1x4x64xf32, #tpu.memory_space<vmem>>, vector<1x4x64xf32>
    %131 = vector.shape_cast %130 : vector<1x4x64xf32> to vector<4x64xf32>
    %132 = vector.shape_cast %129 : vector<4x64xf32> to vector<1x4x64xf32>
    tpu.vector_store %arg5[%c0_66, %c0_67, %c0_68], %132 {strides = array<i32>} : memref<1x4x64xf32, #tpu.memory_space<vmem>>, vector<1x4x64xf32>,
    %133 = vector.extract_strided_slice %126 {offsets = [4, 0], sizes = [4, 64], strides = [1, 1]} : vector<8x64xf32> to vector<4x64xf32>
    %c0_69 = arith.constant 0 : index
    %c0_70 = arith.constant 0 : index
    %c0_71 = arith.constant 0 : index
    %134 = vector.load %arg6[%c0_69, %c0_70, %c0_71] : memref<1x4x64xf32, #tpu.memory_space<vmem>>, vector<1x4x64xf32>
    %135 = vector.shape_cast %134 : vector<1x4x64xf32> to vector<4x64xf32>
    %136 = vector.shape_cast %133 : vector<4x64xf32> to vector<1x4x64xf32>
    tpu.vector_store %arg6[%c0_69, %c0_70, %c0_71], %136 {strides = array<i32>} : memref<1x4x64xf32, #tpu.memory_space<vmem>>, vector<1x4x64xf32>,
    return
  }
  func.func @transform_0(%arg0: i32) -> (i32, i32, i32) {
    %c0_i32 = arith.constant 0 : i32
    %c0_i32_0 = arith.constant 0 : i32
    %c0_i32_1 = arith.constant 0 : i32
    return %arg0, %c0_i32, %c0_i32_0 : i32, i32, i32
  }
  func.func @transform_1(%arg0: i32) -> (i32, i32, i32, i32) {
    %c0_i32 = arith.constant 0 : i32
    %c0_i32_0 = arith.constant 0 : i32
    %c0_i32_1 = arith.constant 0 : i32
    %c0_i32_2 = arith.constant 0 : i32
    return %arg0, %c0_i32, %c0_i32_0, %c0_i32_1 : i32, i32, i32, i32
  }
  func.func @transform_2(%arg0: i32) -> (i32, i32) {
    %c0_i32 = arith.constant 0 : i32
    %c0_i32_0 = arith.constant 0 : i32
    %c0_i32_1 = arith.constant 0 : i32
    return %c0_i32, %c0_i32_0 : i32, i32
  }
  func.func @transform_3(%arg0: i32) -> (i32, i32) {
    %c0_i32 = arith.constant 0 : i32
    %c0_i32_0 = arith.constant 0 : i32
    %c0_i32_1 = arith.constant 0 : i32
    return %c0_i32, %c0_i32_0 : i32, i32
  }
  func.func @transform_4(%arg0: i32) -> (i32, i32, i32) {
    %c0_i32 = arith.constant 0 : i32
    %c0_i32_0 = arith.constant 0 : i32
    %c0_i32_1 = arith.constant 0 : i32
    return %arg0, %c0_i32, %c0_i32_0 : i32, i32, i32
  }
  func.func @transform_5(%arg0: i32) -> (i32, i32, i32) {
    %c0_i32 = arith.constant 0 : i32
    %c0_i32_0 = arith.constant 0 : i32
    %c0_i32_1 = arith.constant 0 : i32
    return %arg0, %c0_i32, %c0_i32_0 : i32, i32, i32
  }
}

module attributes {stable_mosaic.version = 11 : i64} {
  func.func @kernel(%arg0: i32, %arg1: memref<1x4x68xf32, #tpu.memory_space<vmem>>, %arg2: memref<1x8x8x12xf32, #tpu.memory_space<vmem>>, %arg3: memref<8x4xf32, #tpu.memory_space<vmem>>, %arg4: memref<8x1xf32, #tpu.memory_space<vmem>>, %arg5: memref<1x4x64xf32, #tpu.memory_space<vmem>>, %arg6: memref<1x4x64xf32, #tpu.memory_space<vmem>>, %arg7: memref<1x4x64xf32, #tpu.memory_space<vmem>>, %arg8: memref<12x64xf32, #tpu.memory_space<vmem>>, %arg9: memref<4x64xf32, #tpu.memory_space<vmem>>) attributes {dimension_semantics = [#tpu.dimension_semantics<parallel>], iteration_bounds = array<i64: 2>, scalar_prefetch = 0 : i64, scratch_operands = 2 : i64, tpu.core_type = #tpu.core_type<tc>, window_params = [{transform_indices = @transform_0, window_bounds = array<i64: 1, 4, 68>}, {transform_indices = @transform_1, window_bounds = array<i64: 1, 8, 8, 12>}, {pipeline_mode = #tpu.pipeline_mode<synchronous>, transform_indices = @transform_2, window_bounds = array<i64: 8, 4>}, {pipeline_mode = #tpu.pipeline_mode<synchronous>, transform_indices = @transform_3, window_bounds = array<i64: 8, 1>}, {transform_indices = @transform_4, window_bounds = array<i64: 1, 4, 64>}, {transform_indices = @transform_5, window_bounds = array<i64: 1, 4, 64>}, {transform_indices = @transform_6, window_bounds = array<i64: 1, 4, 64>}]} {
    %c0 = arith.constant 0 : index
    %c0_0 = arith.constant 0 : index
    %c0_1 = arith.constant 0 : index
    %0 = vector.load %arg1[%c0, %c0_0, %c0_1] : memref<1x4x68xf32, #tpu.memory_space<vmem>>, vector<1x4x68xf32>
    %1 = vector.shape_cast %0 : vector<1x4x68xf32> to vector<4x68xf32>
    %2 = vector.extract_strided_slice %1 {offsets = [0, 0], sizes = [4, 64], strides = [1, 1]} : vector<4x68xf32> to vector<4x64xf32>
    %c0_2 = arith.constant 0 : index
    %c0_3 = arith.constant 0 : index
    %3 = vector.load %arg8[%c0_2, %c0_3] : memref<12x64xf32, #tpu.memory_space<vmem>>, vector<4x64xf32>
    tpu.vector_store %arg8[%c0_2, %c0_3], %2 {strides = array<i32>} : memref<12x64xf32, #tpu.memory_space<vmem>>, vector<4x64xf32>,
    %4 = vector.extract_strided_slice %1 {offsets = [0, 2], sizes = [4, 64], strides = [1, 1]} : vector<4x68xf32> to vector<4x64xf32>
    %c4 = arith.constant 4 : index
    %c0_4 = arith.constant 0 : index
    %5 = vector.load %arg8[%c4, %c0_4] : memref<12x64xf32, #tpu.memory_space<vmem>>, vector<4x64xf32>
    tpu.vector_store %arg8[%c4, %c0_4], %4 {strides = array<i32>} : memref<12x64xf32, #tpu.memory_space<vmem>>, vector<4x64xf32>,
    %6 = vector.extract_strided_slice %1 {offsets = [0, 4], sizes = [4, 64], strides = [1, 1]} : vector<4x68xf32> to vector<4x64xf32>
    %c8 = arith.constant 8 : index
    %c0_5 = arith.constant 0 : index
    %7 = vector.load %arg8[%c8, %c0_5] : memref<12x64xf32, #tpu.memory_space<vmem>>, vector<4x64xf32>
    tpu.vector_store %arg8[%c8, %c0_5], %6 {strides = array<i32>} : memref<12x64xf32, #tpu.memory_space<vmem>>, vector<4x64xf32>,
    %c0_6 = arith.constant 0 : index
    %c0_7 = arith.constant 0 : index
    %8 = vector.load %arg8[%c0_6, %c0_7] : memref<12x64xf32, #tpu.memory_space<vmem>>, vector<12x64xf32>
    %c0_8 = arith.constant 0 : index
    %c0_9 = arith.constant 0 : index
    %c0_10 = arith.constant 0 : index
    %c0_11 = arith.constant 0 : index
    %9 = vector.load %arg2[%c0_8, %c0_9, %c0_10, %c0_11] : memref<1x8x8x12xf32, #tpu.memory_space<vmem>>, vector<1x1x8x12xf32>
    %10 = vector.shape_cast %9 : vector<1x1x8x12xf32> to vector<8x12xf32>
    %11 = vector.extract_strided_slice %8 {offsets = [0, 0], sizes = [12, 8], strides = [1, 1]} : vector<12x64xf32> to vector<12x8xf32>
    %cst = arith.constant dense<0.000000e+00> : vector<8x8xf32>
    %12 = tpu.matmul %10, %11, %cst {dimension_numbers = #tpu.dot_dimension_numbers<[1], [0], [0], [1], [0, 0, 1, 1], [], []>} : vector<8x12xf32>, vector<12x8xf32>, vector<8x8xf32> -> vector<8x8xf32>
    %13 = vector.extract_strided_slice %12 {offsets = [0, 0], sizes = [4, 8], strides = [1, 1]} : vector<8x8xf32> to vector<4x8xf32>
    %14 = math.tanh %13 : vector<4x8xf32>
    %15 = vector.extract_strided_slice %12 {offsets = [4, 0], sizes = [4, 8], strides = [1, 1]} : vector<8x8xf32> to vector<4x8xf32>
    %16 = arith.negf %15 : vector<4x8xf32>
    %17 = math.exp %16 : vector<4x8xf32>
    %cst_12 = arith.constant 1.000000e+00 : f32
    %18 = vector.broadcast %cst_12 : f32 to vector<4x8xf32>
    %19 = arith.addf %18, %17 : vector<4x8xf32>
    %20 = arith.divf %18, %19 : vector<4x8xf32>
    %21 = arith.mulf %14, %20 : vector<4x8xf32>
    %c0_13 = arith.constant 0 : index
    %c0_14 = arith.constant 0 : index
    %22 = vector.load %arg9[%c0_13, %c0_14] : memref<4x64xf32, #tpu.memory_space<vmem>>, vector<4x8xf32>
    tpu.vector_store %arg9[%c0_13, %c0_14], %21 {strides = array<i32>} : memref<4x64xf32, #tpu.memory_space<vmem>>, vector<4x8xf32>,
    %c0_15 = arith.constant 0 : index
    %c1 = arith.constant 1 : index
    %c0_16 = arith.constant 0 : index
    %c0_17 = arith.constant 0 : index
    %23 = vector.load %arg2[%c0_15, %c1, %c0_16, %c0_17] : memref<1x8x8x12xf32, #tpu.memory_space<vmem>>, vector<1x1x8x12xf32>
    %24 = vector.shape_cast %23 : vector<1x1x8x12xf32> to vector<8x12xf32>
    %25 = vector.extract_strided_slice %8 {offsets = [0, 8], sizes = [12, 8], strides = [1, 1]} : vector<12x64xf32> to vector<12x8xf32>
    %cst_18 = arith.constant dense<0.000000e+00> : vector<8x8xf32>
    %26 = tpu.matmul %24, %25, %cst_18 {dimension_numbers = #tpu.dot_dimension_numbers<[1], [0], [0], [1], [0, 0, 1, 1], [], []>} : vector<8x12xf32>, vector<12x8xf32>, vector<8x8xf32> -> vector<8x8xf32>
    %27 = vector.extract_strided_slice %26 {offsets = [0, 0], sizes = [4, 8], strides = [1, 1]} : vector<8x8xf32> to vector<4x8xf32>
    %28 = math.tanh %27 : vector<4x8xf32>
    %29 = vector.extract_strided_slice %26 {offsets = [4, 0], sizes = [4, 8], strides = [1, 1]} : vector<8x8xf32> to vector<4x8xf32>
    %30 = arith.negf %29 : vector<4x8xf32>
    %31 = math.exp %30 : vector<4x8xf32>
    %cst_19 = arith.constant 1.000000e+00 : f32
    %32 = vector.broadcast %cst_19 : f32 to vector<4x8xf32>
    %33 = arith.addf %32, %31 : vector<4x8xf32>
    %34 = arith.divf %32, %33 : vector<4x8xf32>
    %35 = arith.mulf %28, %34 : vector<4x8xf32>
    %c0_20 = arith.constant 0 : index
    %c8_21 = arith.constant 8 : index
    %36 = vector.load %arg9[%c0_20, %c8_21] : memref<4x64xf32, #tpu.memory_space<vmem>>, vector<4x8xf32>
    tpu.vector_store %arg9[%c0_20, %c8_21], %35 {strides = array<i32>} : memref<4x64xf32, #tpu.memory_space<vmem>>, vector<4x8xf32>,
    %c0_22 = arith.constant 0 : index
    %c2 = arith.constant 2 : index
    %c0_23 = arith.constant 0 : index
    %c0_24 = arith.constant 0 : index
    %37 = vector.load %arg2[%c0_22, %c2, %c0_23, %c0_24] : memref<1x8x8x12xf32, #tpu.memory_space<vmem>>, vector<1x1x8x12xf32>
    %38 = vector.shape_cast %37 : vector<1x1x8x12xf32> to vector<8x12xf32>
    %39 = vector.extract_strided_slice %8 {offsets = [0, 16], sizes = [12, 8], strides = [1, 1]} : vector<12x64xf32> to vector<12x8xf32>
    %cst_25 = arith.constant dense<0.000000e+00> : vector<8x8xf32>
    %40 = tpu.matmul %38, %39, %cst_25 {dimension_numbers = #tpu.dot_dimension_numbers<[1], [0], [0], [1], [0, 0, 1, 1], [], []>} : vector<8x12xf32>, vector<12x8xf32>, vector<8x8xf32> -> vector<8x8xf32>
    %41 = vector.extract_strided_slice %40 {offsets = [0, 0], sizes = [4, 8], strides = [1, 1]} : vector<8x8xf32> to vector<4x8xf32>
    %42 = math.tanh %41 : vector<4x8xf32>
    %43 = vector.extract_strided_slice %40 {offsets = [4, 0], sizes = [4, 8], strides = [1, 1]} : vector<8x8xf32> to vector<4x8xf32>
    %44 = arith.negf %43 : vector<4x8xf32>
    %45 = math.exp %44 : vector<4x8xf32>
    %cst_26 = arith.constant 1.000000e+00 : f32
    %46 = vector.broadcast %cst_26 : f32 to vector<4x8xf32>
    %47 = arith.addf %46, %45 : vector<4x8xf32>
    %48 = arith.divf %46, %47 : vector<4x8xf32>
    %49 = arith.mulf %42, %48 : vector<4x8xf32>
    %c0_27 = arith.constant 0 : index
    %c16 = arith.constant 16 : index
    %50 = vector.load %arg9[%c0_27, %c16] : memref<4x64xf32, #tpu.memory_space<vmem>>, vector<4x8xf32>
    tpu.vector_store %arg9[%c0_27, %c16], %49 {strides = array<i32>} : memref<4x64xf32, #tpu.memory_space<vmem>>, vector<4x8xf32>,
    %c0_28 = arith.constant 0 : index
    %c3 = arith.constant 3 : index
    %c0_29 = arith.constant 0 : index
    %c0_30 = arith.constant 0 : index
    %51 = vector.load %arg2[%c0_28, %c3, %c0_29, %c0_30] : memref<1x8x8x12xf32, #tpu.memory_space<vmem>>, vector<1x1x8x12xf32>
    %52 = vector.shape_cast %51 : vector<1x1x8x12xf32> to vector<8x12xf32>
    %53 = vector.extract_strided_slice %8 {offsets = [0, 24], sizes = [12, 8], strides = [1, 1]} : vector<12x64xf32> to vector<12x8xf32>
    %cst_31 = arith.constant dense<0.000000e+00> : vector<8x8xf32>
    %54 = tpu.matmul %52, %53, %cst_31 {dimension_numbers = #tpu.dot_dimension_numbers<[1], [0], [0], [1], [0, 0, 1, 1], [], []>} : vector<8x12xf32>, vector<12x8xf32>, vector<8x8xf32> -> vector<8x8xf32>
    %55 = vector.extract_strided_slice %54 {offsets = [0, 0], sizes = [4, 8], strides = [1, 1]} : vector<8x8xf32> to vector<4x8xf32>
    %56 = math.tanh %55 : vector<4x8xf32>
    %57 = vector.extract_strided_slice %54 {offsets = [4, 0], sizes = [4, 8], strides = [1, 1]} : vector<8x8xf32> to vector<4x8xf32>
    %58 = arith.negf %57 : vector<4x8xf32>
    %59 = math.exp %58 : vector<4x8xf32>
    %cst_32 = arith.constant 1.000000e+00 : f32
    %60 = vector.broadcast %cst_32 : f32 to vector<4x8xf32>
    %61 = arith.addf %60, %59 : vector<4x8xf32>
    %62 = arith.divf %60, %61 : vector<4x8xf32>
    %63 = arith.mulf %56, %62 : vector<4x8xf32>
    %c0_33 = arith.constant 0 : index
    %c24 = arith.constant 24 : index
    %64 = vector.load %arg9[%c0_33, %c24] : memref<4x64xf32, #tpu.memory_space<vmem>>, vector<4x8xf32>
    tpu.vector_store %arg9[%c0_33, %c24], %63 {strides = array<i32>} : memref<4x64xf32, #tpu.memory_space<vmem>>, vector<4x8xf32>,
    %c0_34 = arith.constant 0 : index
    %c4_35 = arith.constant 4 : index
    %c0_36 = arith.constant 0 : index
    %c0_37 = arith.constant 0 : index
    %65 = vector.load %arg2[%c0_34, %c4_35, %c0_36, %c0_37] : memref<1x8x8x12xf32, #tpu.memory_space<vmem>>, vector<1x1x8x12xf32>
    %66 = vector.shape_cast %65 : vector<1x1x8x12xf32> to vector<8x12xf32>
    %67 = vector.extract_strided_slice %8 {offsets = [0, 32], sizes = [12, 8], strides = [1, 1]} : vector<12x64xf32> to vector<12x8xf32>
    %cst_38 = arith.constant dense<0.000000e+00> : vector<8x8xf32>
    %68 = tpu.matmul %66, %67, %cst_38 {dimension_numbers = #tpu.dot_dimension_numbers<[1], [0], [0], [1], [0, 0, 1, 1], [], []>} : vector<8x12xf32>, vector<12x8xf32>, vector<8x8xf32> -> vector<8x8xf32>
    %69 = vector.extract_strided_slice %68 {offsets = [0, 0], sizes = [4, 8], strides = [1, 1]} : vector<8x8xf32> to vector<4x8xf32>
    %70 = math.tanh %69 : vector<4x8xf32>
    %71 = vector.extract_strided_slice %68 {offsets = [4, 0], sizes = [4, 8], strides = [1, 1]} : vector<8x8xf32> to vector<4x8xf32>
    %72 = arith.negf %71 : vector<4x8xf32>
    %73 = math.exp %72 : vector<4x8xf32>
    %cst_39 = arith.constant 1.000000e+00 : f32
    %74 = vector.broadcast %cst_39 : f32 to vector<4x8xf32>
    %75 = arith.addf %74, %73 : vector<4x8xf32>
    %76 = arith.divf %74, %75 : vector<4x8xf32>
    %77 = arith.mulf %70, %76 : vector<4x8xf32>
    %c0_40 = arith.constant 0 : index
    %c32 = arith.constant 32 : index
    %78 = vector.load %arg9[%c0_40, %c32] : memref<4x64xf32, #tpu.memory_space<vmem>>, vector<4x8xf32>
    tpu.vector_store %arg9[%c0_40, %c32], %77 {strides = array<i32>} : memref<4x64xf32, #tpu.memory_space<vmem>>, vector<4x8xf32>,
    %c0_41 = arith.constant 0 : index
    %c5 = arith.constant 5 : index
    %c0_42 = arith.constant 0 : index
    %c0_43 = arith.constant 0 : index
    %79 = vector.load %arg2[%c0_41, %c5, %c0_42, %c0_43] : memref<1x8x8x12xf32, #tpu.memory_space<vmem>>, vector<1x1x8x12xf32>
    %80 = vector.shape_cast %79 : vector<1x1x8x12xf32> to vector<8x12xf32>
    %81 = vector.extract_strided_slice %8 {offsets = [0, 40], sizes = [12, 8], strides = [1, 1]} : vector<12x64xf32> to vector<12x8xf32>
    %cst_44 = arith.constant dense<0.000000e+00> : vector<8x8xf32>
    %82 = tpu.matmul %80, %81, %cst_44 {dimension_numbers = #tpu.dot_dimension_numbers<[1], [0], [0], [1], [0, 0, 1, 1], [], []>} : vector<8x12xf32>, vector<12x8xf32>, vector<8x8xf32> -> vector<8x8xf32>
    %83 = vector.extract_strided_slice %82 {offsets = [0, 0], sizes = [4, 8], strides = [1, 1]} : vector<8x8xf32> to vector<4x8xf32>
    %84 = math.tanh %83 : vector<4x8xf32>
    %85 = vector.extract_strided_slice %82 {offsets = [4, 0], sizes = [4, 8], strides = [1, 1]} : vector<8x8xf32> to vector<4x8xf32>
    %86 = arith.negf %85 : vector<4x8xf32>
    %87 = math.exp %86 : vector<4x8xf32>
    %cst_45 = arith.constant 1.000000e+00 : f32
    %88 = vector.broadcast %cst_45 : f32 to vector<4x8xf32>
    %89 = arith.addf %88, %87 : vector<4x8xf32>
    %90 = arith.divf %88, %89 : vector<4x8xf32>
    %91 = arith.mulf %84, %90 : vector<4x8xf32>
    %c0_46 = arith.constant 0 : index
    %c40 = arith.constant 40 : index
    %92 = vector.load %arg9[%c0_46, %c40] : memref<4x64xf32, #tpu.memory_space<vmem>>, vector<4x8xf32>
    tpu.vector_store %arg9[%c0_46, %c40], %91 {strides = array<i32>} : memref<4x64xf32, #tpu.memory_space<vmem>>, vector<4x8xf32>,
    %c0_47 = arith.constant 0 : index
    %c6 = arith.constant 6 : index
    %c0_48 = arith.constant 0 : index
    %c0_49 = arith.constant 0 : index
    %93 = vector.load %arg2[%c0_47, %c6, %c0_48, %c0_49] : memref<1x8x8x12xf32, #tpu.memory_space<vmem>>, vector<1x1x8x12xf32>
    %94 = vector.shape_cast %93 : vector<1x1x8x12xf32> to vector<8x12xf32>
    %95 = vector.extract_strided_slice %8 {offsets = [0, 48], sizes = [12, 8], strides = [1, 1]} : vector<12x64xf32> to vector<12x8xf32>
    %cst_50 = arith.constant dense<0.000000e+00> : vector<8x8xf32>
    %96 = tpu.matmul %94, %95, %cst_50 {dimension_numbers = #tpu.dot_dimension_numbers<[1], [0], [0], [1], [0, 0, 1, 1], [], []>} : vector<8x12xf32>, vector<12x8xf32>, vector<8x8xf32> -> vector<8x8xf32>
    %97 = vector.extract_strided_slice %96 {offsets = [0, 0], sizes = [4, 8], strides = [1, 1]} : vector<8x8xf32> to vector<4x8xf32>
    %98 = math.tanh %97 : vector<4x8xf32>
    %99 = vector.extract_strided_slice %96 {offsets = [4, 0], sizes = [4, 8], strides = [1, 1]} : vector<8x8xf32> to vector<4x8xf32>
    %100 = arith.negf %99 : vector<4x8xf32>
    %101 = math.exp %100 : vector<4x8xf32>
    %cst_51 = arith.constant 1.000000e+00 : f32
    %102 = vector.broadcast %cst_51 : f32 to vector<4x8xf32>
    %103 = arith.addf %102, %101 : vector<4x8xf32>
    %104 = arith.divf %102, %103 : vector<4x8xf32>
    %105 = arith.mulf %98, %104 : vector<4x8xf32>
    %c0_52 = arith.constant 0 : index
    %c48 = arith.constant 48 : index
    %106 = vector.load %arg9[%c0_52, %c48] : memref<4x64xf32, #tpu.memory_space<vmem>>, vector<4x8xf32>
    tpu.vector_store %arg9[%c0_52, %c48], %105 {strides = array<i32>} : memref<4x64xf32, #tpu.memory_space<vmem>>, vector<4x8xf32>,
    %c0_53 = arith.constant 0 : index
    %c7 = arith.constant 7 : index
    %c0_54 = arith.constant 0 : index
    %c0_55 = arith.constant 0 : index
    %107 = vector.load %arg2[%c0_53, %c7, %c0_54, %c0_55] : memref<1x8x8x12xf32, #tpu.memory_space<vmem>>, vector<1x1x8x12xf32>
    %108 = vector.shape_cast %107 : vector<1x1x8x12xf32> to vector<8x12xf32>
    %109 = vector.extract_strided_slice %8 {offsets = [0, 56], sizes = [12, 8], strides = [1, 1]} : vector<12x64xf32> to vector<12x8xf32>
    %cst_56 = arith.constant dense<0.000000e+00> : vector<8x8xf32>
    %110 = tpu.matmul %108, %109, %cst_56 {dimension_numbers = #tpu.dot_dimension_numbers<[1], [0], [0], [1], [0, 0, 1, 1], [], []>} : vector<8x12xf32>, vector<12x8xf32>, vector<8x8xf32> -> vector<8x8xf32>
    %111 = vector.extract_strided_slice %110 {offsets = [0, 0], sizes = [4, 8], strides = [1, 1]} : vector<8x8xf32> to vector<4x8xf32>
    %112 = math.tanh %111 : vector<4x8xf32>
    %113 = vector.extract_strided_slice %110 {offsets = [4, 0], sizes = [4, 8], strides = [1, 1]} : vector<8x8xf32> to vector<4x8xf32>
    %114 = arith.negf %113 : vector<4x8xf32>
    %115 = math.exp %114 : vector<4x8xf32>
    %cst_57 = arith.constant 1.000000e+00 : f32
    %116 = vector.broadcast %cst_57 : f32 to vector<4x8xf32>
    %117 = arith.addf %116, %115 : vector<4x8xf32>
    %118 = arith.divf %116, %117 : vector<4x8xf32>
    %119 = arith.mulf %112, %118 : vector<4x8xf32>
    %c0_58 = arith.constant 0 : index
    %c56 = arith.constant 56 : index
    %120 = vector.load %arg9[%c0_58, %c56] : memref<4x64xf32, #tpu.memory_space<vmem>>, vector<4x8xf32>
    tpu.vector_store %arg9[%c0_58, %c56], %119 {strides = array<i32>} : memref<4x64xf32, #tpu.memory_space<vmem>>, vector<4x8xf32>,
    %c0_59 = arith.constant 0 : index
    %c0_60 = arith.constant 0 : index
    %121 = vector.load %arg3[%c0_59, %c0_60] : memref<8x4xf32, #tpu.memory_space<vmem>>, vector<8x4xf32>
    %c0_61 = arith.constant 0 : index
    %c0_62 = arith.constant 0 : index
    %122 = vector.load %arg9[%c0_61, %c0_62] : memref<4x64xf32, #tpu.memory_space<vmem>>, vector<4x64xf32>
    %cst_63 = arith.constant dense<0.000000e+00> : vector<8x64xf32>
    %123 = tpu.matmul %121, %122, %cst_63 {dimension_numbers = #tpu.dot_dimension_numbers<[1], [0], [0], [1], [0, 0, 1, 1], [], []>} : vector<8x4xf32>, vector<4x64xf32>, vector<8x64xf32> -> vector<8x64xf32>
    %c0_64 = arith.constant 0 : index
    %c0_65 = arith.constant 0 : index
    %124 = vector.load %arg4[%c0_64, %c0_65] : memref<8x1xf32, #tpu.memory_space<vmem>>, vector<8x1xf32>
    %125 = vector.broadcast %124 : vector<8x1xf32> to vector<8x64xf32>
    %126 = arith.addf %123, %125 : vector<8x64xf32>
    %127 = vector.extract_strided_slice %126 {offsets = [0, 0], sizes = [4, 64], strides = [1, 1]} : vector<8x64xf32> to vector<4x64xf32>
    %128 = vector.extract_strided_slice %1 {offsets = [0, 2], sizes = [4, 64], strides = [1, 1]} : vector<4x68xf32> to vector<4x64xf32>
    %129 = arith.addf %127, %128 : vector<4x64xf32>
    %c0_66 = arith.constant 0 : index
    %c0_67 = arith.constant 0 : index
    %c0_68 = arith.constant 0 : index
    %130 = vector.load %arg6[%c0_66, %c0_67, %c0_68] : memref<1x4x64xf32, #tpu.memory_space<vmem>>, vector<1x4x64xf32>
    %131 = vector.shape_cast %130 : vector<1x4x64xf32> to vector<4x64xf32>
    %132 = vector.shape_cast %129 : vector<4x64xf32> to vector<1x4x64xf32>
    tpu.vector_store %arg6[%c0_66, %c0_67, %c0_68], %132 {strides = array<i32>} : memref<1x4x64xf32, #tpu.memory_space<vmem>>, vector<1x4x64xf32>,
    %133 = vector.extract_strided_slice %126 {offsets = [4, 0], sizes = [4, 64], strides = [1, 1]} : vector<8x64xf32> to vector<4x64xf32>
    %c0_69 = arith.constant 0 : index
    %c0_70 = arith.constant 0 : index
    %c0_71 = arith.constant 0 : index
    %134 = vector.load %arg5[%c0_69, %c0_70, %c0_71] : memref<1x4x64xf32, #tpu.memory_space<vmem>>, vector<1x4x64xf32>
    %135 = vector.shape_cast %134 : vector<1x4x64xf32> to vector<4x64xf32>
    %136 = arith.addf %133, %135 : vector<4x64xf32>
    %c0_72 = arith.constant 0 : index
    %c0_73 = arith.constant 0 : index
    %c0_74 = arith.constant 0 : index
    %137 = vector.load %arg7[%c0_72, %c0_73, %c0_74] : memref<1x4x64xf32, #tpu.memory_space<vmem>>, vector<1x4x64xf32>
    %138 = vector.shape_cast %137 : vector<1x4x64xf32> to vector<4x64xf32>
    %139 = vector.shape_cast %136 : vector<4x64xf32> to vector<1x4x64xf32>
    tpu.vector_store %arg7[%c0_72, %c0_73, %c0_74], %139 {strides = array<i32>} : memref<1x4x64xf32, #tpu.memory_space<vmem>>, vector<1x4x64xf32>,
    return
  }
  func.func @transform_0(%arg0: i32) -> (i32, i32, i32) {
    %c0_i32 = arith.constant 0 : i32
    %c0_i32_0 = arith.constant 0 : i32
    %c0_i32_1 = arith.constant 0 : i32
    return %arg0, %c0_i32, %c0_i32_0 : i32, i32, i32
  }
  func.func @transform_1(%arg0: i32) -> (i32, i32, i32, i32) {
    %c0_i32 = arith.constant 0 : i32
    %c0_i32_0 = arith.constant 0 : i32
    %c0_i32_1 = arith.constant 0 : i32
    %c0_i32_2 = arith.constant 0 : i32
    return %arg0, %c0_i32, %c0_i32_0, %c0_i32_1 : i32, i32, i32, i32
  }
  func.func @transform_2(%arg0: i32) -> (i32, i32) {
    %c0_i32 = arith.constant 0 : i32
    %c0_i32_0 = arith.constant 0 : i32
    %c0_i32_1 = arith.constant 0 : i32
    return %c0_i32, %c0_i32_0 : i32, i32
  }
  func.func @transform_3(%arg0: i32) -> (i32, i32) {
    %c0_i32 = arith.constant 0 : i32
    %c0_i32_0 = arith.constant 0 : i32
    %c0_i32_1 = arith.constant 0 : i32
    return %c0_i32, %c0_i32_0 : i32, i32
  }
  func.func @transform_4(%arg0: i32) -> (i32, i32, i32) {
    %c0_i32 = arith.constant 0 : i32
    %c0_i32_0 = arith.constant 0 : i32
    %c0_i32_1 = arith.constant 0 : i32
    return %arg0, %c0_i32, %c0_i32_0 : i32, i32, i32
  }
  func.func @transform_5(%arg0: i32) -> (i32, i32, i32) {
    %c0_i32 = arith.constant 0 : i32
    %c0_i32_0 = arith.constant 0 : i32
    %c0_i32_1 = arith.constant 0 : i32
    return %arg0, %c0_i32, %c0_i32_0 : i32, i32, i32
  }
  func.func @transform_6(%arg0: i32) -> (i32, i32, i32) {
    %c0_i32 = arith.constant 0 : i32
    %c0_i32_0 = arith.constant 0 : i32
    %c0_i32_1 = arith.constant 0 : i32
    return %arg0, %c0_i32, %c0_i32_0 : i32, i32, i32
  }
}

module attributes {stable_mosaic.version = 11 : i64} {
  func.func @kernel(%arg0: i32, %arg1: memref<1x4x72xf32, #tpu.memory_space<vmem>>, %arg2: memref<1x8x8x12xf32, #tpu.memory_space<vmem>>, %arg3: memref<8x4xf32, #tpu.memory_space<vmem>>, %arg4: memref<8x1xf32, #tpu.memory_space<vmem>>, %arg5: memref<1x4x64xf32, #tpu.memory_space<vmem>>, %arg6: memref<1x4x64xf32, #tpu.memory_space<vmem>>, %arg7: memref<1x4x64xf32, #tpu.memory_space<vmem>>, %arg8: memref<12x64xf32, #tpu.memory_space<vmem>>, %arg9: memref<4x64xf32, #tpu.memory_space<vmem>>) attributes {dimension_semantics = [#tpu.dimension_semantics<parallel>], iteration_bounds = array<i64: 2>, scalar_prefetch = 0 : i64, scratch_operands = 2 : i64, tpu.core_type = #tpu.core_type<tc>, window_params = [{transform_indices = @transform_0, window_bounds = array<i64: 1, 4, 72>}, {transform_indices = @transform_1, window_bounds = array<i64: 1, 8, 8, 12>}, {pipeline_mode = #tpu.pipeline_mode<synchronous>, transform_indices = @transform_2, window_bounds = array<i64: 8, 4>}, {pipeline_mode = #tpu.pipeline_mode<synchronous>, transform_indices = @transform_3, window_bounds = array<i64: 8, 1>}, {transform_indices = @transform_4, window_bounds = array<i64: 1, 4, 64>}, {transform_indices = @transform_5, window_bounds = array<i64: 1, 4, 64>}, {transform_indices = @transform_6, window_bounds = array<i64: 1, 4, 64>}]} {
    %c0 = arith.constant 0 : index
    %c0_0 = arith.constant 0 : index
    %c0_1 = arith.constant 0 : index
    %0 = vector.load %arg1[%c0, %c0_0, %c0_1] : memref<1x4x72xf32, #tpu.memory_space<vmem>>, vector<1x4x72xf32>
    %1 = vector.shape_cast %0 : vector<1x4x72xf32> to vector<4x72xf32>
    %2 = vector.extract_strided_slice %1 {offsets = [0, 0], sizes = [4, 64], strides = [1, 1]} : vector<4x72xf32> to vector<4x64xf32>
    %c0_2 = arith.constant 0 : index
    %c0_3 = arith.constant 0 : index
    %3 = vector.load %arg8[%c0_2, %c0_3] : memref<12x64xf32, #tpu.memory_space<vmem>>, vector<4x64xf32>
    tpu.vector_store %arg8[%c0_2, %c0_3], %2 {strides = array<i32>} : memref<12x64xf32, #tpu.memory_space<vmem>>, vector<4x64xf32>,
    %4 = vector.extract_strided_slice %1 {offsets = [0, 4], sizes = [4, 64], strides = [1, 1]} : vector<4x72xf32> to vector<4x64xf32>
    %c4 = arith.constant 4 : index
    %c0_4 = arith.constant 0 : index
    %5 = vector.load %arg8[%c4, %c0_4] : memref<12x64xf32, #tpu.memory_space<vmem>>, vector<4x64xf32>
    tpu.vector_store %arg8[%c4, %c0_4], %4 {strides = array<i32>} : memref<12x64xf32, #tpu.memory_space<vmem>>, vector<4x64xf32>,
    %6 = vector.extract_strided_slice %1 {offsets = [0, 8], sizes = [4, 64], strides = [1, 1]} : vector<4x72xf32> to vector<4x64xf32>
    %c8 = arith.constant 8 : index
    %c0_5 = arith.constant 0 : index
    %7 = vector.load %arg8[%c8, %c0_5] : memref<12x64xf32, #tpu.memory_space<vmem>>, vector<4x64xf32>
    tpu.vector_store %arg8[%c8, %c0_5], %6 {strides = array<i32>} : memref<12x64xf32, #tpu.memory_space<vmem>>, vector<4x64xf32>,
    %c0_6 = arith.constant 0 : index
    %c0_7 = arith.constant 0 : index
    %8 = vector.load %arg8[%c0_6, %c0_7] : memref<12x64xf32, #tpu.memory_space<vmem>>, vector<12x64xf32>
    %c0_8 = arith.constant 0 : index
    %c0_9 = arith.constant 0 : index
    %c0_10 = arith.constant 0 : index
    %c0_11 = arith.constant 0 : index
    %9 = vector.load %arg2[%c0_8, %c0_9, %c0_10, %c0_11] : memref<1x8x8x12xf32, #tpu.memory_space<vmem>>, vector<1x1x8x12xf32>
    %10 = vector.shape_cast %9 : vector<1x1x8x12xf32> to vector<8x12xf32>
    %11 = vector.extract_strided_slice %8 {offsets = [0, 0], sizes = [12, 8], strides = [1, 1]} : vector<12x64xf32> to vector<12x8xf32>
    %cst = arith.constant dense<0.000000e+00> : vector<8x8xf32>
    %12 = tpu.matmul %10, %11, %cst {dimension_numbers = #tpu.dot_dimension_numbers<[1], [0], [0], [1], [0, 0, 1, 1], [], []>} : vector<8x12xf32>, vector<12x8xf32>, vector<8x8xf32> -> vector<8x8xf32>
    %13 = vector.extract_strided_slice %12 {offsets = [0, 0], sizes = [4, 8], strides = [1, 1]} : vector<8x8xf32> to vector<4x8xf32>
    %14 = math.tanh %13 : vector<4x8xf32>
    %15 = vector.extract_strided_slice %12 {offsets = [4, 0], sizes = [4, 8], strides = [1, 1]} : vector<8x8xf32> to vector<4x8xf32>
    %16 = arith.negf %15 : vector<4x8xf32>
    %17 = math.exp %16 : vector<4x8xf32>
    %cst_12 = arith.constant 1.000000e+00 : f32
    %18 = vector.broadcast %cst_12 : f32 to vector<4x8xf32>
    %19 = arith.addf %18, %17 : vector<4x8xf32>
    %20 = arith.divf %18, %19 : vector<4x8xf32>
    %21 = arith.mulf %14, %20 : vector<4x8xf32>
    %c0_13 = arith.constant 0 : index
    %c0_14 = arith.constant 0 : index
    %22 = vector.load %arg9[%c0_13, %c0_14] : memref<4x64xf32, #tpu.memory_space<vmem>>, vector<4x8xf32>
    tpu.vector_store %arg9[%c0_13, %c0_14], %21 {strides = array<i32>} : memref<4x64xf32, #tpu.memory_space<vmem>>, vector<4x8xf32>,
    %c0_15 = arith.constant 0 : index
    %c1 = arith.constant 1 : index
    %c0_16 = arith.constant 0 : index
    %c0_17 = arith.constant 0 : index
    %23 = vector.load %arg2[%c0_15, %c1, %c0_16, %c0_17] : memref<1x8x8x12xf32, #tpu.memory_space<vmem>>, vector<1x1x8x12xf32>
    %24 = vector.shape_cast %23 : vector<1x1x8x12xf32> to vector<8x12xf32>
    %25 = vector.extract_strided_slice %8 {offsets = [0, 8], sizes = [12, 8], strides = [1, 1]} : vector<12x64xf32> to vector<12x8xf32>
    %cst_18 = arith.constant dense<0.000000e+00> : vector<8x8xf32>
    %26 = tpu.matmul %24, %25, %cst_18 {dimension_numbers = #tpu.dot_dimension_numbers<[1], [0], [0], [1], [0, 0, 1, 1], [], []>} : vector<8x12xf32>, vector<12x8xf32>, vector<8x8xf32> -> vector<8x8xf32>
    %27 = vector.extract_strided_slice %26 {offsets = [0, 0], sizes = [4, 8], strides = [1, 1]} : vector<8x8xf32> to vector<4x8xf32>
    %28 = math.tanh %27 : vector<4x8xf32>
    %29 = vector.extract_strided_slice %26 {offsets = [4, 0], sizes = [4, 8], strides = [1, 1]} : vector<8x8xf32> to vector<4x8xf32>
    %30 = arith.negf %29 : vector<4x8xf32>
    %31 = math.exp %30 : vector<4x8xf32>
    %cst_19 = arith.constant 1.000000e+00 : f32
    %32 = vector.broadcast %cst_19 : f32 to vector<4x8xf32>
    %33 = arith.addf %32, %31 : vector<4x8xf32>
    %34 = arith.divf %32, %33 : vector<4x8xf32>
    %35 = arith.mulf %28, %34 : vector<4x8xf32>
    %c0_20 = arith.constant 0 : index
    %c8_21 = arith.constant 8 : index
    %36 = vector.load %arg9[%c0_20, %c8_21] : memref<4x64xf32, #tpu.memory_space<vmem>>, vector<4x8xf32>
    tpu.vector_store %arg9[%c0_20, %c8_21], %35 {strides = array<i32>} : memref<4x64xf32, #tpu.memory_space<vmem>>, vector<4x8xf32>,
    %c0_22 = arith.constant 0 : index
    %c2 = arith.constant 2 : index
    %c0_23 = arith.constant 0 : index
    %c0_24 = arith.constant 0 : index
    %37 = vector.load %arg2[%c0_22, %c2, %c0_23, %c0_24] : memref<1x8x8x12xf32, #tpu.memory_space<vmem>>, vector<1x1x8x12xf32>
    %38 = vector.shape_cast %37 : vector<1x1x8x12xf32> to vector<8x12xf32>
    %39 = vector.extract_strided_slice %8 {offsets = [0, 16], sizes = [12, 8], strides = [1, 1]} : vector<12x64xf32> to vector<12x8xf32>
    %cst_25 = arith.constant dense<0.000000e+00> : vector<8x8xf32>
    %40 = tpu.matmul %38, %39, %cst_25 {dimension_numbers = #tpu.dot_dimension_numbers<[1], [0], [0], [1], [0, 0, 1, 1], [], []>} : vector<8x12xf32>, vector<12x8xf32>, vector<8x8xf32> -> vector<8x8xf32>
    %41 = vector.extract_strided_slice %40 {offsets = [0, 0], sizes = [4, 8], strides = [1, 1]} : vector<8x8xf32> to vector<4x8xf32>
    %42 = math.tanh %41 : vector<4x8xf32>
    %43 = vector.extract_strided_slice %40 {offsets = [4, 0], sizes = [4, 8], strides = [1, 1]} : vector<8x8xf32> to vector<4x8xf32>
    %44 = arith.negf %43 : vector<4x8xf32>
    %45 = math.exp %44 : vector<4x8xf32>
    %cst_26 = arith.constant 1.000000e+00 : f32
    %46 = vector.broadcast %cst_26 : f32 to vector<4x8xf32>
    %47 = arith.addf %46, %45 : vector<4x8xf32>
    %48 = arith.divf %46, %47 : vector<4x8xf32>
    %49 = arith.mulf %42, %48 : vector<4x8xf32>
    %c0_27 = arith.constant 0 : index
    %c16 = arith.constant 16 : index
    %50 = vector.load %arg9[%c0_27, %c16] : memref<4x64xf32, #tpu.memory_space<vmem>>, vector<4x8xf32>
    tpu.vector_store %arg9[%c0_27, %c16], %49 {strides = array<i32>} : memref<4x64xf32, #tpu.memory_space<vmem>>, vector<4x8xf32>,
    %c0_28 = arith.constant 0 : index
    %c3 = arith.constant 3 : index
    %c0_29 = arith.constant 0 : index
    %c0_30 = arith.constant 0 : index
    %51 = vector.load %arg2[%c0_28, %c3, %c0_29, %c0_30] : memref<1x8x8x12xf32, #tpu.memory_space<vmem>>, vector<1x1x8x12xf32>
    %52 = vector.shape_cast %51 : vector<1x1x8x12xf32> to vector<8x12xf32>
    %53 = vector.extract_strided_slice %8 {offsets = [0, 24], sizes = [12, 8], strides = [1, 1]} : vector<12x64xf32> to vector<12x8xf32>
    %cst_31 = arith.constant dense<0.000000e+00> : vector<8x8xf32>
    %54 = tpu.matmul %52, %53, %cst_31 {dimension_numbers = #tpu.dot_dimension_numbers<[1], [0], [0], [1], [0, 0, 1, 1], [], []>} : vector<8x12xf32>, vector<12x8xf32>, vector<8x8xf32> -> vector<8x8xf32>
    %55 = vector.extract_strided_slice %54 {offsets = [0, 0], sizes = [4, 8], strides = [1, 1]} : vector<8x8xf32> to vector<4x8xf32>
    %56 = math.tanh %55 : vector<4x8xf32>
    %57 = vector.extract_strided_slice %54 {offsets = [4, 0], sizes = [4, 8], strides = [1, 1]} : vector<8x8xf32> to vector<4x8xf32>
    %58 = arith.negf %57 : vector<4x8xf32>
    %59 = math.exp %58 : vector<4x8xf32>
    %cst_32 = arith.constant 1.000000e+00 : f32
    %60 = vector.broadcast %cst_32 : f32 to vector<4x8xf32>
    %61 = arith.addf %60, %59 : vector<4x8xf32>
    %62 = arith.divf %60, %61 : vector<4x8xf32>
    %63 = arith.mulf %56, %62 : vector<4x8xf32>
    %c0_33 = arith.constant 0 : index
    %c24 = arith.constant 24 : index
    %64 = vector.load %arg9[%c0_33, %c24] : memref<4x64xf32, #tpu.memory_space<vmem>>, vector<4x8xf32>
    tpu.vector_store %arg9[%c0_33, %c24], %63 {strides = array<i32>} : memref<4x64xf32, #tpu.memory_space<vmem>>, vector<4x8xf32>,
    %c0_34 = arith.constant 0 : index
    %c4_35 = arith.constant 4 : index
    %c0_36 = arith.constant 0 : index
    %c0_37 = arith.constant 0 : index
    %65 = vector.load %arg2[%c0_34, %c4_35, %c0_36, %c0_37] : memref<1x8x8x12xf32, #tpu.memory_space<vmem>>, vector<1x1x8x12xf32>
    %66 = vector.shape_cast %65 : vector<1x1x8x12xf32> to vector<8x12xf32>
    %67 = vector.extract_strided_slice %8 {offsets = [0, 32], sizes = [12, 8], strides = [1, 1]} : vector<12x64xf32> to vector<12x8xf32>
    %cst_38 = arith.constant dense<0.000000e+00> : vector<8x8xf32>
    %68 = tpu.matmul %66, %67, %cst_38 {dimension_numbers = #tpu.dot_dimension_numbers<[1], [0], [0], [1], [0, 0, 1, 1], [], []>} : vector<8x12xf32>, vector<12x8xf32>, vector<8x8xf32> -> vector<8x8xf32>
    %69 = vector.extract_strided_slice %68 {offsets = [0, 0], sizes = [4, 8], strides = [1, 1]} : vector<8x8xf32> to vector<4x8xf32>
    %70 = math.tanh %69 : vector<4x8xf32>
    %71 = vector.extract_strided_slice %68 {offsets = [4, 0], sizes = [4, 8], strides = [1, 1]} : vector<8x8xf32> to vector<4x8xf32>
    %72 = arith.negf %71 : vector<4x8xf32>
    %73 = math.exp %72 : vector<4x8xf32>
    %cst_39 = arith.constant 1.000000e+00 : f32
    %74 = vector.broadcast %cst_39 : f32 to vector<4x8xf32>
    %75 = arith.addf %74, %73 : vector<4x8xf32>
    %76 = arith.divf %74, %75 : vector<4x8xf32>
    %77 = arith.mulf %70, %76 : vector<4x8xf32>
    %c0_40 = arith.constant 0 : index
    %c32 = arith.constant 32 : index
    %78 = vector.load %arg9[%c0_40, %c32] : memref<4x64xf32, #tpu.memory_space<vmem>>, vector<4x8xf32>
    tpu.vector_store %arg9[%c0_40, %c32], %77 {strides = array<i32>} : memref<4x64xf32, #tpu.memory_space<vmem>>, vector<4x8xf32>,
    %c0_41 = arith.constant 0 : index
    %c5 = arith.constant 5 : index
    %c0_42 = arith.constant 0 : index
    %c0_43 = arith.constant 0 : index
    %79 = vector.load %arg2[%c0_41, %c5, %c0_42, %c0_43] : memref<1x8x8x12xf32, #tpu.memory_space<vmem>>, vector<1x1x8x12xf32>
    %80 = vector.shape_cast %79 : vector<1x1x8x12xf32> to vector<8x12xf32>
    %81 = vector.extract_strided_slice %8 {offsets = [0, 40], sizes = [12, 8], strides = [1, 1]} : vector<12x64xf32> to vector<12x8xf32>
    %cst_44 = arith.constant dense<0.000000e+00> : vector<8x8xf32>
    %82 = tpu.matmul %80, %81, %cst_44 {dimension_numbers = #tpu.dot_dimension_numbers<[1], [0], [0], [1], [0, 0, 1, 1], [], []>} : vector<8x12xf32>, vector<12x8xf32>, vector<8x8xf32> -> vector<8x8xf32>
    %83 = vector.extract_strided_slice %82 {offsets = [0, 0], sizes = [4, 8], strides = [1, 1]} : vector<8x8xf32> to vector<4x8xf32>
    %84 = math.tanh %83 : vector<4x8xf32>
    %85 = vector.extract_strided_slice %82 {offsets = [4, 0], sizes = [4, 8], strides = [1, 1]} : vector<8x8xf32> to vector<4x8xf32>
    %86 = arith.negf %85 : vector<4x8xf32>
    %87 = math.exp %86 : vector<4x8xf32>
    %cst_45 = arith.constant 1.000000e+00 : f32
    %88 = vector.broadcast %cst_45 : f32 to vector<4x8xf32>
    %89 = arith.addf %88, %87 : vector<4x8xf32>
    %90 = arith.divf %88, %89 : vector<4x8xf32>
    %91 = arith.mulf %84, %90 : vector<4x8xf32>
    %c0_46 = arith.constant 0 : index
    %c40 = arith.constant 40 : index
    %92 = vector.load %arg9[%c0_46, %c40] : memref<4x64xf32, #tpu.memory_space<vmem>>, vector<4x8xf32>
    tpu.vector_store %arg9[%c0_46, %c40], %91 {strides = array<i32>} : memref<4x64xf32, #tpu.memory_space<vmem>>, vector<4x8xf32>,
    %c0_47 = arith.constant 0 : index
    %c6 = arith.constant 6 : index
    %c0_48 = arith.constant 0 : index
    %c0_49 = arith.constant 0 : index
    %93 = vector.load %arg2[%c0_47, %c6, %c0_48, %c0_49] : memref<1x8x8x12xf32, #tpu.memory_space<vmem>>, vector<1x1x8x12xf32>
    %94 = vector.shape_cast %93 : vector<1x1x8x12xf32> to vector<8x12xf32>
    %95 = vector.extract_strided_slice %8 {offsets = [0, 48], sizes = [12, 8], strides = [1, 1]} : vector<12x64xf32> to vector<12x8xf32>
    %cst_50 = arith.constant dense<0.000000e+00> : vector<8x8xf32>
    %96 = tpu.matmul %94, %95, %cst_50 {dimension_numbers = #tpu.dot_dimension_numbers<[1], [0], [0], [1], [0, 0, 1, 1], [], []>} : vector<8x12xf32>, vector<12x8xf32>, vector<8x8xf32> -> vector<8x8xf32>
    %97 = vector.extract_strided_slice %96 {offsets = [0, 0], sizes = [4, 8], strides = [1, 1]} : vector<8x8xf32> to vector<4x8xf32>
    %98 = math.tanh %97 : vector<4x8xf32>
    %99 = vector.extract_strided_slice %96 {offsets = [4, 0], sizes = [4, 8], strides = [1, 1]} : vector<8x8xf32> to vector<4x8xf32>
    %100 = arith.negf %99 : vector<4x8xf32>
    %101 = math.exp %100 : vector<4x8xf32>
    %cst_51 = arith.constant 1.000000e+00 : f32
    %102 = vector.broadcast %cst_51 : f32 to vector<4x8xf32>
    %103 = arith.addf %102, %101 : vector<4x8xf32>
    %104 = arith.divf %102, %103 : vector<4x8xf32>
    %105 = arith.mulf %98, %104 : vector<4x8xf32>
    %c0_52 = arith.constant 0 : index
    %c48 = arith.constant 48 : index
    %106 = vector.load %arg9[%c0_52, %c48] : memref<4x64xf32, #tpu.memory_space<vmem>>, vector<4x8xf32>
    tpu.vector_store %arg9[%c0_52, %c48], %105 {strides = array<i32>} : memref<4x64xf32, #tpu.memory_space<vmem>>, vector<4x8xf32>,
    %c0_53 = arith.constant 0 : index
    %c7 = arith.constant 7 : index
    %c0_54 = arith.constant 0 : index
    %c0_55 = arith.constant 0 : index
    %107 = vector.load %arg2[%c0_53, %c7, %c0_54, %c0_55] : memref<1x8x8x12xf32, #tpu.memory_space<vmem>>, vector<1x1x8x12xf32>
    %108 = vector.shape_cast %107 : vector<1x1x8x12xf32> to vector<8x12xf32>
    %109 = vector.extract_strided_slice %8 {offsets = [0, 56], sizes = [12, 8], strides = [1, 1]} : vector<12x64xf32> to vector<12x8xf32>
    %cst_56 = arith.constant dense<0.000000e+00> : vector<8x8xf32>
    %110 = tpu.matmul %108, %109, %cst_56 {dimension_numbers = #tpu.dot_dimension_numbers<[1], [0], [0], [1], [0, 0, 1, 1], [], []>} : vector<8x12xf32>, vector<12x8xf32>, vector<8x8xf32> -> vector<8x8xf32>
    %111 = vector.extract_strided_slice %110 {offsets = [0, 0], sizes = [4, 8], strides = [1, 1]} : vector<8x8xf32> to vector<4x8xf32>
    %112 = math.tanh %111 : vector<4x8xf32>
    %113 = vector.extract_strided_slice %110 {offsets = [4, 0], sizes = [4, 8], strides = [1, 1]} : vector<8x8xf32> to vector<4x8xf32>
    %114 = arith.negf %113 : vector<4x8xf32>
    %115 = math.exp %114 : vector<4x8xf32>
    %cst_57 = arith.constant 1.000000e+00 : f32
    %116 = vector.broadcast %cst_57 : f32 to vector<4x8xf32>
    %117 = arith.addf %116, %115 : vector<4x8xf32>
    %118 = arith.divf %116, %117 : vector<4x8xf32>
    %119 = arith.mulf %112, %118 : vector<4x8xf32>
    %c0_58 = arith.constant 0 : index
    %c56 = arith.constant 56 : index
    %120 = vector.load %arg9[%c0_58, %c56] : memref<4x64xf32, #tpu.memory_space<vmem>>, vector<4x8xf32>
    tpu.vector_store %arg9[%c0_58, %c56], %119 {strides = array<i32>} : memref<4x64xf32, #tpu.memory_space<vmem>>, vector<4x8xf32>,
    %c0_59 = arith.constant 0 : index
    %c0_60 = arith.constant 0 : index
    %121 = vector.load %arg3[%c0_59, %c0_60] : memref<8x4xf32, #tpu.memory_space<vmem>>, vector<8x4xf32>
    %c0_61 = arith.constant 0 : index
    %c0_62 = arith.constant 0 : index
    %122 = vector.load %arg9[%c0_61, %c0_62] : memref<4x64xf32, #tpu.memory_space<vmem>>, vector<4x64xf32>
    %cst_63 = arith.constant dense<0.000000e+00> : vector<8x64xf32>
    %123 = tpu.matmul %121, %122, %cst_63 {dimension_numbers = #tpu.dot_dimension_numbers<[1], [0], [0], [1], [0, 0, 1, 1], [], []>} : vector<8x4xf32>, vector<4x64xf32>, vector<8x64xf32> -> vector<8x64xf32>
    %c0_64 = arith.constant 0 : index
    %c0_65 = arith.constant 0 : index
    %124 = vector.load %arg4[%c0_64, %c0_65] : memref<8x1xf32, #tpu.memory_space<vmem>>, vector<8x1xf32>
    %125 = vector.broadcast %124 : vector<8x1xf32> to vector<8x64xf32>
    %126 = arith.addf %123, %125 : vector<8x64xf32>
    %127 = vector.extract_strided_slice %126 {offsets = [0, 0], sizes = [4, 64], strides = [1, 1]} : vector<8x64xf32> to vector<4x64xf32>
    %128 = vector.extract_strided_slice %1 {offsets = [0, 4], sizes = [4, 64], strides = [1, 1]} : vector<4x72xf32> to vector<4x64xf32>
    %129 = arith.addf %127, %128 : vector<4x64xf32>
    %c0_66 = arith.constant 0 : index
    %c0_67 = arith.constant 0 : index
    %c0_68 = arith.constant 0 : index
    %130 = vector.load %arg6[%c0_66, %c0_67, %c0_68] : memref<1x4x64xf32, #tpu.memory_space<vmem>>, vector<1x4x64xf32>
    %131 = vector.shape_cast %130 : vector<1x4x64xf32> to vector<4x64xf32>
    %132 = vector.shape_cast %129 : vector<4x64xf32> to vector<1x4x64xf32>
    tpu.vector_store %arg6[%c0_66, %c0_67, %c0_68], %132 {strides = array<i32>} : memref<1x4x64xf32, #tpu.memory_space<vmem>>, vector<1x4x64xf32>,
    %133 = vector.extract_strided_slice %126 {offsets = [4, 0], sizes = [4, 64], strides = [1, 1]} : vector<8x64xf32> to vector<4x64xf32>
    %c0_69 = arith.constant 0 : index
    %c0_70 = arith.constant 0 : index
    %c0_71 = arith.constant 0 : index
    %134 = vector.load %arg5[%c0_69, %c0_70, %c0_71] : memref<1x4x64xf32, #tpu.memory_space<vmem>>, vector<1x4x64xf32>
    %135 = vector.shape_cast %134 : vector<1x4x64xf32> to vector<4x64xf32>
    %136 = arith.addf %133, %135 : vector<4x64xf32>
    %c0_72 = arith.constant 0 : index
    %c0_73 = arith.constant 0 : index
    %c0_74 = arith.constant 0 : index
    %137 = vector.load %arg7[%c0_72, %c0_73, %c0_74] : memref<1x4x64xf32, #tpu.memory_space<vmem>>, vector<1x4x64xf32>
    %138 = vector.shape_cast %137 : vector<1x4x64xf32> to vector<4x64xf32>
    %139 = vector.shape_cast %136 : vector<4x64xf32> to vector<1x4x64xf32>
    tpu.vector_store %arg7[%c0_72, %c0_73, %c0_74], %139 {strides = array<i32>} : memref<1x4x64xf32, #tpu.memory_space<vmem>>, vector<1x4x64xf32>,
    return
  }
  func.func @transform_0(%arg0: i32) -> (i32, i32, i32) {
    %c0_i32 = arith.constant 0 : i32
    %c0_i32_0 = arith.constant 0 : i32
    %c0_i32_1 = arith.constant 0 : i32
    return %arg0, %c0_i32, %c0_i32_0 : i32, i32, i32
  }
  func.func @transform_1(%arg0: i32) -> (i32, i32, i32, i32) {
    %c0_i32 = arith.constant 0 : i32
    %c0_i32_0 = arith.constant 0 : i32
    %c0_i32_1 = arith.constant 0 : i32
    %c0_i32_2 = arith.constant 0 : i32
    return %arg0, %c0_i32, %c0_i32_0, %c0_i32_1 : i32, i32, i32, i32
  }
  func.func @transform_2(%arg0: i32) -> (i32, i32) {
    %c0_i32 = arith.constant 0 : i32
    %c0_i32_0 = arith.constant 0 : i32
    %c0_i32_1 = arith.constant 0 : i32
    return %c0_i32, %c0_i32_0 : i32, i32
  }
  func.func @transform_3(%arg0: i32) -> (i32, i32) {
    %c0_i32 = arith.constant 0 : i32
    %c0_i32_0 = arith.constant 0 : i32
    %c0_i32_1 = arith.constant 0 : i32
    return %c0_i32, %c0_i32_0 : i32, i32
  }
  func.func @transform_4(%arg0: i32) -> (i32, i32, i32) {
    %c0_i32 = arith.constant 0 : i32
    %c0_i32_0 = arith.constant 0 : i32
    %c0_i32_1 = arith.constant 0 : i32
    return %arg0, %c0_i32, %c0_i32_0 : i32, i32, i32
  }
  func.func @transform_5(%arg0: i32) -> (i32, i32, i32) {
    %c0_i32 = arith.constant 0 : i32
    %c0_i32_0 = arith.constant 0 : i32
    %c0_i32_1 = arith.constant 0 : i32
    return %arg0, %c0_i32, %c0_i32_0 : i32, i32, i32
  }
  func.func @transform_6(%arg0: i32) -> (i32, i32, i32) {
    %c0_i32 = arith.constant 0 : i32
    %c0_i32_0 = arith.constant 0 : i32
    %c0_i32_1 = arith.constant 0 : i32
    return %arg0, %c0_i32, %c0_i32_0 : i32, i32, i32
  }
}

module attributes {stable_mosaic.version = 11 : i64} {
  func.func @kernel(%arg0: i32, %arg1: memref<1x4x80xf32, #tpu.memory_space<vmem>>, %arg2: memref<1x8x8x12xf32, #tpu.memory_space<vmem>>, %arg3: memref<4x4xf32, #tpu.memory_space<vmem>>, %arg4: memref<4x1xf32, #tpu.memory_space<vmem>>, %arg5: memref<1x4x64xf32, #tpu.memory_space<vmem>>, %arg6: memref<1x4x64xf32, #tpu.memory_space<vmem>>, %arg7: memref<12x64xf32, #tpu.memory_space<vmem>>, %arg8: memref<4x64xf32, #tpu.memory_space<vmem>>) attributes {dimension_semantics = [#tpu.dimension_semantics<parallel>], iteration_bounds = array<i64: 2>, scalar_prefetch = 0 : i64, scratch_operands = 2 : i64, tpu.core_type = #tpu.core_type<tc>, window_params = [{transform_indices = @transform_0, window_bounds = array<i64: 1, 4, 80>}, {transform_indices = @transform_1, window_bounds = array<i64: 1, 8, 8, 12>}, {pipeline_mode = #tpu.pipeline_mode<synchronous>, transform_indices = @transform_2, window_bounds = array<i64: 4, 4>}, {pipeline_mode = #tpu.pipeline_mode<synchronous>, transform_indices = @transform_3, window_bounds = array<i64: 4, 1>}, {transform_indices = @transform_4, window_bounds = array<i64: 1, 4, 64>}, {transform_indices = @transform_5, window_bounds = array<i64: 1, 4, 64>}]} {
    %c0 = arith.constant 0 : index
    %c0_0 = arith.constant 0 : index
    %c0_1 = arith.constant 0 : index
    %0 = vector.load %arg1[%c0, %c0_0, %c0_1] : memref<1x4x80xf32, #tpu.memory_space<vmem>>, vector<1x4x80xf32>
    %1 = vector.shape_cast %0 : vector<1x4x80xf32> to vector<4x80xf32>
    %2 = vector.extract_strided_slice %1 {offsets = [0, 0], sizes = [4, 64], strides = [1, 1]} : vector<4x80xf32> to vector<4x64xf32>
    %c0_2 = arith.constant 0 : index
    %c0_3 = arith.constant 0 : index
    %3 = vector.load %arg7[%c0_2, %c0_3] : memref<12x64xf32, #tpu.memory_space<vmem>>, vector<4x64xf32>
    tpu.vector_store %arg7[%c0_2, %c0_3], %2 {strides = array<i32>} : memref<12x64xf32, #tpu.memory_space<vmem>>, vector<4x64xf32>,
    %4 = vector.extract_strided_slice %1 {offsets = [0, 8], sizes = [4, 64], strides = [1, 1]} : vector<4x80xf32> to vector<4x64xf32>
    %c4 = arith.constant 4 : index
    %c0_4 = arith.constant 0 : index
    %5 = vector.load %arg7[%c4, %c0_4] : memref<12x64xf32, #tpu.memory_space<vmem>>, vector<4x64xf32>
    tpu.vector_store %arg7[%c4, %c0_4], %4 {strides = array<i32>} : memref<12x64xf32, #tpu.memory_space<vmem>>, vector<4x64xf32>,
    %6 = vector.extract_strided_slice %1 {offsets = [0, 16], sizes = [4, 64], strides = [1, 1]} : vector<4x80xf32> to vector<4x64xf32>
    %c8 = arith.constant 8 : index
    %c0_5 = arith.constant 0 : index
    %7 = vector.load %arg7[%c8, %c0_5] : memref<12x64xf32, #tpu.memory_space<vmem>>, vector<4x64xf32>
    tpu.vector_store %arg7[%c8, %c0_5], %6 {strides = array<i32>} : memref<12x64xf32, #tpu.memory_space<vmem>>, vector<4x64xf32>,
    %c0_6 = arith.constant 0 : index
    %c0_7 = arith.constant 0 : index
    %8 = vector.load %arg7[%c0_6, %c0_7] : memref<12x64xf32, #tpu.memory_space<vmem>>, vector<12x64xf32>
    %c0_8 = arith.constant 0 : index
    %c0_9 = arith.constant 0 : index
    %c0_10 = arith.constant 0 : index
    %c0_11 = arith.constant 0 : index
    %9 = vector.load %arg2[%c0_8, %c0_9, %c0_10, %c0_11] : memref<1x8x8x12xf32, #tpu.memory_space<vmem>>, vector<1x1x8x12xf32>
    %10 = vector.shape_cast %9 : vector<1x1x8x12xf32> to vector<8x12xf32>
    %11 = vector.extract_strided_slice %8 {offsets = [0, 0], sizes = [12, 8], strides = [1, 1]} : vector<12x64xf32> to vector<12x8xf32>
    %cst = arith.constant dense<0.000000e+00> : vector<8x8xf32>
    %12 = tpu.matmul %10, %11, %cst {dimension_numbers = #tpu.dot_dimension_numbers<[1], [0], [0], [1], [0, 0, 1, 1], [], []>} : vector<8x12xf32>, vector<12x8xf32>, vector<8x8xf32> -> vector<8x8xf32>
    %13 = vector.extract_strided_slice %12 {offsets = [0, 0], sizes = [4, 8], strides = [1, 1]} : vector<8x8xf32> to vector<4x8xf32>
    %14 = math.tanh %13 : vector<4x8xf32>
    %15 = vector.extract_strided_slice %12 {offsets = [4, 0], sizes = [4, 8], strides = [1, 1]} : vector<8x8xf32> to vector<4x8xf32>
    %16 = arith.negf %15 : vector<4x8xf32>
    %17 = math.exp %16 : vector<4x8xf32>
    %cst_12 = arith.constant 1.000000e+00 : f32
    %18 = vector.broadcast %cst_12 : f32 to vector<4x8xf32>
    %19 = arith.addf %18, %17 : vector<4x8xf32>
    %20 = arith.divf %18, %19 : vector<4x8xf32>
    %21 = arith.mulf %14, %20 : vector<4x8xf32>
    %c0_13 = arith.constant 0 : index
    %c0_14 = arith.constant 0 : index
    %22 = vector.load %arg8[%c0_13, %c0_14] : memref<4x64xf32, #tpu.memory_space<vmem>>, vector<4x8xf32>
    tpu.vector_store %arg8[%c0_13, %c0_14], %21 {strides = array<i32>} : memref<4x64xf32, #tpu.memory_space<vmem>>, vector<4x8xf32>,
    %c0_15 = arith.constant 0 : index
    %c1 = arith.constant 1 : index
    %c0_16 = arith.constant 0 : index
    %c0_17 = arith.constant 0 : index
    %23 = vector.load %arg2[%c0_15, %c1, %c0_16, %c0_17] : memref<1x8x8x12xf32, #tpu.memory_space<vmem>>, vector<1x1x8x12xf32>
    %24 = vector.shape_cast %23 : vector<1x1x8x12xf32> to vector<8x12xf32>
    %25 = vector.extract_strided_slice %8 {offsets = [0, 8], sizes = [12, 8], strides = [1, 1]} : vector<12x64xf32> to vector<12x8xf32>
    %cst_18 = arith.constant dense<0.000000e+00> : vector<8x8xf32>
    %26 = tpu.matmul %24, %25, %cst_18 {dimension_numbers = #tpu.dot_dimension_numbers<[1], [0], [0], [1], [0, 0, 1, 1], [], []>} : vector<8x12xf32>, vector<12x8xf32>, vector<8x8xf32> -> vector<8x8xf32>
    %27 = vector.extract_strided_slice %26 {offsets = [0, 0], sizes = [4, 8], strides = [1, 1]} : vector<8x8xf32> to vector<4x8xf32>
    %28 = math.tanh %27 : vector<4x8xf32>
    %29 = vector.extract_strided_slice %26 {offsets = [4, 0], sizes = [4, 8], strides = [1, 1]} : vector<8x8xf32> to vector<4x8xf32>
    %30 = arith.negf %29 : vector<4x8xf32>
    %31 = math.exp %30 : vector<4x8xf32>
    %cst_19 = arith.constant 1.000000e+00 : f32
    %32 = vector.broadcast %cst_19 : f32 to vector<4x8xf32>
    %33 = arith.addf %32, %31 : vector<4x8xf32>
    %34 = arith.divf %32, %33 : vector<4x8xf32>
    %35 = arith.mulf %28, %34 : vector<4x8xf32>
    %c0_20 = arith.constant 0 : index
    %c8_21 = arith.constant 8 : index
    %36 = vector.load %arg8[%c0_20, %c8_21] : memref<4x64xf32, #tpu.memory_space<vmem>>, vector<4x8xf32>
    tpu.vector_store %arg8[%c0_20, %c8_21], %35 {strides = array<i32>} : memref<4x64xf32, #tpu.memory_space<vmem>>, vector<4x8xf32>,
    %c0_22 = arith.constant 0 : index
    %c2 = arith.constant 2 : index
    %c0_23 = arith.constant 0 : index
    %c0_24 = arith.constant 0 : index
    %37 = vector.load %arg2[%c0_22, %c2, %c0_23, %c0_24] : memref<1x8x8x12xf32, #tpu.memory_space<vmem>>, vector<1x1x8x12xf32>
    %38 = vector.shape_cast %37 : vector<1x1x8x12xf32> to vector<8x12xf32>
    %39 = vector.extract_strided_slice %8 {offsets = [0, 16], sizes = [12, 8], strides = [1, 1]} : vector<12x64xf32> to vector<12x8xf32>
    %cst_25 = arith.constant dense<0.000000e+00> : vector<8x8xf32>
    %40 = tpu.matmul %38, %39, %cst_25 {dimension_numbers = #tpu.dot_dimension_numbers<[1], [0], [0], [1], [0, 0, 1, 1], [], []>} : vector<8x12xf32>, vector<12x8xf32>, vector<8x8xf32> -> vector<8x8xf32>
    %41 = vector.extract_strided_slice %40 {offsets = [0, 0], sizes = [4, 8], strides = [1, 1]} : vector<8x8xf32> to vector<4x8xf32>
    %42 = math.tanh %41 : vector<4x8xf32>
    %43 = vector.extract_strided_slice %40 {offsets = [4, 0], sizes = [4, 8], strides = [1, 1]} : vector<8x8xf32> to vector<4x8xf32>
    %44 = arith.negf %43 : vector<4x8xf32>
    %45 = math.exp %44 : vector<4x8xf32>
    %cst_26 = arith.constant 1.000000e+00 : f32
    %46 = vector.broadcast %cst_26 : f32 to vector<4x8xf32>
    %47 = arith.addf %46, %45 : vector<4x8xf32>
    %48 = arith.divf %46, %47 : vector<4x8xf32>
    %49 = arith.mulf %42, %48 : vector<4x8xf32>
    %c0_27 = arith.constant 0 : index
    %c16 = arith.constant 16 : index
    %50 = vector.load %arg8[%c0_27, %c16] : memref<4x64xf32, #tpu.memory_space<vmem>>, vector<4x8xf32>
    tpu.vector_store %arg8[%c0_27, %c16], %49 {strides = array<i32>} : memref<4x64xf32, #tpu.memory_space<vmem>>, vector<4x8xf32>,
    %c0_28 = arith.constant 0 : index
    %c3 = arith.constant 3 : index
    %c0_29 = arith.constant 0 : index
    %c0_30 = arith.constant 0 : index
    %51 = vector.load %arg2[%c0_28, %c3, %c0_29, %c0_30] : memref<1x8x8x12xf32, #tpu.memory_space<vmem>>, vector<1x1x8x12xf32>
    %52 = vector.shape_cast %51 : vector<1x1x8x12xf32> to vector<8x12xf32>
    %53 = vector.extract_strided_slice %8 {offsets = [0, 24], sizes = [12, 8], strides = [1, 1]} : vector<12x64xf32> to vector<12x8xf32>
    %cst_31 = arith.constant dense<0.000000e+00> : vector<8x8xf32>
    %54 = tpu.matmul %52, %53, %cst_31 {dimension_numbers = #tpu.dot_dimension_numbers<[1], [0], [0], [1], [0, 0, 1, 1], [], []>} : vector<8x12xf32>, vector<12x8xf32>, vector<8x8xf32> -> vector<8x8xf32>
    %55 = vector.extract_strided_slice %54 {offsets = [0, 0], sizes = [4, 8], strides = [1, 1]} : vector<8x8xf32> to vector<4x8xf32>
    %56 = math.tanh %55 : vector<4x8xf32>
    %57 = vector.extract_strided_slice %54 {offsets = [4, 0], sizes = [4, 8], strides = [1, 1]} : vector<8x8xf32> to vector<4x8xf32>
    %58 = arith.negf %57 : vector<4x8xf32>
    %59 = math.exp %58 : vector<4x8xf32>
    %cst_32 = arith.constant 1.000000e+00 : f32
    %60 = vector.broadcast %cst_32 : f32 to vector<4x8xf32>
    %61 = arith.addf %60, %59 : vector<4x8xf32>
    %62 = arith.divf %60, %61 : vector<4x8xf32>
    %63 = arith.mulf %56, %62 : vector<4x8xf32>
    %c0_33 = arith.constant 0 : index
    %c24 = arith.constant 24 : index
    %64 = vector.load %arg8[%c0_33, %c24] : memref<4x64xf32, #tpu.memory_space<vmem>>, vector<4x8xf32>
    tpu.vector_store %arg8[%c0_33, %c24], %63 {strides = array<i32>} : memref<4x64xf32, #tpu.memory_space<vmem>>, vector<4x8xf32>,
    %c0_34 = arith.constant 0 : index
    %c4_35 = arith.constant 4 : index
    %c0_36 = arith.constant 0 : index
    %c0_37 = arith.constant 0 : index
    %65 = vector.load %arg2[%c0_34, %c4_35, %c0_36, %c0_37] : memref<1x8x8x12xf32, #tpu.memory_space<vmem>>, vector<1x1x8x12xf32>
    %66 = vector.shape_cast %65 : vector<1x1x8x12xf32> to vector<8x12xf32>
    %67 = vector.extract_strided_slice %8 {offsets = [0, 32], sizes = [12, 8], strides = [1, 1]} : vector<12x64xf32> to vector<12x8xf32>
    %cst_38 = arith.constant dense<0.000000e+00> : vector<8x8xf32>
    %68 = tpu.matmul %66, %67, %cst_38 {dimension_numbers = #tpu.dot_dimension_numbers<[1], [0], [0], [1], [0, 0, 1, 1], [], []>} : vector<8x12xf32>, vector<12x8xf32>, vector<8x8xf32> -> vector<8x8xf32>
    %69 = vector.extract_strided_slice %68 {offsets = [0, 0], sizes = [4, 8], strides = [1, 1]} : vector<8x8xf32> to vector<4x8xf32>
    %70 = math.tanh %69 : vector<4x8xf32>
    %71 = vector.extract_strided_slice %68 {offsets = [4, 0], sizes = [4, 8], strides = [1, 1]} : vector<8x8xf32> to vector<4x8xf32>
    %72 = arith.negf %71 : vector<4x8xf32>
    %73 = math.exp %72 : vector<4x8xf32>
    %cst_39 = arith.constant 1.000000e+00 : f32
    %74 = vector.broadcast %cst_39 : f32 to vector<4x8xf32>
    %75 = arith.addf %74, %73 : vector<4x8xf32>
    %76 = arith.divf %74, %75 : vector<4x8xf32>
    %77 = arith.mulf %70, %76 : vector<4x8xf32>
    %c0_40 = arith.constant 0 : index
    %c32 = arith.constant 32 : index
    %78 = vector.load %arg8[%c0_40, %c32] : memref<4x64xf32, #tpu.memory_space<vmem>>, vector<4x8xf32>
    tpu.vector_store %arg8[%c0_40, %c32], %77 {strides = array<i32>} : memref<4x64xf32, #tpu.memory_space<vmem>>, vector<4x8xf32>,
    %c0_41 = arith.constant 0 : index
    %c5 = arith.constant 5 : index
    %c0_42 = arith.constant 0 : index
    %c0_43 = arith.constant 0 : index
    %79 = vector.load %arg2[%c0_41, %c5, %c0_42, %c0_43] : memref<1x8x8x12xf32, #tpu.memory_space<vmem>>, vector<1x1x8x12xf32>
    %80 = vector.shape_cast %79 : vector<1x1x8x12xf32> to vector<8x12xf32>
    %81 = vector.extract_strided_slice %8 {offsets = [0, 40], sizes = [12, 8], strides = [1, 1]} : vector<12x64xf32> to vector<12x8xf32>
    %cst_44 = arith.constant dense<0.000000e+00> : vector<8x8xf32>
    %82 = tpu.matmul %80, %81, %cst_44 {dimension_numbers = #tpu.dot_dimension_numbers<[1], [0], [0], [1], [0, 0, 1, 1], [], []>} : vector<8x12xf32>, vector<12x8xf32>, vector<8x8xf32> -> vector<8x8xf32>
    %83 = vector.extract_strided_slice %82 {offsets = [0, 0], sizes = [4, 8], strides = [1, 1]} : vector<8x8xf32> to vector<4x8xf32>
    %84 = math.tanh %83 : vector<4x8xf32>
    %85 = vector.extract_strided_slice %82 {offsets = [4, 0], sizes = [4, 8], strides = [1, 1]} : vector<8x8xf32> to vector<4x8xf32>
    %86 = arith.negf %85 : vector<4x8xf32>
    %87 = math.exp %86 : vector<4x8xf32>
    %cst_45 = arith.constant 1.000000e+00 : f32
    %88 = vector.broadcast %cst_45 : f32 to vector<4x8xf32>
    %89 = arith.addf %88, %87 : vector<4x8xf32>
    %90 = arith.divf %88, %89 : vector<4x8xf32>
    %91 = arith.mulf %84, %90 : vector<4x8xf32>
    %c0_46 = arith.constant 0 : index
    %c40 = arith.constant 40 : index
    %92 = vector.load %arg8[%c0_46, %c40] : memref<4x64xf32, #tpu.memory_space<vmem>>, vector<4x8xf32>
    tpu.vector_store %arg8[%c0_46, %c40], %91 {strides = array<i32>} : memref<4x64xf32, #tpu.memory_space<vmem>>, vector<4x8xf32>,
    %c0_47 = arith.constant 0 : index
    %c6 = arith.constant 6 : index
    %c0_48 = arith.constant 0 : index
    %c0_49 = arith.constant 0 : index
    %93 = vector.load %arg2[%c0_47, %c6, %c0_48, %c0_49] : memref<1x8x8x12xf32, #tpu.memory_space<vmem>>, vector<1x1x8x12xf32>
    %94 = vector.shape_cast %93 : vector<1x1x8x12xf32> to vector<8x12xf32>
    %95 = vector.extract_strided_slice %8 {offsets = [0, 48], sizes = [12, 8], strides = [1, 1]} : vector<12x64xf32> to vector<12x8xf32>
    %cst_50 = arith.constant dense<0.000000e+00> : vector<8x8xf32>
    %96 = tpu.matmul %94, %95, %cst_50 {dimension_numbers = #tpu.dot_dimension_numbers<[1], [0], [0], [1], [0, 0, 1, 1], [], []>} : vector<8x12xf32>, vector<12x8xf32>, vector<8x8xf32> -> vector<8x8xf32>
    %97 = vector.extract_strided_slice %96 {offsets = [0, 0], sizes = [4, 8], strides = [1, 1]} : vector<8x8xf32> to vector<4x8xf32>
    %98 = math.tanh %97 : vector<4x8xf32>
    %99 = vector.extract_strided_slice %96 {offsets = [4, 0], sizes = [4, 8], strides = [1, 1]} : vector<8x8xf32> to vector<4x8xf32>
    %100 = arith.negf %99 : vector<4x8xf32>
    %101 = math.exp %100 : vector<4x8xf32>
    %cst_51 = arith.constant 1.000000e+00 : f32
    %102 = vector.broadcast %cst_51 : f32 to vector<4x8xf32>
    %103 = arith.addf %102, %101 : vector<4x8xf32>
    %104 = arith.divf %102, %103 : vector<4x8xf32>
    %105 = arith.mulf %98, %104 : vector<4x8xf32>
    %c0_52 = arith.constant 0 : index
    %c48 = arith.constant 48 : index
    %106 = vector.load %arg8[%c0_52, %c48] : memref<4x64xf32, #tpu.memory_space<vmem>>, vector<4x8xf32>
    tpu.vector_store %arg8[%c0_52, %c48], %105 {strides = array<i32>} : memref<4x64xf32, #tpu.memory_space<vmem>>, vector<4x8xf32>,
    %c0_53 = arith.constant 0 : index
    %c7 = arith.constant 7 : index
    %c0_54 = arith.constant 0 : index
    %c0_55 = arith.constant 0 : index
    %107 = vector.load %arg2[%c0_53, %c7, %c0_54, %c0_55] : memref<1x8x8x12xf32, #tpu.memory_space<vmem>>, vector<1x1x8x12xf32>
    %108 = vector.shape_cast %107 : vector<1x1x8x12xf32> to vector<8x12xf32>
    %109 = vector.extract_strided_slice %8 {offsets = [0, 56], sizes = [12, 8], strides = [1, 1]} : vector<12x64xf32> to vector<12x8xf32>
    %cst_56 = arith.constant dense<0.000000e+00> : vector<8x8xf32>
    %110 = tpu.matmul %108, %109, %cst_56 {dimension_numbers = #tpu.dot_dimension_numbers<[1], [0], [0], [1], [0, 0, 1, 1], [], []>} : vector<8x12xf32>, vector<12x8xf32>, vector<8x8xf32> -> vector<8x8xf32>
    %111 = vector.extract_strided_slice %110 {offsets = [0, 0], sizes = [4, 8], strides = [1, 1]} : vector<8x8xf32> to vector<4x8xf32>
    %112 = math.tanh %111 : vector<4x8xf32>
    %113 = vector.extract_strided_slice %110 {offsets = [4, 0], sizes = [4, 8], strides = [1, 1]} : vector<8x8xf32> to vector<4x8xf32>
    %114 = arith.negf %113 : vector<4x8xf32>
    %115 = math.exp %114 : vector<4x8xf32>
    %cst_57 = arith.constant 1.000000e+00 : f32
    %116 = vector.broadcast %cst_57 : f32 to vector<4x8xf32>
    %117 = arith.addf %116, %115 : vector<4x8xf32>
    %118 = arith.divf %116, %117 : vector<4x8xf32>
    %119 = arith.mulf %112, %118 : vector<4x8xf32>
    %c0_58 = arith.constant 0 : index
    %c56 = arith.constant 56 : index
    %120 = vector.load %arg8[%c0_58, %c56] : memref<4x64xf32, #tpu.memory_space<vmem>>, vector<4x8xf32>
    tpu.vector_store %arg8[%c0_58, %c56], %119 {strides = array<i32>} : memref<4x64xf32, #tpu.memory_space<vmem>>, vector<4x8xf32>,
    %c0_59 = arith.constant 0 : index
    %c0_60 = arith.constant 0 : index
    %121 = vector.load %arg3[%c0_59, %c0_60] : memref<4x4xf32, #tpu.memory_space<vmem>>, vector<4x4xf32>
    %c0_61 = arith.constant 0 : index
    %c0_62 = arith.constant 0 : index
    %122 = vector.load %arg8[%c0_61, %c0_62] : memref<4x64xf32, #tpu.memory_space<vmem>>, vector<4x64xf32>
    %cst_63 = arith.constant dense<0.000000e+00> : vector<4x64xf32>
    %123 = tpu.matmul %121, %122, %cst_63 {dimension_numbers = #tpu.dot_dimension_numbers<[1], [0], [0], [1], [0, 0, 1, 1], [], []>} : vector<4x4xf32>, vector<4x64xf32>, vector<4x64xf32> -> vector<4x64xf32>
    %c0_64 = arith.constant 0 : index
    %c0_65 = arith.constant 0 : index
    %124 = vector.load %arg4[%c0_64, %c0_65] : memref<4x1xf32, #tpu.memory_space<vmem>>, vector<4x1xf32>
    %125 = vector.broadcast %124 : vector<4x1xf32> to vector<4x64xf32>
    %126 = arith.addf %123, %125 : vector<4x64xf32>
    %c0_66 = arith.constant 0 : index
    %c0_67 = arith.constant 0 : index
    %c0_68 = arith.constant 0 : index
    %127 = vector.load %arg5[%c0_66, %c0_67, %c0_68] : memref<1x4x64xf32, #tpu.memory_space<vmem>>, vector<1x4x64xf32>
    %128 = vector.shape_cast %127 : vector<1x4x64xf32> to vector<4x64xf32>
    %129 = arith.addf %126, %128 : vector<4x64xf32>
    %c0_69 = arith.constant 0 : index
    %c0_70 = arith.constant 0 : index
    %c0_71 = arith.constant 0 : index
    %130 = vector.load %arg6[%c0_69, %c0_70, %c0_71] : memref<1x4x64xf32, #tpu.memory_space<vmem>>, vector<1x4x64xf32>
    %131 = vector.shape_cast %130 : vector<1x4x64xf32> to vector<4x64xf32>
    %132 = vector.shape_cast %129 : vector<4x64xf32> to vector<1x4x64xf32>
    tpu.vector_store %arg6[%c0_69, %c0_70, %c0_71], %132 {strides = array<i32>} : memref<1x4x64xf32, #tpu.memory_space<vmem>>, vector<1x4x64xf32>,
    return
  }
  func.func @transform_0(%arg0: i32) -> (i32, i32, i32) {
    %c0_i32 = arith.constant 0 : i32
    %c0_i32_0 = arith.constant 0 : i32
    %c0_i32_1 = arith.constant 0 : i32
    return %arg0, %c0_i32, %c0_i32_0 : i32, i32, i32
  }
  func.func @transform_1(%arg0: i32) -> (i32, i32, i32, i32) {
    %c0_i32 = arith.constant 0 : i32
    %c0_i32_0 = arith.constant 0 : i32
    %c0_i32_1 = arith.constant 0 : i32
    %c0_i32_2 = arith.constant 0 : i32
    return %arg0, %c0_i32, %c0_i32_0, %c0_i32_1 : i32, i32, i32, i32
  }
  func.func @transform_2(%arg0: i32) -> (i32, i32) {
    %c0_i32 = arith.constant 0 : i32
    %c0_i32_0 = arith.constant 0 : i32
    %c0_i32_1 = arith.constant 0 : i32
    return %c0_i32, %c0_i32_0 : i32, i32
  }
  func.func @transform_3(%arg0: i32) -> (i32, i32) {
    %c0_i32 = arith.constant 0 : i32
    %c0_i32_0 = arith.constant 0 : i32
    %c0_i32_1 = arith.constant 0 : i32
    return %c0_i32, %c0_i32_0 : i32, i32
  }
  func.func @transform_4(%arg0: i32) -> (i32, i32, i32) {
    %c0_i32 = arith.constant 0 : i32
    %c0_i32_0 = arith.constant 0 : i32
    %c0_i32_1 = arith.constant 0 : i32
    return %arg0, %c0_i32, %c0_i32_0 : i32, i32, i32
  }
  func.func @transform_5(%arg0: i32) -> (i32, i32, i32) {
    %c0_i32 = arith.constant 0 : i32
    %c0_i32_0 = arith.constant 0 : i32
    %c0_i32_1 = arith.constant 0 : i32
    return %arg0, %c0_i32, %c0_i32_0 : i32, i32, i32
  }
}

module attributes {stable_mosaic.version = 11 : i64} {
  func.func @_pconv_kernel(%arg0: i32, %arg1: memref<1x4x64xf32, #tpu.memory_space<vmem>>, %arg2: memref<4x4xf32, #tpu.memory_space<vmem>>, %arg3: memref<4x1xf32, #tpu.memory_space<vmem>>, %arg4: memref<1x4x64xf32, #tpu.memory_space<vmem>>) attributes {dimension_semantics = [#tpu.dimension_semantics<parallel>], iteration_bounds = array<i64: 2>, scalar_prefetch = 0 : i64, scratch_operands = 0 : i64, tpu.core_type = #tpu.core_type<tc>, window_params = [{transform_indices = @transform_0, window_bounds = array<i64: 1, 4, 64>}, {pipeline_mode = #tpu.pipeline_mode<synchronous>, transform_indices = @transform_1, window_bounds = array<i64: 4, 4>}, {pipeline_mode = #tpu.pipeline_mode<synchronous>, transform_indices = @transform_2, window_bounds = array<i64: 4, 1>}, {transform_indices = @transform_3, window_bounds = array<i64: 1, 4, 64>}]} {
    %c0 = arith.constant 0 : index
    %c0_0 = arith.constant 0 : index
    %0 = vector.load %arg2[%c0, %c0_0] : memref<4x4xf32, #tpu.memory_space<vmem>>, vector<4x4xf32>
    %c0_1 = arith.constant 0 : index
    %c0_2 = arith.constant 0 : index
    %c0_3 = arith.constant 0 : index
    %1 = vector.load %arg1[%c0_1, %c0_2, %c0_3] : memref<1x4x64xf32, #tpu.memory_space<vmem>>, vector<1x4x64xf32>
    %2 = vector.shape_cast %1 : vector<1x4x64xf32> to vector<4x64xf32>
    %cst = arith.constant dense<0.000000e+00> : vector<4x64xf32>
    %3 = tpu.matmul %0, %2, %cst {dimension_numbers = #tpu.dot_dimension_numbers<[1], [0], [0], [1], [0, 0, 1, 1], [], []>} : vector<4x4xf32>, vector<4x64xf32>, vector<4x64xf32> -> vector<4x64xf32>
    %c0_4 = arith.constant 0 : index
    %c0_5 = arith.constant 0 : index
    %4 = vector.load %arg3[%c0_4, %c0_5] : memref<4x1xf32, #tpu.memory_space<vmem>>, vector<4x1xf32>
    %5 = vector.broadcast %4 : vector<4x1xf32> to vector<4x64xf32>
    %6 = arith.addf %3, %5 : vector<4x64xf32>
    %c0_6 = arith.constant 0 : index
    %c0_7 = arith.constant 0 : index
    %c0_8 = arith.constant 0 : index
    %7 = vector.load %arg4[%c0_6, %c0_7, %c0_8] : memref<1x4x64xf32, #tpu.memory_space<vmem>>, vector<1x4x64xf32>
    %8 = vector.shape_cast %7 : vector<1x4x64xf32> to vector<4x64xf32>
    %9 = vector.shape_cast %6 : vector<4x64xf32> to vector<1x4x64xf32>
    tpu.vector_store %arg4[%c0_6, %c0_7, %c0_8], %9 {strides = array<i32>} : memref<1x4x64xf32, #tpu.memory_space<vmem>>, vector<1x4x64xf32>,
    return
  }
  func.func @transform_0(%arg0: i32) -> (i32, i32, i32) {
    %c0_i32 = arith.constant 0 : i32
    %c0_i32_0 = arith.constant 0 : i32
    %c0_i32_1 = arith.constant 0 : i32
    return %arg0, %c0_i32, %c0_i32_0 : i32, i32, i32
  }
  func.func @transform_1(%arg0: i32) -> (i32, i32) {
    %c0_i32 = arith.constant 0 : i32
    %c0_i32_0 = arith.constant 0 : i32
    %c0_i32_1 = arith.constant 0 : i32
    return %c0_i32, %c0_i32_0 : i32, i32
  }
  func.func @transform_2(%arg0: i32) -> (i32, i32) {
    %c0_i32 = arith.constant 0 : i32
    %c0_i32_0 = arith.constant 0 : i32
    %c0_i32_1 = arith.constant 0 : i32
    return %c0_i32, %c0_i32_0 : i32, i32
  }
  func.func @transform_3(%arg0: i32) -> (i32, i32, i32) {
    %c0_i32 = arith.constant 0 : i32
    %c0_i32_0 = arith.constant 0 : i32
    %c0_i32_1 = arith.constant 0 : i32
    return %arg0, %c0_i32, %c0_i32_0 : i32, i32, i32
  }
}

</mosaic_0001>

<llo_original>
// kernel: _lambda_.10
$region0: #{_lambda_.10}
  #allocation0 [shape = 'u32[]', space=smem, size = 0x4, offset = 0x4, fixed_abs, tag = 'smem constant byte address 0x4 - core index']
  #allocation1 [shape = 'u32[144,128]{1,0:T(1,128)}', space=vmem, size = 0x12000, scoped, tag = 'internal scratch']
  %s0 = inlined_call_operand.vmem [shape: f32[2,2,64], index: 0, kind: input, shape index: {}]
  %s1 = inlined_call_operand.vmem [shape: f32[4,2], index: 1, kind: input, shape index: {}]
  %s2 = inlined_call_operand.vmem [shape: f32[4,1], index: 2, kind: input, shape index: {}]
  %s3 = inlined_call_operand.vmem [shape: f32[2,4,64], index: 3, kind: output, shape index: {}]
  %s4 = sld [smem:[#allocation0]]
  $region45: #{_lambda_.10} parent=0
    _
  %s6 = ssub.s32 1, %s4
  %s7 = scalar_select 0, %s6, %s4
  loop: start=0, step=1, limit=4
  $region2: #{_lambda_.10} parent=0 // loop_pre_header
    _
  $region3: #{_lambda_.10} parent=0 // loop_header
    %s9 = sphi 0, %s13
    %p10 = scmp.ge.s32.totalorder %s9, 4
    %s19 = sphi 0, %s21
    %s22 = sphi 0, %s19
    %s23 = sphi 0, %s22
    %s39 = sphi 0, %s23
    %s43 = sphi 0, %s43
    %s45 = sphi 0, %s43
    %s46 = sphi 0, %s45
    %s60 = sphi 0, %s46
    %s64 = sphi 0, %s64
    %s66 = sphi 0, %s64
    %s67 = sphi 0, %s66
    %s81 = sphi 0, %s67
    %s87 = sphi 0, %s89
    %s90 = sphi 0, %s87
    %s91 = sphi 0, %s90
    %s107 = sphi 0, %s91
  $region4: #{_lambda_.10} parent=0 // loop_header_branch
    %12 = sbr.rel (%p10) target = $region8
  $region5: #{_lambda_.10} parent=0 // loop_body
    %s14 = ssub.s32 %s9, 1
    %s15 = ssub.s32 %s9, 2
    %s16 = sadd.s32 %s9, 1
    %s17 = ssub.s32 %s9, %s16
    %p18 = scmp.eq.s32.totalorder %s17, 0
    %s20 = sadd.s32 %s19, 1
    %s21 = scalar_select %p18, %s19, %s20
    %p24 = pneg %p18
    %p25 = scmp.eq.s32.totalorder %s9, 1
    %p26 = por %p24, %p25
    %p27 = scmp.ne.s32.totalorder %s19, %s22
    %p28 = scmp.eq.s32.totalorder %s9, 0
    %p29 = por %p27, %p28
    %p30 = scmp.ne.s32.totalorder %s19, %s22
    %p31 = scmp.eq.s32.totalorder %s14, 1
    %p32 = por %p30, %p31
    %p33 = scmp.ne.s32.totalorder %s22, %s23
    %p34 = scmp.eq.s32.totalorder %s14, 0
    %p35 = por %p33, %p34
    %p36 = scmp.ne.s32.totalorder %s22, %s23
    %p37 = scmp.eq.s32.totalorder %s15, 1
    %p38 = por %p36, %p37
    %p40 = scmp.ne.s32.totalorder %s23, %s39
    %p41 = scmp.eq.s32.totalorder %s15, 0
    %p42 = por %p40, %p41
    %s44 = sadd.s32 %s43, 1
    %p47 = scmp.eq.s32.totalorder %s9, 1
    %p48 = scmp.ne.s32.totalorder %s43, %s45
    %p49 = scmp.eq.s32.totalorder %s9, 0
    %p50 = por %p48, %p49
    %p51 = scmp.ne.s32.totalorder %s43, %s45
    %p52 = scmp.eq.s32.totalorder %s14, 1
    %p53 = por %p51, %p52
    %p54 = scmp.ne.s32.totalorder %s45, %s46
    %p55 = scmp.eq.s32.totalorder %s14, 0
    %p56 = por %p54, %p55
    %p57 = scmp.ne.s32.totalorder %s45, %s46
    %p58 = scmp.eq.s32.totalorder %s15, 1
    %p59 = por %p57, %p58
    %p61 = scmp.ne.s32.totalorder %s46, %s60
    %p62 = scmp.eq.s32.totalorder %s15, 0
    %p63 = por %p61, %p62
    %s65 = sadd.s32 %s64, 1
    %p68 = scmp.eq.s32.totalorder %s9, 1
    %p69 = scmp.ne.s32.totalorder %s64, %s66
    %p70 = scmp.eq.s32.totalorder %s9, 0
    %p71 = por %p69, %p70
    %p72 = scmp.ne.s32.totalorder %s64, %s66
    %p73 = scmp.eq.s32.totalorder %s14, 1
    %p74 = por %p72, %p73
    %p75 = scmp.ne.s32.totalorder %s66, %s67
    %p76 = scmp.eq.s32.totalorder %s14, 0
    %p77 = por %p75, %p76
    %p78 = scmp.ne.s32.totalorder %s66, %s67
    %p79 = scmp.eq.s32.totalorder %s15, 1
    %p80 = por %p78, %p79
    %p82 = scmp.ne.s32.totalorder %s67, %s81
    %p83 = scmp.eq.s32.totalorder %s15, 0
    %p84 = por %p82, %p83
    %s85 = ssub.s32 %s9, %s16
    %p86 = scmp.eq.s32.totalorder %s85, 0
    %s88 = sadd.s32 %s87, 1
    %s89 = scalar_select %p86, %s87, %s88
    %p92 = pneg %p86
    %p93 = scmp.eq.s32.totalorder %s9, 1
    %p94 = por %p92, %p93
    %p95 = scmp.ne.s32.totalorder %s87, %s90
    %p96 = scmp.eq.s32.totalorder %s9, 0
    %p97 = por %p95, %p96
    %p98 = scmp.ne.s32.totalorder %s87, %s90
    %p99 = scmp.eq.s32.totalorder %s14, 1
    %p100 = por %p98, %p99
    %p101 = scmp.ne.s32.totalorder %s90, %s91
    %p102 = scmp.eq.s32.totalorder %s14, 0
    %p103 = por %p101, %p102
    %p104 = scmp.ne.s32.totalorder %s90, %s91
    %p105 = scmp.eq.s32.totalorder %s15, 1
    %p106 = por %p104, %p105
    %p108 = scmp.ne.s32.totalorder %s91, %s107
    %p109 = scmp.eq.s32.totalorder %s15, 0
    %p110 = por %p108, %p109
    %p111 = scmp.le.s32.totalorder 1, %s9
    %p112 = scmp.lt.s32.totalorder %s9, 3
    %p113 = pnand %p111, %p112
    %p114 = pneg %p113
    // Predicated region
    $region9: #{_lambda_.10} parent=5 // pred_check
      _
    $region10: #{_lambda_.10} parent=5 // pred_check_branch
      %116 = sbr.rel (%p113) target = $region12
    $region11: #{_lambda_.10} parent=5 // pred_region
      %s117 = ssub.s32 %s9, 1
      // Predicated region
      $region13: #{_lambda_.10} parent=11 // pred_check
        %p118 = pneg %p56
      $region14: #{_lambda_.10} parent=11 // pred_check_branch
        %120 = sbr.rel (%p118) target = $region16
      $region15: #{_lambda_.10} parent=11 // pred_region
        _
      $region16: #{_lambda_.10} parent=11 // pred_fallthru
        _
      // Predicated region
      $region17: #{_lambda_.10} parent=11 // pred_check
        %p121 = pneg %p77
      $region18: #{_lambda_.10} parent=11 // pred_check_branch
        %123 = sbr.rel (%p121) target = $region20
      $region19: #{_lambda_.10} parent=11 // pred_region
        _
      $region20: #{_lambda_.10} parent=11 // pred_fallthru
        _
    $region12: #{_lambda_.10} parent=5 // pred_fallthru
      _
    %p124 = scmp.lt.s32.totalorder %s9, 2
    // Predicated region
    $region21: #{_lambda_.10} parent=5 // pred_check
      %p125 = pneg %p124
    $region22: #{_lambda_.10} parent=5 // pred_check_branch
      %127 = sbr.rel (%p125) target = $region24
    $region23: #{_lambda_.10} parent=5 // pred_region
      // Predicated region
      $region25: #{_lambda_.10} parent=23 // pred_check
        %p128 = pneg %p29
      $region26: #{_lambda_.10} parent=23 // pred_check_branch
        %130 = sbr.rel (%p128) target = $region28
      $region27: #{_lambda_.10} parent=23 // pred_region
        %p131 = scmp.lt.s32.totalorder %s9, 1
        %s132 = scalar_select %p131, %s9, 1
        %s133 = smul.addr %s132, 2
        %s134 = scalar_lea.vmem %s0, %s133
      $region28: #{_lambda_.10} parent=23 // pred_fallthru
        _
    $region24: #{_lambda_.10} parent=5 // pred_fallthru
      _
    %p135 = scmp.le.s32.totalorder 1, %s9
    %p136 = scmp.lt.s32.totalorder %s9, 3
    %p137 = pnand %p135, %p136
    %p138 = pneg %p137
    // Predicated region
    $region29: #{_lambda_.10} parent=5 // pred_check
      _
    $region30: #{_lambda_.10} parent=5 // pred_check_branch
      %140 = sbr.rel (%p137) target = $region32
    $region31: #{_lambda_.10} parent=5 // pred_region
      %s141 = ssub.s32 %s9, 1
      %p142 = scmp.lt.s32.totalorder %s14, 1
      %s143 = scalar_select %p142, %s14, 1
      %s144 = smul.addr %s143, 2
      %s145 = scalar_lea.vmem %s0, %s144
      %p146 = pneg %p35
      %p147 = pneg %p32
      %p148 = pneg %p56
      %p149 = pneg %p53
      %p150 = pneg %p77
      %p151 = pneg %p74
      %p152 = pneg %p103
      %p153 = pneg %p100
      %p154 = scmp.lt.s32.totalorder %s14, 1
      %s155 = scalar_select %p154, %s14, 1
      %s156 = smul.addr %s155, 4
      %s157 = scalar_lea.vmem %s3, %s156
      %p158 = scmp.lt.s32.totalorder %s14, 1
      %s159 = scalar_select %p158, %s14, 1
      %s160 = smul.addr %s159, 2
      %s161 = scalar_lea.vmem %s0, %s160
      %p162 = scmp.lt.s32.totalorder %s14, 1
      %s163 = scalar_select %p162, %s14, 1
      %s164 = smul.addr %s163, 4
      %s165 = scalar_lea.vmem %s3, %s164
      %v166 = vld [vmem:[%s1] sm:$0xf]
      %v167 = vld [vmem:[%s161] sm:$0x3]
      %v168 = vld [vmem:[%s2] sm:$0xf]
      %170 = vset.pattern.permute.xlu0 0
      %171 = vperm.xlu0 %170, %v168
      %v172 = vpop.permute.xlu0 %171
      %vm174 = vcmask 15360
      %v176 = vsel %vm174, %v166, 0
      %vm178 = vcmask 1041408
      %v180 = vsel %vm178, %v167, 0
      %182 = vmatprep.subr.mxu0 0.0
      %183 = vmatpush1.msra.mxu0 %v180
      %184 = vmatprep.subr.mxu0 0.0
      %185 = vmatpush1.msra.mxu0 0.0
      %186 = vmatprep.subr.mxu0 0.0
      %187 = vmatpush1.msra.mxu0 0.0
      %188 = vmatprep.subr.mxu0 0.0
      %189 = vmatpush1.msra.mxu0 0.0
      %190 = vmatprep.subr.mxu0 0.0
      %191 = vmatpush1.msra.mxu0 0.0
      %192 = vmatprep.subr.mxu0 0.0
      %193 = vmatpush1.msra.mxu0 0.0
      %194 = vmatprep.subr.mxu0 0.0
      %195 = vmatpush1.msra.mxu0 0.0
      %196 = vmatprep.subr.mxu0 0.0
      %197 = vmatpush1.msra.mxu0 0.0
      %198 = vmatprep.subr.mxu0 0.0
      %199 = vmatpush1.msra.mxu0 0.0
      %200 = vmatprep.subr.mxu0 0.0
      %201 = vmatpush1.msra.mxu0 0.0
      %202 = vmatprep.subr.mxu0 0.0
      %203 = vmatpush1.msra.mxu0 0.0
      %204 = vmatprep.subr.mxu0 0.0
      %205 = vmatpush1.msra.mxu0 0.0
      %206 = vmatprep.subr.mxu0 0.0
      %207 = vmatpush1.msra.mxu0 0.0
      %208 = vmatprep.subr.mxu0 0.0
      %209 = vmatpush1.msra.mxu0 0.0
      %210 = vmatprep.subr.mxu0 0.0
      %211 = vmatpush1.msra.mxu0 0.0
      %212 = vmatprep.subr.mxu0 0.0
      %213 = vmatpush1.msra.mxu0 0.0
      %214 = vmatprep.subr.mxu0 0.0
      %215 = vmatpush1.msra.mxu0 0.0
      %216 = vmatprep.subr.mxu0 0.0
      %217 = vmatpush1.msra.mxu0 0.0
      %218 = vmatprep.subr.mxu0 0.0
      %219 = vmatpush1.msra.mxu0 0.0
      %220 = vmatprep.subr.mxu0 0.0
      %221 = vmatpush1.msra.mxu0 0.0
      %222 = vmatprep.subr.mxu0 0.0
      %223 = vmatpush1.msra.mxu0 0.0
      %224 = vmatprep.subr.mxu0 0.0
      %225 = vmatpush1.msra.mxu0 0.0
      %226 = vmatprep.subr.mxu0 0.0
      %227 = vmatpush1.msra.mxu0 0.0
      %228 = vmatprep.subr.mxu0 0.0
      %229 = vmatpush1.msra.mxu0 0.0
      %230 = vmatprep.subr.mxu0 0.0
      %231 = vmatpush1.msra.mxu0 0.0
      %232 = vmatprep.subr.mxu0 0.0
      %233 = vmatpush1.msra.mxu0 0.0
      %234 = vmatprep.subr.mxu0 0.0
      %235 = vmatpush1.msra.mxu0 0.0
      %236 = vmatprep.subr.mxu0 0.0
      %237 = vmatpush1.msra.mxu0 0.0
      %238 = vmatprep.subr.mxu0 0.0
      %239 = vmatpush1.msra.mxu0 0.0
      %240 = vmatprep.subr.mxu0 0.0
      %241 = vmatpush1.msra.mxu0 0.0
      %242 = vmatprep.subr.mxu0 0.0
      %243 = vmatpush1.msra.mxu0 0.0
      %244 = vmatprep.subr.mxu0 0.0
      %245 = vmatpush1.msra.mxu0 0.0
      %246 = vmatprep.mubr.f32.mxu0 0.0
      %247 = vmatmul.mubr.f32.gmra.mrb[0].mxu0 %v176
      %v248 = vpop.f32.mrb[0].mxu0
      %v249 = vadd.f32 %v172, %v248
      %v250 = vpop.f32.mrb[0].mxu0
      %251 = vdwg.mxu0
      %vm252 = vcmask 519168
      %253 = vst.msk [vmem:[%s165] sm:$0xf] %vm252, %v249
      %p254 = scmp.lt.s32.totalorder %s14, 1
      %s255 = scalar_select %p254, %s14, 1
      %s256 = smul.addr %s255, 4
      %s257 = scalar_lea.vmem %s3, %s256
      // Predicated region
      $region33: #{_lambda_.10} parent=31 // pred_check
        %p258 = pneg %p100
      $region34: #{_lambda_.10} parent=31 // pred_check_branch
        %260 = sbr.rel (%p258) target = $region36
      $region35: #{_lambda_.10} parent=31 // pred_region
        _
      $region36: #{_lambda_.10} parent=31 // pred_fallthru
        _
    $region32: #{_lambda_.10} parent=5 // pred_fallthru
      _
    %p261 = scmp.le.s32.totalorder 2, %s9
    // Predicated region
    $region37: #{_lambda_.10} parent=5 // pred_check
      %p262 = pneg %p261
    $region38: #{_lambda_.10} parent=5 // pred_check_branch
      %264 = sbr.rel (%p262) target = $region40
    $region39: #{_lambda_.10} parent=5 // pred_region
      %s265 = ssub.s32 %s9, 2
      // Predicated region
      $region41: #{_lambda_.10} parent=39 // pred_check
        %p266 = pneg %p106
      $region42: #{_lambda_.10} parent=39 // pred_check_branch
        %268 = sbr.rel (%p266) target = $region44
      $region43: #{_lambda_.10} parent=39 // pred_region
        %p269 = scmp.lt.s32.totalorder %s15, 1
        %s270 = scalar_select %p269, %s15, 1
        %s271 = smul.addr %s270, 4
        %s272 = scalar_lea.vmem %s3, %s271
      $region44: #{_lambda_.10} parent=39 // pred_fallthru
        _
    $region40: #{_lambda_.10} parent=5 // pred_fallthru
      _
  $region6: #{_lambda_.10} parent=0 // loop_footer
    %s13 = sadd.s32 1, %s9
  $region7: #{_lambda_.10} parent=0 // loop_footer_branch
    %8 = sbr.rel target = $region3
  $region8: #{_lambda_.10} parent=0 // loop_exit
    _

// kernel: _lambda_.11
$region0: #{_lambda_.11}
  #allocation0 [shape = 'u32[]', space=smem, size = 0x4, offset = 0x4, fixed_abs, tag = 'smem constant byte address 0x4 - core index']
  #allocation1 [shape = 'u32[144,128]{1,0:T(1,128)}', space=vmem, size = 0x12000, scoped, tag = 'internal scratch']
  %s0 = inlined_call_operand.vmem [shape: f32[5,16], index: 0, kind: input, shape index: {}]
  %s1 = inlined_call_operand.vmem [shape: f32[4,8,5], index: 1, kind: input, shape index: {}]
  %s2 = inlined_call_operand.vmem [shape: f32[32,1], index: 2, kind: input, shape index: {}]
  %s3 = inlined_call_operand.vmem [shape: f32[32,1], index: 3, kind: input, shape index: {}]
  %s4 = inlined_call_operand.vmem [shape: f32[32,1], index: 4, kind: input, shape index: {}]
  %s5 = inlined_call_operand.vmem [shape: f32[32,16], index: 5, kind: output, shape index: {}]
  %s6 = sld [smem:[#allocation0]]
  $region53: #{_lambda_.11} parent=0
    _
  %s8 = ssub.s32 1, %s6
  %s9 = scalar_select 0, %s8, %s6
  loop: start=0, step=1, limit=6
  $region2: #{_lambda_.11} parent=0 // loop_pre_header
    _
  $region3: #{_lambda_.11} parent=0 // loop_header
    %s11 = sphi 0, %s15
    %p12 = scmp.ge.s32.totalorder %s11, 6
    %s19 = sphi 0, %s19
    %s21 = sphi 0, %s19
    %s22 = sphi 0, %s21
    %s36 = sphi 0, %s22
    %s42 = sphi 0, %s44
    %s45 = sphi 0, %s42
    %s46 = sphi 0, %s45
    %s62 = sphi 0, %s46
    %s68 = sphi 0, %s70
    %s71 = sphi 0, %s68
    %s72 = sphi 0, %s71
    %s88 = sphi 0, %s72
    %s94 = sphi 0, %s96
    %s97 = sphi 0, %s94
    %s98 = sphi 0, %s97
    %s114 = sphi 0, %s98
    %s120 = sphi 0, %s122
    %s123 = sphi 0, %s120
    %s124 = sphi 0, %s123
    %s140 = sphi 0, %s124
    %s146 = sphi 0, %s148
    %s149 = sphi 0, %s146
    %s150 = sphi 0, %s149
    %s166 = sphi 0, %s150
  $region4: #{_lambda_.11} parent=0 // loop_header_branch
    %14 = sbr.rel (%p12) target = $region8
  $region5: #{_lambda_.11} parent=0 // loop_body
    %s16 = ssub.s32 %s11, 1
    %s17 = ssub.s32 %s11, 2
    %s18 = sadd.s32 %s11, 1
    %s20 = sadd.s32 %s19, 1
    %p23 = scmp.eq.s32.totalorder %s11, 3
    %p24 = scmp.ne.s32.totalorder %s19, %s21
    %p25 = scmp.eq.s32.totalorder %s11, 0
    %p26 = por %p24, %p25
    %p27 = scmp.ne.s32.totalorder %s19, %s21
    %p28 = scmp.eq.s32.totalorder %s16, 3
    %p29 = por %p27, %p28
    %p30 = scmp.ne.s32.totalorder %s21, %s22
    %p31 = scmp.eq.s32.totalorder %s16, 0
    %p32 = por %p30, %p31
    %p33 = scmp.ne.s32.totalorder %s21, %s22
    %p34 = scmp.eq.s32.totalorder %s17, 3
    %p35 = por %p33, %p34
    %p37 = scmp.ne.s32.totalorder %s22, %s36
    %p38 = scmp.eq.s32.totalorder %s17, 0
    %p39 = por %p37, %p38
    %s40 = ssub.s32 %s11, %s18
    %p41 = scmp.eq.s32.totalorder %s40, 0
    %s43 = sadd.s32 %s42, 1
    %s44 = scalar_select %p41, %s42, %s43
    %p47 = pneg %p41
    %p48 = scmp.eq.s32.totalorder %s11, 3
    %p49 = por %p47, %p48
    %p50 = scmp.ne.s32.totalorder %s42, %s45
    %p51 = scmp.eq.s32.totalorder %s11, 0
    %p52 = por %p50, %p51
    %p53 = scmp.ne.s32.totalorder %s42, %s45
    %p54 = scmp.eq.s32.totalorder %s16, 3
    %p55 = por %p53, %p54
    %p56 = scmp.ne.s32.totalorder %s45, %s46
    %p57 = scmp.eq.s32.totalorder %s16, 0
    %p58 = por %p56, %p57
    %p59 = scmp.ne.s32.totalorder %s45, %s46
    %p60 = scmp.eq.s32.totalorder %s17, 3
    %p61 = por %p59, %p60
    %p63 = scmp.ne.s32.totalorder %s46, %s62
    %p64 = scmp.eq.s32.totalorder %s17, 0
    %p65 = por %p63, %p64
    %s66 = ssub.s32 %s11, %s18
    %p67 = scmp.eq.s32.totalorder %s66, 0
    %s69 = sadd.s32 %s68, 1
    %s70 = scalar_select %p67, %s68, %s69
    %p73 = pneg %p67
    %p74 = scmp.eq.s32.totalorder %s11, 3
    %p75 = por %p73, %p74
    %p76 = scmp.ne.s32.totalorder %s68, %s71
    %p77 = scmp.eq.s32.totalorder %s11, 0
    %p78 = por %p76, %p77
    %p79 = scmp.ne.s32.totalorder %s68, %s71
    %p80 = scmp.eq.s32.totalorder %s16, 3
    %p81 = por %p79, %p80
    %p82 = scmp.ne.s32.totalorder %s71, %s72
    %p83 = scmp.eq.s32.totalorder %s16, 0
    %p84 = por %p82, %p83
    %p85 = scmp.ne.s32.totalorder %s71, %s72
    %p86 = scmp.eq.s32.totalorder %s17, 3
    %p87 = por %p85, %p86
    %p89 = scmp.ne.s32.totalorder %s72, %s88
    %p90 = scmp.eq.s32.totalorder %s17, 0
    %p91 = por %p89, %p90
    %s92 = ssub.s32 %s11, %s18
    %p93 = scmp.eq.s32.totalorder %s92, 0
    %s95 = sadd.s32 %s94, 1
    %s96 = scalar_select %p93, %s94, %s95
    %p99 = pneg %p93
    %p100 = scmp.eq.s32.totalorder %s11, 3
    %p101 = por %p99, %p100
    %p102 = scmp.ne.s32.totalorder %s94, %s97
    %p103 = scmp.eq.s32.totalorder %s11, 0
    %p104 = por %p102, %p103
    %p105 = scmp.ne.s32.totalorder %s94, %s97
    %p106 = scmp.eq.s32.totalorder %s16, 3
    %p107 = por %p105, %p106
    %p108 = scmp.ne.s32.totalorder %s97, %s98
    %p109 = scmp.eq.s32.totalorder %s16, 0
    %p110 = por %p108, %p109
    %p111 = scmp.ne.s32.totalorder %s97, %s98
    %p112 = scmp.eq.s32.totalorder %s17, 3
    %p113 = por %p111, %p112
    %p115 = scmp.ne.s32.totalorder %s98, %s114
    %p116 = scmp.eq.s32.totalorder %s17, 0
    %p117 = por %p115, %p116
    %s118 = ssub.s32 %s11, %s18
    %p119 = scmp.eq.s32.totalorder %s118, 0
    %s121 = sadd.s32 %s120, 1
    %s122 = scalar_select %p119, %s120, %s121
    %p125 = pneg %p119
    %p126 = scmp.eq.s32.totalorder %s11, 3
    %p127 = por %p125, %p126
    %p128 = scmp.ne.s32.totalorder %s120, %s123
    %p129 = scmp.eq.s32.totalorder %s11, 0
    %p130 = por %p128, %p129
    %p131 = scmp.ne.s32.totalorder %s120, %s123
    %p132 = scmp.eq.s32.totalorder %s16, 3
    %p133 = por %p131, %p132
    %p134 = scmp.ne.s32.totalorder %s123, %s124
    %p135 = scmp.eq.s32.totalorder %s16, 0
    %p136 = por %p134, %p135
    %p137 = scmp.ne.s32.totalorder %s123, %s124
    %p138 = scmp.eq.s32.totalorder %s17, 3
    %p139 = por %p137, %p138
    %p141 = scmp.ne.s32.totalorder %s124, %s140
    %p142 = scmp.eq.s32.totalorder %s17, 0
    %p143 = por %p141, %p142
    %s144 = ssub.s32 %s11, %s18
    %p145 = scmp.eq.s32.totalorder %s144, 0
    %s147 = sadd.s32 %s146, 1
    %s148 = scalar_select %p145, %s146, %s147
    %p151 = pneg %p145
    %p152 = scmp.eq.s32.totalorder %s11, 3
    %p153 = por %p151, %p152
    %p154 = scmp.ne.s32.totalorder %s146, %s149
    %p155 = scmp.eq.s32.totalorder %s11, 0
    %p156 = por %p154, %p155
    %p157 = scmp.ne.s32.totalorder %s146, %s149
    %p158 = scmp.eq.s32.totalorder %s16, 3
    %p159 = por %p157, %p158
    %p160 = scmp.ne.s32.totalorder %s149, %s150
    %p161 = scmp.eq.s32.totalorder %s16, 0
    %p162 = por %p160, %p161
    %p163 = scmp.ne.s32.totalorder %s149, %s150
    %p164 = scmp.eq.s32.totalorder %s17, 3
    %p165 = por %p163, %p164
    %p167 = scmp.ne.s32.totalorder %s150, %s166
    %p168 = scmp.eq.s32.totalorder %s17, 0
    %p169 = por %p167, %p168
    %p170 = scmp.le.s32.totalorder 1, %s11
    %p171 = scmp.lt.s32.totalorder %s11, 5
    %p172 = pnand %p170, %p171
    %p173 = pneg %p172
    // Predicated region
    $region9: #{_lambda_.11} parent=5 // pred_check
      _
    $region10: #{_lambda_.11} parent=5 // pred_check_branch
      %175 = sbr.rel (%p172) target = $region12
    $region11: #{_lambda_.11} parent=5 // pred_region
      %s176 = ssub.s32 %s11, 1
      // Predicated region
      $region13: #{_lambda_.11} parent=11 // pred_check
        %p177 = pneg %p32
      $region14: #{_lambda_.11} parent=11 // pred_check_branch
        %179 = sbr.rel (%p177) target = $region16
      $region15: #{_lambda_.11} parent=11 // pred_region
        _
      $region16: #{_lambda_.11} parent=11 // pred_fallthru
        _
    $region12: #{_lambda_.11} parent=5 // pred_fallthru
      _
    %p180 = scmp.lt.s32.totalorder %s11, 4
    // Predicated region
    $region17: #{_lambda_.11} parent=5 // pred_check
      %p181 = pneg %p180
    $region18: #{_lambda_.11} parent=5 // pred_check_branch
      %183 = sbr.rel (%p181) target = $region20
    $region19: #{_lambda_.11} parent=5 // pred_region
      // Predicated region
      $region21: #{_lambda_.11} parent=19 // pred_check
        %p184 = pneg %p52
      $region22: #{_lambda_.11} parent=19 // pred_check_branch
        %186 = sbr.rel (%p184) target = $region24
      $region23: #{_lambda_.11} parent=19 // pred_region
        %p187 = scmp.lt.s32.totalorder %s11, 3
        %s188 = scalar_select %p187, %s11, 3
        %s189 = smul.addr %s188, 8
        %s190 = scalar_lea.vmem %s1, %s189
      $region24: #{_lambda_.11} parent=19 // pred_fallthru
        _
      // Predicated region
      $region25: #{_lambda_.11} parent=19 // pred_check
        %p191 = pneg %p78
      $region26: #{_lambda_.11} parent=19 // pred_check_branch
        %193 = sbr.rel (%p191) target = $region28
      $region27: #{_lambda_.11} parent=19 // pred_region
        %p194 = scmp.lt.s32.totalorder %s11, 3
        %s195 = scalar_select %p194, %s11, 3
        %s196 = smul.addr %s195, 8
        %s197 = scalar_lea.vmem %s2, %s196
      $region28: #{_lambda_.11} parent=19 // pred_fallthru
        _
      // Predicated region
      $region29: #{_lambda_.11} parent=19 // pred_check
        %p198 = pneg %p104
      $region30: #{_lambda_.11} parent=19 // pred_check_branch
        %200 = sbr.rel (%p198) target = $region32
      $region31: #{_lambda_.11} parent=19 // pred_region
        %p201 = scmp.lt.s32.totalorder %s11, 3
        %s202 = scalar_select %p201, %s11, 3
        %s203 = smul.addr %s202, 8
        %s204 = scalar_lea.vmem %s3, %s203
      $region32: #{_lambda_.11} parent=19 // pred_fallthru
        _
      // Predicated region
      $region33: #{_lambda_.11} parent=19 // pred_check
        %p205 = pneg %p130
      $region34: #{_lambda_.11} parent=19 // pred_check_branch
        %207 = sbr.rel (%p205) target = $region36
      $region35: #{_lambda_.11} parent=19 // pred_region
        %p208 = scmp.lt.s32.totalorder %s11, 3
        %s209 = scalar_select %p208, %s11, 3
        %s210 = smul.addr %s209, 8
        %s211 = scalar_lea.vmem %s4, %s210
      $region36: #{_lambda_.11} parent=19 // pred_fallthru
        _
    $region20: #{_lambda_.11} parent=5 // pred_fallthru
      _
    %p212 = scmp.le.s32.totalorder 1, %s11
    %p213 = scmp.lt.s32.totalorder %s11, 5
    %p214 = pnand %p212, %p213
    %p215 = pneg %p214
    // Predicated region
    $region37: #{_lambda_.11} parent=5 // pred_check
      _
    $region38: #{_lambda_.11} parent=5 // pred_check_branch
      %217 = sbr.rel (%p214) target = $region40
    $region39: #{_lambda_.11} parent=5 // pred_region
      %s218 = ssub.s32 %s11, 1
      %p219 = pneg %p32
      %p220 = pneg %p29
      %p221 = scmp.lt.s32.totalorder %s16, 3
      %s222 = scalar_select %p221, %s16, 3
      %s223 = smul.addr %s222, 8
      %s224 = scalar_lea.vmem %s1, %s223
      %p225 = pneg %p58
      %p226 = pneg %p55
      %p227 = scmp.lt.s32.totalorder %s16, 3
      %s228 = scalar_select %p227, %s16, 3
      %s229 = smul.addr %s228, 8
      %s230 = scalar_lea.vmem %s2, %s229
      %p231 = pneg %p84
      %p232 = pneg %p81
      %p233 = scmp.lt.s32.totalorder %s16, 3
      %s234 = scalar_select %p233, %s16, 3
      %s235 = smul.addr %s234, 8
      %s236 = scalar_lea.vmem %s3, %s235
      %p237 = pneg %p110
      %p238 = pneg %p107
      %p239 = scmp.lt.s32.totalorder %s16, 3
      %s240 = scalar_select %p239, %s16, 3
      %s241 = smul.addr %s240, 8
      %s242 = scalar_lea.vmem %s4, %s241
      %p243 = pneg %p136
      %p244 = pneg %p133
      %p245 = pneg %p162
      %p246 = pneg %p159
      %p247 = scmp.lt.s32.totalorder %s16, 3
      %s248 = scalar_select %p247, %s16, 3
      %s249 = smul.addr %s248, 8
      %s250 = scalar_lea.vmem %s5, %s249
      %p251 = scmp.lt.s32.totalorder %s16, 3
      %s252 = scalar_select %p251, %s16, 3
      %s253 = smul.addr %s252, 8
      %s254 = scalar_lea.vmem %s1, %s253
      %p255 = scmp.lt.s32.totalorder %s16, 3
      %s256 = scalar_select %p255, %s16, 3
      %s257 = smul.addr %s256, 8
      %s258 = scalar_lea.vmem %s2, %s257
      %p259 = scmp.lt.s32.totalorder %s16, 3
      %s260 = scalar_select %p259, %s16, 3
      %s261 = smul.addr %s260, 8
      %s262 = scalar_lea.vmem %s3, %s261
      %p263 = scmp.lt.s32.totalorder %s16, 3
      %s264 = scalar_select %p263, %s16, 3
      %s265 = smul.addr %s264, 8
      %s266 = scalar_lea.vmem %s4, %s265
      %p267 = scmp.lt.s32.totalorder %s16, 3
      %s268 = scalar_select %p267, %s16, 3
      %s269 = smul.addr %s268, 8
      %s270 = scalar_lea.vmem %s5, %s269
      %v271 = vld [vmem:[%s254] sm:$0xff]
      %v272 = vld [vmem:[%s0] sm:$0x1f]
      %v273 = vld [vmem:[%s258] sm:$0xff]
      %275 = vset.pattern.permute.xlu0 0
      %276 = vperm.xlu0 %275, %v273
      %v277 = vpop.permute.xlu0 %276
      %vm279 = vcmask 39936
      %v281 = vsel %vm279, %v271, 0
      %vm283 = vcmask 1044480
      %v285 = vsel %vm283, %v272, 0
      %287 = vmatprep.subr.mxu0 0.0
      %288 = vmatpush1.msra.mxu0 %v285
      %289 = vmatprep.subr.mxu0 0.0
      %290 = vmatpush1.msra.mxu0 0.0
      %291 = vmatprep.subr.mxu0 0.0
      %292 = vmatpush1.msra.mxu0 0.0
      %293 = vmatprep.subr.mxu0 0.0
      %294 = vmatpush1.msra.mxu0 0.0
      %295 = vmatprep.subr.mxu0 0.0
      %296 = vmatpush1.msra.mxu0 0.0
      %297 = vmatprep.subr.mxu0 0.0
      %298 = vmatpush1.msra.mxu0 0.0
      %299 = vmatprep.subr.mxu0 0.0
      %300 = vmatpush1.msra.mxu0 0.0
      %301 = vmatprep.subr.mxu0 0.0
      %302 = vmatpush1.msra.mxu0 0.0
      %303 = vmatprep.subr.mxu0 0.0
      %304 = vmatpush1.msra.mxu0 0.0
      %305 = vmatprep.subr.mxu0 0.0
      %306 = vmatpush1.msra.mxu0 0.0
      %307 = vmatprep.subr.mxu0 0.0
      %308 = vmatpush1.msra.mxu0 0.0
      %309 = vmatprep.subr.mxu0 0.0
      %310 = vmatpush1.msra.mxu0 0.0
      %311 = vmatprep.subr.mxu0 0.0
      %312 = vmatpush1.msra.mxu0 0.0
      %313 = vmatprep.subr.mxu0 0.0
      %314 = vmatpush1.msra.mxu0 0.0
      %315 = vmatprep.subr.mxu0 0.0
      %316 = vmatpush1.msra.mxu0 0.0
      %317 = vmatprep.subr.mxu0 0.0
      %318 = vmatpush1.msra.mxu0 0.0
      %319 = vmatprep.subr.mxu0 0.0
      %320 = vmatpush1.msra.mxu0 0.0
      %321 = vmatprep.subr.mxu0 0.0
      %322 = vmatpush1.msra.mxu0 0.0
      %323 = vmatprep.subr.mxu0 0.0
      %324 = vmatpush1.msra.mxu0 0.0
      %325 = vmatprep.subr.mxu0 0.0
      %326 = vmatpush1.msra.mxu0 0.0
      %327 = vmatprep.subr.mxu0 0.0
      %328 = vmatpush1.msra.mxu0 0.0
      %329 = vmatprep.subr.mxu0 0.0
      %330 = vmatpush1.msra.mxu0 0.0
      %331 = vmatprep.subr.mxu0 0.0
      %332 = vmatpush1.msra.mxu0 0.0
      %333 = vmatprep.subr.mxu0 0.0
      %334 = vmatpush1.msra.mxu0 0.0
      %335 = vmatprep.subr.mxu0 0.0
      %336 = vmatpush1.msra.mxu0 0.0
      %337 = vmatprep.subr.mxu0 0.0
      %338 = vmatpush1.msra.mxu0 0.0
      %339 = vmatprep.subr.mxu0 0.0
      %340 = vmatpush1.msra.mxu0 0.0
      %341 = vmatprep.subr.mxu0 0.0
      %342 = vmatpush1.msra.mxu0 0.0
      %343 = vmatprep.subr.mxu0 0.0
      %344 = vmatpush1.msra.mxu0 0.0
      %345 = vmatprep.subr.mxu0 0.0
      %346 = vmatpush1.msra.mxu0 0.0
      %347 = vmatprep.subr.mxu0 0.0
      %348 = vmatpush1.msra.mxu0 0.0
      %349 = vmatprep.subr.mxu0 0.0
      %350 = vmatpush1.msra.mxu0 0.0
      %351 = vmatprep.mubr.f32.mxu0 0.0
      %352 = vmatmul.mubr.f32.gmra.mrb[0].mxu0 %v281
      %v353 = vpop.f32.mrb[0].mxu0
      %v354 = vadd.f32 %v277, %v353
      %v355 = vpop.f32.mrb[0].mxu0
      %356 = vdwg.mxu0
      %vm357 = vcmask 130048
      %v358 = vsel %vm357, %v354, 0.0
      %359 = vadd.xlane.f32.xlu0 %v358
      %v360 = vpop.xlane.xlu0 %359
      %v361 = vrcp.pop 16.0
      %v362 = vmul.f32 %v360, %v361
      %v363 = vsub.f32 %v354, %v362
      %v364 = vmul.f32 %v363, %v363
      %v365 = vsel %vm357, %v364, 0.0
      %366 = vadd.xlane.f32.xlu0 %v365
      %v367 = vpop.xlane.xlu0 %366
      %v368 = vmul.f32 %v367, %v361
      %v369 = vld [vmem:[%s262] sm:$0xff]
      %v370 = vadd.f32 %v368, 1e-05
      %v371 = vrsqrt.pop %v370
      %v372 = vmul.f32 %v369, %v371
      %374 = vset.pattern.permute.xlu0 0
      %375 = vperm.xlu0 %374, %v372
      %v376 = vpop.permute.xlu0 %375
      %v378 = vmul.f32 %v363, %v376
      %v379 = vld [vmem:[%s266] sm:$0xff]
      %381 = vset.pattern.permute.xlu0 0
      %382 = vperm.xlu0 %381, %v379
      %v383 = vpop.permute.xlu0 %382
      %v385 = vadd.f32 %v378, %v383
      %v386 = vtanh.pop %v385
      %387 = vst.msk [vmem:[%s270] sm:$0xff] %vm357, %v386
      %p388 = scmp.lt.s32.totalorder %s16, 3
      %s389 = scalar_select %p388, %s16, 3
      %s390 = smul.addr %s389, 8
      %s391 = scalar_lea.vmem %s5, %s390
      // Predicated region
      $region41: #{_lambda_.11} parent=39 // pred_check
        %p392 = pneg %p159
      $region42: #{_lambda_.11} parent=39 // pred_check_branch
        %394 = sbr.rel (%p392) target = $region44
      $region43: #{_lambda_.11} parent=39 // pred_region
        _
      $region44: #{_lambda_.11} parent=39 // pred_fallthru
        _
    $region40: #{_lambda_.11} parent=5 // pred_fallthru
      _
    %p395 = scmp.le.s32.totalorder 2, %s11
    // Predicated region
    $region45: #{_lambda_.11} parent=5 // pred_check
      %p396 = pneg %p395
    $region46: #{_lambda_.11} parent=5 // pred_check_branch
      %398 = sbr.rel (%p396) target = $region48
    $region47: #{_lambda_.11} parent=5 // pred_region
      %s399 = ssub.s32 %s11, 2
      // Predicated region
      $region49: #{_lambda_.11} parent=47 // pred_check
        %p400 = pneg %p165
      $region50: #{_lambda_.11} parent=47 // pred_check_branch
        %402 = sbr.rel (%p400) target = $region52
      $region51: #{_lambda_.11} parent=47 // pred_region
        %p403 = scmp.lt.s32.totalorder %s17, 3
        %s404 = scalar_select %p403, %s17, 3
        %s405 = smul.addr %s404, 8
        %s406 = scalar_lea.vmem %s5, %s405
      $region52: #{_lambda_.11} parent=47 // pred_fallthru
        _
    $region48: #{_lambda_.11} parent=5 // pred_fallthru
      _
  $region6: #{_lambda_.11} parent=0 // loop_footer
    %s15 = sadd.s32 1, %s11
  $region7: #{_lambda_.11} parent=0 // loop_footer_branch
    %10 = sbr.rel target = $region3
  $region8: #{_lambda_.11} parent=0 // loop_exit
    _

// kernel: _lambda_.12
$region0: #{_lambda_.12}
  #allocation0 [shape = 'u32[]', space=smem, size = 0x4, offset = 0x4, fixed_abs, tag = 'smem constant byte address 0x4 - core index']
  #allocation1 [shape = 'u32[144,128]{1,0:T(1,128)}', space=vmem, size = 0x12000, scoped, tag = 'internal scratch']
  %s0 = inlined_call_operand.vmem [shape: f32[32,16], index: 0, kind: input, shape index: {}]
  %s1 = inlined_call_operand.vmem [shape: f32[4,8,8], index: 1, kind: input, shape index: {}]
  %s2 = inlined_call_operand.vmem [shape: f32[32,1], index: 2, kind: input, shape index: {}]
  %s3 = inlined_call_operand.vmem [shape: f32[32,1], index: 3, kind: input, shape index: {}]
  %s4 = inlined_call_operand.vmem [shape: f32[32,1], index: 4, kind: input, shape index: {}]
  %s5 = inlined_call_operand.vmem [shape: f32[32,16], index: 5, kind: output, shape index: {}]
  %s6 = sld [smem:[#allocation0]]
  $region53: #{_lambda_.12} parent=0
    _
  %s8 = ssub.s32 1, %s6
  %s9 = scalar_select 0, %s8, %s6
  loop: start=0, step=1, limit=6
  $region2: #{_lambda_.12} parent=0 // loop_pre_header
    _
  $region3: #{_lambda_.12} parent=0 // loop_header
    %s11 = sphi 0, %s15
    %p12 = scmp.ge.s32.totalorder %s11, 6
    %s21 = sphi 0, %s23
    %s24 = sphi 0, %s21
    %s25 = sphi 0, %s24
    %s41 = sphi 0, %s25
    %s47 = sphi 0, %s49
    %s50 = sphi 0, %s47
    %s51 = sphi 0, %s50
    %s67 = sphi 0, %s51
    %s73 = sphi 0, %s75
    %s76 = sphi 0, %s73
    %s77 = sphi 0, %s76
    %s93 = sphi 0, %s77
    %s99 = sphi 0, %s101
    %s102 = sphi 0, %s99
    %s103 = sphi 0, %s102
    %s119 = sphi 0, %s103
    %s125 = sphi 0, %s127
    %s128 = sphi 0, %s125
    %s129 = sphi 0, %s128
    %s145 = sphi 0, %s129
    %s151 = sphi 0, %s153
    %s154 = sphi 0, %s151
    %s155 = sphi 0, %s154
    %s171 = sphi 0, %s155
  $region4: #{_lambda_.12} parent=0 // loop_header_branch
    %14 = sbr.rel (%p12) target = $region8
  $region5: #{_lambda_.12} parent=0 // loop_body
    %s16 = ssub.s32 %s11, 1
    %s17 = ssub.s32 %s11, 2
    %s18 = sadd.s32 %s11, 1
    %s19 = ssub.s32 %s11, %s18
    %p20 = scmp.eq.s32.totalorder %s19, 0
    %s22 = sadd.s32 %s21, 1
    %s23 = scalar_select %p20, %s21, %s22
    %p26 = pneg %p20
    %p27 = scmp.eq.s32.totalorder %s11, 3
    %p28 = por %p26, %p27
    %p29 = scmp.ne.s32.totalorder %s21, %s24
    %p30 = scmp.eq.s32.totalorder %s11, 0
    %p31 = por %p29, %p30
    %p32 = scmp.ne.s32.totalorder %s21, %s24
    %p33 = scmp.eq.s32.totalorder %s16, 3
    %p34 = por %p32, %p33
    %p35 = scmp.ne.s32.totalorder %s24, %s25
    %p36 = scmp.eq.s32.totalorder %s16, 0
    %p37 = por %p35, %p36
    %p38 = scmp.ne.s32.totalorder %s24, %s25
    %p39 = scmp.eq.s32.totalorder %s17, 3
    %p40 = por %p38, %p39
    %p42 = scmp.ne.s32.totalorder %s25, %s41
    %p43 = scmp.eq.s32.totalorder %s17, 0
    %p44 = por %p42, %p43
    %s45 = ssub.s32 %s11, %s18
    %p46 = scmp.eq.s32.totalorder %s45, 0
    %s48 = sadd.s32 %s47, 1
    %s49 = scalar_select %p46, %s47, %s48
    %p52 = pneg %p46
    %p53 = scmp.eq.s32.totalorder %s11, 3
    %p54 = por %p52, %p53
    %p55 = scmp.ne.s32.totalorder %s47, %s50
    %p56 = scmp.eq.s32.totalorder %s11, 0
    %p57 = por %p55, %p56
    %p58 = scmp.ne.s32.totalorder %s47, %s50
    %p59 = scmp.eq.s32.totalorder %s16, 3
    %p60 = por %p58, %p59
    %p61 = scmp.ne.s32.totalorder %s50, %s51
    %p62 = scmp.eq.s32.totalorder %s16, 0
    %p63 = por %p61, %p62
    %p64 = scmp.ne.s32.totalorder %s50, %s51
    %p65 = scmp.eq.s32.totalorder %s17, 3
    %p66 = por %p64, %p65
    %p68 = scmp.ne.s32.totalorder %s51, %s67
    %p69 = scmp.eq.s32.totalorder %s17, 0
    %p70 = por %p68, %p69
    %s71 = ssub.s32 %s11, %s18
    %p72 = scmp.eq.s32.totalorder %s71, 0
    %s74 = sadd.s32 %s73, 1
    %s75 = scalar_select %p72, %s73, %s74
    %p78 = pneg %p72
    %p79 = scmp.eq.s32.totalorder %s11, 3
    %p80 = por %p78, %p79
    %p81 = scmp.ne.s32.totalorder %s73, %s76
    %p82 = scmp.eq.s32.totalorder %s11, 0
    %p83 = por %p81, %p82
    %p84 = scmp.ne.s32.totalorder %s73, %s76
    %p85 = scmp.eq.s32.totalorder %s16, 3
    %p86 = por %p84, %p85
    %p87 = scmp.ne.s32.totalorder %s76, %s77
    %p88 = scmp.eq.s32.totalorder %s16, 0
    %p89 = por %p87, %p88
    %p90 = scmp.ne.s32.totalorder %s76, %s77
    %p91 = scmp.eq.s32.totalorder %s17, 3
    %p92 = por %p90, %p91
    %p94 = scmp.ne.s32.totalorder %s77, %s93
    %p95 = scmp.eq.s32.totalorder %s17, 0
    %p96 = por %p94, %p95
    %s97 = ssub.s32 %s11, %s18
    %p98 = scmp.eq.s32.totalorder %s97, 0
    %s100 = sadd.s32 %s99, 1
    %s101 = scalar_select %p98, %s99, %s100
    %p104 = pneg %p98
    %p105 = scmp.eq.s32.totalorder %s11, 3
    %p106 = por %p104, %p105
    %p107 = scmp.ne.s32.totalorder %s99, %s102
    %p108 = scmp.eq.s32.totalorder %s11, 0
    %p109 = por %p107, %p108
    %p110 = scmp.ne.s32.totalorder %s99, %s102
    %p111 = scmp.eq.s32.totalorder %s16, 3
    %p112 = por %p110, %p111
    %p113 = scmp.ne.s32.totalorder %s102, %s103
    %p114 = scmp.eq.s32.totalorder %s16, 0
    %p115 = por %p113, %p114
    %p116 = scmp.ne.s32.totalorder %s102, %s103
    %p117 = scmp.eq.s32.totalorder %s17, 3
    %p118 = por %p116, %p117
    %p120 = scmp.ne.s32.totalorder %s103, %s119
    %p121 = scmp.eq.s32.totalorder %s17, 0
    %p122 = por %p120, %p121
    %s123 = ssub.s32 %s11, %s18
    %p124 = scmp.eq.s32.totalorder %s123, 0
    %s126 = sadd.s32 %s125, 1
    %s127 = scalar_select %p124, %s125, %s126
    %p130 = pneg %p124
    %p131 = scmp.eq.s32.totalorder %s11, 3
    %p132 = por %p130, %p131
    %p133 = scmp.ne.s32.totalorder %s125, %s128
    %p134 = scmp.eq.s32.totalorder %s11, 0
    %p135 = por %p133, %p134
    %p136 = scmp.ne.s32.totalorder %s125, %s128
    %p137 = scmp.eq.s32.totalorder %s16, 3
    %p138 = por %p136, %p137
    %p139 = scmp.ne.s32.totalorder %s128, %s129
    %p140 = scmp.eq.s32.totalorder %s16, 0
    %p141 = por %p139, %p140
    %p142 = scmp.ne.s32.totalorder %s128, %s129
    %p143 = scmp.eq.s32.totalorder %s17, 3
    %p144 = por %p142, %p143
    %p146 = scmp.ne.s32.totalorder %s129, %s145
    %p147 = scmp.eq.s32.totalorder %s17, 0
    %p148 = por %p146, %p147
    %s149 = ssub.s32 %s11, %s18
    %p150 = scmp.eq.s32.totalorder %s149, 0
    %s152 = sadd.s32 %s151, 1
    %s153 = scalar_select %p150, %s151, %s152
    %p156 = pneg %p150
    %p157 = scmp.eq.s32.totalorder %s11, 3
    %p158 = por %p156, %p157
    %p159 = scmp.ne.s32.totalorder %s151, %s154
    %p160 = scmp.eq.s32.totalorder %s11, 0
    %p161 = por %p159, %p160
    %p162 = scmp.ne.s32.totalorder %s151, %s154
    %p163 = scmp.eq.s32.totalorder %s16, 3
    %p164 = por %p162, %p163
    %p165 = scmp.ne.s32.totalorder %s154, %s155
    %p166 = scmp.eq.s32.totalorder %s16, 0
    %p167 = por %p165, %p166
    %p168 = scmp.ne.s32.totalorder %s154, %s155
    %p169 = scmp.eq.s32.totalorder %s17, 3
    %p170 = por %p168, %p169
    %p172 = scmp.ne.s32.totalorder %s155, %s171
    %p173 = scmp.eq.s32.totalorder %s17, 0
    %p174 = por %p172, %p173
    %p175 = scmp.le.s32.totalorder 1, %s11
    %p176 = scmp.lt.s32.totalorder %s11, 5
    %p177 = pnand %p175, %p176
    %p178 = pneg %p177
    // Predicated region
    $region9: #{_lambda_.12} parent=5 // pred_check
      _
    $region10: #{_lambda_.12} parent=5 // pred_check_branch
      %180 = sbr.rel (%p177) target = $region12
    $region11: #{_lambda_.12} parent=5 // pred_region
      %s181 = ssub.s32 %s11, 1
    $region12: #{_lambda_.12} parent=5 // pred_fallthru
      _
    %p182 = scmp.lt.s32.totalorder %s11, 4
    // Predicated region
    $region13: #{_lambda_.12} parent=5 // pred_check
      %p183 = pneg %p182
    $region14: #{_lambda_.12} parent=5 // pred_check_branch
      %185 = sbr.rel (%p183) target = $region16
    $region15: #{_lambda_.12} parent=5 // pred_region
      // Predicated region
      $region17: #{_lambda_.12} parent=15 // pred_check
        %p186 = pneg %p31
      $region18: #{_lambda_.12} parent=15 // pred_check_branch
        %188 = sbr.rel (%p186) target = $region20
      $region19: #{_lambda_.12} parent=15 // pred_region
        %p189 = scmp.lt.s32.totalorder %s11, 3
        %s190 = scalar_select %p189, %s11, 3
        %s191 = smul.addr %s190, 8
        %s192 = scalar_lea.vmem %s0, %s191
      $region20: #{_lambda_.12} parent=15 // pred_fallthru
        _
      // Predicated region
      $region21: #{_lambda_.12} parent=15 // pred_check
        %p193 = pneg %p57
      $region22: #{_lambda_.12} parent=15 // pred_check_branch
        %195 = sbr.rel (%p193) target = $region24
      $region23: #{_lambda_.12} parent=15 // pred_region
        %p196 = scmp.lt.s32.totalorder %s11, 3
        %s197 = scalar_select %p196, %s11, 3
        %s198 = smul.addr %s197, 8
        %s199 = scalar_lea.vmem %s1, %s198
      $region24: #{_lambda_.12} parent=15 // pred_fallthru
        _
      // Predicated region
      $region25: #{_lambda_.12} parent=15 // pred_check
        %p200 = pneg %p83
      $region26: #{_lambda_.12} parent=15 // pred_check_branch
        %202 = sbr.rel (%p200) target = $region28
      $region27: #{_lambda_.12} parent=15 // pred_region
        %p203 = scmp.lt.s32.totalorder %s11, 3
        %s204 = scalar_select %p203, %s11, 3
        %s205 = smul.addr %s204, 8
        %s206 = scalar_lea.vmem %s2, %s205
      $region28: #{_lambda_.12} parent=15 // pred_fallthru
        _
      // Predicated region
      $region29: #{_lambda_.12} parent=15 // pred_check
        %p207 = pneg %p109
      $region30: #{_lambda_.12} parent=15 // pred_check_branch
        %209 = sbr.rel (%p207) target = $region32
      $region31: #{_lambda_.12} parent=15 // pred_region
        %p210 = scmp.lt.s32.totalorder %s11, 3
        %s211 = scalar_select %p210, %s11, 3
        %s212 = smul.addr %s211, 8
        %s213 = scalar_lea.vmem %s3, %s212
      $region32: #{_lambda_.12} parent=15 // pred_fallthru
        _
      // Predicated region
      $region33: #{_lambda_.12} parent=15 // pred_check
        %p214 = pneg %p135
      $region34: #{_lambda_.12} parent=15 // pred_check_branch
        %216 = sbr.rel (%p214) target = $region36
      $region35: #{_lambda_.12} parent=15 // pred_region
        %p217 = scmp.lt.s32.totalorder %s11, 3
        %s218 = scalar_select %p217, %s11, 3
        %s219 = smul.addr %s218, 8
        %s220 = scalar_lea.vmem %s4, %s219
      $region36: #{_lambda_.12} parent=15 // pred_fallthru
        _
    $region16: #{_lambda_.12} parent=5 // pred_fallthru
      _
    %p221 = scmp.le.s32.totalorder 1, %s11
    %p222 = scmp.lt.s32.totalorder %s11, 5
    %p223 = pnand %p221, %p222
    %p224 = pneg %p223
    // Predicated region
    $region37: #{_lambda_.12} parent=5 // pred_check
      _
    $region38: #{_lambda_.12} parent=5 // pred_check_branch
      %226 = sbr.rel (%p223) target = $region40
    $region39: #{_lambda_.12} parent=5 // pred_region
      %s227 = ssub.s32 %s11, 1
      %p228 = scmp.lt.s32.totalorder %s16, 3
      %s229 = scalar_select %p228, %s16, 3
      %s230 = smul.addr %s229, 8
      %s231 = scalar_lea.vmem %s0, %s230
      %p232 = pneg %p37
      %p233 = pneg %p34
      %p234 = scmp.lt.s32.totalorder %s16, 3
      %s235 = scalar_select %p234, %s16, 3
      %s236 = smul.addr %s235, 8
      %s237 = scalar_lea.vmem %s1, %s236
      %p238 = pneg %p63
      %p239 = pneg %p60
      %p240 = scmp.lt.s32.totalorder %s16, 3
      %s241 = scalar_select %p240, %s16, 3
      %s242 = smul.addr %s241, 8
      %s243 = scalar_lea.vmem %s2, %s242
      %p244 = pneg %p89
      %p245 = pneg %p86
      %p246 = scmp.lt.s32.totalorder %s16, 3
      %s247 = scalar_select %p246, %s16, 3
      %s248 = smul.addr %s247, 8
      %s249 = scalar_lea.vmem %s3, %s248
      %p250 = pneg %p115
      %p251 = pneg %p112
      %p252 = scmp.lt.s32.totalorder %s16, 3
      %s253 = scalar_select %p252, %s16, 3
      %s254 = smul.addr %s253, 8
      %s255 = scalar_lea.vmem %s4, %s254
      %p256 = pneg %p141
      %p257 = pneg %p138
      %p258 = pneg %p167
      %p259 = pneg %p164
      %p260 = scmp.lt.s32.totalorder %s16, 3
      %s261 = scalar_select %p260, %s16, 3
      %s262 = smul.addr %s261, 8
      %s263 = scalar_lea.vmem %s5, %s262
      %p264 = scmp.lt.s32.totalorder %s16, 3
      %s265 = scalar_select %p264, %s16, 3
      %s266 = smul.addr %s265, 8
      %s267 = scalar_lea.vmem %s0, %s266
      %p268 = scmp.lt.s32.totalorder %s16, 3
      %s269 = scalar_select %p268, %s16, 3
      %s270 = smul.addr %s269, 8
      %s271 = scalar_lea.vmem %s1, %s270
      %p272 = scmp.lt.s32.totalorder %s16, 3
      %s273 = scalar_select %p272, %s16, 3
      %s274 = smul.addr %s273, 8
      %s275 = scalar_lea.vmem %s2, %s274
      %p276 = scmp.lt.s32.totalorder %s16, 3
      %s277 = scalar_select %p276, %s16, 3
      %s278 = smul.addr %s277, 8
      %s279 = scalar_lea.vmem %s3, %s278
      %p280 = scmp.lt.s32.totalorder %s16, 3
      %s281 = scalar_select %p280, %s16, 3
      %s282 = smul.addr %s281, 8
      %s283 = scalar_lea.vmem %s4, %s282
      %p284 = scmp.lt.s32.totalorder %s16, 3
      %s285 = scalar_select %p284, %s16, 3
      %s286 = smul.addr %s285, 8
      %s287 = scalar_lea.vmem %s5, %s286
      %v288 = vld [vmem:[%s271] sm:$0xff]
      %v289 = vld [vmem:[%s267] sm:$0xff]
      %v290 = vld [vmem:[%s275] sm:$0xff]
      %292 = vset.pattern.permute.xlu0 0
      %293 = vperm.xlu0 %292, %v290
      %v294 = vpop.permute.xlu0 %293
      %vm296 = vcmask 64512
      %v298 = vsel %vm296, %v288, 0
      %300 = vmatprep.subr.mxu0 0.0
      %301 = vmatpush1.msra.mxu0 %v289
      %302 = vmatprep.subr.mxu0 0.0
      %303 = vmatpush1.msra.mxu0 0.0
      %304 = vmatprep.subr.mxu0 0.0
      %305 = vmatpush1.msra.mxu0 0.0
      %306 = vmatprep.subr.mxu0 0.0
      %307 = vmatpush1.msra.mxu0 0.0
      %308 = vmatprep.subr.mxu0 0.0
      %309 = vmatpush1.msra.mxu0 0.0
      %310 = vmatprep.subr.mxu0 0.0
      %311 = vmatpush1.msra.mxu0 0.0
      %312 = vmatprep.subr.mxu0 0.0
      %313 = vmatpush1.msra.mxu0 0.0
      %314 = vmatprep.subr.mxu0 0.0
      %315 = vmatpush1.msra.mxu0 0.0
      %316 = vmatprep.subr.mxu0 0.0
      %317 = vmatpush1.msra.mxu0 0.0
      %318 = vmatprep.subr.mxu0 0.0
      %319 = vmatpush1.msra.mxu0 0.0
      %320 = vmatprep.subr.mxu0 0.0
      %321 = vmatpush1.msra.mxu0 0.0
      %322 = vmatprep.subr.mxu0 0.0
      %323 = vmatpush1.msra.mxu0 0.0
      %324 = vmatprep.subr.mxu0 0.0
      %325 = vmatpush1.msra.mxu0 0.0
      %326 = vmatprep.subr.mxu0 0.0
      %327 = vmatpush1.msra.mxu0 0.0
      %328 = vmatprep.subr.mxu0 0.0
      %329 = vmatpush1.msra.mxu0 0.0
      %330 = vmatprep.subr.mxu0 0.0
      %331 = vmatpush1.msra.mxu0 0.0
      %332 = vmatprep.subr.mxu0 0.0
      %333 = vmatpush1.msra.mxu0 0.0
      %334 = vmatprep.subr.mxu0 0.0
      %335 = vmatpush1.msra.mxu0 0.0
      %336 = vmatprep.subr.mxu0 0.0
      %337 = vmatpush1.msra.mxu0 0.0
      %338 = vmatprep.subr.mxu0 0.0
      %339 = vmatpush1.msra.mxu0 0.0
      %340 = vmatprep.subr.mxu0 0.0
      %341 = vmatpush1.msra.mxu0 0.0
      %342 = vmatprep.subr.mxu0 0.0
      %343 = vmatpush1.msra.mxu0 0.0
      %344 = vmatprep.subr.mxu0 0.0
      %345 = vmatpush1.msra.mxu0 0.0
      %346 = vmatprep.subr.mxu0 0.0
      %347 = vmatpush1.msra.mxu0 0.0
      %348 = vmatprep.subr.mxu0 0.0
      %349 = vmatpush1.msra.mxu0 0.0
      %350 = vmatprep.subr.mxu0 0.0
      %351 = vmatpush1.msra.mxu0 0.0
      %352 = vmatprep.subr.mxu0 0.0
      %353 = vmatpush1.msra.mxu0 0.0
      %354 = vmatprep.subr.mxu0 0.0
      %355 = vmatpush1.msra.mxu0 0.0
      %356 = vmatprep.subr.mxu0 0.0
      %357 = vmatpush1.msra.mxu0 0.0
      %358 = vmatprep.subr.mxu0 0.0
      %359 = vmatpush1.msra.mxu0 0.0
      %360 = vmatprep.subr.mxu0 0.0
      %361 = vmatpush1.msra.mxu0 0.0
      %362 = vmatprep.subr.mxu0 0.0
      %363 = vmatpush1.msra.mxu0 0.0
      %364 = vmatprep.mubr.f32.mxu0 0.0
      %365 = vmatmul.mubr.f32.gmra.mrb[0].mxu0 %v298
      %v366 = vpop.f32.mrb[0].mxu0
      %v367 = vadd.f32 %v294, %v366
      %v368 = vpop.f32.mrb[0].mxu0
      %369 = vdwg.mxu0
      %vm370 = vcmask 130048
      %v371 = vsel %vm370, %v367, 0.0
      %372 = vadd.xlane.f32.xlu0 %v371
      %v373 = vpop.xlane.xlu0 %372
      %v374 = vrcp.pop 16.0
      %v375 = vmul.f32 %v373, %v374
      %v376 = vsub.f32 %v367, %v375
      %v377 = vmul.f32 %v376, %v376
      %v378 = vsel %vm370, %v377, 0.0
      %379 = vadd.xlane.f32.xlu0 %v378
      %v380 = vpop.xlane.xlu0 %379
      %v381 = vmul.f32 %v380, %v374
      %v382 = vld [vmem:[%s279] sm:$0xff]
      %v383 = vadd.f32 %v381, 1e-05
      %v384 = vrsqrt.pop %v383
      %v385 = vmul.f32 %v382, %v384
      %387 = vset.pattern.permute.xlu0 0
      %388 = vperm.xlu0 %387, %v385
      %v389 = vpop.permute.xlu0 %388
      %v391 = vmul.f32 %v376, %v389
      %v392 = vld [vmem:[%s283] sm:$0xff]
      %394 = vset.pattern.permute.xlu0 0
      %395 = vperm.xlu0 %394, %v392
      %v396 = vpop.permute.xlu0 %395
      %v398 = vadd.f32 %v391, %v396
      %v399 = vtanh.pop %v398
      %400 = vst.msk [vmem:[%s287] sm:$0xff] %vm370, %v399
      %p401 = scmp.lt.s32.totalorder %s16, 3
      %s402 = scalar_select %p401, %s16, 3
      %s403 = smul.addr %s402, 8
      %s404 = scalar_lea.vmem %s5, %s403
      // Predicated region
      $region41: #{_lambda_.12} parent=39 // pred_check
        %p405 = pneg %p164
      $region42: #{_lambda_.12} parent=39 // pred_check_branch
        %407 = sbr.rel (%p405) target = $region44
      $region43: #{_lambda_.12} parent=39 // pred_region
        _
      $region44: #{_lambda_.12} parent=39 // pred_fallthru
        _
    $region40: #{_lambda_.12} parent=5 // pred_fallthru
      _
    %p408 = scmp.le.s32.totalorder 2, %s11
    // Predicated region
    $region45: #{_lambda_.12} parent=5 // pred_check
      %p409 = pneg %p408
    $region46: #{_lambda_.12} parent=5 // pred_check_branch
      %411 = sbr.rel (%p409) target = $region48
    $region47: #{_lambda_.12} parent=5 // pred_region
      %s412 = ssub.s32 %s11, 2
      // Predicated region
      $region49: #{_lambda_.12} parent=47 // pred_check
        %p413 = pneg %p170
      $region50: #{_lambda_.12} parent=47 // pred_check_branch
        %415 = sbr.rel (%p413) target = $region52
      $region51: #{_lambda_.12} parent=47 // pred_region
        %p416 = scmp.lt.s32.totalorder %s17, 3
        %s417 = scalar_select %p416, %s17, 3
        %s418 = smul.addr %s417, 8
        %s419 = scalar_lea.vmem %s5, %s418
      $region52: #{_lambda_.12} parent=47 // pred_fallthru
        _
    $region48: #{_lambda_.12} parent=5 // pred_fallthru
      _
  $region6: #{_lambda_.12} parent=0 // loop_footer
    %s15 = sadd.s32 1, %s11
  $region7: #{_lambda_.12} parent=0 // loop_footer_branch
    %10 = sbr.rel target = $region3
  $region8: #{_lambda_.12} parent=0 // loop_exit
    _

// kernel: _lambda_.13
$region0: #{_lambda_.13}
  #allocation0 [shape = 'u32[]', space=smem, size = 0x4, offset = 0x4, fixed_abs, tag = 'smem constant byte address 0x4 - core index']
  #allocation1 [shape = 'u32[144,128]{1,0:T(1,128)}', space=vmem, size = 0x12000, scoped, tag = 'internal scratch']
  %s0 = inlined_call_operand.vmem [shape: f32[32,16], index: 0, kind: input, shape index: {}]
  %s1 = inlined_call_operand.vmem [shape: f32[4,8,8], index: 1, kind: input, shape index: {}]
  %s2 = inlined_call_operand.vmem [shape: f32[32,1], index: 2, kind: input, shape index: {}]
  %s3 = inlined_call_operand.vmem [shape: f32[32,1], index: 3, kind: input, shape index: {}]
  %s4 = inlined_call_operand.vmem [shape: f32[32,1], index: 4, kind: input, shape index: {}]
  %s5 = inlined_call_operand.vmem [shape: f32[32,16], index: 5, kind: input, shape index: {}]
  %s6 = inlined_call_operand.vmem [shape: f32[32,16], index: 6, kind: output, shape index: {}]
  %s7 = sld [smem:[#allocation0]]
  $region57: #{_lambda_.13} parent=0
    _
  %s9 = ssub.s32 1, %s7
  %s10 = scalar_select 0, %s9, %s7
  loop: start=0, step=1, limit=6
  $region2: #{_lambda_.13} parent=0 // loop_pre_header
    _
  $region3: #{_lambda_.13} parent=0 // loop_header
    %s12 = sphi 0, %s16
    %p13 = scmp.ge.s32.totalorder %s12, 6
    %s22 = sphi 0, %s24
    %s25 = sphi 0, %s22
    %s26 = sphi 0, %s25
    %s42 = sphi 0, %s26
    %s48 = sphi 0, %s50
    %s51 = sphi 0, %s48
    %s52 = sphi 0, %s51
    %s68 = sphi 0, %s52
    %s74 = sphi 0, %s76
    %s77 = sphi 0, %s74
    %s78 = sphi 0, %s77
    %s94 = sphi 0, %s78
    %s100 = sphi 0, %s102
    %s103 = sphi 0, %s100
    %s104 = sphi 0, %s103
    %s120 = sphi 0, %s104
    %s126 = sphi 0, %s128
    %s129 = sphi 0, %s126
    %s130 = sphi 0, %s129
    %s146 = sphi 0, %s130
    %s152 = sphi 0, %s154
    %s155 = sphi 0, %s152
    %s156 = sphi 0, %s155
    %s172 = sphi 0, %s156
    %s178 = sphi 0, %s180
    %s181 = sphi 0, %s178
    %s182 = sphi 0, %s181
    %s198 = sphi 0, %s182
  $region4: #{_lambda_.13} parent=0 // loop_header_branch
    %15 = sbr.rel (%p13) target = $region8
  $region5: #{_lambda_.13} parent=0 // loop_body
    %s17 = ssub.s32 %s12, 1
    %s18 = ssub.s32 %s12, 2
    %s19 = sadd.s32 %s12, 1
    %s20 = ssub.s32 %s12, %s19
    %p21 = scmp.eq.s32.totalorder %s20, 0
    %s23 = sadd.s32 %s22, 1
    %s24 = scalar_select %p21, %s22, %s23
    %p27 = pneg %p21
    %p28 = scmp.eq.s32.totalorder %s12, 3
    %p29 = por %p27, %p28
    %p30 = scmp.ne.s32.totalorder %s22, %s25
    %p31 = scmp.eq.s32.totalorder %s12, 0
    %p32 = por %p30, %p31
    %p33 = scmp.ne.s32.totalorder %s22, %s25
    %p34 = scmp.eq.s32.totalorder %s17, 3
    %p35 = por %p33, %p34
    %p36 = scmp.ne.s32.totalorder %s25, %s26
    %p37 = scmp.eq.s32.totalorder %s17, 0
    %p38 = por %p36, %p37
    %p39 = scmp.ne.s32.totalorder %s25, %s26
    %p40 = scmp.eq.s32.totalorder %s18, 3
    %p41 = por %p39, %p40
    %p43 = scmp.ne.s32.totalorder %s26, %s42
    %p44 = scmp.eq.s32.totalorder %s18, 0
    %p45 = por %p43, %p44
    %s46 = ssub.s32 %s12, %s19
    %p47 = scmp.eq.s32.totalorder %s46, 0
    %s49 = sadd.s32 %s48, 1
    %s50 = scalar_select %p47, %s48, %s49
    %p53 = pneg %p47
    %p54 = scmp.eq.s32.totalorder %s12, 3
    %p55 = por %p53, %p54
    %p56 = scmp.ne.s32.totalorder %s48, %s51
    %p57 = scmp.eq.s32.totalorder %s12, 0
    %p58 = por %p56, %p57
    %p59 = scmp.ne.s32.totalorder %s48, %s51
    %p60 = scmp.eq.s32.totalorder %s17, 3
    %p61 = por %p59, %p60
    %p62 = scmp.ne.s32.totalorder %s51, %s52
    %p63 = scmp.eq.s32.totalorder %s17, 0
    %p64 = por %p62, %p63
    %p65 = scmp.ne.s32.totalorder %s51, %s52
    %p66 = scmp.eq.s32.totalorder %s18, 3
    %p67 = por %p65, %p66
    %p69 = scmp.ne.s32.totalorder %s52, %s68
    %p70 = scmp.eq.s32.totalorder %s18, 0
    %p71 = por %p69, %p70
    %s72 = ssub.s32 %s12, %s19
    %p73 = scmp.eq.s32.totalorder %s72, 0
    %s75 = sadd.s32 %s74, 1
    %s76 = scalar_select %p73, %s74, %s75
    %p79 = pneg %p73
    %p80 = scmp.eq.s32.totalorder %s12, 3
    %p81 = por %p79, %p80
    %p82 = scmp.ne.s32.totalorder %s74, %s77
    %p83 = scmp.eq.s32.totalorder %s12, 0
    %p84 = por %p82, %p83
    %p85 = scmp.ne.s32.totalorder %s74, %s77
    %p86 = scmp.eq.s32.totalorder %s17, 3
    %p87 = por %p85, %p86
    %p88 = scmp.ne.s32.totalorder %s77, %s78
    %p89 = scmp.eq.s32.totalorder %s17, 0
    %p90 = por %p88, %p89
    %p91 = scmp.ne.s32.totalorder %s77, %s78
    %p92 = scmp.eq.s32.totalorder %s18, 3
    %p93 = por %p91, %p92
    %p95 = scmp.ne.s32.totalorder %s78, %s94
    %p96 = scmp.eq.s32.totalorder %s18, 0
    %p97 = por %p95, %p96
    %s98 = ssub.s32 %s12, %s19
    %p99 = scmp.eq.s32.totalorder %s98, 0
    %s101 = sadd.s32 %s100, 1
    %s102 = scalar_select %p99, %s100, %s101
    %p105 = pneg %p99
    %p106 = scmp.eq.s32.totalorder %s12, 3
    %p107 = por %p105, %p106
    %p108 = scmp.ne.s32.totalorder %s100, %s103
    %p109 = scmp.eq.s32.totalorder %s12, 0
    %p110 = por %p108, %p109
    %p111 = scmp.ne.s32.totalorder %s100, %s103
    %p112 = scmp.eq.s32.totalorder %s17, 3
    %p113 = por %p111, %p112
    %p114 = scmp.ne.s32.totalorder %s103, %s104
    %p115 = scmp.eq.s32.totalorder %s17, 0
    %p116 = por %p114, %p115
    %p117 = scmp.ne.s32.totalorder %s103, %s104
    %p118 = scmp.eq.s32.totalorder %s18, 3
    %p119 = por %p117, %p118
    %p121 = scmp.ne.s32.totalorder %s104, %s120
    %p122 = scmp.eq.s32.totalorder %s18, 0
    %p123 = por %p121, %p122
    %s124 = ssub.s32 %s12, %s19
    %p125 = scmp.eq.s32.totalorder %s124, 0
    %s127 = sadd.s32 %s126, 1
    %s128 = scalar_select %p125, %s126, %s127
    %p131 = pneg %p125
    %p132 = scmp.eq.s32.totalorder %s12, 3
    %p133 = por %p131, %p132
    %p134 = scmp.ne.s32.totalorder %s126, %s129
    %p135 = scmp.eq.s32.totalorder %s12, 0
    %p136 = por %p134, %p135
    %p137 = scmp.ne.s32.totalorder %s126, %s129
    %p138 = scmp.eq.s32.totalorder %s17, 3
    %p139 = por %p137, %p138
    %p140 = scmp.ne.s32.totalorder %s129, %s130
    %p141 = scmp.eq.s32.totalorder %s17, 0
    %p142 = por %p140, %p141
    %p143 = scmp.ne.s32.totalorder %s129, %s130
    %p144 = scmp.eq.s32.totalorder %s18, 3
    %p145 = por %p143, %p144
    %p147 = scmp.ne.s32.totalorder %s130, %s146
    %p148 = scmp.eq.s32.totalorder %s18, 0
    %p149 = por %p147, %p148
    %s150 = ssub.s32 %s12, %s19
    %p151 = scmp.eq.s32.totalorder %s150, 0
    %s153 = sadd.s32 %s152, 1
    %s154 = scalar_select %p151, %s152, %s153
    %p157 = pneg %p151
    %p158 = scmp.eq.s32.totalorder %s12, 3
    %p159 = por %p157, %p158
    %p160 = scmp.ne.s32.totalorder %s152, %s155
    %p161 = scmp.eq.s32.totalorder %s12, 0
    %p162 = por %p160, %p161
    %p163 = scmp.ne.s32.totalorder %s152, %s155
    %p164 = scmp.eq.s32.totalorder %s17, 3
    %p165 = por %p163, %p164
    %p166 = scmp.ne.s32.totalorder %s155, %s156
    %p167 = scmp.eq.s32.totalorder %s17, 0
    %p168 = por %p166, %p167
    %p169 = scmp.ne.s32.totalorder %s155, %s156
    %p170 = scmp.eq.s32.totalorder %s18, 3
    %p171 = por %p169, %p170
    %p173 = scmp.ne.s32.totalorder %s156, %s172
    %p174 = scmp.eq.s32.totalorder %s18, 0
    %p175 = por %p173, %p174
    %s176 = ssub.s32 %s12, %s19
    %p177 = scmp.eq.s32.totalorder %s176, 0
    %s179 = sadd.s32 %s178, 1
    %s180 = scalar_select %p177, %s178, %s179
    %p183 = pneg %p177
    %p184 = scmp.eq.s32.totalorder %s12, 3
    %p185 = por %p183, %p184
    %p186 = scmp.ne.s32.totalorder %s178, %s181
    %p187 = scmp.eq.s32.totalorder %s12, 0
    %p188 = por %p186, %p187
    %p189 = scmp.ne.s32.totalorder %s178, %s181
    %p190 = scmp.eq.s32.totalorder %s17, 3
    %p191 = por %p189, %p190
    %p192 = scmp.ne.s32.totalorder %s181, %s182
    %p193 = scmp.eq.s32.totalorder %s17, 0
    %p194 = por %p192, %p193
    %p195 = scmp.ne.s32.totalorder %s181, %s182
    %p196 = scmp.eq.s32.totalorder %s18, 3
    %p197 = por %p195, %p196
    %p199 = scmp.ne.s32.totalorder %s182, %s198
    %p200 = scmp.eq.s32.totalorder %s18, 0
    %p201 = por %p199, %p200
    %p202 = scmp.le.s32.totalorder 1, %s12
    %p203 = scmp.lt.s32.totalorder %s12, 5
    %p204 = pnand %p202, %p203
    %p205 = pneg %p204
    // Predicated region
    $region9: #{_lambda_.13} parent=5 // pred_check
      _
    $region10: #{_lambda_.13} parent=5 // pred_check_branch
      %207 = sbr.rel (%p204) target = $region12
    $region11: #{_lambda_.13} parent=5 // pred_region
      %s208 = ssub.s32 %s12, 1
    $region12: #{_lambda_.13} parent=5 // pred_fallthru
      _
    %p209 = scmp.lt.s32.totalorder %s12, 4
    // Predicated region
    $region13: #{_lambda_.13} parent=5 // pred_check
      %p210 = pneg %p209
    $region14: #{_lambda_.13} parent=5 // pred_check_branch
      %212 = sbr.rel (%p210) target = $region16
    $region15: #{_lambda_.13} parent=5 // pred_region
      // Predicated region
      $region17: #{_lambda_.13} parent=15 // pred_check
        %p213 = pneg %p32
      $region18: #{_lambda_.13} parent=15 // pred_check_branch
        %215 = sbr.rel (%p213) target = $region20
      $region19: #{_lambda_.13} parent=15 // pred_region
        %p216 = scmp.lt.s32.totalorder %s12, 3
        %s217 = scalar_select %p216, %s12, 3
        %s218 = smul.addr %s217, 8
        %s219 = scalar_lea.vmem %s0, %s218
      $region20: #{_lambda_.13} parent=15 // pred_fallthru
        _
      // Predicated region
      $region21: #{_lambda_.13} parent=15 // pred_check
        %p220 = pneg %p58
      $region22: #{_lambda_.13} parent=15 // pred_check_branch
        %222 = sbr.rel (%p220) target = $region24
      $region23: #{_lambda_.13} parent=15 // pred_region
        %p223 = scmp.lt.s32.totalorder %s12, 3
        %s224 = scalar_select %p223, %s12, 3
        %s225 = smul.addr %s224, 8
        %s226 = scalar_lea.vmem %s1, %s225
      $region24: #{_lambda_.13} parent=15 // pred_fallthru
        _
      // Predicated region
      $region25: #{_lambda_.13} parent=15 // pred_check
        %p227 = pneg %p84
      $region26: #{_lambda_.13} parent=15 // pred_check_branch
        %229 = sbr.rel (%p227) target = $region28
      $region27: #{_lambda_.13} parent=15 // pred_region
        %p230 = scmp.lt.s32.totalorder %s12, 3
        %s231 = scalar_select %p230, %s12, 3
        %s232 = smul.addr %s231, 8
        %s233 = scalar_lea.vmem %s2, %s232
      $region28: #{_lambda_.13} parent=15 // pred_fallthru
        _
      // Predicated region
      $region29: #{_lambda_.13} parent=15 // pred_check
        %p234 = pneg %p110
      $region30: #{_lambda_.13} parent=15 // pred_check_branch
        %236 = sbr.rel (%p234) target = $region32
      $region31: #{_lambda_.13} parent=15 // pred_region
        %p237 = scmp.lt.s32.totalorder %s12, 3
        %s238 = scalar_select %p237, %s12, 3
        %s239 = smul.addr %s238, 8
        %s240 = scalar_lea.vmem %s3, %s239
      $region32: #{_lambda_.13} parent=15 // pred_fallthru
        _
      // Predicated region
      $region33: #{_lambda_.13} parent=15 // pred_check
        %p241 = pneg %p136
      $region34: #{_lambda_.13} parent=15 // pred_check_branch
        %243 = sbr.rel (%p241) target = $region36
      $region35: #{_lambda_.13} parent=15 // pred_region
        %p244 = scmp.lt.s32.totalorder %s12, 3
        %s245 = scalar_select %p244, %s12, 3
        %s246 = smul.addr %s245, 8
        %s247 = scalar_lea.vmem %s4, %s246
      $region36: #{_lambda_.13} parent=15 // pred_fallthru
        _
      // Predicated region
      $region37: #{_lambda_.13} parent=15 // pred_check
        %p248 = pneg %p162
      $region38: #{_lambda_.13} parent=15 // pred_check_branch
        %250 = sbr.rel (%p248) target = $region40
      $region39: #{_lambda_.13} parent=15 // pred_region
        %p251 = scmp.lt.s32.totalorder %s12, 3
        %s252 = scalar_select %p251, %s12, 3
        %s253 = smul.addr %s252, 8
        %s254 = scalar_lea.vmem %s5, %s253
      $region40: #{_lambda_.13} parent=15 // pred_fallthru
        _
    $region16: #{_lambda_.13} parent=5 // pred_fallthru
      _
    %p255 = scmp.le.s32.totalorder 1, %s12
    %p256 = scmp.lt.s32.totalorder %s12, 5
    %p257 = pnand %p255, %p256
    %p258 = pneg %p257
    // Predicated region
    $region41: #{_lambda_.13} parent=5 // pred_check
      _
    $region42: #{_lambda_.13} parent=5 // pred_check_branch
      %260 = sbr.rel (%p257) target = $region44
    $region43: #{_lambda_.13} parent=5 // pred_region
      %s261 = ssub.s32 %s12, 1
      %p262 = scmp.lt.s32.totalorder %s17, 3
      %s263 = scalar_select %p262, %s17, 3
      %s264 = smul.addr %s263, 8
      %s265 = scalar_lea.vmem %s0, %s264
      %p266 = pneg %p38
      %p267 = pneg %p35
      %p268 = scmp.lt.s32.totalorder %s17, 3
      %s269 = scalar_select %p268, %s17, 3
      %s270 = smul.addr %s269, 8
      %s271 = scalar_lea.vmem %s1, %s270
      %p272 = pneg %p64
      %p273 = pneg %p61
      %p274 = scmp.lt.s32.totalorder %s17, 3
      %s275 = scalar_select %p274, %s17, 3
      %s276 = smul.addr %s275, 8
      %s277 = scalar_lea.vmem %s2, %s276
      %p278 = pneg %p90
      %p279 = pneg %p87
      %p280 = scmp.lt.s32.totalorder %s17, 3
      %s281 = scalar_select %p280, %s17, 3
      %s282 = smul.addr %s281, 8
      %s283 = scalar_lea.vmem %s3, %s282
      %p284 = pneg %p116
      %p285 = pneg %p113
      %p286 = scmp.lt.s32.totalorder %s17, 3
      %s287 = scalar_select %p286, %s17, 3
      %s288 = smul.addr %s287, 8
      %s289 = scalar_lea.vmem %s4, %s288
      %p290 = pneg %p142
      %p291 = pneg %p139
      %p292 = scmp.lt.s32.totalorder %s17, 3
      %s293 = scalar_select %p292, %s17, 3
      %s294 = smul.addr %s293, 8
      %s295 = scalar_lea.vmem %s5, %s294
      %p296 = pneg %p168
      %p297 = pneg %p165
      %p298 = pneg %p194
      %p299 = pneg %p191
      %p300 = scmp.lt.s32.totalorder %s17, 3
      %s301 = scalar_select %p300, %s17, 3
      %s302 = smul.addr %s301, 8
      %s303 = scalar_lea.vmem %s6, %s302
      %p304 = scmp.lt.s32.totalorder %s17, 3
      %s305 = scalar_select %p304, %s17, 3
      %s306 = smul.addr %s305, 8
      %s307 = scalar_lea.vmem %s0, %s306
      %p308 = scmp.lt.s32.totalorder %s17, 3
      %s309 = scalar_select %p308, %s17, 3
      %s310 = smul.addr %s309, 8
      %s311 = scalar_lea.vmem %s1, %s310
      %p312 = scmp.lt.s32.totalorder %s17, 3
      %s313 = scalar_select %p312, %s17, 3
      %s314 = smul.addr %s313, 8
      %s315 = scalar_lea.vmem %s2, %s314
      %p316 = scmp.lt.s32.totalorder %s17, 3
      %s317 = scalar_select %p316, %s17, 3
      %s318 = smul.addr %s317, 8
      %s319 = scalar_lea.vmem %s3, %s318
      %p320 = scmp.lt.s32.totalorder %s17, 3
      %s321 = scalar_select %p320, %s17, 3
      %s322 = smul.addr %s321, 8
      %s323 = scalar_lea.vmem %s4, %s322
      %p324 = scmp.lt.s32.totalorder %s17, 3
      %s325 = scalar_select %p324, %s17, 3
      %s326 = smul.addr %s325, 8
      %s327 = scalar_lea.vmem %s5, %s326
      %p328 = scmp.lt.s32.totalorder %s17, 3
      %s329 = scalar_select %p328, %s17, 3
      %s330 = smul.addr %s329, 8
      %s331 = scalar_lea.vmem %s6, %s330
      %v332 = vld [vmem:[%s311] sm:$0xff]
      %v333 = vld [vmem:[%s307] sm:$0xff]
      %v334 = vld [vmem:[%s315] sm:$0xff]
      %336 = vset.pattern.permute.xlu0 0
      %337 = vperm.xlu0 %336, %v334
      %v338 = vpop.permute.xlu0 %337
      %vm340 = vcmask 64512
      %v342 = vsel %vm340, %v332, 0
      %344 = vmatprep.subr.mxu0 0.0
      %345 = vmatpush1.msra.mxu0 %v333
      %346 = vmatprep.subr.mxu0 0.0
      %347 = vmatpush1.msra.mxu0 0.0
      %348 = vmatprep.subr.mxu0 0.0
      %349 = vmatpush1.msra.mxu0 0.0
      %350 = vmatprep.subr.mxu0 0.0
      %351 = vmatpush1.msra.mxu0 0.0
      %352 = vmatprep.subr.mxu0 0.0
      %353 = vmatpush1.msra.mxu0 0.0
      %354 = vmatprep.subr.mxu0 0.0
      %355 = vmatpush1.msra.mxu0 0.0
      %356 = vmatprep.subr.mxu0 0.0
      %357 = vmatpush1.msra.mxu0 0.0
      %358 = vmatprep.subr.mxu0 0.0
      %359 = vmatpush1.msra.mxu0 0.0
      %360 = vmatprep.subr.mxu0 0.0
      %361 = vmatpush1.msra.mxu0 0.0
      %362 = vmatprep.subr.mxu0 0.0
      %363 = vmatpush1.msra.mxu0 0.0
      %364 = vmatprep.subr.mxu0 0.0
      %365 = vmatpush1.msra.mxu0 0.0
      %366 = vmatprep.subr.mxu0 0.0
      %367 = vmatpush1.msra.mxu0 0.0
      %368 = vmatprep.subr.mxu0 0.0
      %369 = vmatpush1.msra.mxu0 0.0
      %370 = vmatprep.subr.mxu0 0.0
      %371 = vmatpush1.msra.mxu0 0.0
      %372 = vmatprep.subr.mxu0 0.0
      %373 = vmatpush1.msra.mxu0 0.0
      %374 = vmatprep.subr.mxu0 0.0
      %375 = vmatpush1.msra.mxu0 0.0
      %376 = vmatprep.subr.mxu0 0.0
      %377 = vmatpush1.msra.mxu0 0.0
      %378 = vmatprep.subr.mxu0 0.0
      %379 = vmatpush1.msra.mxu0 0.0
      %380 = vmatprep.subr.mxu0 0.0
      %381 = vmatpush1.msra.mxu0 0.0
      %382 = vmatprep.subr.mxu0 0.0
      %383 = vmatpush1.msra.mxu0 0.0
      %384 = vmatprep.subr.mxu0 0.0
      %385 = vmatpush1.msra.mxu0 0.0
      %386 = vmatprep.subr.mxu0 0.0
      %387 = vmatpush1.msra.mxu0 0.0
      %388 = vmatprep.subr.mxu0 0.0
      %389 = vmatpush1.msra.mxu0 0.0
      %390 = vmatprep.subr.mxu0 0.0
      %391 = vmatpush1.msra.mxu0 0.0
      %392 = vmatprep.subr.mxu0 0.0
      %393 = vmatpush1.msra.mxu0 0.0
      %394 = vmatprep.subr.mxu0 0.0
      %395 = vmatpush1.msra.mxu0 0.0
      %396 = vmatprep.subr.mxu0 0.0
      %397 = vmatpush1.msra.mxu0 0.0
      %398 = vmatprep.subr.mxu0 0.0
      %399 = vmatpush1.msra.mxu0 0.0
      %400 = vmatprep.subr.mxu0 0.0
      %401 = vmatpush1.msra.mxu0 0.0
      %402 = vmatprep.subr.mxu0 0.0
      %403 = vmatpush1.msra.mxu0 0.0
      %404 = vmatprep.subr.mxu0 0.0
      %405 = vmatpush1.msra.mxu0 0.0
      %406 = vmatprep.subr.mxu0 0.0
      %407 = vmatpush1.msra.mxu0 0.0
      %408 = vmatprep.mubr.f32.mxu0 0.0
      %409 = vmatmul.mubr.f32.gmra.mrb[0].mxu0 %v342
      %v410 = vpop.f32.mrb[0].mxu0
      %v411 = vadd.f32 %v338, %v410
      %v412 = vpop.f32.mrb[0].mxu0
      %413 = vdwg.mxu0
      %vm414 = vcmask 130048
      %v415 = vsel %vm414, %v411, 0.0
      %416 = vadd.xlane.f32.xlu0 %v415
      %v417 = vpop.xlane.xlu0 %416
      %v418 = vrcp.pop 16.0
      %v419 = vmul.f32 %v417, %v418
      %v420 = vsub.f32 %v411, %v419
      %v421 = vmul.f32 %v420, %v420
      %v422 = vsel %vm414, %v421, 0.0
      %423 = vadd.xlane.f32.xlu0 %v422
      %v424 = vpop.xlane.xlu0 %423
      %v425 = vmul.f32 %v424, %v418
      %v426 = vld [vmem:[%s319] sm:$0xff]
      %v427 = vadd.f32 %v425, 1e-05
      %v428 = vrsqrt.pop %v427
      %v429 = vmul.f32 %v426, %v428
      %431 = vset.pattern.permute.xlu0 0
      %432 = vperm.xlu0 %431, %v429
      %v433 = vpop.permute.xlu0 %432
      %v435 = vmul.f32 %v420, %v433
      %v436 = vld [vmem:[%s323] sm:$0xff]
      %438 = vset.pattern.permute.xlu0 0
      %439 = vperm.xlu0 %438, %v436
      %v440 = vpop.permute.xlu0 %439
      %v442 = vadd.f32 %v435, %v440
      %v443 = vtanh.pop %v442
      %v444 = vld [vmem:[%s327] sm:$0xff]
      %v445 = vadd.f32 %v443, %v444
      %446 = vst.msk [vmem:[%s331] sm:$0xff] %vm414, %v445
      %p447 = scmp.lt.s32.totalorder %s17, 3
      %s448 = scalar_select %p447, %s17, 3
      %s449 = smul.addr %s448, 8
      %s450 = scalar_lea.vmem %s6, %s449
      // Predicated region
      $region45: #{_lambda_.13} parent=43 // pred_check
        %p451 = pneg %p191
      $region46: #{_lambda_.13} parent=43 // pred_check_branch
        %453 = sbr.rel (%p451) target = $region48
      $region47: #{_lambda_.13} parent=43 // pred_region
        _
      $region48: #{_lambda_.13} parent=43 // pred_fallthru
        _
    $region44: #{_lambda_.13} parent=5 // pred_fallthru
      _
    %p454 = scmp.le.s32.totalorder 2, %s12
    // Predicated region
    $region49: #{_lambda_.13} parent=5 // pred_check
      %p455 = pneg %p454
    $region50: #{_lambda_.13} parent=5 // pred_check_branch
      %457 = sbr.rel (%p455) target = $region52
    $region51: #{_lambda_.13} parent=5 // pred_region
      %s458 = ssub.s32 %s12, 2
      // Predicated region
      $region53: #{_lambda_.13} parent=51 // pred_check
        %p459 = pneg %p197
      $region54: #{_lambda_.13} parent=51 // pred_check_branch
        %461 = sbr.rel (%p459) target = $region56
      $region55: #{_lambda_.13} parent=51 // pred_region
        %p462 = scmp.lt.s32.totalorder %s18, 3
        %s463 = scalar_select %p462, %s18, 3
        %s464 = smul.addr %s463, 8
        %s465 = scalar_lea.vmem %s6, %s464
      $region56: #{_lambda_.13} parent=51 // pred_fallthru
        _
    $region52: #{_lambda_.13} parent=5 // pred_fallthru
      _
  $region6: #{_lambda_.13} parent=0 // loop_footer
    %s16 = sadd.s32 1, %s12
  $region7: #{_lambda_.13} parent=0 // loop_footer_branch
    %11 = sbr.rel target = $region3
  $region8: #{_lambda_.13} parent=0 // loop_exit
    _

// kernel: _lambda_.14
$region0: #{_lambda_.14}
  #allocation0 [shape = 'u32[]', space=smem, size = 0x4, offset = 0x4, fixed_abs, tag = 'smem constant byte address 0x4 - core index']
  #allocation1 [shape = 'u32[144,128]{1,0:T(1,128)}', space=vmem, size = 0x12000, scoped, tag = 'internal scratch']
  %s0 = inlined_call_operand.vmem [shape: f32[32,16], index: 0, kind: input, shape index: {}]
  %s1 = inlined_call_operand.vmem [shape: f32[4,96,8], index: 1, kind: input, shape index: {}]
  %s2 = inlined_call_operand.vmem [shape: f32[384,1], index: 2, kind: input, shape index: {}]
  %s3 = inlined_call_operand.vmem [shape: f32[384,16], index: 3, kind: output, shape index: {}]
  %s4 = sld [smem:[#allocation0]]
  $region45: #{_lambda_.14} parent=0
    _
  %s6 = ssub.s32 1, %s4
  %s7 = scalar_select 0, %s6, %s4
  loop: start=0, step=1, limit=6
  $region2: #{_lambda_.14} parent=0 // loop_pre_header
    _
  $region3: #{_lambda_.14} parent=0 // loop_header
    %s9 = sphi 0, %s13
    %p10 = scmp.ge.s32.totalorder %s9, 6
    %s19 = sphi 0, %s21
    %s22 = sphi 0, %s19
    %s23 = sphi 0, %s22
    %s39 = sphi 0, %s23
    %s45 = sphi 0, %s47
    %s48 = sphi 0, %s45
    %s49 = sphi 0, %s48
    %s65 = sphi 0, %s49
    %s71 = sphi 0, %s73
    %s74 = sphi 0, %s71
    %s75 = sphi 0, %s74
    %s91 = sphi 0, %s75
    %s97 = sphi 0, %s99
    %s100 = sphi 0, %s97
    %s101 = sphi 0, %s100
    %s117 = sphi 0, %s101
  $region4: #{_lambda_.14} parent=0 // loop_header_branch
    %12 = sbr.rel (%p10) target = $region8
  $region5: #{_lambda_.14} parent=0 // loop_body
    %s14 = ssub.s32 %s9, 1
    %s15 = ssub.s32 %s9, 2
    %s16 = sadd.s32 %s9, 1
    %s17 = ssub.s32 %s9, %s16
    %p18 = scmp.eq.s32.totalorder %s17, 0
    %s20 = sadd.s32 %s19, 1
    %s21 = scalar_select %p18, %s19, %s20
    %p24 = pneg %p18
    %p25 = scmp.eq.s32.totalorder %s9, 3
    %p26 = por %p24, %p25
    %p27 = scmp.ne.s32.totalorder %s19, %s22
    %p28 = scmp.eq.s32.totalorder %s9, 0
    %p29 = por %p27, %p28
    %p30 = scmp.ne.s32.totalorder %s19, %s22
    %p31 = scmp.eq.s32.totalorder %s14, 3
    %p32 = por %p30, %p31
    %p33 = scmp.ne.s32.totalorder %s22, %s23
    %p34 = scmp.eq.s32.totalorder %s14, 0
    %p35 = por %p33, %p34
    %p36 = scmp.ne.s32.totalorder %s22, %s23
    %p37 = scmp.eq.s32.totalorder %s15, 3
    %p38 = por %p36, %p37
    %p40 = scmp.ne.s32.totalorder %s23, %s39
    %p41 = scmp.eq.s32.totalorder %s15, 0
    %p42 = por %p40, %p41
    %s43 = ssub.s32 %s9, %s16
    %p44 = scmp.eq.s32.totalorder %s43, 0
    %s46 = sadd.s32 %s45, 1
    %s47 = scalar_select %p44, %s45, %s46
    %p50 = pneg %p44
    %p51 = scmp.eq.s32.totalorder %s9, 3
    %p52 = por %p50, %p51
    %p53 = scmp.ne.s32.totalorder %s45, %s48
    %p54 = scmp.eq.s32.totalorder %s9, 0
    %p55 = por %p53, %p54
    %p56 = scmp.ne.s32.totalorder %s45, %s48
    %p57 = scmp.eq.s32.totalorder %s14, 3
    %p58 = por %p56, %p57
    %p59 = scmp.ne.s32.totalorder %s48, %s49
    %p60 = scmp.eq.s32.totalorder %s14, 0
    %p61 = por %p59, %p60
    %p62 = scmp.ne.s32.totalorder %s48, %s49
    %p63 = scmp.eq.s32.totalorder %s15, 3
    %p64 = por %p62, %p63
    %p66 = scmp.ne.s32.totalorder %s49, %s65
    %p67 = scmp.eq.s32.totalorder %s15, 0
    %p68 = por %p66, %p67
    %s69 = ssub.s32 %s9, %s16
    %p70 = scmp.eq.s32.totalorder %s69, 0
    %s72 = sadd.s32 %s71, 1
    %s73 = scalar_select %p70, %s71, %s72
    %p76 = pneg %p70
    %p77 = scmp.eq.s32.totalorder %s9, 3
    %p78 = por %p76, %p77
    %p79 = scmp.ne.s32.totalorder %s71, %s74
    %p80 = scmp.eq.s32.totalorder %s9, 0
    %p81 = por %p79, %p80
    %p82 = scmp.ne.s32.totalorder %s71, %s74
    %p83 = scmp.eq.s32.totalorder %s14, 3
    %p84 = por %p82, %p83
    %p85 = scmp.ne.s32.totalorder %s74, %s75
    %p86 = scmp.eq.s32.totalorder %s14, 0
    %p87 = por %p85, %p86
    %p88 = scmp.ne.s32.totalorder %s74, %s75
    %p89 = scmp.eq.s32.totalorder %s15, 3
    %p90 = por %p88, %p89
    %p92 = scmp.ne.s32.totalorder %s75, %s91
    %p93 = scmp.eq.s32.totalorder %s15, 0
    %p94 = por %p92, %p93
    %s95 = ssub.s32 %s9, %s16
    %p96 = scmp.eq.s32.totalorder %s95, 0
    %s98 = sadd.s32 %s97, 1
    %s99 = scalar_select %p96, %s97, %s98
    %p102 = pneg %p96
    %p103 = scmp.eq.s32.totalorder %s9, 3
    %p104 = por %p102, %p103
    %p105 = scmp.ne.s32.totalorder %s97, %s100
    %p106 = scmp.eq.s32.totalorder %s9, 0
    %p107 = por %p105, %p106
    %p108 = scmp.ne.s32.totalorder %s97, %s100
    %p109 = scmp.eq.s32.totalorder %s14, 3
    %p110 = por %p108, %p109
    %p111 = scmp.ne.s32.totalorder %s100, %s101
    %p112 = scmp.eq.s32.totalorder %s14, 0
    %p113 = por %p111, %p112
    %p114 = scmp.ne.s32.totalorder %s100, %s101
    %p115 = scmp.eq.s32.totalorder %s15, 3
    %p116 = por %p114, %p115
    %p118 = scmp.ne.s32.totalorder %s101, %s117
    %p119 = scmp.eq.s32.totalorder %s15, 0
    %p120 = por %p118, %p119
    %p121 = scmp.le.s32.totalorder 1, %s9
    %p122 = scmp.lt.s32.totalorder %s9, 5
    %p123 = pnand %p121, %p122
    %p124 = pneg %p123
    // Predicated region
    $region9: #{_lambda_.14} parent=5 // pred_check
      _
    $region10: #{_lambda_.14} parent=5 // pred_check_branch
      %126 = sbr.rel (%p123) target = $region12
    $region11: #{_lambda_.14} parent=5 // pred_region
      %s127 = ssub.s32 %s9, 1
    $region12: #{_lambda_.14} parent=5 // pred_fallthru
      _
    %p128 = scmp.lt.s32.totalorder %s9, 4
    // Predicated region
    $region13: #{_lambda_.14} parent=5 // pred_check
      %p129 = pneg %p128
    $region14: #{_lambda_.14} parent=5 // pred_check_branch
      %131 = sbr.rel (%p129) target = $region16
    $region15: #{_lambda_.14} parent=5 // pred_region
      // Predicated region
      $region17: #{_lambda_.14} parent=15 // pred_check
        %p132 = pneg %p29
      $region18: #{_lambda_.14} parent=15 // pred_check_branch
        %134 = sbr.rel (%p132) target = $region20
      $region19: #{_lambda_.14} parent=15 // pred_region
        %p135 = scmp.lt.s32.totalorder %s9, 3
        %s136 = scalar_select %p135, %s9, 3
        %s137 = smul.addr %s136, 8
        %s138 = scalar_lea.vmem %s0, %s137
      $region20: #{_lambda_.14} parent=15 // pred_fallthru
        _
      // Predicated region
      $region21: #{_lambda_.14} parent=15 // pred_check
        %p139 = pneg %p55
      $region22: #{_lambda_.14} parent=15 // pred_check_branch
        %141 = sbr.rel (%p139) target = $region24
      $region23: #{_lambda_.14} parent=15 // pred_region
        %p142 = scmp.lt.s32.totalorder %s9, 3
        %s143 = scalar_select %p142, %s9, 3
        %s144 = smul.addr %s143, 12
        %s145 = smul.addr %s144, 8
        %s146 = scalar_lea.vmem %s1, %s145
      $region24: #{_lambda_.14} parent=15 // pred_fallthru
        _
      // Predicated region
      $region25: #{_lambda_.14} parent=15 // pred_check
        %p147 = pneg %p81
      $region26: #{_lambda_.14} parent=15 // pred_check_branch
        %149 = sbr.rel (%p147) target = $region28
      $region27: #{_lambda_.14} parent=15 // pred_region
        %s150 = smul.u32 12, %s9
        %p151 = scmp.lt.s32.totalorder %s150, 47
        %s152 = scalar_select %p151, %s150, 47
        %s153 = smul.addr %s152, 8
        %s154 = scalar_lea.vmem %s2, %s153
        %s155 = smul.u32 12, %s9
      $region28: #{_lambda_.14} parent=15 // pred_fallthru
        _
    $region16: #{_lambda_.14} parent=5 // pred_fallthru
      _
    %p156 = scmp.le.s32.totalorder 1, %s9
    %p157 = scmp.lt.s32.totalorder %s9, 5
    %p158 = pnand %p156, %p157
    %p159 = pneg %p158
    // Predicated region
    $region29: #{_lambda_.14} parent=5 // pred_check
      _
    $region30: #{_lambda_.14} parent=5 // pred_check_branch
      %161 = sbr.rel (%p158) target = $region32
    $region31: #{_lambda_.14} parent=5 // pred_region
      %s162 = ssub.s32 %s9, 1
      %p163 = scmp.lt.s32.totalorder %s14, 3
      %s164 = scalar_select %p163, %s14, 3
      %s165 = smul.addr %s164, 8
      %s166 = scalar_lea.vmem %s0, %s165
      %p167 = pneg %p35
      %p168 = pneg %p32
      %p169 = scmp.lt.s32.totalorder %s14, 3
      %s170 = scalar_select %p169, %s14, 3
      %s171 = smul.addr %s170, 12
      %s172 = smul.addr %s171, 8
      %s173 = scalar_lea.vmem %s1, %s172
      %p174 = pneg %p61
      %p175 = pneg %p58
      %s176 = smul.u32 12, %s14
      %p177 = scmp.lt.s32.totalorder %s176, 47
      %s178 = scalar_select %p177, %s176, 47
      %s179 = smul.addr %s178, 8
      %s180 = scalar_lea.vmem %s2, %s179
      %p181 = pneg %p87
      %p182 = pneg %p84
      %p183 = pneg %p113
      %p184 = pneg %p110
      %s185 = smul.u32 12, %s14
      %p186 = scmp.lt.s32.totalorder %s185, 47
      %s187 = scalar_select %p186, %s185, 47
      %s188 = smul.addr %s187, 8
      %s189 = scalar_lea.vmem %s3, %s188
      %p190 = scmp.lt.s32.totalorder %s14, 3
      %s191 = scalar_select %p190, %s14, 3
      %s192 = smul.addr %s191, 8
      %s193 = scalar_lea.vmem %s0, %s192
      %p194 = scmp.lt.s32.totalorder %s14, 3
      %s195 = scalar_select %p194, %s14, 3
      %s196 = smul.addr %s195, 12
      %s197 = smul.addr %s196, 8
      %s198 = scalar_lea.vmem %s1, %s197
      %s199 = smul.u32 12, %s14
      %p200 = scmp.lt.s32.totalorder %s199, 47
      %s201 = scalar_select %p200, %s199, 47
      %s202 = smul.addr %s201, 8
      %s203 = scalar_lea.vmem %s2, %s202
      %s204 = smul.u32 12, %s14
      %s205 = smul.u32 12, %s14
      %p206 = scmp.lt.s32.totalorder %s205, 47
      %s207 = scalar_select %p206, %s205, 47
      %s208 = smul.addr %s207, 8
      %s209 = scalar_lea.vmem %s3, %s208
      %s210 = smul.u32 12, %s14
      %v211 = vld [vmem:[%s198] sm:$0xff]
      %v212 = vld [vmem:[%s198 + $0x8] sm:$0xff]
      %v213 = vld [vmem:[%s198 + $0x10] sm:$0xff]
      %v214 = vld [vmem:[%s198 + $0x18] sm:$0xff]
      %v215 = vld [vmem:[%s198 + $0x20] sm:$0xff]
      %v216 = vld [vmem:[%s198 + $0x28] sm:$0xff]
      %v217 = vld [vmem:[%s198 + $0x30] sm:$0xff]
      %v218 = vld [vmem:[%s198 + $0x38] sm:$0xff]
      %v219 = vld [vmem:[%s198 + $0x40] sm:$0xff]
      %v220 = vld [vmem:[%s198 + $0x48] sm:$0xff]
      %v221 = vld [vmem:[%s198 + $0x50] sm:$0xff]
      %v222 = vld [vmem:[%s198 + $0x58] sm:$0xff]
      %v223 = vld [vmem:[%s193] sm:$0xff]
      %v224 = vld [vmem:[%s203] sm:$0xff]
      %v225 = vld [vmem:[%s203 + $0x8] sm:$0xff]
      %v226 = vld [vmem:[%s203 + $0x10] sm:$0xff]
      %v227 = vld [vmem:[%s203 + $0x18] sm:$0xff]
      %v228 = vld [vmem:[%s203 + $0x20] sm:$0xff]
      %v229 = vld [vmem:[%s203 + $0x28] sm:$0xff]
      %v230 = vld [vmem:[%s203 + $0x30] sm:$0xff]
      %v231 = vld [vmem:[%s203 + $0x38] sm:$0xff]
      %v232 = vld [vmem:[%s203 + $0x40] sm:$0xff]
      %v233 = vld [vmem:[%s203 + $0x48] sm:$0xff]
      %v234 = vld [vmem:[%s203 + $0x50] sm:$0xff]
      %v235 = vld [vmem:[%s203 + $0x58] sm:$0xff]
      %237 = vset.pattern.permute.xlu0 0
      %238 = vperm.xlu0 %237, %v224
      %v239 = vpop.permute.xlu0 %238
      %242 = vset.pattern.permute.xlu0 0
      %243 = vperm.xlu0 %242, %v225
      %v244 = vpop.permute.xlu0 %243
      %247 = vset.pattern.permute.xlu0 0
      %248 = vperm.xlu0 %247, %v226
      %v249 = vpop.permute.xlu0 %248
      %252 = vset.pattern.permute.xlu0 0
      %253 = vperm.xlu0 %252, %v227
      %v254 = vpop.permute.xlu0 %253
      %257 = vset.pattern.permute.xlu0 0
      %258 = vperm.xlu0 %257, %v228
      %v259 = vpop.permute.xlu0 %258
      %262 = vset.pattern.permute.xlu0 0
      %263 = vperm.xlu0 %262, %v229
      %v264 = vpop.permute.xlu0 %263
      %267 = vset.pattern.permute.xlu0 0
      %268 = vperm.xlu0 %267, %v230
      %v269 = vpop.permute.xlu0 %268
      %272 = vset.pattern.permute.xlu0 0
      %273 = vperm.xlu0 %272, %v231
      %v274 = vpop.permute.xlu0 %273
      %277 = vset.pattern.permute.xlu0 0
      %278 = vperm.xlu0 %277, %v232
      %v279 = vpop.permute.xlu0 %278
      %282 = vset.pattern.permute.xlu0 0
      %283 = vperm.xlu0 %282, %v233
      %v284 = vpop.permute.xlu0 %283
      %287 = vset.pattern.permute.xlu0 0
      %288 = vperm.xlu0 %287, %v234
      %v289 = vpop.permute.xlu0 %288
      %292 = vset.pattern.permute.xlu0 0
      %293 = vperm.xlu0 %292, %v235
      %v294 = vpop.permute.xlu0 %293
      %vm296 = vcmask 64512
      %v298 = vsel %vm296, %v211, 0
      %v301 = vsel %vm296, %v212, 0
      %v304 = vsel %vm296, %v213, 0
      %v307 = vsel %vm296, %v214, 0
      %v310 = vsel %vm296, %v215, 0
      %v313 = vsel %vm296, %v216, 0
      %v316 = vsel %vm296, %v217, 0
      %v319 = vsel %vm296, %v218, 0
      %v322 = vsel %vm296, %v219, 0
      %v325 = vsel %vm296, %v220, 0
      %v328 = vsel %vm296, %v221, 0
      %v331 = vsel %vm296, %v222, 0
      %333 = vmatprep.subr.mxu0 0.0
      %334 = vmatpush1.msra.mxu0 %v223
      %335 = vmatprep.subr.mxu0 0.0
      %336 = vmatpush1.msra.mxu0 0.0
      %337 = vmatprep.subr.mxu0 0.0
      %338 = vmatpush1.msra.mxu0 0.0
      %339 = vmatprep.subr.mxu0 0.0
      %340 = vmatpush1.msra.mxu0 0.0
      %341 = vmatprep.subr.mxu0 0.0
      %342 = vmatpush1.msra.mxu0 0.0
      %343 = vmatprep.subr.mxu0 0.0
      %344 = vmatpush1.msra.mxu0 0.0
      %345 = vmatprep.subr.mxu0 0.0
      %346 = vmatpush1.msra.mxu0 0.0
      %347 = vmatprep.subr.mxu0 0.0
      %348 = vmatpush1.msra.mxu0 0.0
      %349 = vmatprep.subr.mxu0 0.0
      %350 = vmatpush1.msra.mxu0 0.0
      %351 = vmatprep.subr.mxu0 0.0
      %352 = vmatpush1.msra.mxu0 0.0
      %353 = vmatprep.subr.mxu0 0.0
      %354 = vmatpush1.msra.mxu0 0.0
      %355 = vmatprep.subr.mxu0 0.0
      %356 = vmatpush1.msra.mxu0 0.0
      %357 = vmatprep.subr.mxu0 0.0
      %358 = vmatpush1.msra.mxu0 0.0
      %359 = vmatprep.subr.mxu0 0.0
      %360 = vmatpush1.msra.mxu0 0.0
      %361 = vmatprep.subr.mxu0 0.0
      %362 = vmatpush1.msra.mxu0 0.0
      %363 = vmatprep.subr.mxu0 0.0
      %364 = vmatpush1.msra.mxu0 0.0
      %365 = vmatprep.subr.mxu0 0.0
      %366 = vmatpush1.msra.mxu0 0.0
      %367 = vmatprep.subr.mxu0 0.0
      %368 = vmatpush1.msra.mxu0 0.0
      %369 = vmatprep.subr.mxu0 0.0
      %370 = vmatpush1.msra.mxu0 0.0
      %371 = vmatprep.subr.mxu0 0.0
      %372 = vmatpush1.msra.mxu0 0.0
      %373 = vmatprep.subr.mxu0 0.0
      %374 = vmatpush1.msra.mxu0 0.0
      %375 = vmatprep.subr.mxu0 0.0
      %376 = vmatpush1.msra.mxu0 0.0
      %377 = vmatprep.subr.mxu0 0.0
      %378 = vmatpush1.msra.mxu0 0.0
      %379 = vmatprep.subr.mxu0 0.0
      %380 = vmatpush1.msra.mxu0 0.0
      %381 = vmatprep.subr.mxu0 0.0
      %382 = vmatpush1.msra.mxu0 0.0
      %383 = vmatprep.subr.mxu0 0.0
      %384 = vmatpush1.msra.mxu0 0.0
      %385 = vmatprep.subr.mxu0 0.0
      %386 = vmatpush1.msra.mxu0 0.0
      %387 = vmatprep.subr.mxu0 0.0
      %388 = vmatpush1.msra.mxu0 0.0
      %389 = vmatprep.subr.mxu0 0.0
      %390 = vmatpush1.msra.mxu0 0.0
      %391 = vmatprep.subr.mxu0 0.0
      %392 = vmatpush1.msra.mxu0 0.0
      %393 = vmatprep.subr.mxu0 0.0
      %394 = vmatpush1.msra.mxu0 0.0
      %395 = vmatprep.subr.mxu0 0.0
      %396 = vmatpush1.msra.mxu0 0.0
      %397 = vmatprep.mubr.f32.mxu0 0.0
      %398 = vmatmul.mubr.f32.gmra.mrb[0].mxu0 %v298
      %v399 = vpop.f32.mrb[0].mxu0
      %v400 = vadd.f32 %v239, %v399
      %v401 = vpop.f32.mrb[0].mxu0
      %402 = vmatprep.mubr.f32.mxu0 0.0
      %403 = vmatmul.mubr.f32.gmra.mrb[0].mxu0 %v301
      %v404 = vpop.f32.mrb[0].mxu0
      %v405 = vadd.f32 %v244, %v404
      %v406 = vpop.f32.mrb[0].mxu0
      %407 = vmatprep.mubr.f32.mxu0 0.0
      %408 = vmatmul.mubr.f32.gmra.mrb[0].mxu0 %v304
      %v409 = vpop.f32.mrb[0].mxu0
      %v410 = vadd.f32 %v249, %v409
      %v411 = vpop.f32.mrb[0].mxu0
      %412 = vmatprep.mubr.f32.mxu0 0.0
      %413 = vmatmul.mubr.f32.gmra.mrb[0].mxu0 %v307
      %v414 = vpop.f32.mrb[0].mxu0
      %v415 = vadd.f32 %v254, %v414
      %v416 = vpop.f32.mrb[0].mxu0
      %417 = vmatprep.mubr.f32.mxu0 0.0
      %418 = vmatmul.mubr.f32.gmra.mrb[0].mxu0 %v310
      %v419 = vpop.f32.mrb[0].mxu0
      %v420 = vadd.f32 %v259, %v419
      %v421 = vpop.f32.mrb[0].mxu0
      %422 = vmatprep.mubr.f32.mxu0 0.0
      %423 = vmatmul.mubr.f32.gmra.mrb[0].mxu0 %v313
      %v424 = vpop.f32.mrb[0].mxu0
      %v425 = vadd.f32 %v264, %v424
      %v426 = vpop.f32.mrb[0].mxu0
      %427 = vmatprep.mubr.f32.mxu0 0.0
      %428 = vmatmul.mubr.f32.gmra.mrb[0].mxu0 %v316
      %v429 = vpop.f32.mrb[0].mxu0
      %v430 = vadd.f32 %v269, %v429
      %v431 = vpop.f32.mrb[0].mxu0
      %432 = vmatprep.mubr.f32.mxu0 0.0
      %433 = vmatmul.mubr.f32.gmra.mrb[0].mxu0 %v319
      %v434 = vpop.f32.mrb[0].mxu0
      %v435 = vadd.f32 %v274, %v434
      %v436 = vpop.f32.mrb[0].mxu0
      %437 = vmatprep.mubr.f32.mxu0 0.0
      %438 = vmatmul.mubr.f32.gmra.mrb[0].mxu0 %v322
      %v439 = vpop.f32.mrb[0].mxu0
      %v440 = vadd.f32 %v279, %v439
      %v441 = vpop.f32.mrb[0].mxu0
      %442 = vmatprep.mubr.f32.mxu0 0.0
      %443 = vmatmul.mubr.f32.gmra.mrb[0].mxu0 %v325
      %v444 = vpop.f32.mrb[0].mxu0
      %v445 = vadd.f32 %v284, %v444
      %v446 = vpop.f32.mrb[0].mxu0
      %447 = vmatprep.mubr.f32.mxu0 0.0
      %448 = vmatmul.mubr.f32.gmra.mrb[0].mxu0 %v328
      %v449 = vpop.f32.mrb[0].mxu0
      %v450 = vadd.f32 %v289, %v449
      %v451 = vpop.f32.mrb[0].mxu0
      %452 = vmatprep.mubr.f32.mxu0 0.0
      %453 = vmatmul.mubr.f32.gmra.mrb[0].mxu0 %v331
      %v454 = vpop.f32.mrb[0].mxu0
      %v455 = vadd.f32 %v294, %v454
      %v456 = vpop.f32.mrb[0].mxu0
      %457 = vdwg.mxu0
      %vm458 = vcmask 130048
      %459 = vst.msk [vmem:[%s209] sm:$0xff] %vm458, %v400
      %460 = vst.msk [vmem:[%s209 + $0x8] sm:$0xff] %vm458, %v405
      %461 = vst.msk [vmem:[%s209 + $0x10] sm:$0xff] %vm458, %v410
      %462 = vst.msk [vmem:[%s209 + $0x18] sm:$0xff] %vm458, %v415
      %463 = vst.msk [vmem:[%s209 + $0x20] sm:$0xff] %vm458, %v420
      %464 = vst.msk [vmem:[%s209 + $0x28] sm:$0xff] %vm458, %v425
      %465 = vst.msk [vmem:[%s209 + $0x30] sm:$0xff] %vm458, %v430
      %466 = vst.msk [vmem:[%s209 + $0x38] sm:$0xff] %vm458, %v435
      %467 = vst.msk [vmem:[%s209 + $0x40] sm:$0xff] %vm458, %v440
      %468 = vst.msk [vmem:[%s209 + $0x48] sm:$0xff] %vm458, %v445
      %469 = vst.msk [vmem:[%s209 + $0x50] sm:$0xff] %vm458, %v450
      %470 = vst.msk [vmem:[%s209 + $0x58] sm:$0xff] %vm458, %v455
      %s471 = smul.u32 12, %s14
      %p472 = scmp.lt.s32.totalorder %s471, 47
      %s473 = scalar_select %p472, %s471, 47
      %s474 = smul.addr %s473, 8
      %s475 = scalar_lea.vmem %s3, %s474
      // Predicated region
      $region33: #{_lambda_.14} parent=31 // pred_check
        %p476 = pneg %p110
      $region34: #{_lambda_.14} parent=31 // pred_check_branch
        %478 = sbr.rel (%p476) target = $region36
      $region35: #{_lambda_.14} parent=31 // pred_region
        %s479 = smul.u32 12, %s14
      $region36: #{_lambda_.14} parent=31 // pred_fallthru
        _
    $region32: #{_lambda_.14} parent=5 // pred_fallthru
      _
    %p480 = scmp.le.s32.totalorder 2, %s9
    // Predicated region
    $region37: #{_lambda_.14} parent=5 // pred_check
      %p481 = pneg %p480
    $region38: #{_lambda_.14} parent=5 // pred_check_branch
      %483 = sbr.rel (%p481) target = $region40
    $region39: #{_lambda_.14} parent=5 // pred_region
      %s484 = ssub.s32 %s9, 2
      // Predicated region
      $region41: #{_lambda_.14} parent=39 // pred_check
        %p485 = pneg %p116
      $region42: #{_lambda_.14} parent=39 // pred_check_branch
        %487 = sbr.rel (%p485) target = $region44
      $region43: #{_lambda_.14} parent=39 // pred_region
        %s488 = smul.u32 12, %s15
        %p489 = scmp.lt.s32.totalorder %s488, 47
        %s490 = scalar_select %p489, %s488, 47
        %s491 = smul.addr %s490, 8
        %s492 = scalar_lea.vmem %s3, %s491
      $region44: #{_lambda_.14} parent=39 // pred_fallthru
        _
    $region40: #{_lambda_.14} parent=5 // pred_fallthru
      _
  $region6: #{_lambda_.14} parent=0 // loop_footer
    %s13 = sadd.s32 1, %s9
  $region7: #{_lambda_.14} parent=0 // loop_footer_branch
    %8 = sbr.rel target = $region3
  $region8: #{_lambda_.14} parent=0 // loop_exit
    _

// kernel: _lambda_.15
$region0: #{_lambda_.15}
  #allocation0 [shape = 'u32[]', space=smem, size = 0x4, offset = 0x4, fixed_abs, tag = 'smem constant byte address 0x4 - core index']
  #allocation1 [shape = 'u32[144,128]{1,0:T(1,128)}', space=vmem, size = 0x12000, scoped, tag = 'internal scratch']
  #allocation2 [shape = 'f32[12,64]{1,0:T(8,128)}', space=vmem, size = 0x2000, scoped, tag = 'scratch operand']
  #allocation3 [shape = 'f32[4,64]{1,0:T(4,128)}', space=vmem, size = 0x800, scoped, tag = 'scratch operand']
  %s0 = inlined_call_operand.vmem [shape: f32[2,4,66], index: 0, kind: input, shape index: {}]
  %s1 = inlined_call_operand.vmem [shape: f32[2,8,8,12], index: 1, kind: input, shape index: {}]
  %s2 = inlined_call_operand.vmem [shape: f32[8,4], index: 2, kind: input, shape index: {}]
  %s3 = inlined_call_operand.vmem [shape: f32[8,1], index: 3, kind: input, shape index: {}]
  %s4 = inlined_call_operand.vmem [shape: f32[2,4,64], index: 4, kind: output, shape index: {0}]
  %s5 = inlined_call_operand.vmem [shape: f32[2,4,64], index: 5, kind: output, shape index: {1}]
  %6 = xla_tuple %s4, %s5
  %s7 = sld [smem:[#allocation0]]
  $region57: #{_lambda_.15} parent=0
    _
  %s9 = ssub.s32 1, %s7
  %s10 = scalar_select 0, %s9, %s7
  loop: start=0, step=1, limit=4
  $region2: #{_lambda_.15} parent=0 // loop_pre_header
    _
  $region3: #{_lambda_.15} parent=0 // loop_header
    %s12 = sphi 0, %s16
    %p13 = scmp.ge.s32.totalorder %s12, 4
    %s22 = sphi 0, %s24
    %s25 = sphi 0, %s22
    %s26 = sphi 0, %s25
    %s42 = sphi 0, %s26
    %s48 = sphi 0, %s50
    %s51 = sphi 0, %s48
    %s52 = sphi 0, %s51
    %s68 = sphi 0, %s52
    %s72 = sphi 0, %s72
    %s74 = sphi 0, %s72
    %s75 = sphi 0, %s74
    %s89 = sphi 0, %s75
    %s93 = sphi 0, %s93
    %s95 = sphi 0, %s93
    %s96 = sphi 0, %s95
    %s110 = sphi 0, %s96
    %s116 = sphi 0, %s118
    %s119 = sphi 0, %s116
    %s120 = sphi 0, %s119
    %s136 = sphi 0, %s120
    %s142 = sphi 0, %s144
    %s145 = sphi 0, %s142
    %s146 = sphi 0, %s145
    %s162 = sphi 0, %s146
  $region4: #{_lambda_.15} parent=0 // loop_header_branch
    %15 = sbr.rel (%p13) target = $region8
  $region5: #{_lambda_.15} parent=0 // loop_body
    %s17 = ssub.s32 %s12, 1
    %s18 = ssub.s32 %s12, 2
    %s19 = sadd.s32 %s12, 1
    %s20 = ssub.s32 %s12, %s19
    %p21 = scmp.eq.s32.totalorder %s20, 0
    %s23 = sadd.s32 %s22, 1
    %s24 = scalar_select %p21, %s22, %s23
    %p27 = pneg %p21
    %p28 = scmp.eq.s32.totalorder %s12, 1
    %p29 = por %p27, %p28
    %p30 = scmp.ne.s32.totalorder %s22, %s25
    %p31 = scmp.eq.s32.totalorder %s12, 0
    %p32 = por %p30, %p31
    %p33 = scmp.ne.s32.totalorder %s22, %s25
    %p34 = scmp.eq.s32.totalorder %s17, 1
    %p35 = por %p33, %p34
    %p36 = scmp.ne.s32.totalorder %s25, %s26
    %p37 = scmp.eq.s32.totalorder %s17, 0
    %p38 = por %p36, %p37
    %p39 = scmp.ne.s32.totalorder %s25, %s26
    %p40 = scmp.eq.s32.totalorder %s18, 1
    %p41 = por %p39, %p40
    %p43 = scmp.ne.s32.totalorder %s26, %s42
    %p44 = scmp.eq.s32.totalorder %s18, 0
    %p45 = por %p43, %p44
    %s46 = ssub.s32 %s12, %s19
    %p47 = scmp.eq.s32.totalorder %s46, 0
    %s49 = sadd.s32 %s48, 1
    %s50 = scalar_select %p47, %s48, %s49
    %p53 = pneg %p47
    %p54 = scmp.eq.s32.totalorder %s12, 1
    %p55 = por %p53, %p54
    %p56 = scmp.ne.s32.totalorder %s48, %s51
    %p57 = scmp.eq.s32.totalorder %s12, 0
    %p58 = por %p56, %p57
    %p59 = scmp.ne.s32.totalorder %s48, %s51
    %p60 = scmp.eq.s32.totalorder %s17, 1
    %p61 = por %p59, %p60
    %p62 = scmp.ne.s32.totalorder %s51, %s52
    %p63 = scmp.eq.s32.totalorder %s17, 0
    %p64 = por %p62, %p63
    %p65 = scmp.ne.s32.totalorder %s51, %s52
    %p66 = scmp.eq.s32.totalorder %s18, 1
    %p67 = por %p65, %p66
    %p69 = scmp.ne.s32.totalorder %s52, %s68
    %p70 = scmp.eq.s32.totalorder %s18, 0
    %p71 = por %p69, %p70
    %s73 = sadd.s32 %s72, 1
    %p76 = scmp.eq.s32.totalorder %s12, 1
    %p77 = scmp.ne.s32.totalorder %s72, %s74
    %p78 = scmp.eq.s32.totalorder %s12, 0
    %p79 = por %p77, %p78
    %p80 = scmp.ne.s32.totalorder %s72, %s74
    %p81 = scmp.eq.s32.totalorder %s17, 1
    %p82 = por %p80, %p81
    %p83 = scmp.ne.s32.totalorder %s74, %s75
    %p84 = scmp.eq.s32.totalorder %s17, 0
    %p85 = por %p83, %p84
    %p86 = scmp.ne.s32.totalorder %s74, %s75
    %p87 = scmp.eq.s32.totalorder %s18, 1
    %p88 = por %p86, %p87
    %p90 = scmp.ne.s32.totalorder %s75, %s89
    %p91 = scmp.eq.s32.totalorder %s18, 0
    %p92 = por %p90, %p91
    %s94 = sadd.s32 %s93, 1
    %p97 = scmp.eq.s32.totalorder %s12, 1
    %p98 = scmp.ne.s32.totalorder %s93, %s95
    %p99 = scmp.eq.s32.totalorder %s12, 0
    %p100 = por %p98, %p99
    %p101 = scmp.ne.s32.totalorder %s93, %s95
    %p102 = scmp.eq.s32.totalorder %s17, 1
    %p103 = por %p101, %p102
    %p104 = scmp.ne.s32.totalorder %s95, %s96
    %p105 = scmp.eq.s32.totalorder %s17, 0
    %p106 = por %p104, %p105
    %p107 = scmp.ne.s32.totalorder %s95, %s96
    %p108 = scmp.eq.s32.totalorder %s18, 1
    %p109 = por %p107, %p108
    %p111 = scmp.ne.s32.totalorder %s96, %s110
    %p112 = scmp.eq.s32.totalorder %s18, 0
    %p113 = por %p111, %p112
    %s114 = ssub.s32 %s12, %s19
    %p115 = scmp.eq.s32.totalorder %s114, 0
    %s117 = sadd.s32 %s116, 1
    %s118 = scalar_select %p115, %s116, %s117
    %p121 = pneg %p115
    %p122 = scmp.eq.s32.totalorder %s12, 1
    %p123 = por %p121, %p122
    %p124 = scmp.ne.s32.totalorder %s116, %s119
    %p125 = scmp.eq.s32.totalorder %s12, 0
    %p126 = por %p124, %p125
    %p127 = scmp.ne.s32.totalorder %s116, %s119
    %p128 = scmp.eq.s32.totalorder %s17, 1
    %p129 = por %p127, %p128
    %p130 = scmp.ne.s32.totalorder %s119, %s120
    %p131 = scmp.eq.s32.totalorder %s17, 0
    %p132 = por %p130, %p131
    %p133 = scmp.ne.s32.totalorder %s119, %s120
    %p134 = scmp.eq.s32.totalorder %s18, 1
    %p135 = por %p133, %p134
    %p137 = scmp.ne.s32.totalorder %s120, %s136
    %p138 = scmp.eq.s32.totalorder %s18, 0
    %p139 = por %p137, %p138
    %s140 = ssub.s32 %s12, %s19
    %p141 = scmp.eq.s32.totalorder %s140, 0
    %s143 = sadd.s32 %s142, 1
    %s144 = scalar_select %p141, %s142, %s143
    %p147 = pneg %p141
    %p148 = scmp.eq.s32.totalorder %s12, 1
    %p149 = por %p147, %p148
    %p150 = scmp.ne.s32.totalorder %s142, %s145
    %p151 = scmp.eq.s32.totalorder %s12, 0
    %p152 = por %p150, %p151
    %p153 = scmp.ne.s32.totalorder %s142, %s145
    %p154 = scmp.eq.s32.totalorder %s17, 1
    %p155 = por %p153, %p154
    %p156 = scmp.ne.s32.totalorder %s145, %s146
    %p157 = scmp.eq.s32.totalorder %s17, 0
    %p158 = por %p156, %p157
    %p159 = scmp.ne.s32.totalorder %s145, %s146
    %p160 = scmp.eq.s32.totalorder %s18, 1
    %p161 = por %p159, %p160
    %p163 = scmp.ne.s32.totalorder %s146, %s162
    %p164 = scmp.eq.s32.totalorder %s18, 0
    %p165 = por %p163, %p164
    %p166 = scmp.le.s32.totalorder 1, %s12
    %p167 = scmp.lt.s32.totalorder %s12, 3
    %p168 = pnand %p166, %p167
    %p169 = pneg %p168
    // Predicated region
    $region9: #{_lambda_.15} parent=5 // pred_check
      _
    $region10: #{_lambda_.15} parent=5 // pred_check_branch
      %171 = sbr.rel (%p168) target = $region12
    $region11: #{_lambda_.15} parent=5 // pred_region
      %s172 = ssub.s32 %s12, 1
      // Predicated region
      $region13: #{_lambda_.15} parent=11 // pred_check
        %p173 = pneg %p85
      $region14: #{_lambda_.15} parent=11 // pred_check_branch
        %175 = sbr.rel (%p173) target = $region16
      $region15: #{_lambda_.15} parent=11 // pred_region
        _
      $region16: #{_lambda_.15} parent=11 // pred_fallthru
        _
      // Predicated region
      $region17: #{_lambda_.15} parent=11 // pred_check
        %p176 = pneg %p106
      $region18: #{_lambda_.15} parent=11 // pred_check_branch
        %178 = sbr.rel (%p176) target = $region20
      $region19: #{_lambda_.15} parent=11 // pred_region
        _
      $region20: #{_lambda_.15} parent=11 // pred_fallthru
        _
    $region12: #{_lambda_.15} parent=5 // pred_fallthru
      _
    %p179 = scmp.lt.s32.totalorder %s12, 2
    // Predicated region
    $region21: #{_lambda_.15} parent=5 // pred_check
      %p180 = pneg %p179
    $region22: #{_lambda_.15} parent=5 // pred_check_branch
      %182 = sbr.rel (%p180) target = $region24
    $region23: #{_lambda_.15} parent=5 // pred_region
      // Predicated region
      $region25: #{_lambda_.15} parent=23 // pred_check
        %p183 = pneg %p32
      $region26: #{_lambda_.15} parent=23 // pred_check_branch
        %185 = sbr.rel (%p183) target = $region28
      $region27: #{_lambda_.15} parent=23 // pred_region
        %p186 = scmp.lt.s32.totalorder %s12, 1
        %s187 = scalar_select %p186, %s12, 1
        %s188 = smul.addr %s187, 4
        %s189 = scalar_lea.vmem %s0, %s188
      $region28: #{_lambda_.15} parent=23 // pred_fallthru
        _
      // Predicated region
      $region29: #{_lambda_.15} parent=23 // pred_check
        %p190 = pneg %p58
      $region30: #{_lambda_.15} parent=23 // pred_check_branch
        %192 = sbr.rel (%p190) target = $region32
      $region31: #{_lambda_.15} parent=23 // pred_region
        %p193 = scmp.lt.s32.totalorder %s12, 1
        %s194 = scalar_select %p193, %s12, 1
        %s195 = smul.addr %s194, 8
        %s196 = smul.addr %s195, 8
        %s197 = scalar_lea.vmem %s1, %s196
      $region32: #{_lambda_.15} parent=23 // pred_fallthru
        _
    $region24: #{_lambda_.15} parent=5 // pred_fallthru
      _
    %p198 = scmp.le.s32.totalorder 1, %s12
    %p199 = scmp.lt.s32.totalorder %s12, 3
    %p200 = pnand %p198, %p199
    %p201 = pneg %p200
    // Predicated region
    $region33: #{_lambda_.15} parent=5 // pred_check
      _
    $region34: #{_lambda_.15} parent=5 // pred_check_branch
      %203 = sbr.rel (%p200) target = $region36
    $region35: #{_lambda_.15} parent=5 // pred_region
      %s204 = ssub.s32 %s12, 1
      %p205 = scmp.lt.s32.totalorder %s17, 1
      %s206 = scalar_select %p205, %s17, 1
      %s207 = smul.addr %s206, 4
      %s208 = scalar_lea.vmem %s0, %s207
      %p209 = pneg %p38
      %p210 = pneg %p35
      %p211 = scmp.lt.s32.totalorder %s17, 1
      %s212 = scalar_select %p211, %s17, 1
      %s213 = smul.addr %s212, 8
      %s214 = smul.addr %s213, 8
      %s215 = scalar_lea.vmem %s1, %s214
      %p216 = pneg %p64
      %p217 = pneg %p61
      %p218 = pneg %p85
      %p219 = pneg %p82
      %p220 = pneg %p106
      %p221 = pneg %p103
      %p222 = pneg %p132
      %p223 = pneg %p129
      %p224 = scmp.lt.s32.totalorder %s17, 1
      %s225 = scalar_select %p224, %s17, 1
      %s226 = smul.addr %s225, 4
      %s227 = scalar_lea.vmem %s4, %s226
      %p228 = pneg %p158
      %p229 = pneg %p155
      %p230 = scmp.lt.s32.totalorder %s17, 1
      %s231 = scalar_select %p230, %s17, 1
      %s232 = smul.addr %s231, 4
      %s233 = scalar_lea.vmem %s5, %s232
      %p234 = scmp.lt.s32.totalorder %s17, 1
      %s235 = scalar_select %p234, %s17, 1
      %s236 = smul.addr %s235, 4
      %s237 = scalar_lea.vmem %s0, %s236
      %p238 = scmp.lt.s32.totalorder %s17, 1
      %s239 = scalar_select %p238, %s17, 1
      %s240 = smul.addr %s239, 8
      %s241 = smul.addr %s240, 8
      %s242 = scalar_lea.vmem %s1, %s241
      %p243 = scmp.lt.s32.totalorder %s17, 1
      %s244 = scalar_select %p243, %s17, 1
      %s245 = smul.addr %s244, 4
      %s246 = scalar_lea.vmem %s4, %s245
      %p247 = scmp.lt.s32.totalorder %s17, 1
      %s248 = scalar_select %p247, %s17, 1
      %s249 = smul.addr %s248, 4
      %s250 = scalar_lea.vmem %s5, %s249
      %v251 = vld [vmem:[%s237] sm:$0xf]
      %vm252 = vcmask 519168
      %253 = vst.msk [vmem:[#allocation2] sm:$0xf] %vm252, %v251
      %255 = vrot.lane.b32.xlu0 %v251, 127
      %v256 = vpop.permute.xlu0 %255
      %258 = vst.msk [vmem:[#allocation2 + $0x4] sm:$0xf] %vm252, %v256
      %259 = vrot.lane.b32.xlu0 %v251, 126
      %v260 = vpop.permute.xlu0 %259
      %262 = vst.msk [vmem:[#allocation2 + $0x8] sm:$0xf] %vm252, %v260
      %v263 = vld [vmem:[#allocation2] sm:$0xff]
      %v264 = vld [vmem:[#allocation2 + $0x8] sm:$0xf]
      %v265 = vld [vmem:[%s242] sm:$0xff]
      %vm266 = vcmask 97280
      %v268 = vsel %vm266, %v265, 0
      %vm270 = vcmask 1043456
      %v272 = vsel %vm270, %v264, 0
      %274 = vmatprep.subr.mxu0 0.0
      %275 = vmatpush1.msra.mxu0 %v263
      %276 = vmatprep.subr.mxu0 0.0
      %277 = vmatpush1.msra.mxu0 %v272
      %278 = vmatprep.subr.mxu0 0.0
      %279 = vmatpush1.msra.mxu0 0.0
      %280 = vmatprep.subr.mxu0 0.0
      %281 = vmatpush1.msra.mxu0 0.0
      %282 = vmatprep.subr.mxu0 0.0
      %283 = vmatpush1.msra.mxu0 0.0
      %284 = vmatprep.subr.mxu0 0.0
      %285 = vmatpush1.msra.mxu0 0.0
      %286 = vmatprep.subr.mxu0 0.0
      %287 = vmatpush1.msra.mxu0 0.0
      %288 = vmatprep.subr.mxu0 0.0
      %289 = vmatpush1.msra.mxu0 0.0
      %290 = vmatprep.subr.mxu0 0.0
      %291 = vmatpush1.msra.mxu0 0.0
      %292 = vmatprep.subr.mxu0 0.0
      %293 = vmatpush1.msra.mxu0 0.0
      %294 = vmatprep.subr.mxu0 0.0
      %295 = vmatpush1.msra.mxu0 0.0
      %296 = vmatprep.subr.mxu0 0.0
      %297 = vmatpush1.msra.mxu0 0.0
      %298 = vmatprep.subr.mxu0 0.0
      %299 = vmatpush1.msra.mxu0 0.0
      %300 = vmatprep.subr.mxu0 0.0
      %301 = vmatpush1.msra.mxu0 0.0
      %302 = vmatprep.subr.mxu0 0.0
      %303 = vmatpush1.msra.mxu0 0.0
      %304 = vmatprep.subr.mxu0 0.0
      %305 = vmatpush1.msra.mxu0 0.0
      %306 = vmatprep.subr.mxu0 0.0
      %307 = vmatpush1.msra.mxu0 0.0
      %308 = vmatprep.subr.mxu0 0.0
      %309 = vmatpush1.msra.mxu0 0.0
      %310 = vmatprep.subr.mxu0 0.0
      %311 = vmatpush1.msra.mxu0 0.0
      %312 = vmatprep.subr.mxu0 0.0
      %313 = vmatpush1.msra.mxu0 0.0
      %314 = vmatprep.subr.mxu0 0.0
      %315 = vmatpush1.msra.mxu0 0.0
      %316 = vmatprep.subr.mxu0 0.0
      %317 = vmatpush1.msra.mxu0 0.0
      %318 = vmatprep.subr.mxu0 0.0
      %319 = vmatpush1.msra.mxu0 0.0
      %320 = vmatprep.subr.mxu0 0.0
      %321 = vmatpush1.msra.mxu0 0.0
      %322 = vmatprep.subr.mxu0 0.0
      %323 = vmatpush1.msra.mxu0 0.0
      %324 = vmatprep.subr.mxu0 0.0
      %325 = vmatpush1.msra.mxu0 0.0
      %326 = vmatprep.subr.mxu0 0.0
      %327 = vmatpush1.msra.mxu0 0.0
      %328 = vmatprep.subr.mxu0 0.0
      %329 = vmatpush1.msra.mxu0 0.0
      %330 = vmatprep.subr.mxu0 0.0
      %331 = vmatpush1.msra.mxu0 0.0
      %332 = vmatprep.subr.mxu0 0.0
      %333 = vmatpush1.msra.mxu0 0.0
      %334 = vmatprep.subr.mxu0 0.0
      %335 = vmatpush1.msra.mxu0 0.0
      %336 = vmatprep.subr.mxu0 0.0
      %337 = vmatpush1.msra.mxu0 0.0
      %338 = vmatprep.mubr.f32.mxu0 0.0
      %339 = vmatmul.mubr.f32.gmra.mrb[0].mxu0 %v268
      %v340 = vpop.f32.mrb[0].mxu0
      %v341 = vadd.f32 0.0, %v340
      %v342 = vpop.f32.mrb[0].mxu0
      %343 = vdwg.mxu0
      %v344 = vtanh.pop %v341
      %v345 = vxor.u32 %v341, 2147483648
      %v346 = vmul.f32 %v345, 1.442695
      %v347 = vpow.pop %v346
      %v348 = vadd.f32 %v347, 1.0
      %v349 = vrcp.pop %v348
      %v350 = vmul.f32 1.0, %v349
      %v352 = vrot.slane %v350, 4
      %v354 = vmul.f32 %v344, %v352
      %vm355 = vcmask 60416
      %356 = vst.msk [vmem:[#allocation3] sm:$0xf] %vm355, %v354
      %s357 = scalar_lea.vmem %s242, 8
      %v358 = vld [vmem:[%s357] sm:$0xff]
      %360 = vrot.lane.b32.xlu0 %v263, 120
      %v361 = vpop.permute.xlu0 %360
      %362 = vrot.lane.b32.xlu0 %v264, 120
      %v363 = vpop.permute.xlu0 %362
      %v366 = vsel %vm266, %v358, 0
      %v368 = vsel %vm270, %v363, 0
      %370 = vmatprep.subr.mxu0 0.0
      %371 = vmatpush1.msra.mxu0 %v361
      %372 = vmatprep.subr.mxu0 0.0
      %373 = vmatpush1.msra.mxu0 %v368
      %374 = vmatprep.subr.mxu0 0.0
      %375 = vmatpush1.msra.mxu0 0.0
      %376 = vmatprep.subr.mxu0 0.0
      %377 = vmatpush1.msra.mxu0 0.0
      %378 = vmatprep.subr.mxu0 0.0
      %379 = vmatpush1.msra.mxu0 0.0
      %380 = vmatprep.subr.mxu0 0.0
      %381 = vmatpush1.msra.mxu0 0.0
      %382 = vmatprep.subr.mxu0 0.0
      %383 = vmatpush1.msra.mxu0 0.0
      %384 = vmatprep.subr.mxu0 0.0
      %385 = vmatpush1.msra.mxu0 0.0
      %386 = vmatprep.subr.mxu0 0.0
      %387 = vmatpush1.msra.mxu0 0.0
      %388 = vmatprep.subr.mxu0 0.0
      %389 = vmatpush1.msra.mxu0 0.0
      %390 = vmatprep.subr.mxu0 0.0
      %391 = vmatpush1.msra.mxu0 0.0
      %392 = vmatprep.subr.mxu0 0.0
      %393 = vmatpush1.msra.mxu0 0.0
      %394 = vmatprep.subr.mxu0 0.0
      %395 = vmatpush1.msra.mxu0 0.0
      %396 = vmatprep.subr.mxu0 0.0
      %397 = vmatpush1.msra.mxu0 0.0
      %398 = vmatprep.subr.mxu0 0.0
      %399 = vmatpush1.msra.mxu0 0.0
      %400 = vmatprep.subr.mxu0 0.0
      %401 = vmatpush1.msra.mxu0 0.0
      %402 = vmatprep.subr.mxu0 0.0
      %403 = vmatpush1.msra.mxu0 0.0
      %404 = vmatprep.subr.mxu0 0.0
      %405 = vmatpush1.msra.mxu0 0.0
      %406 = vmatprep.subr.mxu0 0.0
      %407 = vmatpush1.msra.mxu0 0.0
      %408 = vmatprep.subr.mxu0 0.0
      %409 = vmatpush1.msra.mxu0 0.0
      %410 = vmatprep.subr.mxu0 0.0
      %411 = vmatpush1.msra.mxu0 0.0
      %412 = vmatprep.subr.mxu0 0.0
      %413 = vmatpush1.msra.mxu0 0.0
      %414 = vmatprep.subr.mxu0 0.0
      %415 = vmatpush1.msra.mxu0 0.0
      %416 = vmatprep.subr.mxu0 0.0
      %417 = vmatpush1.msra.mxu0 0.0
      %418 = vmatprep.subr.mxu0 0.0
      %419 = vmatpush1.msra.mxu0 0.0
      %420 = vmatprep.subr.mxu0 0.0
      %421 = vmatpush1.msra.mxu0 0.0
      %422 = vmatprep.subr.mxu0 0.0
      %423 = vmatpush1.msra.mxu0 0.0
      %424 = vmatprep.subr.mxu0 0.0
      %425 = vmatpush1.msra.mxu0 0.0
      %426 = vmatprep.subr.mxu0 0.0
      %427 = vmatpush1.msra.mxu0 0.0
      %428 = vmatprep.subr.mxu0 0.0
      %429 = vmatpush1.msra.mxu0 0.0
      %430 = vmatprep.subr.mxu0 0.0
      %431 = vmatpush1.msra.mxu0 0.0
      %432 = vmatprep.subr.mxu0 0.0
      %433 = vmatpush1.msra.mxu0 0.0
      %434 = vmatprep.mubr.f32.mxu0 0.0
      %435 = vmatmul.mubr.f32.gmra.mrb[0].mxu0 %v366
      %v436 = vpop.f32.mrb[0].mxu0
      %v437 = vadd.f32 0.0, %v436
      %v438 = vpop.f32.mrb[0].mxu0
      %439 = vdwg.mxu0
      %v440 = vtanh.pop %v437
      %v441 = vxor.u32 %v437, 2147483648
      %v442 = vmul.f32 %v441, 1.442695
      %v443 = vpow.pop %v442
      %v444 = vadd.f32 %v443, 1.0
      %v445 = vrcp.pop %v444
      %v446 = vmul.f32 1.0, %v445
      %v448 = vrot.slane %v446, 4
      %v450 = vmul.f32 %v440, %v448
      %452 = vrot.lane.b32.xlu0 %v450, 8
      %v453 = vpop.permute.xlu0 %452
      %vm455 = vcmask 126016
      %456 = vst.msk [vmem:[#allocation3] sm:$0xf] %vm455, %v453
      %s457 = scalar_lea.vmem %s242, 16
      %v458 = vld [vmem:[%s457] sm:$0xff]
      %459 = vrot.lane.b32.xlu0 %v263, 112
      %v460 = vpop.permute.xlu0 %459
      %461 = vrot.lane.b32.xlu0 %v264, 112
      %v462 = vpop.permute.xlu0 %461
      %v465 = vsel %vm266, %v458, 0
      %v467 = vsel %vm270, %v462, 0
      %469 = vmatprep.subr.mxu0 0.0
      %470 = vmatpush1.msra.mxu0 %v460
      %471 = vmatprep.subr.mxu0 0.0
      %472 = vmatpush1.msra.mxu0 %v467
      %473 = vmatprep.subr.mxu0 0.0
      %474 = vmatpush1.msra.mxu0 0.0
      %475 = vmatprep.subr.mxu0 0.0
      %476 = vmatpush1.msra.mxu0 0.0
      %477 = vmatprep.subr.mxu0 0.0
      %478 = vmatpush1.msra.mxu0 0.0
      %479 = vmatprep.subr.mxu0 0.0
      %480 = vmatpush1.msra.mxu0 0.0
      %481 = vmatprep.subr.mxu0 0.0
      %482 = vmatpush1.msra.mxu0 0.0
      %483 = vmatprep.subr.mxu0 0.0
      %484 = vmatpush1.msra.mxu0 0.0
      %485 = vmatprep.subr.mxu0 0.0
      %486 = vmatpush1.msra.mxu0 0.0
      %487 = vmatprep.subr.mxu0 0.0
      %488 = vmatpush1.msra.mxu0 0.0
      %489 = vmatprep.subr.mxu0 0.0
      %490 = vmatpush1.msra.mxu0 0.0
      %491 = vmatprep.subr.mxu0 0.0
      %492 = vmatpush1.msra.mxu0 0.0
      %493 = vmatprep.subr.mxu0 0.0
      %494 = vmatpush1.msra.mxu0 0.0
      %495 = vmatprep.subr.mxu0 0.0
      %496 = vmatpush1.msra.mxu0 0.0
      %497 = vmatprep.subr.mxu0 0.0
      %498 = vmatpush1.msra.mxu0 0.0
      %499 = vmatprep.subr.mxu0 0.0
      %500 = vmatpush1.msra.mxu0 0.0
      %501 = vmatprep.subr.mxu0 0.0
      %502 = vmatpush1.msra.mxu0 0.0
      %503 = vmatprep.subr.mxu0 0.0
      %504 = vmatpush1.msra.mxu0 0.0
      %505 = vmatprep.subr.mxu0 0.0
      %506 = vmatpush1.msra.mxu0 0.0
      %507 = vmatprep.subr.mxu0 0.0
      %508 = vmatpush1.msra.mxu0 0.0
      %509 = vmatprep.subr.mxu0 0.0
      %510 = vmatpush1.msra.mxu0 0.0
      %511 = vmatprep.subr.mxu0 0.0
      %512 = vmatpush1.msra.mxu0 0.0
      %513 = vmatprep.subr.mxu0 0.0
      %514 = vmatpush1.msra.mxu0 0.0
      %515 = vmatprep.subr.mxu0 0.0
      %516 = vmatpush1.msra.mxu0 0.0
      %517 = vmatprep.subr.mxu0 0.0
      %518 = vmatpush1.msra.mxu0 0.0
      %519 = vmatprep.subr.mxu0 0.0
      %520 = vmatpush1.msra.mxu0 0.0
      %521 = vmatprep.subr.mxu0 0.0
      %522 = vmatpush1.msra.mxu0 0.0
      %523 = vmatprep.subr.mxu0 0.0
      %524 = vmatpush1.msra.mxu0 0.0
      %525 = vmatprep.subr.mxu0 0.0
      %526 = vmatpush1.msra.mxu0 0.0
      %527 = vmatprep.subr.mxu0 0.0
      %528 = vmatpush1.msra.mxu0 0.0
      %529 = vmatprep.subr.mxu0 0.0
      %530 = vmatpush1.msra.mxu0 0.0
      %531 = vmatprep.subr.mxu0 0.0
      %532 = vmatpush1.msra.mxu0 0.0
      %533 = vmatprep.mubr.f32.mxu0 0.0
      %534 = vmatmul.mubr.f32.gmra.mrb[0].mxu0 %v465
      %v535 = vpop.f32.mrb[0].mxu0
      %v536 = vadd.f32 0.0, %v535
      %v537 = vpop.f32.mrb[0].mxu0
      %538 = vdwg.mxu0
      %v539 = vtanh.pop %v536
      %v540 = vxor.u32 %v536, 2147483648
      %v541 = vmul.f32 %v540, 1.442695
      %v542 = vpow.pop %v541
      %v543 = vadd.f32 %v542, 1.0
      %v544 = vrcp.pop %v543
      %v545 = vmul.f32 1.0, %v544
      %v547 = vrot.slane %v545, 4
      %v549 = vmul.f32 %v539, %v547
      %551 = vrot.lane.b32.xlu0 %v549, 16
      %v552 = vpop.permute.xlu0 %551
      %vm554 = vcmask 191616
      %555 = vst.msk [vmem:[#allocation3] sm:$0xf] %vm554, %v552
      %s556 = scalar_lea.vmem %s242, 24
      %v557 = vld [vmem:[%s556] sm:$0xff]
      %558 = vrot.lane.b32.xlu0 %v263, 104
      %v559 = vpop.permute.xlu0 %558
      %560 = vrot.lane.b32.xlu0 %v264, 104
      %v561 = vpop.permute.xlu0 %560
      %v564 = vsel %vm266, %v557, 0
      %v566 = vsel %vm270, %v561, 0
      %568 = vmatprep.subr.mxu0 0.0
      %569 = vmatpush1.msra.mxu0 %v559
      %570 = vmatprep.subr.mxu0 0.0
      %571 = vmatpush1.msra.mxu0 %v566
      %572 = vmatprep.subr.mxu0 0.0
      %573 = vmatpush1.msra.mxu0 0.0
      %574 = vmatprep.subr.mxu0 0.0
      %575 = vmatpush1.msra.mxu0 0.0
      %576 = vmatprep.subr.mxu0 0.0
      %577 = vmatpush1.msra.mxu0 0.0
      %578 = vmatprep.subr.mxu0 0.0
      %579 = vmatpush1.msra.mxu0 0.0
      %580 = vmatprep.subr.mxu0 0.0
      %581 = vmatpush1.msra.mxu0 0.0
      %582 = vmatprep.subr.mxu0 0.0
      %583 = vmatpush1.msra.mxu0 0.0
      %584 = vmatprep.subr.mxu0 0.0
      %585 = vmatpush1.msra.mxu0 0.0
      %586 = vmatprep.subr.mxu0 0.0
      %587 = vmatpush1.msra.mxu0 0.0
      %588 = vmatprep.subr.mxu0 0.0
      %589 = vmatpush1.msra.mxu0 0.0
      %590 = vmatprep.subr.mxu0 0.0
      %591 = vmatpush1.msra.mxu0 0.0
      %592 = vmatprep.subr.mxu0 0.0
      %593 = vmatpush1.msra.mxu0 0.0
      %594 = vmatprep.subr.mxu0 0.0
      %595 = vmatpush1.msra.mxu0 0.0
      %596 = vmatprep.subr.mxu0 0.0
      %597 = vmatpush1.msra.mxu0 0.0
      %598 = vmatprep.subr.mxu0 0.0
      %599 = vmatpush1.msra.mxu0 0.0
      %600 = vmatprep.subr.mxu0 0.0
      %601 = vmatpush1.msra.mxu0 0.0
      %602 = vmatprep.subr.mxu0 0.0
      %603 = vmatpush1.msra.mxu0 0.0
      %604 = vmatprep.subr.mxu0 0.0
      %605 = vmatpush1.msra.mxu0 0.0
      %606 = vmatprep.subr.mxu0 0.0
      %607 = vmatpush1.msra.mxu0 0.0
      %608 = vmatprep.subr.mxu0 0.0
      %609 = vmatpush1.msra.mxu0 0.0
      %610 = vmatprep.subr.mxu0 0.0
      %611 = vmatpush1.msra.mxu0 0.0
      %612 = vmatprep.subr.mxu0 0.0
      %613 = vmatpush1.msra.mxu0 0.0
      %614 = vmatprep.subr.mxu0 0.0
      %615 = vmatpush1.msra.mxu0 0.0
      %616 = vmatprep.subr.mxu0 0.0
      %617 = vmatpush1.msra.mxu0 0.0
      %618 = vmatprep.subr.mxu0 0.0
      %619 = vmatpush1.msra.mxu0 0.0
      %620 = vmatprep.subr.mxu0 0.0
      %621 = vmatpush1.msra.mxu0 0.0
      %622 = vmatprep.subr.mxu0 0.0
      %623 = vmatpush1.msra.mxu0 0.0
      %624 = vmatprep.subr.mxu0 0.0
      %625 = vmatpush1.msra.mxu0 0.0
      %626 = vmatprep.subr.mxu0 0.0
      %627 = vmatpush1.msra.mxu0 0.0
      %628 = vmatprep.subr.mxu0 0.0
      %629 = vmatpush1.msra.mxu0 0.0
      %630 = vmatprep.subr.mxu0 0.0
      %631 = vmatpush1.msra.mxu0 0.0
      %632 = vmatprep.mubr.f32.mxu0 0.0
      %633 = vmatmul.mubr.f32.gmra.mrb[0].mxu0 %v564
      %v634 = vpop.f32.mrb[0].mxu0
      %v635 = vadd.f32 0.0, %v634
      %v636 = vpop.f32.mrb[0].mxu0
      %637 = vdwg.mxu0
      %v638 = vtanh.pop %v635
      %v639 = vxor.u32 %v635, 2147483648
      %v640 = vmul.f32 %v639, 1.442695
      %v641 = vpow.pop %v640
      %v642 = vadd.f32 %v641, 1.0
      %v643 = vrcp.pop %v642
      %v644 = vmul.f32 1.0, %v643
      %v646 = vrot.slane %v644, 4
      %v648 = vmul.f32 %v638, %v646
      %650 = vrot.lane.b32.xlu0 %v648, 24
      %v651 = vpop.permute.xlu0 %650
      %vm653 = vcmask 257216
      %654 = vst.msk [vmem:[#allocation3] sm:$0xf] %vm653, %v651
      %s655 = scalar_lea.vmem %s242, 32
      %v656 = vld [vmem:[%s655] sm:$0xff]
      %657 = vrot.lane.b32.xlu0 %v263, 96
      %v658 = vpop.permute.xlu0 %657
      %659 = vrot.lane.b32.xlu0 %v264, 96
      %v660 = vpop.permute.xlu0 %659
      %v663 = vsel %vm266, %v656, 0
      %v665 = vsel %vm270, %v660, 0
      %667 = vmatprep.subr.mxu0 0.0
      %668 = vmatpush1.msra.mxu0 %v658
      %669 = vmatprep.subr.mxu0 0.0
      %670 = vmatpush1.msra.mxu0 %v665
      %671 = vmatprep.subr.mxu0 0.0
      %672 = vmatpush1.msra.mxu0 0.0
      %673 = vmatprep.subr.mxu0 0.0
      %674 = vmatpush1.msra.mxu0 0.0
      %675 = vmatprep.subr.mxu0 0.0
      %676 = vmatpush1.msra.mxu0 0.0
      %677 = vmatprep.subr.mxu0 0.0
      %678 = vmatpush1.msra.mxu0 0.0
      %679 = vmatprep.subr.mxu0 0.0
      %680 = vmatpush1.msra.mxu0 0.0
      %681 = vmatprep.subr.mxu0 0.0
      %682 = vmatpush1.msra.mxu0 0.0
      %683 = vmatprep.subr.mxu0 0.0
      %684 = vmatpush1.msra.mxu0 0.0
      %685 = vmatprep.subr.mxu0 0.0
      %686 = vmatpush1.msra.mxu0 0.0
      %687 = vmatprep.subr.mxu0 0.0
      %688 = vmatpush1.msra.mxu0 0.0
      %689 = vmatprep.subr.mxu0 0.0
      %690 = vmatpush1.msra.mxu0 0.0
      %691 = vmatprep.subr.mxu0 0.0
      %692 = vmatpush1.msra.mxu0 0.0
      %693 = vmatprep.subr.mxu0 0.0
      %694 = vmatpush1.msra.mxu0 0.0
      %695 = vmatprep.subr.mxu0 0.0
      %696 = vmatpush1.msra.mxu0 0.0
      %697 = vmatprep.subr.mxu0 0.0
      %698 = vmatpush1.msra.mxu0 0.0
      %699 = vmatprep.subr.mxu0 0.0
      %700 = vmatpush1.msra.mxu0 0.0
      %701 = vmatprep.subr.mxu0 0.0
      %702 = vmatpush1.msra.mxu0 0.0
      %703 = vmatprep.subr.mxu0 0.0
      %704 = vmatpush1.msra.mxu0 0.0
      %705 = vmatprep.subr.mxu0 0.0
      %706 = vmatpush1.msra.mxu0 0.0
      %707 = vmatprep.subr.mxu0 0.0
      %708 = vmatpush1.msra.mxu0 0.0
      %709 = vmatprep.subr.mxu0 0.0
      %710 = vmatpush1.msra.mxu0 0.0
      %711 = vmatprep.subr.mxu0 0.0
      %712 = vmatpush1.msra.mxu0 0.0
      %713 = vmatprep.subr.mxu0 0.0
      %714 = vmatpush1.msra.mxu0 0.0
      %715 = vmatprep.subr.mxu0 0.0
      %716 = vmatpush1.msra.mxu0 0.0
      %717 = vmatprep.subr.mxu0 0.0
      %718 = vmatpush1.msra.mxu0 0.0
      %719 = vmatprep.subr.mxu0 0.0
      %720 = vmatpush1.msra.mxu0 0.0
      %721 = vmatprep.subr.mxu0 0.0
      %722 = vmatpush1.msra.mxu0 0.0
      %723 = vmatprep.subr.mxu0 0.0
      %724 = vmatpush1.msra.mxu0 0.0
      %725 = vmatprep.subr.mxu0 0.0
      %726 = vmatpush1.msra.mxu0 0.0
      %727 = vmatprep.subr.mxu0 0.0
      %728 = vmatpush1.msra.mxu0 0.0
      %729 = vmatprep.subr.mxu0 0.0
      %730 = vmatpush1.msra.mxu0 0.0
      %731 = vmatprep.mubr.f32.mxu0 0.0
      %732 = vmatmul.mubr.f32.gmra.mrb[0].mxu0 %v663
      %v733 = vpop.f32.mrb[0].mxu0
      %v734 = vadd.f32 0.0, %v733
      %v735 = vpop.f32.mrb[0].mxu0
      %736 = vdwg.mxu0
      %v737 = vtanh.pop %v734
      %v738 = vxor.u32 %v734, 2147483648
      %v739 = vmul.f32 %v738, 1.442695
      %v740 = vpow.pop %v739
      %v741 = vadd.f32 %v740, 1.0
      %v742 = vrcp.pop %v741
      %v743 = vmul.f32 1.0, %v742
      %v745 = vrot.slane %v743, 4
      %v747 = vmul.f32 %v737, %v745
      %749 = vrot.lane.b32.xlu0 %v747, 32
      %v750 = vpop.permute.xlu0 %749
      %vm752 = vcmask 322816
      %753 = vst.msk [vmem:[#allocation3] sm:$0xf] %vm752, %v750
      %s754 = scalar_lea.vmem %s242, 40
      %v755 = vld [vmem:[%s754] sm:$0xff]
      %756 = vrot.lane.b32.xlu0 %v263, 88
      %v757 = vpop.permute.xlu0 %756
      %758 = vrot.lane.b32.xlu0 %v264, 88
      %v759 = vpop.permute.xlu0 %758
      %v762 = vsel %vm266, %v755, 0
      %v764 = vsel %vm270, %v759, 0
      %766 = vmatprep.subr.mxu0 0.0
      %767 = vmatpush1.msra.mxu0 %v757
      %768 = vmatprep.subr.mxu0 0.0
      %769 = vmatpush1.msra.mxu0 %v764
      %770 = vmatprep.subr.mxu0 0.0
      %771 = vmatpush1.msra.mxu0 0.0
      %772 = vmatprep.subr.mxu0 0.0
      %773 = vmatpush1.msra.mxu0 0.0
      %774 = vmatprep.subr.mxu0 0.0
      %775 = vmatpush1.msra.mxu0 0.0
      %776 = vmatprep.subr.mxu0 0.0
      %777 = vmatpush1.msra.mxu0 0.0
      %778 = vmatprep.subr.mxu0 0.0
      %779 = vmatpush1.msra.mxu0 0.0
      %780 = vmatprep.subr.mxu0 0.0
      %781 = vmatpush1.msra.mxu0 0.0
      %782 = vmatprep.subr.mxu0 0.0
      %783 = vmatpush1.msra.mxu0 0.0
      %784 = vmatprep.subr.mxu0 0.0
      %785 = vmatpush1.msra.mxu0 0.0
      %786 = vmatprep.subr.mxu0 0.0
      %787 = vmatpush1.msra.mxu0 0.0
      %788 = vmatprep.subr.mxu0 0.0
      %789 = vmatpush1.msra.mxu0 0.0
      %790 = vmatprep.subr.mxu0 0.0
      %791 = vmatpush1.msra.mxu0 0.0
      %792 = vmatprep.subr.mxu0 0.0
      %793 = vmatpush1.msra.mxu0 0.0
      %794 = vmatprep.subr.mxu0 0.0
      %795 = vmatpush1.msra.mxu0 0.0
      %796 = vmatprep.subr.mxu0 0.0
      %797 = vmatpush1.msra.mxu0 0.0
      %798 = vmatprep.subr.mxu0 0.0
      %799 = vmatpush1.msra.mxu0 0.0
      %800 = vmatprep.subr.mxu0 0.0
      %801 = vmatpush1.msra.mxu0 0.0
      %802 = vmatprep.subr.mxu0 0.0
      %803 = vmatpush1.msra.mxu0 0.0
      %804 = vmatprep.subr.mxu0 0.0
      %805 = vmatpush1.msra.mxu0 0.0
      %806 = vmatprep.subr.mxu0 0.0
      %807 = vmatpush1.msra.mxu0 0.0
      %808 = vmatprep.subr.mxu0 0.0
      %809 = vmatpush1.msra.mxu0 0.0
      %810 = vmatprep.subr.mxu0 0.0
      %811 = vmatpush1.msra.mxu0 0.0
      %812 = vmatprep.subr.mxu0 0.0
      %813 = vmatpush1.msra.mxu0 0.0
      %814 = vmatprep.subr.mxu0 0.0
      %815 = vmatpush1.msra.mxu0 0.0
      %816 = vmatprep.subr.mxu0 0.0
      %817 = vmatpush1.msra.mxu0 0.0
      %818 = vmatprep.subr.mxu0 0.0
      %819 = vmatpush1.msra.mxu0 0.0
      %820 = vmatprep.subr.mxu0 0.0
      %821 = vmatpush1.msra.mxu0 0.0
      %822 = vmatprep.subr.mxu0 0.0
      %823 = vmatpush1.msra.mxu0 0.0
      %824 = vmatprep.subr.mxu0 0.0
      %825 = vmatpush1.msra.mxu0 0.0
      %826 = vmatprep.subr.mxu0 0.0
      %827 = vmatpush1.msra.mxu0 0.0
      %828 = vmatprep.subr.mxu0 0.0
      %829 = vmatpush1.msra.mxu0 0.0
      %830 = vmatprep.mubr.f32.mxu0 0.0
      %831 = vmatmul.mubr.f32.gmra.mrb[0].mxu0 %v762
      %v832 = vpop.f32.mrb[0].mxu0
      %v833 = vadd.f32 0.0, %v832
      %v834 = vpop.f32.mrb[0].mxu0
      %835 = vdwg.mxu0
      %v836 = vtanh.pop %v833
      %v837 = vxor.u32 %v833, 2147483648
      %v838 = vmul.f32 %v837, 1.442695
      %v839 = vpow.pop %v838
      %v840 = vadd.f32 %v839, 1.0
      %v841 = vrcp.pop %v840
      %v842 = vmul.f32 1.0, %v841
      %v844 = vrot.slane %v842, 4
      %v846 = vmul.f32 %v836, %v844
      %848 = vrot.lane.b32.xlu0 %v846, 40
      %v849 = vpop.permute.xlu0 %848
      %vm851 = vcmask 388416
      %852 = vst.msk [vmem:[#allocation3] sm:$0xf] %vm851, %v849
      %s853 = scalar_lea.vmem %s242, 48
      %v854 = vld [vmem:[%s853] sm:$0xff]
      %855 = vrot.lane.b32.xlu0 %v263, 80
      %v856 = vpop.permute.xlu0 %855
      %857 = vrot.lane.b32.xlu0 %v264, 80
      %v858 = vpop.permute.xlu0 %857
      %v861 = vsel %vm266, %v854, 0
      %v863 = vsel %vm270, %v858, 0
      %865 = vmatprep.subr.mxu0 0.0
      %866 = vmatpush1.msra.mxu0 %v856
      %867 = vmatprep.subr.mxu0 0.0
      %868 = vmatpush1.msra.mxu0 %v863
      %869 = vmatprep.subr.mxu0 0.0
      %870 = vmatpush1.msra.mxu0 0.0
      %871 = vmatprep.subr.mxu0 0.0
      %872 = vmatpush1.msra.mxu0 0.0
      %873 = vmatprep.subr.mxu0 0.0
      %874 = vmatpush1.msra.mxu0 0.0
      %875 = vmatprep.subr.mxu0 0.0
      %876 = vmatpush1.msra.mxu0 0.0
      %877 = vmatprep.subr.mxu0 0.0
      %878 = vmatpush1.msra.mxu0 0.0
      %879 = vmatprep.subr.mxu0 0.0
      %880 = vmatpush1.msra.mxu0 0.0
      %881 = vmatprep.subr.mxu0 0.0
      %882 = vmatpush1.msra.mxu0 0.0
      %883 = vmatprep.subr.mxu0 0.0
      %884 = vmatpush1.msra.mxu0 0.0
      %885 = vmatprep.subr.mxu0 0.0
      %886 = vmatpush1.msra.mxu0 0.0
      %887 = vmatprep.subr.mxu0 0.0
      %888 = vmatpush1.msra.mxu0 0.0
      %889 = vmatprep.subr.mxu0 0.0
      %890 = vmatpush1.msra.mxu0 0.0
      %891 = vmatprep.subr.mxu0 0.0
      %892 = vmatpush1.msra.mxu0 0.0
      %893 = vmatprep.subr.mxu0 0.0
      %894 = vmatpush1.msra.mxu0 0.0
      %895 = vmatprep.subr.mxu0 0.0
      %896 = vmatpush1.msra.mxu0 0.0
      %897 = vmatprep.subr.mxu0 0.0
      %898 = vmatpush1.msra.mxu0 0.0
      %899 = vmatprep.subr.mxu0 0.0
      %900 = vmatpush1.msra.mxu0 0.0
      %901 = vmatprep.subr.mxu0 0.0
      %902 = vmatpush1.msra.mxu0 0.0
      %903 = vmatprep.subr.mxu0 0.0
      %904 = vmatpush1.msra.mxu0 0.0
      %905 = vmatprep.subr.mxu0 0.0
      %906 = vmatpush1.msra.mxu0 0.0
      %907 = vmatprep.subr.mxu0 0.0
      %908 = vmatpush1.msra.mxu0 0.0
      %909 = vmatprep.subr.mxu0 0.0
      %910 = vmatpush1.msra.mxu0 0.0
      %911 = vmatprep.subr.mxu0 0.0
      %912 = vmatpush1.msra.mxu0 0.0
      %913 = vmatprep.subr.mxu0 0.0
      %914 = vmatpush1.msra.mxu0 0.0
      %915 = vmatprep.subr.mxu0 0.0
      %916 = vmatpush1.msra.mxu0 0.0
      %917 = vmatprep.subr.mxu0 0.0
      %918 = vmatpush1.msra.mxu0 0.0
      %919 = vmatprep.subr.mxu0 0.0
      %920 = vmatpush1.msra.mxu0 0.0
      %921 = vmatprep.subr.mxu0 0.0
      %922 = vmatpush1.msra.mxu0 0.0
      %923 = vmatprep.subr.mxu0 0.0
      %924 = vmatpush1.msra.mxu0 0.0
      %925 = vmatprep.subr.mxu0 0.0
      %926 = vmatpush1.msra.mxu0 0.0
      %927 = vmatprep.subr.mxu0 0.0
      %928 = vmatpush1.msra.mxu0 0.0
      %929 = vmatprep.mubr.f32.mxu0 0.0
      %930 = vmatmul.mubr.f32.gmra.mrb[0].mxu0 %v861
      %v931 = vpop.f32.mrb[0].mxu0
      %v932 = vadd.f32 0.0, %v931
      %v933 = vpop.f32.mrb[0].mxu0
      %934 = vdwg.mxu0
      %v935 = vtanh.pop %v932
      %v936 = vxor.u32 %v932, 2147483648
      %v937 = vmul.f32 %v936, 1.442695
      %v938 = vpow.pop %v937
      %v939 = vadd.f32 %v938, 1.0
      %v940 = vrcp.pop %v939
      %v941 = vmul.f32 1.0, %v940
      %v943 = vrot.slane %v941, 4
      %v945 = vmul.f32 %v935, %v943
      %947 = vrot.lane.b32.xlu0 %v945, 48
      %v948 = vpop.permute.xlu0 %947
      %vm950 = vcmask 454016
      %951 = vst.msk [vmem:[#allocation3] sm:$0xf] %vm950, %v948
      %s952 = scalar_lea.vmem %s242, 56
      %v953 = vld [vmem:[%s952] sm:$0xff]
      %954 = vrot.lane.b32.xlu0 %v263, 72
      %v955 = vpop.permute.xlu0 %954
      %956 = vrot.lane.b32.xlu0 %v264, 72
      %v957 = vpop.permute.xlu0 %956
      %v960 = vsel %vm266, %v953, 0
      %v962 = vsel %vm270, %v957, 0
      %964 = vmatprep.subr.mxu0 0.0
      %965 = vmatpush1.msra.mxu0 %v955
      %966 = vmatprep.subr.mxu0 0.0
      %967 = vmatpush1.msra.mxu0 %v962
      %968 = vmatprep.subr.mxu0 0.0
      %969 = vmatpush1.msra.mxu0 0.0
      %970 = vmatprep.subr.mxu0 0.0
      %971 = vmatpush1.msra.mxu0 0.0
      %972 = vmatprep.subr.mxu0 0.0
      %973 = vmatpush1.msra.mxu0 0.0
      %974 = vmatprep.subr.mxu0 0.0
      %975 = vmatpush1.msra.mxu0 0.0
      %976 = vmatprep.subr.mxu0 0.0
      %977 = vmatpush1.msra.mxu0 0.0
      %978 = vmatprep.subr.mxu0 0.0
      %979 = vmatpush1.msra.mxu0 0.0
      %980 = vmatprep.subr.mxu0 0.0
      %981 = vmatpush1.msra.mxu0 0.0
      %982 = vmatprep.subr.mxu0 0.0
      %983 = vmatpush1.msra.mxu0 0.0
      %984 = vmatprep.subr.mxu0 0.0
      %985 = vmatpush1.msra.mxu0 0.0
      %986 = vmatprep.subr.mxu0 0.0
      %987 = vmatpush1.msra.mxu0 0.0
      %988 = vmatprep.subr.mxu0 0.0
      %989 = vmatpush1.msra.mxu0 0.0
      %990 = vmatprep.subr.mxu0 0.0
      %991 = vmatpush1.msra.mxu0 0.0
      %992 = vmatprep.subr.mxu0 0.0
      %993 = vmatpush1.msra.mxu0 0.0
      %994 = vmatprep.subr.mxu0 0.0
      %995 = vmatpush1.msra.mxu0 0.0
      %996 = vmatprep.subr.mxu0 0.0
      %997 = vmatpush1.msra.mxu0 0.0
      %998 = vmatprep.subr.mxu0 0.0
      %999 = vmatpush1.msra.mxu0 0.0
      %1000 = vmatprep.subr.mxu0 0.0
      %1001 = vmatpush1.msra.mxu0 0.0
      %1002 = vmatprep.subr.mxu0 0.0
      %1003 = vmatpush1.msra.mxu0 0.0
      %1004 = vmatprep.subr.mxu0 0.0
      %1005 = vmatpush1.msra.mxu0 0.0
      %1006 = vmatprep.subr.mxu0 0.0
      %1007 = vmatpush1.msra.mxu0 0.0
      %1008 = vmatprep.subr.mxu0 0.0
      %1009 = vmatpush1.msra.mxu0 0.0
      %1010 = vmatprep.subr.mxu0 0.0
      %1011 = vmatpush1.msra.mxu0 0.0
      %1012 = vmatprep.subr.mxu0 0.0
      %1013 = vmatpush1.msra.mxu0 0.0
      %1014 = vmatprep.subr.mxu0 0.0
      %1015 = vmatpush1.msra.mxu0 0.0
      %1016 = vmatprep.subr.mxu0 0.0
      %1017 = vmatpush1.msra.mxu0 0.0
      %1018 = vmatprep.subr.mxu0 0.0
      %1019 = vmatpush1.msra.mxu0 0.0
      %1020 = vmatprep.subr.mxu0 0.0
      %1021 = vmatpush1.msra.mxu0 0.0
      %1022 = vmatprep.subr.mxu0 0.0
      %1023 = vmatpush1.msra.mxu0 0.0
      %1024 = vmatprep.subr.mxu0 0.0
      %1025 = vmatpush1.msra.mxu0 0.0
      %1026 = vmatprep.subr.mxu0 0.0
      %1027 = vmatpush1.msra.mxu0 0.0
      %1028 = vmatprep.mubr.f32.mxu0 0.0
      %1029 = vmatmul.mubr.f32.gmra.mrb[0].mxu0 %v960
      %v1030 = vpop.f32.mrb[0].mxu0
      %v1031 = vadd.f32 0.0, %v1030
      %v1032 = vpop.f32.mrb[0].mxu0
      %1033 = vdwg.mxu0
      %v1034 = vtanh.pop %v1031
      %v1035 = vxor.u32 %v1031, 2147483648
      %v1036 = vmul.f32 %v1035, 1.442695
      %v1037 = vpow.pop %v1036
      %v1038 = vadd.f32 %v1037, 1.0
      %v1039 = vrcp.pop %v1038
      %v1040 = vmul.f32 1.0, %v1039
      %v1042 = vrot.slane %v1040, 4
      %v1044 = vmul.f32 %v1034, %v1042
      %1046 = vrot.lane.b32.xlu0 %v1044, 56
      %v1047 = vpop.permute.xlu0 %1046
      %vm1049 = vcmask 519616
      %1050 = vst.msk [vmem:[#allocation3] sm:$0xf] %vm1049, %v1047
      %v1051 = vld [vmem:[%s2] sm:$0xff]
      %v1052 = vld [vmem:[#allocation3] sm:$0xf]
      %v1053 = vld [vmem:[%s3] sm:$0xff]
      %1055 = vset.pattern.permute.xlu0 0
      %1056 = vperm.xlu0 %1055, %v1053
      %v1057 = vpop.permute.xlu0 %1056
      %vm1059 = vcmask 31744
      %v1061 = vsel %vm1059, %v1051, 0
      %v1064 = vsel %vm270, %v1052, 0
      %1066 = vmatprep.subr.mxu0 0.0
      %1067 = vmatpush1.msra.mxu0 %v1064
      %1068 = vmatprep.subr.mxu0 0.0
      %1069 = vmatpush1.msra.mxu0 0.0
      %1070 = vmatprep.subr.mxu0 0.0
      %1071 = vmatpush1.msra.mxu0 0.0
      %1072 = vmatprep.subr.mxu0 0.0
      %1073 = vmatpush1.msra.mxu0 0.0
      %1074 = vmatprep.subr.mxu0 0.0
      %1075 = vmatpush1.msra.mxu0 0.0
      %1076 = vmatprep.subr.mxu0 0.0
      %1077 = vmatpush1.msra.mxu0 0.0
      %1078 = vmatprep.subr.mxu0 0.0
      %1079 = vmatpush1.msra.mxu0 0.0
      %1080 = vmatprep.subr.mxu0 0.0
      %1081 = vmatpush1.msra.mxu0 0.0
      %1082 = vmatprep.subr.mxu0 0.0
      %1083 = vmatpush1.msra.mxu0 0.0
      %1084 = vmatprep.subr.mxu0 0.0
      %1085 = vmatpush1.msra.mxu0 0.0
      %1086 = vmatprep.subr.mxu0 0.0
      %1087 = vmatpush1.msra.mxu0 0.0
      %1088 = vmatprep.subr.mxu0 0.0
      %1089 = vmatpush1.msra.mxu0 0.0
      %1090 = vmatprep.subr.mxu0 0.0
      %1091 = vmatpush1.msra.mxu0 0.0
      %1092 = vmatprep.subr.mxu0 0.0
      %1093 = vmatpush1.msra.mxu0 0.0
      %1094 = vmatprep.subr.mxu0 0.0
      %1095 = vmatpush1.msra.mxu0 0.0
      %1096 = vmatprep.subr.mxu0 0.0
      %1097 = vmatpush1.msra.mxu0 0.0
      %1098 = vmatprep.subr.mxu0 0.0
      %1099 = vmatpush1.msra.mxu0 0.0
      %1100 = vmatprep.subr.mxu0 0.0
      %1101 = vmatpush1.msra.mxu0 0.0
      %1102 = vmatprep.subr.mxu0 0.0
      %1103 = vmatpush1.msra.mxu0 0.0
      %1104 = vmatprep.subr.mxu0 0.0
      %1105 = vmatpush1.msra.mxu0 0.0
      %1106 = vmatprep.subr.mxu0 0.0
      %1107 = vmatpush1.msra.mxu0 0.0
      %1108 = vmatprep.subr.mxu0 0.0
      %1109 = vmatpush1.msra.mxu0 0.0
      %1110 = vmatprep.subr.mxu0 0.0
      %1111 = vmatpush1.msra.mxu0 0.0
      %1112 = vmatprep.subr.mxu0 0.0
      %1113 = vmatpush1.msra.mxu0 0.0
      %1114 = vmatprep.subr.mxu0 0.0
      %1115 = vmatpush1.msra.mxu0 0.0
      %1116 = vmatprep.subr.mxu0 0.0
      %1117 = vmatpush1.msra.mxu0 0.0
      %1118 = vmatprep.subr.mxu0 0.0
      %1119 = vmatpush1.msra.mxu0 0.0
      %1120 = vmatprep.subr.mxu0 0.0
      %1121 = vmatpush1.msra.mxu0 0.0
      %1122 = vmatprep.subr.mxu0 0.0
      %1123 = vmatpush1.msra.mxu0 0.0
      %1124 = vmatprep.subr.mxu0 0.0
      %1125 = vmatpush1.msra.mxu0 0.0
      %1126 = vmatprep.subr.mxu0 0.0
      %1127 = vmatpush1.msra.mxu0 0.0
      %1128 = vmatprep.subr.mxu0 0.0
      %1129 = vmatpush1.msra.mxu0 0.0
      %1130 = vmatprep.mubr.f32.mxu0 0.0
      %1131 = vmatmul.mubr.f32.gmra.mrb[0].mxu0 %v1061
      %v1132 = vpop.f32.mrb[0].mxu0
      %v1133 = vadd.f32 %v1057, %v1132
      %v1134 = vpop.f32.mrb[0].mxu0
      %1135 = vdwg.mxu0
      %v1136 = vadd.f32 %v1133, %v256
      %1137 = vst.msk [vmem:[%s246] sm:$0xf] %vm252, %v1136
      %vm1138 = vcmask 523268
      %1139 = vst.msk [vmem:[%s250 - $0x4] sm:$0xf0] %vm1138, %v1133
      %p1140 = scmp.lt.s32.totalorder %s17, 1
      %s1141 = scalar_select %p1140, %s17, 1
      %s1142 = smul.addr %s1141, 4
      %s1143 = scalar_lea.vmem %s4, %s1142
      %p1144 = scmp.lt.s32.totalorder %s17, 1
      %s1145 = scalar_select %p1144, %s17, 1
      %s1146 = smul.addr %s1145, 4
      %s1147 = scalar_lea.vmem %s5, %s1146
      // Predicated region
      $region37: #{_lambda_.15} parent=35 // pred_check
        %p1148 = pneg %p129
      $region38: #{_lambda_.15} parent=35 // pred_check_branch
        %1150 = sbr.rel (%p1148) target = $region40
      $region39: #{_lambda_.15} parent=35 // pred_region
        _
      $region40: #{_lambda_.15} parent=35 // pred_fallthru
        _
      // Predicated region
      $region41: #{_lambda_.15} parent=35 // pred_check
        %p1151 = pneg %p155
      $region42: #{_lambda_.15} parent=35 // pred_check_branch
        %1153 = sbr.rel (%p1151) target = $region44
      $region43: #{_lambda_.15} parent=35 // pred_region
        _
      $region44: #{_lambda_.15} parent=35 // pred_fallthru
        _
    $region36: #{_lambda_.15} parent=5 // pred_fallthru
      _
    %p1154 = scmp.le.s32.totalorder 2, %s12
    // Predicated region
    $region45: #{_lambda_.15} parent=5 // pred_check
      %p1155 = pneg %p1154
    $region46: #{_lambda_.15} parent=5 // pred_check_branch
      %1157 = sbr.rel (%p1155) target = $region48
    $region47: #{_lambda_.15} parent=5 // pred_region
      %s1158 = ssub.s32 %s12, 2
      // Predicated region
      $region49: #{_lambda_.15} parent=47 // pred_check
        %p1159 = pneg %p135
      $region50: #{_lambda_.15} parent=47 // pred_check_branch
        %1161 = sbr.rel (%p1159) target = $region52
      $region51: #{_lambda_.15} parent=47 // pred_region
        %p1162 = scmp.lt.s32.totalorder %s18, 1
        %s1163 = scalar_select %p1162, %s18, 1
        %s1164 = smul.addr %s1163, 4
        %s1165 = scalar_lea.vmem %s4, %s1164
      $region52: #{_lambda_.15} parent=47 // pred_fallthru
        _
      // Predicated region
      $region53: #{_lambda_.15} parent=47 // pred_check
        %p1166 = pneg %p161
      $region54: #{_lambda_.15} parent=47 // pred_check_branch
        %1168 = sbr.rel (%p1166) target = $region56
      $region55: #{_lambda_.15} parent=47 // pred_region
        %p1169 = scmp.lt.s32.totalorder %s18, 1
        %s1170 = scalar_select %p1169, %s18, 1
        %s1171 = smul.addr %s1170, 4
        %s1172 = scalar_lea.vmem %s5, %s1171
      $region56: #{_lambda_.15} parent=47 // pred_fallthru
        _
    $region48: #{_lambda_.15} parent=5 // pred_fallthru
      _
  $region6: #{_lambda_.15} parent=0 // loop_footer
    %s16 = sadd.s32 1, %s12
  $region7: #{_lambda_.15} parent=0 // loop_footer_branch
    %11 = sbr.rel target = $region3
  $region8: #{_lambda_.15} parent=0 // loop_exit
    _

// kernel: _lambda_.16
$region0: #{_lambda_.16}
  #allocation0 [shape = 'u32[]', space=smem, size = 0x4, offset = 0x4, fixed_abs, tag = 'smem constant byte address 0x4 - core index']
  #allocation1 [shape = 'u32[144,128]{1,0:T(1,128)}', space=vmem, size = 0x12000, scoped, tag = 'internal scratch']
  #allocation2 [shape = 'f32[12,64]{1,0:T(8,128)}', space=vmem, size = 0x2000, scoped, tag = 'scratch operand']
  #allocation3 [shape = 'f32[4,64]{1,0:T(4,128)}', space=vmem, size = 0x800, scoped, tag = 'scratch operand']
  %s0 = inlined_call_operand.vmem [shape: f32[2,4,68], index: 0, kind: input, shape index: {}]
  %s1 = inlined_call_operand.vmem [shape: f32[2,8,8,12], index: 1, kind: input, shape index: {}]
  %s2 = inlined_call_operand.vmem [shape: f32[8,4], index: 2, kind: input, shape index: {}]
  %s3 = inlined_call_operand.vmem [shape: f32[8,1], index: 3, kind: input, shape index: {}]
  %s4 = inlined_call_operand.vmem [shape: f32[2,4,64], index: 4, kind: input, shape index: {}, may-alias: {4,6}]
  %s5 = inlined_call_operand.vmem [shape: f32[2,4,64], index: 5, kind: output, shape index: {0}]
  %s6 = inlined_call_operand.vmem [shape: f32[2,4,64], index: 6, kind: output, shape index: {1}, may-alias: {4,6}]
  %7 = xla_tuple %s5, %s6
  %s8 = sld [smem:[#allocation0]]
  $region61: #{_lambda_.16} parent=0
    _
  %s10 = ssub.s32 1, %s8
  %s11 = scalar_select 0, %s10, %s8
  loop: start=0, step=1, limit=4
  $region2: #{_lambda_.16} parent=0 // loop_pre_header
    _
  $region3: #{_lambda_.16} parent=0 // loop_header
    %s13 = sphi 0, %s17
    %p14 = scmp.ge.s32.totalorder %s13, 4
    %s23 = sphi 0, %s25
    %s26 = sphi 0, %s23
    %s27 = sphi 0, %s26
    %s43 = sphi 0, %s27
    %s49 = sphi 0, %s51
    %s52 = sphi 0, %s49
    %s53 = sphi 0, %s52
    %s69 = sphi 0, %s53
    %s73 = sphi 0, %s73
    %s75 = sphi 0, %s73
    %s76 = sphi 0, %s75
    %s90 = sphi 0, %s76
    %s94 = sphi 0, %s94
    %s96 = sphi 0, %s94
    %s97 = sphi 0, %s96
    %s111 = sphi 0, %s97
    %s117 = sphi 0, %s119
    %s120 = sphi 0, %s117
    %s121 = sphi 0, %s120
    %s137 = sphi 0, %s121
    %s143 = sphi 0, %s145
    %s146 = sphi 0, %s143
    %s147 = sphi 0, %s146
    %s163 = sphi 0, %s147
    %s169 = sphi 0, %s171
    %s172 = sphi 0, %s169
    %s173 = sphi 0, %s172
    %s189 = sphi 0, %s173
  $region4: #{_lambda_.16} parent=0 // loop_header_branch
    %16 = sbr.rel (%p14) target = $region8
  $region5: #{_lambda_.16} parent=0 // loop_body
    %s18 = ssub.s32 %s13, 1
    %s19 = ssub.s32 %s13, 2
    %s20 = sadd.s32 %s13, 1
    %s21 = ssub.s32 %s13, %s20
    %p22 = scmp.eq.s32.totalorder %s21, 0
    %s24 = sadd.s32 %s23, 1
    %s25 = scalar_select %p22, %s23, %s24
    %p28 = pneg %p22
    %p29 = scmp.eq.s32.totalorder %s13, 1
    %p30 = por %p28, %p29
    %p31 = scmp.ne.s32.totalorder %s23, %s26
    %p32 = scmp.eq.s32.totalorder %s13, 0
    %p33 = por %p31, %p32
    %p34 = scmp.ne.s32.totalorder %s23, %s26
    %p35 = scmp.eq.s32.totalorder %s18, 1
    %p36 = por %p34, %p35
    %p37 = scmp.ne.s32.totalorder %s26, %s27
    %p38 = scmp.eq.s32.totalorder %s18, 0
    %p39 = por %p37, %p38
    %p40 = scmp.ne.s32.totalorder %s26, %s27
    %p41 = scmp.eq.s32.totalorder %s19, 1
    %p42 = por %p40, %p41
    %p44 = scmp.ne.s32.totalorder %s27, %s43
    %p45 = scmp.eq.s32.totalorder %s19, 0
    %p46 = por %p44, %p45
    %s47 = ssub.s32 %s13, %s20
    %p48 = scmp.eq.s32.totalorder %s47, 0
    %s50 = sadd.s32 %s49, 1
    %s51 = scalar_select %p48, %s49, %s50
    %p54 = pneg %p48
    %p55 = scmp.eq.s32.totalorder %s13, 1
    %p56 = por %p54, %p55
    %p57 = scmp.ne.s32.totalorder %s49, %s52
    %p58 = scmp.eq.s32.totalorder %s13, 0
    %p59 = por %p57, %p58
    %p60 = scmp.ne.s32.totalorder %s49, %s52
    %p61 = scmp.eq.s32.totalorder %s18, 1
    %p62 = por %p60, %p61
    %p63 = scmp.ne.s32.totalorder %s52, %s53
    %p64 = scmp.eq.s32.totalorder %s18, 0
    %p65 = por %p63, %p64
    %p66 = scmp.ne.s32.totalorder %s52, %s53
    %p67 = scmp.eq.s32.totalorder %s19, 1
    %p68 = por %p66, %p67
    %p70 = scmp.ne.s32.totalorder %s53, %s69
    %p71 = scmp.eq.s32.totalorder %s19, 0
    %p72 = por %p70, %p71
    %s74 = sadd.s32 %s73, 1
    %p77 = scmp.eq.s32.totalorder %s13, 1
    %p78 = scmp.ne.s32.totalorder %s73, %s75
    %p79 = scmp.eq.s32.totalorder %s13, 0
    %p80 = por %p78, %p79
    %p81 = scmp.ne.s32.totalorder %s73, %s75
    %p82 = scmp.eq.s32.totalorder %s18, 1
    %p83 = por %p81, %p82
    %p84 = scmp.ne.s32.totalorder %s75, %s76
    %p85 = scmp.eq.s32.totalorder %s18, 0
    %p86 = por %p84, %p85
    %p87 = scmp.ne.s32.totalorder %s75, %s76
    %p88 = scmp.eq.s32.totalorder %s19, 1
    %p89 = por %p87, %p88
    %p91 = scmp.ne.s32.totalorder %s76, %s90
    %p92 = scmp.eq.s32.totalorder %s19, 0
    %p93 = por %p91, %p92
    %s95 = sadd.s32 %s94, 1
    %p98 = scmp.eq.s32.totalorder %s13, 1
    %p99 = scmp.ne.s32.totalorder %s94, %s96
    %p100 = scmp.eq.s32.totalorder %s13, 0
    %p101 = por %p99, %p100
    %p102 = scmp.ne.s32.totalorder %s94, %s96
    %p103 = scmp.eq.s32.totalorder %s18, 1
    %p104 = por %p102, %p103
    %p105 = scmp.ne.s32.totalorder %s96, %s97
    %p106 = scmp.eq.s32.totalorder %s18, 0
    %p107 = por %p105, %p106
    %p108 = scmp.ne.s32.totalorder %s96, %s97
    %p109 = scmp.eq.s32.totalorder %s19, 1
    %p110 = por %p108, %p109
    %p112 = scmp.ne.s32.totalorder %s97, %s111
    %p113 = scmp.eq.s32.totalorder %s19, 0
    %p114 = por %p112, %p113
    %s115 = ssub.s32 %s13, %s20
    %p116 = scmp.eq.s32.totalorder %s115, 0
    %s118 = sadd.s32 %s117, 1
    %s119 = scalar_select %p116, %s117, %s118
    %p122 = pneg %p116
    %p123 = scmp.eq.s32.totalorder %s13, 1
    %p124 = por %p122, %p123
    %p125 = scmp.ne.s32.totalorder %s117, %s120
    %p126 = scmp.eq.s32.totalorder %s13, 0
    %p127 = por %p125, %p126
    %p128 = scmp.ne.s32.totalorder %s117, %s120
    %p129 = scmp.eq.s32.totalorder %s18, 1
    %p130 = por %p128, %p129
    %p131 = scmp.ne.s32.totalorder %s120, %s121
    %p132 = scmp.eq.s32.totalorder %s18, 0
    %p133 = por %p131, %p132
    %p134 = scmp.ne.s32.totalorder %s120, %s121
    %p135 = scmp.eq.s32.totalorder %s19, 1
    %p136 = por %p134, %p135
    %p138 = scmp.ne.s32.totalorder %s121, %s137
    %p139 = scmp.eq.s32.totalorder %s19, 0
    %p140 = por %p138, %p139
    %s141 = ssub.s32 %s13, %s20
    %p142 = scmp.eq.s32.totalorder %s141, 0
    %s144 = sadd.s32 %s143, 1
    %s145 = scalar_select %p142, %s143, %s144
    %p148 = pneg %p142
    %p149 = scmp.eq.s32.totalorder %s13, 1
    %p150 = por %p148, %p149
    %p151 = scmp.ne.s32.totalorder %s143, %s146
    %p152 = scmp.eq.s32.totalorder %s13, 0
    %p153 = por %p151, %p152
    %p154 = scmp.ne.s32.totalorder %s143, %s146
    %p155 = scmp.eq.s32.totalorder %s18, 1
    %p156 = por %p154, %p155
    %p157 = scmp.ne.s32.totalorder %s146, %s147
    %p158 = scmp.eq.s32.totalorder %s18, 0
    %p159 = por %p157, %p158
    %p160 = scmp.ne.s32.totalorder %s146, %s147
    %p161 = scmp.eq.s32.totalorder %s19, 1
    %p162 = por %p160, %p161
    %p164 = scmp.ne.s32.totalorder %s147, %s163
    %p165 = scmp.eq.s32.totalorder %s19, 0
    %p166 = por %p164, %p165
    %s167 = ssub.s32 %s13, %s20
    %p168 = scmp.eq.s32.totalorder %s167, 0
    %s170 = sadd.s32 %s169, 1
    %s171 = scalar_select %p168, %s169, %s170
    %p174 = pneg %p168
    %p175 = scmp.eq.s32.totalorder %s13, 1
    %p176 = por %p174, %p175
    %p177 = scmp.ne.s32.totalorder %s169, %s172
    %p178 = scmp.eq.s32.totalorder %s13, 0
    %p179 = por %p177, %p178
    %p180 = scmp.ne.s32.totalorder %s169, %s172
    %p181 = scmp.eq.s32.totalorder %s18, 1
    %p182 = por %p180, %p181
    %p183 = scmp.ne.s32.totalorder %s172, %s173
    %p184 = scmp.eq.s32.totalorder %s18, 0
    %p185 = por %p183, %p184
    %p186 = scmp.ne.s32.totalorder %s172, %s173
    %p187 = scmp.eq.s32.totalorder %s19, 1
    %p188 = por %p186, %p187
    %p190 = scmp.ne.s32.totalorder %s173, %s189
    %p191 = scmp.eq.s32.totalorder %s19, 0
    %p192 = por %p190, %p191
    %p193 = scmp.le.s32.totalorder 1, %s13
    %p194 = scmp.lt.s32.totalorder %s13, 3
    %p195 = pnand %p193, %p194
    %p196 = pneg %p195
    // Predicated region
    $region9: #{_lambda_.16} parent=5 // pred_check
      _
    $region10: #{_lambda_.16} parent=5 // pred_check_branch
      %198 = sbr.rel (%p195) target = $region12
    $region11: #{_lambda_.16} parent=5 // pred_region
      %s199 = ssub.s32 %s13, 1
      // Predicated region
      $region13: #{_lambda_.16} parent=11 // pred_check
        %p200 = pneg %p86
      $region14: #{_lambda_.16} parent=11 // pred_check_branch
        %202 = sbr.rel (%p200) target = $region16
      $region15: #{_lambda_.16} parent=11 // pred_region
        _
      $region16: #{_lambda_.16} parent=11 // pred_fallthru
        _
      // Predicated region
      $region17: #{_lambda_.16} parent=11 // pred_check
        %p203 = pneg %p107
      $region18: #{_lambda_.16} parent=11 // pred_check_branch
        %205 = sbr.rel (%p203) target = $region20
      $region19: #{_lambda_.16} parent=11 // pred_region
        _
      $region20: #{_lambda_.16} parent=11 // pred_fallthru
        _
    $region12: #{_lambda_.16} parent=5 // pred_fallthru
      _
    %p206 = scmp.lt.s32.totalorder %s13, 2
    // Predicated region
    $region21: #{_lambda_.16} parent=5 // pred_check
      %p207 = pneg %p206
    $region22: #{_lambda_.16} parent=5 // pred_check_branch
      %209 = sbr.rel (%p207) target = $region24
    $region23: #{_lambda_.16} parent=5 // pred_region
      // Predicated region
      $region25: #{_lambda_.16} parent=23 // pred_check
        %p210 = pneg %p33
      $region26: #{_lambda_.16} parent=23 // pred_check_branch
        %212 = sbr.rel (%p210) target = $region28
      $region27: #{_lambda_.16} parent=23 // pred_region
        %p213 = scmp.lt.s32.totalorder %s13, 1
        %s214 = scalar_select %p213, %s13, 1
        %s215 = smul.addr %s214, 4
        %s216 = scalar_lea.vmem %s0, %s215
      $region28: #{_lambda_.16} parent=23 // pred_fallthru
        _
      // Predicated region
      $region29: #{_lambda_.16} parent=23 // pred_check
        %p217 = pneg %p59
      $region30: #{_lambda_.16} parent=23 // pred_check_branch
        %219 = sbr.rel (%p217) target = $region32
      $region31: #{_lambda_.16} parent=23 // pred_region
        %p220 = scmp.lt.s32.totalorder %s13, 1
        %s221 = scalar_select %p220, %s13, 1
        %s222 = smul.addr %s221, 8
        %s223 = smul.addr %s222, 8
        %s224 = scalar_lea.vmem %s1, %s223
      $region32: #{_lambda_.16} parent=23 // pred_fallthru
        _
      // Predicated region
      $region33: #{_lambda_.16} parent=23 // pred_check
        %p225 = pneg %p127
      $region34: #{_lambda_.16} parent=23 // pred_check_branch
        %227 = sbr.rel (%p225) target = $region36
      $region35: #{_lambda_.16} parent=23 // pred_region
        %p228 = scmp.lt.s32.totalorder %s13, 1
        %s229 = scalar_select %p228, %s13, 1
        %s230 = smul.addr %s229, 4
        %s231 = scalar_lea.vmem %s4, %s230
      $region36: #{_lambda_.16} parent=23 // pred_fallthru
        _
    $region24: #{_lambda_.16} parent=5 // pred_fallthru
      _
    %p232 = scmp.le.s32.totalorder 1, %s13
    %p233 = scmp.lt.s32.totalorder %s13, 3
    %p234 = pnand %p232, %p233
    %p235 = pneg %p234
    // Predicated region
    $region37: #{_lambda_.16} parent=5 // pred_check
      _
    $region38: #{_lambda_.16} parent=5 // pred_check_branch
      %237 = sbr.rel (%p234) target = $region40
    $region39: #{_lambda_.16} parent=5 // pred_region
      %s238 = ssub.s32 %s13, 1
      %p239 = scmp.lt.s32.totalorder %s18, 1
      %s240 = scalar_select %p239, %s18, 1
      %s241 = smul.addr %s240, 4
      %s242 = scalar_lea.vmem %s0, %s241
      %p243 = pneg %p39
      %p244 = pneg %p36
      %p245 = scmp.lt.s32.totalorder %s18, 1
      %s246 = scalar_select %p245, %s18, 1
      %s247 = smul.addr %s246, 8
      %s248 = smul.addr %s247, 8
      %s249 = scalar_lea.vmem %s1, %s248
      %p250 = pneg %p65
      %p251 = pneg %p62
      %p252 = pneg %p86
      %p253 = pneg %p83
      %p254 = pneg %p107
      %p255 = pneg %p104
      %p256 = scmp.lt.s32.totalorder %s18, 1
      %s257 = scalar_select %p256, %s18, 1
      %s258 = smul.addr %s257, 4
      %s259 = scalar_lea.vmem %s4, %s258
      %p260 = pneg %p133
      %p261 = pneg %p130
      %p262 = pneg %p159
      %p263 = pneg %p156
      %p264 = scmp.lt.s32.totalorder %s18, 1
      %s265 = scalar_select %p264, %s18, 1
      %s266 = smul.addr %s265, 4
      %s267 = scalar_lea.vmem %s5, %s266
      %p268 = pneg %p185
      %p269 = pneg %p182
      %p270 = scmp.lt.s32.totalorder %s18, 1
      %s271 = scalar_select %p270, %s18, 1
      %s272 = smul.addr %s271, 4
      %s273 = scalar_lea.vmem %s6, %s272
      %p274 = scmp.lt.s32.totalorder %s18, 1
      %s275 = scalar_select %p274, %s18, 1
      %s276 = smul.addr %s275, 4
      %s277 = scalar_lea.vmem %s0, %s276
      %p278 = scmp.lt.s32.totalorder %s18, 1
      %s279 = scalar_select %p278, %s18, 1
      %s280 = smul.addr %s279, 8
      %s281 = smul.addr %s280, 8
      %s282 = scalar_lea.vmem %s1, %s281
      %p283 = scmp.lt.s32.totalorder %s18, 1
      %s284 = scalar_select %p283, %s18, 1
      %s285 = smul.addr %s284, 4
      %s286 = scalar_lea.vmem %s4, %s285
      %p287 = scmp.lt.s32.totalorder %s18, 1
      %s288 = scalar_select %p287, %s18, 1
      %s289 = smul.addr %s288, 4
      %s290 = scalar_lea.vmem %s5, %s289
      %p291 = scmp.lt.s32.totalorder %s18, 1
      %s292 = scalar_select %p291, %s18, 1
      %s293 = smul.addr %s292, 4
      %s294 = scalar_lea.vmem %s6, %s293
      %v295 = vld [vmem:[%s277] sm:$0xf]
      %vm296 = vcmask 519168
      %297 = vst.msk [vmem:[#allocation2] sm:$0xf] %vm296, %v295
      %299 = vrot.lane.b32.xlu0 %v295, 126
      %v300 = vpop.permute.xlu0 %299
      %302 = vst.msk [vmem:[#allocation2 + $0x4] sm:$0xf] %vm296, %v300
      %303 = vrot.lane.b32.xlu0 %v295, 124
      %v304 = vpop.permute.xlu0 %303
      %306 = vst.msk [vmem:[#allocation2 + $0x8] sm:$0xf] %vm296, %v304
      %v307 = vld [vmem:[#allocation2] sm:$0xff]
      %v308 = vld [vmem:[#allocation2 + $0x8] sm:$0xf]
      %v309 = vld [vmem:[%s282] sm:$0xff]
      %vm310 = vcmask 97280
      %v312 = vsel %vm310, %v309, 0
      %vm314 = vcmask 1043456
      %v316 = vsel %vm314, %v308, 0
      %318 = vmatprep.subr.mxu0 0.0
      %319 = vmatpush1.msra.mxu0 %v307
      %320 = vmatprep.subr.mxu0 0.0
      %321 = vmatpush1.msra.mxu0 %v316
      %322 = vmatprep.subr.mxu0 0.0
      %323 = vmatpush1.msra.mxu0 0.0
      %324 = vmatprep.subr.mxu0 0.0
      %325 = vmatpush1.msra.mxu0 0.0
      %326 = vmatprep.subr.mxu0 0.0
      %327 = vmatpush1.msra.mxu0 0.0
      %328 = vmatprep.subr.mxu0 0.0
      %329 = vmatpush1.msra.mxu0 0.0
      %330 = vmatprep.subr.mxu0 0.0
      %331 = vmatpush1.msra.mxu0 0.0
      %332 = vmatprep.subr.mxu0 0.0
      %333 = vmatpush1.msra.mxu0 0.0
      %334 = vmatprep.subr.mxu0 0.0
      %335 = vmatpush1.msra.mxu0 0.0
      %336 = vmatprep.subr.mxu0 0.0
      %337 = vmatpush1.msra.mxu0 0.0
      %338 = vmatprep.subr.mxu0 0.0
      %339 = vmatpush1.msra.mxu0 0.0
      %340 = vmatprep.subr.mxu0 0.0
      %341 = vmatpush1.msra.mxu0 0.0
      %342 = vmatprep.subr.mxu0 0.0
      %343 = vmatpush1.msra.mxu0 0.0
      %344 = vmatprep.subr.mxu0 0.0
      %345 = vmatpush1.msra.mxu0 0.0
      %346 = vmatprep.subr.mxu0 0.0
      %347 = vmatpush1.msra.mxu0 0.0
      %348 = vmatprep.subr.mxu0 0.0
      %349 = vmatpush1.msra.mxu0 0.0
      %350 = vmatprep.subr.mxu0 0.0
      %351 = vmatpush1.msra.mxu0 0.0
      %352 = vmatprep.subr.mxu0 0.0
      %353 = vmatpush1.msra.mxu0 0.0
      %354 = vmatprep.subr.mxu0 0.0
      %355 = vmatpush1.msra.mxu0 0.0
      %356 = vmatprep.subr.mxu0 0.0
      %357 = vmatpush1.msra.mxu0 0.0
      %358 = vmatprep.subr.mxu0 0.0
      %359 = vmatpush1.msra.mxu0 0.0
      %360 = vmatprep.subr.mxu0 0.0
      %361 = vmatpush1.msra.mxu0 0.0
      %362 = vmatprep.subr.mxu0 0.0
      %363 = vmatpush1.msra.mxu0 0.0
      %364 = vmatprep.subr.mxu0 0.0
      %365 = vmatpush1.msra.mxu0 0.0
      %366 = vmatprep.subr.mxu0 0.0
      %367 = vmatpush1.msra.mxu0 0.0
      %368 = vmatprep.subr.mxu0 0.0
      %369 = vmatpush1.msra.mxu0 0.0
      %370 = vmatprep.subr.mxu0 0.0
      %371 = vmatpush1.msra.mxu0 0.0
      %372 = vmatprep.subr.mxu0 0.0
      %373 = vmatpush1.msra.mxu0 0.0
      %374 = vmatprep.subr.mxu0 0.0
      %375 = vmatpush1.msra.mxu0 0.0
      %376 = vmatprep.subr.mxu0 0.0
      %377 = vmatpush1.msra.mxu0 0.0
      %378 = vmatprep.subr.mxu0 0.0
      %379 = vmatpush1.msra.mxu0 0.0
      %380 = vmatprep.subr.mxu0 0.0
      %381 = vmatpush1.msra.mxu0 0.0
      %382 = vmatprep.mubr.f32.mxu0 0.0
      %383 = vmatmul.mubr.f32.gmra.mrb[0].mxu0 %v312
      %v384 = vpop.f32.mrb[0].mxu0
      %v385 = vadd.f32 0.0, %v384
      %v386 = vpop.f32.mrb[0].mxu0
      %387 = vdwg.mxu0
      %v388 = vtanh.pop %v385
      %v389 = vxor.u32 %v385, 2147483648
      %v390 = vmul.f32 %v389, 1.442695
      %v391 = vpow.pop %v390
      %v392 = vadd.f32 %v391, 1.0
      %v393 = vrcp.pop %v392
      %v394 = vmul.f32 1.0, %v393
      %v396 = vrot.slane %v394, 4
      %v398 = vmul.f32 %v388, %v396
      %vm399 = vcmask 60416
      %400 = vst.msk [vmem:[#allocation3] sm:$0xf] %vm399, %v398
      %s401 = scalar_lea.vmem %s282, 8
      %v402 = vld [vmem:[%s401] sm:$0xff]
      %404 = vrot.lane.b32.xlu0 %v307, 120
      %v405 = vpop.permute.xlu0 %404
      %406 = vrot.lane.b32.xlu0 %v308, 120
      %v407 = vpop.permute.xlu0 %406
      %v410 = vsel %vm310, %v402, 0
      %v412 = vsel %vm314, %v407, 0
      %414 = vmatprep.subr.mxu0 0.0
      %415 = vmatpush1.msra.mxu0 %v405
      %416 = vmatprep.subr.mxu0 0.0
      %417 = vmatpush1.msra.mxu0 %v412
      %418 = vmatprep.subr.mxu0 0.0
      %419 = vmatpush1.msra.mxu0 0.0
      %420 = vmatprep.subr.mxu0 0.0
      %421 = vmatpush1.msra.mxu0 0.0
      %422 = vmatprep.subr.mxu0 0.0
      %423 = vmatpush1.msra.mxu0 0.0
      %424 = vmatprep.subr.mxu0 0.0
      %425 = vmatpush1.msra.mxu0 0.0
      %426 = vmatprep.subr.mxu0 0.0
      %427 = vmatpush1.msra.mxu0 0.0
      %428 = vmatprep.subr.mxu0 0.0
      %429 = vmatpush1.msra.mxu0 0.0
      %430 = vmatprep.subr.mxu0 0.0
      %431 = vmatpush1.msra.mxu0 0.0
      %432 = vmatprep.subr.mxu0 0.0
      %433 = vmatpush1.msra.mxu0 0.0
      %434 = vmatprep.subr.mxu0 0.0
      %435 = vmatpush1.msra.mxu0 0.0
      %436 = vmatprep.subr.mxu0 0.0
      %437 = vmatpush1.msra.mxu0 0.0
      %438 = vmatprep.subr.mxu0 0.0
      %439 = vmatpush1.msra.mxu0 0.0
      %440 = vmatprep.subr.mxu0 0.0
      %441 = vmatpush1.msra.mxu0 0.0
      %442 = vmatprep.subr.mxu0 0.0
      %443 = vmatpush1.msra.mxu0 0.0
      %444 = vmatprep.subr.mxu0 0.0
      %445 = vmatpush1.msra.mxu0 0.0
      %446 = vmatprep.subr.mxu0 0.0
      %447 = vmatpush1.msra.mxu0 0.0
      %448 = vmatprep.subr.mxu0 0.0
      %449 = vmatpush1.msra.mxu0 0.0
      %450 = vmatprep.subr.mxu0 0.0
      %451 = vmatpush1.msra.mxu0 0.0
      %452 = vmatprep.subr.mxu0 0.0
      %453 = vmatpush1.msra.mxu0 0.0
      %454 = vmatprep.subr.mxu0 0.0
      %455 = vmatpush1.msra.mxu0 0.0
      %456 = vmatprep.subr.mxu0 0.0
      %457 = vmatpush1.msra.mxu0 0.0
      %458 = vmatprep.subr.mxu0 0.0
      %459 = vmatpush1.msra.mxu0 0.0
      %460 = vmatprep.subr.mxu0 0.0
      %461 = vmatpush1.msra.mxu0 0.0
      %462 = vmatprep.subr.mxu0 0.0
      %463 = vmatpush1.msra.mxu0 0.0
      %464 = vmatprep.subr.mxu0 0.0
      %465 = vmatpush1.msra.mxu0 0.0
      %466 = vmatprep.subr.mxu0 0.0
      %467 = vmatpush1.msra.mxu0 0.0
      %468 = vmatprep.subr.mxu0 0.0
      %469 = vmatpush1.msra.mxu0 0.0
      %470 = vmatprep.subr.mxu0 0.0
      %471 = vmatpush1.msra.mxu0 0.0
      %472 = vmatprep.subr.mxu0 0.0
      %473 = vmatpush1.msra.mxu0 0.0
      %474 = vmatprep.subr.mxu0 0.0
      %475 = vmatpush1.msra.mxu0 0.0
      %476 = vmatprep.subr.mxu0 0.0
      %477 = vmatpush1.msra.mxu0 0.0
      %478 = vmatprep.mubr.f32.mxu0 0.0
      %479 = vmatmul.mubr.f32.gmra.mrb[0].mxu0 %v410
      %v480 = vpop.f32.mrb[0].mxu0
      %v481 = vadd.f32 0.0, %v480
      %v482 = vpop.f32.mrb[0].mxu0
      %483 = vdwg.mxu0
      %v484 = vtanh.pop %v481
      %v485 = vxor.u32 %v481, 2147483648
      %v486 = vmul.f32 %v485, 1.442695
      %v487 = vpow.pop %v486
      %v488 = vadd.f32 %v487, 1.0
      %v489 = vrcp.pop %v488
      %v490 = vmul.f32 1.0, %v489
      %v492 = vrot.slane %v490, 4
      %v494 = vmul.f32 %v484, %v492
      %496 = vrot.lane.b32.xlu0 %v494, 8
      %v497 = vpop.permute.xlu0 %496
      %vm499 = vcmask 126016
      %500 = vst.msk [vmem:[#allocation3] sm:$0xf] %vm499, %v497
      %s501 = scalar_lea.vmem %s282, 16
      %v502 = vld [vmem:[%s501] sm:$0xff]
      %503 = vrot.lane.b32.xlu0 %v307, 112
      %v504 = vpop.permute.xlu0 %503
      %505 = vrot.lane.b32.xlu0 %v308, 112
      %v506 = vpop.permute.xlu0 %505
      %v509 = vsel %vm310, %v502, 0
      %v511 = vsel %vm314, %v506, 0
      %513 = vmatprep.subr.mxu0 0.0
      %514 = vmatpush1.msra.mxu0 %v504
      %515 = vmatprep.subr.mxu0 0.0
      %516 = vmatpush1.msra.mxu0 %v511
      %517 = vmatprep.subr.mxu0 0.0
      %518 = vmatpush1.msra.mxu0 0.0
      %519 = vmatprep.subr.mxu0 0.0
      %520 = vmatpush1.msra.mxu0 0.0
      %521 = vmatprep.subr.mxu0 0.0
      %522 = vmatpush1.msra.mxu0 0.0
      %523 = vmatprep.subr.mxu0 0.0
      %524 = vmatpush1.msra.mxu0 0.0
      %525 = vmatprep.subr.mxu0 0.0
      %526 = vmatpush1.msra.mxu0 0.0
      %527 = vmatprep.subr.mxu0 0.0
      %528 = vmatpush1.msra.mxu0 0.0
      %529 = vmatprep.subr.mxu0 0.0
      %530 = vmatpush1.msra.mxu0 0.0
      %531 = vmatprep.subr.mxu0 0.0
      %532 = vmatpush1.msra.mxu0 0.0
      %533 = vmatprep.subr.mxu0 0.0
      %534 = vmatpush1.msra.mxu0 0.0
      %535 = vmatprep.subr.mxu0 0.0
      %536 = vmatpush1.msra.mxu0 0.0
      %537 = vmatprep.subr.mxu0 0.0
      %538 = vmatpush1.msra.mxu0 0.0
      %539 = vmatprep.subr.mxu0 0.0
      %540 = vmatpush1.msra.mxu0 0.0
      %541 = vmatprep.subr.mxu0 0.0
      %542 = vmatpush1.msra.mxu0 0.0
      %543 = vmatprep.subr.mxu0 0.0
      %544 = vmatpush1.msra.mxu0 0.0
      %545 = vmatprep.subr.mxu0 0.0
      %546 = vmatpush1.msra.mxu0 0.0
      %547 = vmatprep.subr.mxu0 0.0
      %548 = vmatpush1.msra.mxu0 0.0
      %549 = vmatprep.subr.mxu0 0.0
      %550 = vmatpush1.msra.mxu0 0.0
      %551 = vmatprep.subr.mxu0 0.0
      %552 = vmatpush1.msra.mxu0 0.0
      %553 = vmatprep.subr.mxu0 0.0
      %554 = vmatpush1.msra.mxu0 0.0
      %555 = vmatprep.subr.mxu0 0.0
      %556 = vmatpush1.msra.mxu0 0.0
      %557 = vmatprep.subr.mxu0 0.0
      %558 = vmatpush1.msra.mxu0 0.0
      %559 = vmatprep.subr.mxu0 0.0
      %560 = vmatpush1.msra.mxu0 0.0
      %561 = vmatprep.subr.mxu0 0.0
      %562 = vmatpush1.msra.mxu0 0.0
      %563 = vmatprep.subr.mxu0 0.0
      %564 = vmatpush1.msra.mxu0 0.0
      %565 = vmatprep.subr.mxu0 0.0
      %566 = vmatpush1.msra.mxu0 0.0
      %567 = vmatprep.subr.mxu0 0.0
      %568 = vmatpush1.msra.mxu0 0.0
      %569 = vmatprep.subr.mxu0 0.0
      %570 = vmatpush1.msra.mxu0 0.0
      %571 = vmatprep.subr.mxu0 0.0
      %572 = vmatpush1.msra.mxu0 0.0
      %573 = vmatprep.subr.mxu0 0.0
      %574 = vmatpush1.msra.mxu0 0.0
      %575 = vmatprep.subr.mxu0 0.0
      %576 = vmatpush1.msra.mxu0 0.0
      %577 = vmatprep.mubr.f32.mxu0 0.0
      %578 = vmatmul.mubr.f32.gmra.mrb[0].mxu0 %v509
      %v579 = vpop.f32.mrb[0].mxu0
      %v580 = vadd.f32 0.0, %v579
      %v581 = vpop.f32.mrb[0].mxu0
      %582 = vdwg.mxu0
      %v583 = vtanh.pop %v580
      %v584 = vxor.u32 %v580, 2147483648
      %v585 = vmul.f32 %v584, 1.442695
      %v586 = vpow.pop %v585
      %v587 = vadd.f32 %v586, 1.0
      %v588 = vrcp.pop %v587
      %v589 = vmul.f32 1.0, %v588
      %v591 = vrot.slane %v589, 4
      %v593 = vmul.f32 %v583, %v591
      %595 = vrot.lane.b32.xlu0 %v593, 16
      %v596 = vpop.permute.xlu0 %595
      %vm598 = vcmask 191616
      %599 = vst.msk [vmem:[#allocation3] sm:$0xf] %vm598, %v596
      %s600 = scalar_lea.vmem %s282, 24
      %v601 = vld [vmem:[%s600] sm:$0xff]
      %602 = vrot.lane.b32.xlu0 %v307, 104
      %v603 = vpop.permute.xlu0 %602
      %604 = vrot.lane.b32.xlu0 %v308, 104
      %v605 = vpop.permute.xlu0 %604
      %v608 = vsel %vm310, %v601, 0
      %v610 = vsel %vm314, %v605, 0
      %612 = vmatprep.subr.mxu0 0.0
      %613 = vmatpush1.msra.mxu0 %v603
      %614 = vmatprep.subr.mxu0 0.0
      %615 = vmatpush1.msra.mxu0 %v610
      %616 = vmatprep.subr.mxu0 0.0
      %617 = vmatpush1.msra.mxu0 0.0
      %618 = vmatprep.subr.mxu0 0.0
      %619 = vmatpush1.msra.mxu0 0.0
      %620 = vmatprep.subr.mxu0 0.0
      %621 = vmatpush1.msra.mxu0 0.0
      %622 = vmatprep.subr.mxu0 0.0
      %623 = vmatpush1.msra.mxu0 0.0
      %624 = vmatprep.subr.mxu0 0.0
      %625 = vmatpush1.msra.mxu0 0.0
      %626 = vmatprep.subr.mxu0 0.0
      %627 = vmatpush1.msra.mxu0 0.0
      %628 = vmatprep.subr.mxu0 0.0
      %629 = vmatpush1.msra.mxu0 0.0
      %630 = vmatprep.subr.mxu0 0.0
      %631 = vmatpush1.msra.mxu0 0.0
      %632 = vmatprep.subr.mxu0 0.0
      %633 = vmatpush1.msra.mxu0 0.0
      %634 = vmatprep.subr.mxu0 0.0
      %635 = vmatpush1.msra.mxu0 0.0
      %636 = vmatprep.subr.mxu0 0.0
      %637 = vmatpush1.msra.mxu0 0.0
      %638 = vmatprep.subr.mxu0 0.0
      %639 = vmatpush1.msra.mxu0 0.0
      %640 = vmatprep.subr.mxu0 0.0
      %641 = vmatpush1.msra.mxu0 0.0
      %642 = vmatprep.subr.mxu0 0.0
      %643 = vmatpush1.msra.mxu0 0.0
      %644 = vmatprep.subr.mxu0 0.0
      %645 = vmatpush1.msra.mxu0 0.0
      %646 = vmatprep.subr.mxu0 0.0
      %647 = vmatpush1.msra.mxu0 0.0
      %648 = vmatprep.subr.mxu0 0.0
      %649 = vmatpush1.msra.mxu0 0.0
      %650 = vmatprep.subr.mxu0 0.0
      %651 = vmatpush1.msra.mxu0 0.0
      %652 = vmatprep.subr.mxu0 0.0
      %653 = vmatpush1.msra.mxu0 0.0
      %654 = vmatprep.subr.mxu0 0.0
      %655 = vmatpush1.msra.mxu0 0.0
      %656 = vmatprep.subr.mxu0 0.0
      %657 = vmatpush1.msra.mxu0 0.0
      %658 = vmatprep.subr.mxu0 0.0
      %659 = vmatpush1.msra.mxu0 0.0
      %660 = vmatprep.subr.mxu0 0.0
      %661 = vmatpush1.msra.mxu0 0.0
      %662 = vmatprep.subr.mxu0 0.0
      %663 = vmatpush1.msra.mxu0 0.0
      %664 = vmatprep.subr.mxu0 0.0
      %665 = vmatpush1.msra.mxu0 0.0
      %666 = vmatprep.subr.mxu0 0.0
      %667 = vmatpush1.msra.mxu0 0.0
      %668 = vmatprep.subr.mxu0 0.0
      %669 = vmatpush1.msra.mxu0 0.0
      %670 = vmatprep.subr.mxu0 0.0
      %671 = vmatpush1.msra.mxu0 0.0
      %672 = vmatprep.subr.mxu0 0.0
      %673 = vmatpush1.msra.mxu0 0.0
      %674 = vmatprep.subr.mxu0 0.0
      %675 = vmatpush1.msra.mxu0 0.0
      %676 = vmatprep.mubr.f32.mxu0 0.0
      %677 = vmatmul.mubr.f32.gmra.mrb[0].mxu0 %v608
      %v678 = vpop.f32.mrb[0].mxu0
      %v679 = vadd.f32 0.0, %v678
      %v680 = vpop.f32.mrb[0].mxu0
      %681 = vdwg.mxu0
      %v682 = vtanh.pop %v679
      %v683 = vxor.u32 %v679, 2147483648
      %v684 = vmul.f32 %v683, 1.442695
      %v685 = vpow.pop %v684
      %v686 = vadd.f32 %v685, 1.0
      %v687 = vrcp.pop %v686
      %v688 = vmul.f32 1.0, %v687
      %v690 = vrot.slane %v688, 4
      %v692 = vmul.f32 %v682, %v690
      %694 = vrot.lane.b32.xlu0 %v692, 24
      %v695 = vpop.permute.xlu0 %694
      %vm697 = vcmask 257216
      %698 = vst.msk [vmem:[#allocation3] sm:$0xf] %vm697, %v695
      %s699 = scalar_lea.vmem %s282, 32
      %v700 = vld [vmem:[%s699] sm:$0xff]
      %701 = vrot.lane.b32.xlu0 %v307, 96
      %v702 = vpop.permute.xlu0 %701
      %703 = vrot.lane.b32.xlu0 %v308, 96
      %v704 = vpop.permute.xlu0 %703
      %v707 = vsel %vm310, %v700, 0
      %v709 = vsel %vm314, %v704, 0
      %711 = vmatprep.subr.mxu0 0.0
      %712 = vmatpush1.msra.mxu0 %v702
      %713 = vmatprep.subr.mxu0 0.0
      %714 = vmatpush1.msra.mxu0 %v709
      %715 = vmatprep.subr.mxu0 0.0
      %716 = vmatpush1.msra.mxu0 0.0
      %717 = vmatprep.subr.mxu0 0.0
      %718 = vmatpush1.msra.mxu0 0.0
      %719 = vmatprep.subr.mxu0 0.0
      %720 = vmatpush1.msra.mxu0 0.0
      %721 = vmatprep.subr.mxu0 0.0
      %722 = vmatpush1.msra.mxu0 0.0
      %723 = vmatprep.subr.mxu0 0.0
      %724 = vmatpush1.msra.mxu0 0.0
      %725 = vmatprep.subr.mxu0 0.0
      %726 = vmatpush1.msra.mxu0 0.0
      %727 = vmatprep.subr.mxu0 0.0
      %728 = vmatpush1.msra.mxu0 0.0
      %729 = vmatprep.subr.mxu0 0.0
      %730 = vmatpush1.msra.mxu0 0.0
      %731 = vmatprep.subr.mxu0 0.0
      %732 = vmatpush1.msra.mxu0 0.0
      %733 = vmatprep.subr.mxu0 0.0
      %734 = vmatpush1.msra.mxu0 0.0
      %735 = vmatprep.subr.mxu0 0.0
      %736 = vmatpush1.msra.mxu0 0.0
      %737 = vmatprep.subr.mxu0 0.0
      %738 = vmatpush1.msra.mxu0 0.0
      %739 = vmatprep.subr.mxu0 0.0
      %740 = vmatpush1.msra.mxu0 0.0
      %741 = vmatprep.subr.mxu0 0.0
      %742 = vmatpush1.msra.mxu0 0.0
      %743 = vmatprep.subr.mxu0 0.0
      %744 = vmatpush1.msra.mxu0 0.0
      %745 = vmatprep.subr.mxu0 0.0
      %746 = vmatpush1.msra.mxu0 0.0
      %747 = vmatprep.subr.mxu0 0.0
      %748 = vmatpush1.msra.mxu0 0.0
      %749 = vmatprep.subr.mxu0 0.0
      %750 = vmatpush1.msra.mxu0 0.0
      %751 = vmatprep.subr.mxu0 0.0
      %752 = vmatpush1.msra.mxu0 0.0
      %753 = vmatprep.subr.mxu0 0.0
      %754 = vmatpush1.msra.mxu0 0.0
      %755 = vmatprep.subr.mxu0 0.0
      %756 = vmatpush1.msra.mxu0 0.0
      %757 = vmatprep.subr.mxu0 0.0
      %758 = vmatpush1.msra.mxu0 0.0
      %759 = vmatprep.subr.mxu0 0.0
      %760 = vmatpush1.msra.mxu0 0.0
      %761 = vmatprep.subr.mxu0 0.0
      %762 = vmatpush1.msra.mxu0 0.0
      %763 = vmatprep.subr.mxu0 0.0
      %764 = vmatpush1.msra.mxu0 0.0
      %765 = vmatprep.subr.mxu0 0.0
      %766 = vmatpush1.msra.mxu0 0.0
      %767 = vmatprep.subr.mxu0 0.0
      %768 = vmatpush1.msra.mxu0 0.0
      %769 = vmatprep.subr.mxu0 0.0
      %770 = vmatpush1.msra.mxu0 0.0
      %771 = vmatprep.subr.mxu0 0.0
      %772 = vmatpush1.msra.mxu0 0.0
      %773 = vmatprep.subr.mxu0 0.0
      %774 = vmatpush1.msra.mxu0 0.0
      %775 = vmatprep.mubr.f32.mxu0 0.0
      %776 = vmatmul.mubr.f32.gmra.mrb[0].mxu0 %v707
      %v777 = vpop.f32.mrb[0].mxu0
      %v778 = vadd.f32 0.0, %v777
      %v779 = vpop.f32.mrb[0].mxu0
      %780 = vdwg.mxu0
      %v781 = vtanh.pop %v778
      %v782 = vxor.u32 %v778, 2147483648
      %v783 = vmul.f32 %v782, 1.442695
      %v784 = vpow.pop %v783
      %v785 = vadd.f32 %v784, 1.0
      %v786 = vrcp.pop %v785
      %v787 = vmul.f32 1.0, %v786
      %v789 = vrot.slane %v787, 4
      %v791 = vmul.f32 %v781, %v789
      %793 = vrot.lane.b32.xlu0 %v791, 32
      %v794 = vpop.permute.xlu0 %793
      %vm796 = vcmask 322816
      %797 = vst.msk [vmem:[#allocation3] sm:$0xf] %vm796, %v794
      %s798 = scalar_lea.vmem %s282, 40
      %v799 = vld [vmem:[%s798] sm:$0xff]
      %800 = vrot.lane.b32.xlu0 %v307, 88
      %v801 = vpop.permute.xlu0 %800
      %802 = vrot.lane.b32.xlu0 %v308, 88
      %v803 = vpop.permute.xlu0 %802
      %v806 = vsel %vm310, %v799, 0
      %v808 = vsel %vm314, %v803, 0
      %810 = vmatprep.subr.mxu0 0.0
      %811 = vmatpush1.msra.mxu0 %v801
      %812 = vmatprep.subr.mxu0 0.0
      %813 = vmatpush1.msra.mxu0 %v808
      %814 = vmatprep.subr.mxu0 0.0
      %815 = vmatpush1.msra.mxu0 0.0
      %816 = vmatprep.subr.mxu0 0.0
      %817 = vmatpush1.msra.mxu0 0.0
      %818 = vmatprep.subr.mxu0 0.0
      %819 = vmatpush1.msra.mxu0 0.0
      %820 = vmatprep.subr.mxu0 0.0
      %821 = vmatpush1.msra.mxu0 0.0
      %822 = vmatprep.subr.mxu0 0.0
      %823 = vmatpush1.msra.mxu0 0.0
      %824 = vmatprep.subr.mxu0 0.0
      %825 = vmatpush1.msra.mxu0 0.0
      %826 = vmatprep.subr.mxu0 0.0
      %827 = vmatpush1.msra.mxu0 0.0
      %828 = vmatprep.subr.mxu0 0.0
      %829 = vmatpush1.msra.mxu0 0.0
      %830 = vmatprep.subr.mxu0 0.0
      %831 = vmatpush1.msra.mxu0 0.0
      %832 = vmatprep.subr.mxu0 0.0
      %833 = vmatpush1.msra.mxu0 0.0
      %834 = vmatprep.subr.mxu0 0.0
      %835 = vmatpush1.msra.mxu0 0.0
      %836 = vmatprep.subr.mxu0 0.0
      %837 = vmatpush1.msra.mxu0 0.0
      %838 = vmatprep.subr.mxu0 0.0
      %839 = vmatpush1.msra.mxu0 0.0
      %840 = vmatprep.subr.mxu0 0.0
      %841 = vmatpush1.msra.mxu0 0.0
      %842 = vmatprep.subr.mxu0 0.0
      %843 = vmatpush1.msra.mxu0 0.0
      %844 = vmatprep.subr.mxu0 0.0
      %845 = vmatpush1.msra.mxu0 0.0
      %846 = vmatprep.subr.mxu0 0.0
      %847 = vmatpush1.msra.mxu0 0.0
      %848 = vmatprep.subr.mxu0 0.0
      %849 = vmatpush1.msra.mxu0 0.0
      %850 = vmatprep.subr.mxu0 0.0
      %851 = vmatpush1.msra.mxu0 0.0
      %852 = vmatprep.subr.mxu0 0.0
      %853 = vmatpush1.msra.mxu0 0.0
      %854 = vmatprep.subr.mxu0 0.0
      %855 = vmatpush1.msra.mxu0 0.0
      %856 = vmatprep.subr.mxu0 0.0
      %857 = vmatpush1.msra.mxu0 0.0
      %858 = vmatprep.subr.mxu0 0.0
      %859 = vmatpush1.msra.mxu0 0.0
      %860 = vmatprep.subr.mxu0 0.0
      %861 = vmatpush1.msra.mxu0 0.0
      %862 = vmatprep.subr.mxu0 0.0
      %863 = vmatpush1.msra.mxu0 0.0
      %864 = vmatprep.subr.mxu0 0.0
      %865 = vmatpush1.msra.mxu0 0.0
      %866 = vmatprep.subr.mxu0 0.0
      %867 = vmatpush1.msra.mxu0 0.0
      %868 = vmatprep.subr.mxu0 0.0
      %869 = vmatpush1.msra.mxu0 0.0
      %870 = vmatprep.subr.mxu0 0.0
      %871 = vmatpush1.msra.mxu0 0.0
      %872 = vmatprep.subr.mxu0 0.0
      %873 = vmatpush1.msra.mxu0 0.0
      %874 = vmatprep.mubr.f32.mxu0 0.0
      %875 = vmatmul.mubr.f32.gmra.mrb[0].mxu0 %v806
      %v876 = vpop.f32.mrb[0].mxu0
      %v877 = vadd.f32 0.0, %v876
      %v878 = vpop.f32.mrb[0].mxu0
      %879 = vdwg.mxu0
      %v880 = vtanh.pop %v877
      %v881 = vxor.u32 %v877, 2147483648
      %v882 = vmul.f32 %v881, 1.442695
      %v883 = vpow.pop %v882
      %v884 = vadd.f32 %v883, 1.0
      %v885 = vrcp.pop %v884
      %v886 = vmul.f32 1.0, %v885
      %v888 = vrot.slane %v886, 4
      %v890 = vmul.f32 %v880, %v888
      %892 = vrot.lane.b32.xlu0 %v890, 40
      %v893 = vpop.permute.xlu0 %892
      %vm895 = vcmask 388416
      %896 = vst.msk [vmem:[#allocation3] sm:$0xf] %vm895, %v893
      %s897 = scalar_lea.vmem %s282, 48
      %v898 = vld [vmem:[%s897] sm:$0xff]
      %899 = vrot.lane.b32.xlu0 %v307, 80
      %v900 = vpop.permute.xlu0 %899
      %901 = vrot.lane.b32.xlu0 %v308, 80
      %v902 = vpop.permute.xlu0 %901
      %v905 = vsel %vm310, %v898, 0
      %v907 = vsel %vm314, %v902, 0
      %909 = vmatprep.subr.mxu0 0.0
      %910 = vmatpush1.msra.mxu0 %v900
      %911 = vmatprep.subr.mxu0 0.0
      %912 = vmatpush1.msra.mxu0 %v907
      %913 = vmatprep.subr.mxu0 0.0
      %914 = vmatpush1.msra.mxu0 0.0
      %915 = vmatprep.subr.mxu0 0.0
      %916 = vmatpush1.msra.mxu0 0.0
      %917 = vmatprep.subr.mxu0 0.0
      %918 = vmatpush1.msra.mxu0 0.0
      %919 = vmatprep.subr.mxu0 0.0
      %920 = vmatpush1.msra.mxu0 0.0
      %921 = vmatprep.subr.mxu0 0.0
      %922 = vmatpush1.msra.mxu0 0.0
      %923 = vmatprep.subr.mxu0 0.0
      %924 = vmatpush1.msra.mxu0 0.0
      %925 = vmatprep.subr.mxu0 0.0
      %926 = vmatpush1.msra.mxu0 0.0
      %927 = vmatprep.subr.mxu0 0.0
      %928 = vmatpush1.msra.mxu0 0.0
      %929 = vmatprep.subr.mxu0 0.0
      %930 = vmatpush1.msra.mxu0 0.0
      %931 = vmatprep.subr.mxu0 0.0
      %932 = vmatpush1.msra.mxu0 0.0
      %933 = vmatprep.subr.mxu0 0.0
      %934 = vmatpush1.msra.mxu0 0.0
      %935 = vmatprep.subr.mxu0 0.0
      %936 = vmatpush1.msra.mxu0 0.0
      %937 = vmatprep.subr.mxu0 0.0
      %938 = vmatpush1.msra.mxu0 0.0
      %939 = vmatprep.subr.mxu0 0.0
      %940 = vmatpush1.msra.mxu0 0.0
      %941 = vmatprep.subr.mxu0 0.0
      %942 = vmatpush1.msra.mxu0 0.0
      %943 = vmatprep.subr.mxu0 0.0
      %944 = vmatpush1.msra.mxu0 0.0
      %945 = vmatprep.subr.mxu0 0.0
      %946 = vmatpush1.msra.mxu0 0.0
      %947 = vmatprep.subr.mxu0 0.0
      %948 = vmatpush1.msra.mxu0 0.0
      %949 = vmatprep.subr.mxu0 0.0
      %950 = vmatpush1.msra.mxu0 0.0
      %951 = vmatprep.subr.mxu0 0.0
      %952 = vmatpush1.msra.mxu0 0.0
      %953 = vmatprep.subr.mxu0 0.0
      %954 = vmatpush1.msra.mxu0 0.0
      %955 = vmatprep.subr.mxu0 0.0
      %956 = vmatpush1.msra.mxu0 0.0
      %957 = vmatprep.subr.mxu0 0.0
      %958 = vmatpush1.msra.mxu0 0.0
      %959 = vmatprep.subr.mxu0 0.0
      %960 = vmatpush1.msra.mxu0 0.0
      %961 = vmatprep.subr.mxu0 0.0
      %962 = vmatpush1.msra.mxu0 0.0
      %963 = vmatprep.subr.mxu0 0.0
      %964 = vmatpush1.msra.mxu0 0.0
      %965 = vmatprep.subr.mxu0 0.0
      %966 = vmatpush1.msra.mxu0 0.0
      %967 = vmatprep.subr.mxu0 0.0
      %968 = vmatpush1.msra.mxu0 0.0
      %969 = vmatprep.subr.mxu0 0.0
      %970 = vmatpush1.msra.mxu0 0.0
      %971 = vmatprep.subr.mxu0 0.0
      %972 = vmatpush1.msra.mxu0 0.0
      %973 = vmatprep.mubr.f32.mxu0 0.0
      %974 = vmatmul.mubr.f32.gmra.mrb[0].mxu0 %v905
      %v975 = vpop.f32.mrb[0].mxu0
      %v976 = vadd.f32 0.0, %v975
      %v977 = vpop.f32.mrb[0].mxu0
      %978 = vdwg.mxu0
      %v979 = vtanh.pop %v976
      %v980 = vxor.u32 %v976, 2147483648
      %v981 = vmul.f32 %v980, 1.442695
      %v982 = vpow.pop %v981
      %v983 = vadd.f32 %v982, 1.0
      %v984 = vrcp.pop %v983
      %v985 = vmul.f32 1.0, %v984
      %v987 = vrot.slane %v985, 4
      %v989 = vmul.f32 %v979, %v987
      %991 = vrot.lane.b32.xlu0 %v989, 48
      %v992 = vpop.permute.xlu0 %991
      %vm994 = vcmask 454016
      %995 = vst.msk [vmem:[#allocation3] sm:$0xf] %vm994, %v992
      %s996 = scalar_lea.vmem %s282, 56
      %v997 = vld [vmem:[%s996] sm:$0xff]
      %998 = vrot.lane.b32.xlu0 %v307, 72
      %v999 = vpop.permute.xlu0 %998
      %1000 = vrot.lane.b32.xlu0 %v308, 72
      %v1001 = vpop.permute.xlu0 %1000
      %v1004 = vsel %vm310, %v997, 0
      %v1006 = vsel %vm314, %v1001, 0
      %1008 = vmatprep.subr.mxu0 0.0
      %1009 = vmatpush1.msra.mxu0 %v999
      %1010 = vmatprep.subr.mxu0 0.0
      %1011 = vmatpush1.msra.mxu0 %v1006
      %1012 = vmatprep.subr.mxu0 0.0
      %1013 = vmatpush1.msra.mxu0 0.0
      %1014 = vmatprep.subr.mxu0 0.0
      %1015 = vmatpush1.msra.mxu0 0.0
      %1016 = vmatprep.subr.mxu0 0.0
      %1017 = vmatpush1.msra.mxu0 0.0
      %1018 = vmatprep.subr.mxu0 0.0
      %1019 = vmatpush1.msra.mxu0 0.0
      %1020 = vmatprep.subr.mxu0 0.0
      %1021 = vmatpush1.msra.mxu0 0.0
      %1022 = vmatprep.subr.mxu0 0.0
      %1023 = vmatpush1.msra.mxu0 0.0
      %1024 = vmatprep.subr.mxu0 0.0
      %1025 = vmatpush1.msra.mxu0 0.0
      %1026 = vmatprep.subr.mxu0 0.0
      %1027 = vmatpush1.msra.mxu0 0.0
      %1028 = vmatprep.subr.mxu0 0.0
      %1029 = vmatpush1.msra.mxu0 0.0
      %1030 = vmatprep.subr.mxu0 0.0
      %1031 = vmatpush1.msra.mxu0 0.0
      %1032 = vmatprep.subr.mxu0 0.0
      %1033 = vmatpush1.msra.mxu0 0.0
      %1034 = vmatprep.subr.mxu0 0.0
      %1035 = vmatpush1.msra.mxu0 0.0
      %1036 = vmatprep.subr.mxu0 0.0
      %1037 = vmatpush1.msra.mxu0 0.0
      %1038 = vmatprep.subr.mxu0 0.0
      %1039 = vmatpush1.msra.mxu0 0.0
      %1040 = vmatprep.subr.mxu0 0.0
      %1041 = vmatpush1.msra.mxu0 0.0
      %1042 = vmatprep.subr.mxu0 0.0
      %1043 = vmatpush1.msra.mxu0 0.0
      %1044 = vmatprep.subr.mxu0 0.0
      %1045 = vmatpush1.msra.mxu0 0.0
      %1046 = vmatprep.subr.mxu0 0.0
      %1047 = vmatpush1.msra.mxu0 0.0
      %1048 = vmatprep.subr.mxu0 0.0
      %1049 = vmatpush1.msra.mxu0 0.0
      %1050 = vmatprep.subr.mxu0 0.0
      %1051 = vmatpush1.msra.mxu0 0.0
      %1052 = vmatprep.subr.mxu0 0.0
      %1053 = vmatpush1.msra.mxu0 0.0
      %1054 = vmatprep.subr.mxu0 0.0
      %1055 = vmatpush1.msra.mxu0 0.0
      %1056 = vmatprep.subr.mxu0 0.0
      %1057 = vmatpush1.msra.mxu0 0.0
      %1058 = vmatprep.subr.mxu0 0.0
      %1059 = vmatpush1.msra.mxu0 0.0
      %1060 = vmatprep.subr.mxu0 0.0
      %1061 = vmatpush1.msra.mxu0 0.0
      %1062 = vmatprep.subr.mxu0 0.0
      %1063 = vmatpush1.msra.mxu0 0.0
      %1064 = vmatprep.subr.mxu0 0.0
      %1065 = vmatpush1.msra.mxu0 0.0
      %1066 = vmatprep.subr.mxu0 0.0
      %1067 = vmatpush1.msra.mxu0 0.0
      %1068 = vmatprep.subr.mxu0 0.0
      %1069 = vmatpush1.msra.mxu0 0.0
      %1070 = vmatprep.subr.mxu0 0.0
      %1071 = vmatpush1.msra.mxu0 0.0
      %1072 = vmatprep.mubr.f32.mxu0 0.0
      %1073 = vmatmul.mubr.f32.gmra.mrb[0].mxu0 %v1004
      %v1074 = vpop.f32.mrb[0].mxu0
      %v1075 = vadd.f32 0.0, %v1074
      %v1076 = vpop.f32.mrb[0].mxu0
      %1077 = vdwg.mxu0
      %v1078 = vtanh.pop %v1075
      %v1079 = vxor.u32 %v1075, 2147483648
      %v1080 = vmul.f32 %v1079, 1.442695
      %v1081 = vpow.pop %v1080
      %v1082 = vadd.f32 %v1081, 1.0
      %v1083 = vrcp.pop %v1082
      %v1084 = vmul.f32 1.0, %v1083
      %v1086 = vrot.slane %v1084, 4
      %v1088 = vmul.f32 %v1078, %v1086
      %1090 = vrot.lane.b32.xlu0 %v1088, 56
      %v1091 = vpop.permute.xlu0 %1090
      %vm1093 = vcmask 519616
      %1094 = vst.msk [vmem:[#allocation3] sm:$0xf] %vm1093, %v1091
      %v1095 = vld [vmem:[%s2] sm:$0xff]
      %v1096 = vld [vmem:[#allocation3] sm:$0xf]
      %v1097 = vld [vmem:[%s3] sm:$0xff]
      %1099 = vset.pattern.permute.xlu0 0
      %1100 = vperm.xlu0 %1099, %v1097
      %v1101 = vpop.permute.xlu0 %1100
      %vm1103 = vcmask 31744
      %v1105 = vsel %vm1103, %v1095, 0
      %v1108 = vsel %vm314, %v1096, 0
      %1110 = vmatprep.subr.mxu0 0.0
      %1111 = vmatpush1.msra.mxu0 %v1108
      %1112 = vmatprep.subr.mxu0 0.0
      %1113 = vmatpush1.msra.mxu0 0.0
      %1114 = vmatprep.subr.mxu0 0.0
      %1115 = vmatpush1.msra.mxu0 0.0
      %1116 = vmatprep.subr.mxu0 0.0
      %1117 = vmatpush1.msra.mxu0 0.0
      %1118 = vmatprep.subr.mxu0 0.0
      %1119 = vmatpush1.msra.mxu0 0.0
      %1120 = vmatprep.subr.mxu0 0.0
      %1121 = vmatpush1.msra.mxu0 0.0
      %1122 = vmatprep.subr.mxu0 0.0
      %1123 = vmatpush1.msra.mxu0 0.0
      %1124 = vmatprep.subr.mxu0 0.0
      %1125 = vmatpush1.msra.mxu0 0.0
      %1126 = vmatprep.subr.mxu0 0.0
      %1127 = vmatpush1.msra.mxu0 0.0
      %1128 = vmatprep.subr.mxu0 0.0
      %1129 = vmatpush1.msra.mxu0 0.0
      %1130 = vmatprep.subr.mxu0 0.0
      %1131 = vmatpush1.msra.mxu0 0.0
      %1132 = vmatprep.subr.mxu0 0.0
      %1133 = vmatpush1.msra.mxu0 0.0
      %1134 = vmatprep.subr.mxu0 0.0
      %1135 = vmatpush1.msra.mxu0 0.0
      %1136 = vmatprep.subr.mxu0 0.0
      %1137 = vmatpush1.msra.mxu0 0.0
      %1138 = vmatprep.subr.mxu0 0.0
      %1139 = vmatpush1.msra.mxu0 0.0
      %1140 = vmatprep.subr.mxu0 0.0
      %1141 = vmatpush1.msra.mxu0 0.0
      %1142 = vmatprep.subr.mxu0 0.0
      %1143 = vmatpush1.msra.mxu0 0.0
      %1144 = vmatprep.subr.mxu0 0.0
      %1145 = vmatpush1.msra.mxu0 0.0
      %1146 = vmatprep.subr.mxu0 0.0
      %1147 = vmatpush1.msra.mxu0 0.0
      %1148 = vmatprep.subr.mxu0 0.0
      %1149 = vmatpush1.msra.mxu0 0.0
      %1150 = vmatprep.subr.mxu0 0.0
      %1151 = vmatpush1.msra.mxu0 0.0
      %1152 = vmatprep.subr.mxu0 0.0
      %1153 = vmatpush1.msra.mxu0 0.0
      %1154 = vmatprep.subr.mxu0 0.0
      %1155 = vmatpush1.msra.mxu0 0.0
      %1156 = vmatprep.subr.mxu0 0.0
      %1157 = vmatpush1.msra.mxu0 0.0
      %1158 = vmatprep.subr.mxu0 0.0
      %1159 = vmatpush1.msra.mxu0 0.0
      %1160 = vmatprep.subr.mxu0 0.0
      %1161 = vmatpush1.msra.mxu0 0.0
      %1162 = vmatprep.subr.mxu0 0.0
      %1163 = vmatpush1.msra.mxu0 0.0
      %1164 = vmatprep.subr.mxu0 0.0
      %1165 = vmatpush1.msra.mxu0 0.0
      %1166 = vmatprep.subr.mxu0 0.0
      %1167 = vmatpush1.msra.mxu0 0.0
      %1168 = vmatprep.subr.mxu0 0.0
      %1169 = vmatpush1.msra.mxu0 0.0
      %1170 = vmatprep.subr.mxu0 0.0
      %1171 = vmatpush1.msra.mxu0 0.0
      %1172 = vmatprep.subr.mxu0 0.0
      %1173 = vmatpush1.msra.mxu0 0.0
      %1174 = vmatprep.mubr.f32.mxu0 0.0
      %1175 = vmatmul.mubr.f32.gmra.mrb[0].mxu0 %v1105
      %v1176 = vpop.f32.mrb[0].mxu0
      %v1177 = vadd.f32 %v1101, %v1176
      %v1178 = vpop.f32.mrb[0].mxu0
      %1179 = vdwg.mxu0
      %v1180 = vadd.f32 %v1177, %v300
      %1181 = vst.msk [vmem:[%s290] sm:$0xf] %vm296, %v1180
      %v1182 = vld [vmem:[%s286] sm:$0xf]
      %v1184 = vrot.slane %v1182, 4
      %v1186 = vadd.f32 %v1177, %v1184
      %vm1187 = vcmask 523268
      %1188 = vst.msk [vmem:[%s294 - $0x4] sm:$0xf0] %vm1187, %v1186
      %p1189 = scmp.lt.s32.totalorder %s18, 1
      %s1190 = scalar_select %p1189, %s18, 1
      %s1191 = smul.addr %s1190, 4
      %s1192 = scalar_lea.vmem %s5, %s1191
      %p1193 = scmp.lt.s32.totalorder %s18, 1
      %s1194 = scalar_select %p1193, %s18, 1
      %s1195 = smul.addr %s1194, 4
      %s1196 = scalar_lea.vmem %s6, %s1195
      // Predicated region
      $region41: #{_lambda_.16} parent=39 // pred_check
        %p1197 = pneg %p156
      $region42: #{_lambda_.16} parent=39 // pred_check_branch
        %1199 = sbr.rel (%p1197) target = $region44
      $region43: #{_lambda_.16} parent=39 // pred_region
        _
      $region44: #{_lambda_.16} parent=39 // pred_fallthru
        _
      // Predicated region
      $region45: #{_lambda_.16} parent=39 // pred_check
        %p1200 = pneg %p182
      $region46: #{_lambda_.16} parent=39 // pred_check_branch
        %1202 = sbr.rel (%p1200) target = $region48
      $region47: #{_lambda_.16} parent=39 // pred_region
        _
      $region48: #{_lambda_.16} parent=39 // pred_fallthru
        _
    $region40: #{_lambda_.16} parent=5 // pred_fallthru
      _
    %p1203 = scmp.le.s32.totalorder 2, %s13
    // Predicated region
    $region49: #{_lambda_.16} parent=5 // pred_check
      %p1204 = pneg %p1203
    $region50: #{_lambda_.16} parent=5 // pred_check_branch
      %1206 = sbr.rel (%p1204) target = $region52
    $region51: #{_lambda_.16} parent=5 // pred_region
      %s1207 = ssub.s32 %s13, 2
      // Predicated region
      $region53: #{_lambda_.16} parent=51 // pred_check
        %p1208 = pneg %p162
      $region54: #{_lambda_.16} parent=51 // pred_check_branch
        %1210 = sbr.rel (%p1208) target = $region56
      $region55: #{_lambda_.16} parent=51 // pred_region
        %p1211 = scmp.lt.s32.totalorder %s19, 1
        %s1212 = scalar_select %p1211, %s19, 1
        %s1213 = smul.addr %s1212, 4
        %s1214 = scalar_lea.vmem %s5, %s1213
      $region56: #{_lambda_.16} parent=51 // pred_fallthru
        _
      // Predicated region
      $region57: #{_lambda_.16} parent=51 // pred_check
        %p1215 = pneg %p188
      $region58: #{_lambda_.16} parent=51 // pred_check_branch
        %1217 = sbr.rel (%p1215) target = $region60
      $region59: #{_lambda_.16} parent=51 // pred_region
        %p1218 = scmp.lt.s32.totalorder %s19, 1
        %s1219 = scalar_select %p1218, %s19, 1
        %s1220 = smul.addr %s1219, 4
        %s1221 = scalar_lea.vmem %s6, %s1220
      $region60: #{_lambda_.16} parent=51 // pred_fallthru
        _
    $region52: #{_lambda_.16} parent=5 // pred_fallthru
      _
  $region6: #{_lambda_.16} parent=0 // loop_footer
    %s17 = sadd.s32 1, %s13
  $region7: #{_lambda_.16} parent=0 // loop_footer_branch
    %12 = sbr.rel target = $region3
  $region8: #{_lambda_.16} parent=0 // loop_exit
    _

// kernel: _lambda_.17
$region0: #{_lambda_.17}
  #allocation0 [shape = 'u32[]', space=smem, size = 0x4, offset = 0x4, fixed_abs, tag = 'smem constant byte address 0x4 - core index']
  #allocation1 [shape = 'u32[144,128]{1,0:T(1,128)}', space=vmem, size = 0x12000, scoped, tag = 'internal scratch']
  #allocation2 [shape = 'f32[12,64]{1,0:T(8,128)}', space=vmem, size = 0x2000, scoped, tag = 'scratch operand']
  #allocation3 [shape = 'f32[4,64]{1,0:T(4,128)}', space=vmem, size = 0x800, scoped, tag = 'scratch operand']
  %s0 = inlined_call_operand.vmem [shape: f32[2,4,72], index: 0, kind: input, shape index: {}]
  %s1 = inlined_call_operand.vmem [shape: f32[2,8,8,12], index: 1, kind: input, shape index: {}]
  %s2 = inlined_call_operand.vmem [shape: f32[8,4], index: 2, kind: input, shape index: {}]
  %s3 = inlined_call_operand.vmem [shape: f32[8,1], index: 3, kind: input, shape index: {}]
  %s4 = inlined_call_operand.vmem [shape: f32[2,4,64], index: 4, kind: input, shape index: {}, may-alias: {4,6}]
  %s5 = inlined_call_operand.vmem [shape: f32[2,4,64], index: 5, kind: output, shape index: {0}]
  %s6 = inlined_call_operand.vmem [shape: f32[2,4,64], index: 6, kind: output, shape index: {1}, may-alias: {4,6}]
  %7 = xla_tuple %s5, %s6
  %s8 = sld [smem:[#allocation0]]
  $region61: #{_lambda_.17} parent=0
    _
  %s10 = ssub.s32 1, %s8
  %s11 = scalar_select 0, %s10, %s8
  loop: start=0, step=1, limit=4
  $region2: #{_lambda_.17} parent=0 // loop_pre_header
    _
  $region3: #{_lambda_.17} parent=0 // loop_header
    %s13 = sphi 0, %s17
    %p14 = scmp.ge.s32.totalorder %s13, 4
    %s23 = sphi 0, %s25
    %s26 = sphi 0, %s23
    %s27 = sphi 0, %s26
    %s43 = sphi 0, %s27
    %s49 = sphi 0, %s51
    %s52 = sphi 0, %s49
    %s53 = sphi 0, %s52
    %s69 = sphi 0, %s53
    %s73 = sphi 0, %s73
    %s75 = sphi 0, %s73
    %s76 = sphi 0, %s75
    %s90 = sphi 0, %s76
    %s94 = sphi 0, %s94
    %s96 = sphi 0, %s94
    %s97 = sphi 0, %s96
    %s111 = sphi 0, %s97
    %s117 = sphi 0, %s119
    %s120 = sphi 0, %s117
    %s121 = sphi 0, %s120
    %s137 = sphi 0, %s121
    %s143 = sphi 0, %s145
    %s146 = sphi 0, %s143
    %s147 = sphi 0, %s146
    %s163 = sphi 0, %s147
    %s169 = sphi 0, %s171
    %s172 = sphi 0, %s169
    %s173 = sphi 0, %s172
    %s189 = sphi 0, %s173
  $region4: #{_lambda_.17} parent=0 // loop_header_branch
    %16 = sbr.rel (%p14) target = $region8
  $region5: #{_lambda_.17} parent=0 // loop_body
    %s18 = ssub.s32 %s13, 1
    %s19 = ssub.s32 %s13, 2
    %s20 = sadd.s32 %s13, 1
    %s21 = ssub.s32 %s13, %s20
    %p22 = scmp.eq.s32.totalorder %s21, 0
    %s24 = sadd.s32 %s23, 1
    %s25 = scalar_select %p22, %s23, %s24
    %p28 = pneg %p22
    %p29 = scmp.eq.s32.totalorder %s13, 1
    %p30 = por %p28, %p29
    %p31 = scmp.ne.s32.totalorder %s23, %s26
    %p32 = scmp.eq.s32.totalorder %s13, 0
    %p33 = por %p31, %p32
    %p34 = scmp.ne.s32.totalorder %s23, %s26
    %p35 = scmp.eq.s32.totalorder %s18, 1
    %p36 = por %p34, %p35
    %p37 = scmp.ne.s32.totalorder %s26, %s27
    %p38 = scmp.eq.s32.totalorder %s18, 0
    %p39 = por %p37, %p38
    %p40 = scmp.ne.s32.totalorder %s26, %s27
    %p41 = scmp.eq.s32.totalorder %s19, 1
    %p42 = por %p40, %p41
    %p44 = scmp.ne.s32.totalorder %s27, %s43
    %p45 = scmp.eq.s32.totalorder %s19, 0
    %p46 = por %p44, %p45
    %s47 = ssub.s32 %s13, %s20
    %p48 = scmp.eq.s32.totalorder %s47, 0
    %s50 = sadd.s32 %s49, 1
    %s51 = scalar_select %p48, %s49, %s50
    %p54 = pneg %p48
    %p55 = scmp.eq.s32.totalorder %s13, 1
    %p56 = por %p54, %p55
    %p57 = scmp.ne.s32.totalorder %s49, %s52
    %p58 = scmp.eq.s32.totalorder %s13, 0
    %p59 = por %p57, %p58
    %p60 = scmp.ne.s32.totalorder %s49, %s52
    %p61 = scmp.eq.s32.totalorder %s18, 1
    %p62 = por %p60, %p61
    %p63 = scmp.ne.s32.totalorder %s52, %s53
    %p64 = scmp.eq.s32.totalorder %s18, 0
    %p65 = por %p63, %p64
    %p66 = scmp.ne.s32.totalorder %s52, %s53
    %p67 = scmp.eq.s32.totalorder %s19, 1
    %p68 = por %p66, %p67
    %p70 = scmp.ne.s32.totalorder %s53, %s69
    %p71 = scmp.eq.s32.totalorder %s19, 0
    %p72 = por %p70, %p71
    %s74 = sadd.s32 %s73, 1
    %p77 = scmp.eq.s32.totalorder %s13, 1
    %p78 = scmp.ne.s32.totalorder %s73, %s75
    %p79 = scmp.eq.s32.totalorder %s13, 0
    %p80 = por %p78, %p79
    %p81 = scmp.ne.s32.totalorder %s73, %s75
    %p82 = scmp.eq.s32.totalorder %s18, 1
    %p83 = por %p81, %p82
    %p84 = scmp.ne.s32.totalorder %s75, %s76
    %p85 = scmp.eq.s32.totalorder %s18, 0
    %p86 = por %p84, %p85
    %p87 = scmp.ne.s32.totalorder %s75, %s76
    %p88 = scmp.eq.s32.totalorder %s19, 1
    %p89 = por %p87, %p88
    %p91 = scmp.ne.s32.totalorder %s76, %s90
    %p92 = scmp.eq.s32.totalorder %s19, 0
    %p93 = por %p91, %p92
    %s95 = sadd.s32 %s94, 1
    %p98 = scmp.eq.s32.totalorder %s13, 1
    %p99 = scmp.ne.s32.totalorder %s94, %s96
    %p100 = scmp.eq.s32.totalorder %s13, 0
    %p101 = por %p99, %p100
    %p102 = scmp.ne.s32.totalorder %s94, %s96
    %p103 = scmp.eq.s32.totalorder %s18, 1
    %p104 = por %p102, %p103
    %p105 = scmp.ne.s32.totalorder %s96, %s97
    %p106 = scmp.eq.s32.totalorder %s18, 0
    %p107 = por %p105, %p106
    %p108 = scmp.ne.s32.totalorder %s96, %s97
    %p109 = scmp.eq.s32.totalorder %s19, 1
    %p110 = por %p108, %p109
    %p112 = scmp.ne.s32.totalorder %s97, %s111
    %p113 = scmp.eq.s32.totalorder %s19, 0
    %p114 = por %p112, %p113
    %s115 = ssub.s32 %s13, %s20
    %p116 = scmp.eq.s32.totalorder %s115, 0
    %s118 = sadd.s32 %s117, 1
    %s119 = scalar_select %p116, %s117, %s118
    %p122 = pneg %p116
    %p123 = scmp.eq.s32.totalorder %s13, 1
    %p124 = por %p122, %p123
    %p125 = scmp.ne.s32.totalorder %s117, %s120
    %p126 = scmp.eq.s32.totalorder %s13, 0
    %p127 = por %p125, %p126
    %p128 = scmp.ne.s32.totalorder %s117, %s120
    %p129 = scmp.eq.s32.totalorder %s18, 1
    %p130 = por %p128, %p129
    %p131 = scmp.ne.s32.totalorder %s120, %s121
    %p132 = scmp.eq.s32.totalorder %s18, 0
    %p133 = por %p131, %p132
    %p134 = scmp.ne.s32.totalorder %s120, %s121
    %p135 = scmp.eq.s32.totalorder %s19, 1
    %p136 = por %p134, %p135
    %p138 = scmp.ne.s32.totalorder %s121, %s137
    %p139 = scmp.eq.s32.totalorder %s19, 0
    %p140 = por %p138, %p139
    %s141 = ssub.s32 %s13, %s20
    %p142 = scmp.eq.s32.totalorder %s141, 0
    %s144 = sadd.s32 %s143, 1
    %s145 = scalar_select %p142, %s143, %s144
    %p148 = pneg %p142
    %p149 = scmp.eq.s32.totalorder %s13, 1
    %p150 = por %p148, %p149
    %p151 = scmp.ne.s32.totalorder %s143, %s146
    %p152 = scmp.eq.s32.totalorder %s13, 0
    %p153 = por %p151, %p152
    %p154 = scmp.ne.s32.totalorder %s143, %s146
    %p155 = scmp.eq.s32.totalorder %s18, 1
    %p156 = por %p154, %p155
    %p157 = scmp.ne.s32.totalorder %s146, %s147
    %p158 = scmp.eq.s32.totalorder %s18, 0
    %p159 = por %p157, %p158
    %p160 = scmp.ne.s32.totalorder %s146, %s147
    %p161 = scmp.eq.s32.totalorder %s19, 1
    %p162 = por %p160, %p161
    %p164 = scmp.ne.s32.totalorder %s147, %s163
    %p165 = scmp.eq.s32.totalorder %s19, 0
    %p166 = por %p164, %p165
    %s167 = ssub.s32 %s13, %s20
    %p168 = scmp.eq.s32.totalorder %s167, 0
    %s170 = sadd.s32 %s169, 1
    %s171 = scalar_select %p168, %s169, %s170
    %p174 = pneg %p168
    %p175 = scmp.eq.s32.totalorder %s13, 1
    %p176 = por %p174, %p175
    %p177 = scmp.ne.s32.totalorder %s169, %s172
    %p178 = scmp.eq.s32.totalorder %s13, 0
    %p179 = por %p177, %p178
    %p180 = scmp.ne.s32.totalorder %s169, %s172
    %p181 = scmp.eq.s32.totalorder %s18, 1
    %p182 = por %p180, %p181
    %p183 = scmp.ne.s32.totalorder %s172, %s173
    %p184 = scmp.eq.s32.totalorder %s18, 0
    %p185 = por %p183, %p184
    %p186 = scmp.ne.s32.totalorder %s172, %s173
    %p187 = scmp.eq.s32.totalorder %s19, 1
    %p188 = por %p186, %p187
    %p190 = scmp.ne.s32.totalorder %s173, %s189
    %p191 = scmp.eq.s32.totalorder %s19, 0
    %p192 = por %p190, %p191
    %p193 = scmp.le.s32.totalorder 1, %s13
    %p194 = scmp.lt.s32.totalorder %s13, 3
    %p195 = pnand %p193, %p194
    %p196 = pneg %p195
    // Predicated region
    $region9: #{_lambda_.17} parent=5 // pred_check
      _
    $region10: #{_lambda_.17} parent=5 // pred_check_branch
      %198 = sbr.rel (%p195) target = $region12
    $region11: #{_lambda_.17} parent=5 // pred_region
      %s199 = ssub.s32 %s13, 1
      // Predicated region
      $region13: #{_lambda_.17} parent=11 // pred_check
        %p200 = pneg %p86
      $region14: #{_lambda_.17} parent=11 // pred_check_branch
        %202 = sbr.rel (%p200) target = $region16
      $region15: #{_lambda_.17} parent=11 // pred_region
        _
      $region16: #{_lambda_.17} parent=11 // pred_fallthru
        _
      // Predicated region
      $region17: #{_lambda_.17} parent=11 // pred_check
        %p203 = pneg %p107
      $region18: #{_lambda_.17} parent=11 // pred_check_branch
        %205 = sbr.rel (%p203) target = $region20
      $region19: #{_lambda_.17} parent=11 // pred_region
        _
      $region20: #{_lambda_.17} parent=11 // pred_fallthru
        _
    $region12: #{_lambda_.17} parent=5 // pred_fallthru
      _
    %p206 = scmp.lt.s32.totalorder %s13, 2
    // Predicated region
    $region21: #{_lambda_.17} parent=5 // pred_check
      %p207 = pneg %p206
    $region22: #{_lambda_.17} parent=5 // pred_check_branch
      %209 = sbr.rel (%p207) target = $region24
    $region23: #{_lambda_.17} parent=5 // pred_region
      // Predicated region
      $region25: #{_lambda_.17} parent=23 // pred_check
        %p210 = pneg %p33
      $region26: #{_lambda_.17} parent=23 // pred_check_branch
        %212 = sbr.rel (%p210) target = $region28
      $region27: #{_lambda_.17} parent=23 // pred_region
        %p213 = scmp.lt.s32.totalorder %s13, 1
        %s214 = scalar_select %p213, %s13, 1
        %s215 = smul.addr %s214, 4
        %s216 = scalar_lea.vmem %s0, %s215
      $region28: #{_lambda_.17} parent=23 // pred_fallthru
        _
      // Predicated region
      $region29: #{_lambda_.17} parent=23 // pred_check
        %p217 = pneg %p59
      $region30: #{_lambda_.17} parent=23 // pred_check_branch
        %219 = sbr.rel (%p217) target = $region32
      $region31: #{_lambda_.17} parent=23 // pred_region
        %p220 = scmp.lt.s32.totalorder %s13, 1
        %s221 = scalar_select %p220, %s13, 1
        %s222 = smul.addr %s221, 8
        %s223 = smul.addr %s222, 8
        %s224 = scalar_lea.vmem %s1, %s223
      $region32: #{_lambda_.17} parent=23 // pred_fallthru
        _
      // Predicated region
      $region33: #{_lambda_.17} parent=23 // pred_check
        %p225 = pneg %p127
      $region34: #{_lambda_.17} parent=23 // pred_check_branch
        %227 = sbr.rel (%p225) target = $region36
      $region35: #{_lambda_.17} parent=23 // pred_region
        %p228 = scmp.lt.s32.totalorder %s13, 1
        %s229 = scalar_select %p228, %s13, 1
        %s230 = smul.addr %s229, 4
        %s231 = scalar_lea.vmem %s4, %s230
      $region36: #{_lambda_.17} parent=23 // pred_fallthru
        _
    $region24: #{_lambda_.17} parent=5 // pred_fallthru
      _
    %p232 = scmp.le.s32.totalorder 1, %s13
    %p233 = scmp.lt.s32.totalorder %s13, 3
    %p234 = pnand %p232, %p233
    %p235 = pneg %p234
    // Predicated region
    $region37: #{_lambda_.17} parent=5 // pred_check
      _
    $region38: #{_lambda_.17} parent=5 // pred_check_branch
      %237 = sbr.rel (%p234) target = $region40
    $region39: #{_lambda_.17} parent=5 // pred_region
      %s238 = ssub.s32 %s13, 1
      %p239 = scmp.lt.s32.totalorder %s18, 1
      %s240 = scalar_select %p239, %s18, 1
      %s241 = smul.addr %s240, 4
      %s242 = scalar_lea.vmem %s0, %s241
      %p243 = pneg %p39
      %p244 = pneg %p36
      %p245 = scmp.lt.s32.totalorder %s18, 1
      %s246 = scalar_select %p245, %s18, 1
      %s247 = smul.addr %s246, 8
      %s248 = smul.addr %s247, 8
      %s249 = scalar_lea.vmem %s1, %s248
      %p250 = pneg %p65
      %p251 = pneg %p62
      %p252 = pneg %p86
      %p253 = pneg %p83
      %p254 = pneg %p107
      %p255 = pneg %p104
      %p256 = scmp.lt.s32.totalorder %s18, 1
      %s257 = scalar_select %p256, %s18, 1
      %s258 = smul.addr %s257, 4
      %s259 = scalar_lea.vmem %s4, %s258
      %p260 = pneg %p133
      %p261 = pneg %p130
      %p262 = pneg %p159
      %p263 = pneg %p156
      %p264 = scmp.lt.s32.totalorder %s18, 1
      %s265 = scalar_select %p264, %s18, 1
      %s266 = smul.addr %s265, 4
      %s267 = scalar_lea.vmem %s5, %s266
      %p268 = pneg %p185
      %p269 = pneg %p182
      %p270 = scmp.lt.s32.totalorder %s18, 1
      %s271 = scalar_select %p270, %s18, 1
      %s272 = smul.addr %s271, 4
      %s273 = scalar_lea.vmem %s6, %s272
      %p274 = scmp.lt.s32.totalorder %s18, 1
      %s275 = scalar_select %p274, %s18, 1
      %s276 = smul.addr %s275, 4
      %s277 = scalar_lea.vmem %s0, %s276
      %p278 = scmp.lt.s32.totalorder %s18, 1
      %s279 = scalar_select %p278, %s18, 1
      %s280 = smul.addr %s279, 8
      %s281 = smul.addr %s280, 8
      %s282 = scalar_lea.vmem %s1, %s281
      %p283 = scmp.lt.s32.totalorder %s18, 1
      %s284 = scalar_select %p283, %s18, 1
      %s285 = smul.addr %s284, 4
      %s286 = scalar_lea.vmem %s4, %s285
      %p287 = scmp.lt.s32.totalorder %s18, 1
      %s288 = scalar_select %p287, %s18, 1
      %s289 = smul.addr %s288, 4
      %s290 = scalar_lea.vmem %s5, %s289
      %p291 = scmp.lt.s32.totalorder %s18, 1
      %s292 = scalar_select %p291, %s18, 1
      %s293 = smul.addr %s292, 4
      %s294 = scalar_lea.vmem %s6, %s293
      %v295 = vld [vmem:[%s277] sm:$0xf]
      %vm296 = vcmask 519168
      %297 = vst.msk [vmem:[#allocation2] sm:$0xf] %vm296, %v295
      %299 = vrot.lane.b32.xlu0 %v295, 124
      %v300 = vpop.permute.xlu0 %299
      %302 = vst.msk [vmem:[#allocation2 + $0x4] sm:$0xf] %vm296, %v300
      %303 = vrot.lane.b32.xlu0 %v295, 120
      %v304 = vpop.permute.xlu0 %303
      %306 = vst.msk [vmem:[#allocation2 + $0x8] sm:$0xf] %vm296, %v304
      %v307 = vld [vmem:[#allocation2] sm:$0xff]
      %v308 = vld [vmem:[#allocation2 + $0x8] sm:$0xf]
      %v309 = vld [vmem:[%s282] sm:$0xff]
      %vm310 = vcmask 97280
      %v312 = vsel %vm310, %v309, 0
      %vm314 = vcmask 1043456
      %v316 = vsel %vm314, %v308, 0
      %318 = vmatprep.subr.mxu0 0.0
      %319 = vmatpush1.msra.mxu0 %v307
      %320 = vmatprep.subr.mxu0 0.0
      %321 = vmatpush1.msra.mxu0 %v316
      %322 = vmatprep.subr.mxu0 0.0
      %323 = vmatpush1.msra.mxu0 0.0
      %324 = vmatprep.subr.mxu0 0.0
      %325 = vmatpush1.msra.mxu0 0.0
      %326 = vmatprep.subr.mxu0 0.0
      %327 = vmatpush1.msra.mxu0 0.0
      %328 = vmatprep.subr.mxu0 0.0
      %329 = vmatpush1.msra.mxu0 0.0
      %330 = vmatprep.subr.mxu0 0.0
      %331 = vmatpush1.msra.mxu0 0.0
      %332 = vmatprep.subr.mxu0 0.0
      %333 = vmatpush1.msra.mxu0 0.0
      %334 = vmatprep.subr.mxu0 0.0
      %335 = vmatpush1.msra.mxu0 0.0
      %336 = vmatprep.subr.mxu0 0.0
      %337 = vmatpush1.msra.mxu0 0.0
      %338 = vmatprep.subr.mxu0 0.0
      %339 = vmatpush1.msra.mxu0 0.0
      %340 = vmatprep.subr.mxu0 0.0
      %341 = vmatpush1.msra.mxu0 0.0
      %342 = vmatprep.subr.mxu0 0.0
      %343 = vmatpush1.msra.mxu0 0.0
      %344 = vmatprep.subr.mxu0 0.0
      %345 = vmatpush1.msra.mxu0 0.0
      %346 = vmatprep.subr.mxu0 0.0
      %347 = vmatpush1.msra.mxu0 0.0
      %348 = vmatprep.subr.mxu0 0.0
      %349 = vmatpush1.msra.mxu0 0.0
      %350 = vmatprep.subr.mxu0 0.0
      %351 = vmatpush1.msra.mxu0 0.0
      %352 = vmatprep.subr.mxu0 0.0
      %353 = vmatpush1.msra.mxu0 0.0
      %354 = vmatprep.subr.mxu0 0.0
      %355 = vmatpush1.msra.mxu0 0.0
      %356 = vmatprep.subr.mxu0 0.0
      %357 = vmatpush1.msra.mxu0 0.0
      %358 = vmatprep.subr.mxu0 0.0
      %359 = vmatpush1.msra.mxu0 0.0
      %360 = vmatprep.subr.mxu0 0.0
      %361 = vmatpush1.msra.mxu0 0.0
      %362 = vmatprep.subr.mxu0 0.0
      %363 = vmatpush1.msra.mxu0 0.0
      %364 = vmatprep.subr.mxu0 0.0
      %365 = vmatpush1.msra.mxu0 0.0
      %366 = vmatprep.subr.mxu0 0.0
      %367 = vmatpush1.msra.mxu0 0.0
      %368 = vmatprep.subr.mxu0 0.0
      %369 = vmatpush1.msra.mxu0 0.0
      %370 = vmatprep.subr.mxu0 0.0
      %371 = vmatpush1.msra.mxu0 0.0
      %372 = vmatprep.subr.mxu0 0.0
      %373 = vmatpush1.msra.mxu0 0.0
      %374 = vmatprep.subr.mxu0 0.0
      %375 = vmatpush1.msra.mxu0 0.0
      %376 = vmatprep.subr.mxu0 0.0
      %377 = vmatpush1.msra.mxu0 0.0
      %378 = vmatprep.subr.mxu0 0.0
      %379 = vmatpush1.msra.mxu0 0.0
      %380 = vmatprep.subr.mxu0 0.0
      %381 = vmatpush1.msra.mxu0 0.0
      %382 = vmatprep.mubr.f32.mxu0 0.0
      %383 = vmatmul.mubr.f32.gmra.mrb[0].mxu0 %v312
      %v384 = vpop.f32.mrb[0].mxu0
      %v385 = vadd.f32 0.0, %v384
      %v386 = vpop.f32.mrb[0].mxu0
      %387 = vdwg.mxu0
      %v388 = vtanh.pop %v385
      %v389 = vxor.u32 %v385, 2147483648
      %v390 = vmul.f32 %v389, 1.442695
      %v391 = vpow.pop %v390
      %v392 = vadd.f32 %v391, 1.0
      %v393 = vrcp.pop %v392
      %v394 = vmul.f32 1.0, %v393
      %v396 = vrot.slane %v394, 4
      %v398 = vmul.f32 %v388, %v396
      %vm399 = vcmask 60416
      %400 = vst.msk [vmem:[#allocation3] sm:$0xf] %vm399, %v398
      %s401 = scalar_lea.vmem %s282, 8
      %v402 = vld [vmem:[%s401] sm:$0xff]
      %404 = vrot.lane.b32.xlu0 %v307, 120
      %v405 = vpop.permute.xlu0 %404
      %406 = vrot.lane.b32.xlu0 %v308, 120
      %v407 = vpop.permute.xlu0 %406
      %v410 = vsel %vm310, %v402, 0
      %v412 = vsel %vm314, %v407, 0
      %414 = vmatprep.subr.mxu0 0.0
      %415 = vmatpush1.msra.mxu0 %v405
      %416 = vmatprep.subr.mxu0 0.0
      %417 = vmatpush1.msra.mxu0 %v412
      %418 = vmatprep.subr.mxu0 0.0
      %419 = vmatpush1.msra.mxu0 0.0
      %420 = vmatprep.subr.mxu0 0.0
      %421 = vmatpush1.msra.mxu0 0.0
      %422 = vmatprep.subr.mxu0 0.0
      %423 = vmatpush1.msra.mxu0 0.0
      %424 = vmatprep.subr.mxu0 0.0
      %425 = vmatpush1.msra.mxu0 0.0
      %426 = vmatprep.subr.mxu0 0.0
      %427 = vmatpush1.msra.mxu0 0.0
      %428 = vmatprep.subr.mxu0 0.0
      %429 = vmatpush1.msra.mxu0 0.0
      %430 = vmatprep.subr.mxu0 0.0
      %431 = vmatpush1.msra.mxu0 0.0
      %432 = vmatprep.subr.mxu0 0.0
      %433 = vmatpush1.msra.mxu0 0.0
      %434 = vmatprep.subr.mxu0 0.0
      %435 = vmatpush1.msra.mxu0 0.0
      %436 = vmatprep.subr.mxu0 0.0
      %437 = vmatpush1.msra.mxu0 0.0
      %438 = vmatprep.subr.mxu0 0.0
      %439 = vmatpush1.msra.mxu0 0.0
      %440 = vmatprep.subr.mxu0 0.0
      %441 = vmatpush1.msra.mxu0 0.0
      %442 = vmatprep.subr.mxu0 0.0
      %443 = vmatpush1.msra.mxu0 0.0
      %444 = vmatprep.subr.mxu0 0.0
      %445 = vmatpush1.msra.mxu0 0.0
      %446 = vmatprep.subr.mxu0 0.0
      %447 = vmatpush1.msra.mxu0 0.0
      %448 = vmatprep.subr.mxu0 0.0
      %449 = vmatpush1.msra.mxu0 0.0
      %450 = vmatprep.subr.mxu0 0.0
      %451 = vmatpush1.msra.mxu0 0.0
      %452 = vmatprep.subr.mxu0 0.0
      %453 = vmatpush1.msra.mxu0 0.0
      %454 = vmatprep.subr.mxu0 0.0
      %455 = vmatpush1.msra.mxu0 0.0
      %456 = vmatprep.subr.mxu0 0.0
      %457 = vmatpush1.msra.mxu0 0.0
      %458 = vmatprep.subr.mxu0 0.0
      %459 = vmatpush1.msra.mxu0 0.0
      %460 = vmatprep.subr.mxu0 0.0
      %461 = vmatpush1.msra.mxu0 0.0
      %462 = vmatprep.subr.mxu0 0.0
      %463 = vmatpush1.msra.mxu0 0.0
      %464 = vmatprep.subr.mxu0 0.0
      %465 = vmatpush1.msra.mxu0 0.0
      %466 = vmatprep.subr.mxu0 0.0
      %467 = vmatpush1.msra.mxu0 0.0
      %468 = vmatprep.subr.mxu0 0.0
      %469 = vmatpush1.msra.mxu0 0.0
      %470 = vmatprep.subr.mxu0 0.0
      %471 = vmatpush1.msra.mxu0 0.0
      %472 = vmatprep.subr.mxu0 0.0
      %473 = vmatpush1.msra.mxu0 0.0
      %474 = vmatprep.subr.mxu0 0.0
      %475 = vmatpush1.msra.mxu0 0.0
      %476 = vmatprep.subr.mxu0 0.0
      %477 = vmatpush1.msra.mxu0 0.0
      %478 = vmatprep.mubr.f32.mxu0 0.0
      %479 = vmatmul.mubr.f32.gmra.mrb[0].mxu0 %v410
      %v480 = vpop.f32.mrb[0].mxu0
      %v481 = vadd.f32 0.0, %v480
      %v482 = vpop.f32.mrb[0].mxu0
      %483 = vdwg.mxu0
      %v484 = vtanh.pop %v481
      %v485 = vxor.u32 %v481, 2147483648
      %v486 = vmul.f32 %v485, 1.442695
      %v487 = vpow.pop %v486
      %v488 = vadd.f32 %v487, 1.0
      %v489 = vrcp.pop %v488
      %v490 = vmul.f32 1.0, %v489
      %v492 = vrot.slane %v490, 4
      %v494 = vmul.f32 %v484, %v492
      %496 = vrot.lane.b32.xlu0 %v494, 8
      %v497 = vpop.permute.xlu0 %496
      %vm499 = vcmask 126016
      %500 = vst.msk [vmem:[#allocation3] sm:$0xf] %vm499, %v497
      %s501 = scalar_lea.vmem %s282, 16
      %v502 = vld [vmem:[%s501] sm:$0xff]
      %503 = vrot.lane.b32.xlu0 %v307, 112
      %v504 = vpop.permute.xlu0 %503
      %505 = vrot.lane.b32.xlu0 %v308, 112
      %v506 = vpop.permute.xlu0 %505
      %v509 = vsel %vm310, %v502, 0
      %v511 = vsel %vm314, %v506, 0
      %513 = vmatprep.subr.mxu0 0.0
      %514 = vmatpush1.msra.mxu0 %v504
      %515 = vmatprep.subr.mxu0 0.0
      %516 = vmatpush1.msra.mxu0 %v511
      %517 = vmatprep.subr.mxu0 0.0
      %518 = vmatpush1.msra.mxu0 0.0
      %519 = vmatprep.subr.mxu0 0.0
      %520 = vmatpush1.msra.mxu0 0.0
      %521 = vmatprep.subr.mxu0 0.0
      %522 = vmatpush1.msra.mxu0 0.0
      %523 = vmatprep.subr.mxu0 0.0
      %524 = vmatpush1.msra.mxu0 0.0
      %525 = vmatprep.subr.mxu0 0.0
      %526 = vmatpush1.msra.mxu0 0.0
      %527 = vmatprep.subr.mxu0 0.0
      %528 = vmatpush1.msra.mxu0 0.0
      %529 = vmatprep.subr.mxu0 0.0
      %530 = vmatpush1.msra.mxu0 0.0
      %531 = vmatprep.subr.mxu0 0.0
      %532 = vmatpush1.msra.mxu0 0.0
      %533 = vmatprep.subr.mxu0 0.0
      %534 = vmatpush1.msra.mxu0 0.0
      %535 = vmatprep.subr.mxu0 0.0
      %536 = vmatpush1.msra.mxu0 0.0
      %537 = vmatprep.subr.mxu0 0.0
      %538 = vmatpush1.msra.mxu0 0.0
      %539 = vmatprep.subr.mxu0 0.0
      %540 = vmatpush1.msra.mxu0 0.0
      %541 = vmatprep.subr.mxu0 0.0
      %542 = vmatpush1.msra.mxu0 0.0
      %543 = vmatprep.subr.mxu0 0.0
      %544 = vmatpush1.msra.mxu0 0.0
      %545 = vmatprep.subr.mxu0 0.0
      %546 = vmatpush1.msra.mxu0 0.0
      %547 = vmatprep.subr.mxu0 0.0
      %548 = vmatpush1.msra.mxu0 0.0
      %549 = vmatprep.subr.mxu0 0.0
      %550 = vmatpush1.msra.mxu0 0.0
      %551 = vmatprep.subr.mxu0 0.0
      %552 = vmatpush1.msra.mxu0 0.0
      %553 = vmatprep.subr.mxu0 0.0
      %554 = vmatpush1.msra.mxu0 0.0
      %555 = vmatprep.subr.mxu0 0.0
      %556 = vmatpush1.msra.mxu0 0.0
      %557 = vmatprep.subr.mxu0 0.0
      %558 = vmatpush1.msra.mxu0 0.0
      %559 = vmatprep.subr.mxu0 0.0
      %560 = vmatpush1.msra.mxu0 0.0
      %561 = vmatprep.subr.mxu0 0.0
      %562 = vmatpush1.msra.mxu0 0.0
      %563 = vmatprep.subr.mxu0 0.0
      %564 = vmatpush1.msra.mxu0 0.0
      %565 = vmatprep.subr.mxu0 0.0
      %566 = vmatpush1.msra.mxu0 0.0
      %567 = vmatprep.subr.mxu0 0.0
      %568 = vmatpush1.msra.mxu0 0.0
      %569 = vmatprep.subr.mxu0 0.0
      %570 = vmatpush1.msra.mxu0 0.0
      %571 = vmatprep.subr.mxu0 0.0
      %572 = vmatpush1.msra.mxu0 0.0
      %573 = vmatprep.subr.mxu0 0.0
      %574 = vmatpush1.msra.mxu0 0.0
      %575 = vmatprep.subr.mxu0 0.0
      %576 = vmatpush1.msra.mxu0 0.0
      %577 = vmatprep.mubr.f32.mxu0 0.0
      %578 = vmatmul.mubr.f32.gmra.mrb[0].mxu0 %v509
      %v579 = vpop.f32.mrb[0].mxu0
      %v580 = vadd.f32 0.0, %v579
      %v581 = vpop.f32.mrb[0].mxu0
      %582 = vdwg.mxu0
      %v583 = vtanh.pop %v580
      %v584 = vxor.u32 %v580, 2147483648
      %v585 = vmul.f32 %v584, 1.442695
      %v586 = vpow.pop %v585
      %v587 = vadd.f32 %v586, 1.0
      %v588 = vrcp.pop %v587
      %v589 = vmul.f32 1.0, %v588
      %v591 = vrot.slane %v589, 4
      %v593 = vmul.f32 %v583, %v591
      %595 = vrot.lane.b32.xlu0 %v593, 16
      %v596 = vpop.permute.xlu0 %595
      %vm598 = vcmask 191616
      %599 = vst.msk [vmem:[#allocation3] sm:$0xf] %vm598, %v596
      %s600 = scalar_lea.vmem %s282, 24
      %v601 = vld [vmem:[%s600] sm:$0xff]
      %602 = vrot.lane.b32.xlu0 %v307, 104
      %v603 = vpop.permute.xlu0 %602
      %604 = vrot.lane.b32.xlu0 %v308, 104
      %v605 = vpop.permute.xlu0 %604
      %v608 = vsel %vm310, %v601, 0
      %v610 = vsel %vm314, %v605, 0
      %612 = vmatprep.subr.mxu0 0.0
      %613 = vmatpush1.msra.mxu0 %v603
      %614 = vmatprep.subr.mxu0 0.0
      %615 = vmatpush1.msra.mxu0 %v610
      %616 = vmatprep.subr.mxu0 0.0
      %617 = vmatpush1.msra.mxu0 0.0
      %618 = vmatprep.subr.mxu0 0.0
      %619 = vmatpush1.msra.mxu0 0.0
      %620 = vmatprep.subr.mxu0 0.0
      %621 = vmatpush1.msra.mxu0 0.0
      %622 = vmatprep.subr.mxu0 0.0
      %623 = vmatpush1.msra.mxu0 0.0
      %624 = vmatprep.subr.mxu0 0.0
      %625 = vmatpush1.msra.mxu0 0.0
      %626 = vmatprep.subr.mxu0 0.0
      %627 = vmatpush1.msra.mxu0 0.0
      %628 = vmatprep.subr.mxu0 0.0
      %629 = vmatpush1.msra.mxu0 0.0
      %630 = vmatprep.subr.mxu0 0.0
      %631 = vmatpush1.msra.mxu0 0.0
      %632 = vmatprep.subr.mxu0 0.0
      %633 = vmatpush1.msra.mxu0 0.0
      %634 = vmatprep.subr.mxu0 0.0
      %635 = vmatpush1.msra.mxu0 0.0
      %636 = vmatprep.subr.mxu0 0.0
      %637 = vmatpush1.msra.mxu0 0.0
      %638 = vmatprep.subr.mxu0 0.0
      %639 = vmatpush1.msra.mxu0 0.0
      %640 = vmatprep.subr.mxu0 0.0
      %641 = vmatpush1.msra.mxu0 0.0
      %642 = vmatprep.subr.mxu0 0.0
      %643 = vmatpush1.msra.mxu0 0.0
      %644 = vmatprep.subr.mxu0 0.0
      %645 = vmatpush1.msra.mxu0 0.0
      %646 = vmatprep.subr.mxu0 0.0
      %647 = vmatpush1.msra.mxu0 0.0
      %648 = vmatprep.subr.mxu0 0.0
      %649 = vmatpush1.msra.mxu0 0.0
      %650 = vmatprep.subr.mxu0 0.0
      %651 = vmatpush1.msra.mxu0 0.0
      %652 = vmatprep.subr.mxu0 0.0
      %653 = vmatpush1.msra.mxu0 0.0
      %654 = vmatprep.subr.mxu0 0.0
      %655 = vmatpush1.msra.mxu0 0.0
      %656 = vmatprep.subr.mxu0 0.0
      %657 = vmatpush1.msra.mxu0 0.0
      %658 = vmatprep.subr.mxu0 0.0
      %659 = vmatpush1.msra.mxu0 0.0
      %660 = vmatprep.subr.mxu0 0.0
      %661 = vmatpush1.msra.mxu0 0.0
      %662 = vmatprep.subr.mxu0 0.0
      %663 = vmatpush1.msra.mxu0 0.0
      %664 = vmatprep.subr.mxu0 0.0
      %665 = vmatpush1.msra.mxu0 0.0
      %666 = vmatprep.subr.mxu0 0.0
      %667 = vmatpush1.msra.mxu0 0.0
      %668 = vmatprep.subr.mxu0 0.0
      %669 = vmatpush1.msra.mxu0 0.0
      %670 = vmatprep.subr.mxu0 0.0
      %671 = vmatpush1.msra.mxu0 0.0
      %672 = vmatprep.subr.mxu0 0.0
      %673 = vmatpush1.msra.mxu0 0.0
      %674 = vmatprep.subr.mxu0 0.0
      %675 = vmatpush1.msra.mxu0 0.0
      %676 = vmatprep.mubr.f32.mxu0 0.0
      %677 = vmatmul.mubr.f32.gmra.mrb[0].mxu0 %v608
      %v678 = vpop.f32.mrb[0].mxu0
      %v679 = vadd.f32 0.0, %v678
      %v680 = vpop.f32.mrb[0].mxu0
      %681 = vdwg.mxu0
      %v682 = vtanh.pop %v679
      %v683 = vxor.u32 %v679, 2147483648
      %v684 = vmul.f32 %v683, 1.442695
      %v685 = vpow.pop %v684
      %v686 = vadd.f32 %v685, 1.0
      %v687 = vrcp.pop %v686
      %v688 = vmul.f32 1.0, %v687
      %v690 = vrot.slane %v688, 4
      %v692 = vmul.f32 %v682, %v690
      %694 = vrot.lane.b32.xlu0 %v692, 24
      %v695 = vpop.permute.xlu0 %694
      %vm697 = vcmask 257216
      %698 = vst.msk [vmem:[#allocation3] sm:$0xf] %vm697, %v695
      %s699 = scalar_lea.vmem %s282, 32
      %v700 = vld [vmem:[%s699] sm:$0xff]
      %701 = vrot.lane.b32.xlu0 %v307, 96
      %v702 = vpop.permute.xlu0 %701
      %703 = vrot.lane.b32.xlu0 %v308, 96
      %v704 = vpop.permute.xlu0 %703
      %v707 = vsel %vm310, %v700, 0
      %v709 = vsel %vm314, %v704, 0
      %711 = vmatprep.subr.mxu0 0.0
      %712 = vmatpush1.msra.mxu0 %v702
      %713 = vmatprep.subr.mxu0 0.0
      %714 = vmatpush1.msra.mxu0 %v709
      %715 = vmatprep.subr.mxu0 0.0
      %716 = vmatpush1.msra.mxu0 0.0
      %717 = vmatprep.subr.mxu0 0.0
      %718 = vmatpush1.msra.mxu0 0.0
      %719 = vmatprep.subr.mxu0 0.0
      %720 = vmatpush1.msra.mxu0 0.0
      %721 = vmatprep.subr.mxu0 0.0
      %722 = vmatpush1.msra.mxu0 0.0
      %723 = vmatprep.subr.mxu0 0.0
      %724 = vmatpush1.msra.mxu0 0.0
      %725 = vmatprep.subr.mxu0 0.0
      %726 = vmatpush1.msra.mxu0 0.0
      %727 = vmatprep.subr.mxu0 0.0
      %728 = vmatpush1.msra.mxu0 0.0
      %729 = vmatprep.subr.mxu0 0.0
      %730 = vmatpush1.msra.mxu0 0.0
      %731 = vmatprep.subr.mxu0 0.0
      %732 = vmatpush1.msra.mxu0 0.0
      %733 = vmatprep.subr.mxu0 0.0
      %734 = vmatpush1.msra.mxu0 0.0
      %735 = vmatprep.subr.mxu0 0.0
      %736 = vmatpush1.msra.mxu0 0.0
      %737 = vmatprep.subr.mxu0 0.0
      %738 = vmatpush1.msra.mxu0 0.0
      %739 = vmatprep.subr.mxu0 0.0
      %740 = vmatpush1.msra.mxu0 0.0
      %741 = vmatprep.subr.mxu0 0.0
      %742 = vmatpush1.msra.mxu0 0.0
      %743 = vmatprep.subr.mxu0 0.0
      %744 = vmatpush1.msra.mxu0 0.0
      %745 = vmatprep.subr.mxu0 0.0
      %746 = vmatpush1.msra.mxu0 0.0
      %747 = vmatprep.subr.mxu0 0.0
      %748 = vmatpush1.msra.mxu0 0.0
      %749 = vmatprep.subr.mxu0 0.0
      %750 = vmatpush1.msra.mxu0 0.0
      %751 = vmatprep.subr.mxu0 0.0
      %752 = vmatpush1.msra.mxu0 0.0
      %753 = vmatprep.subr.mxu0 0.0
      %754 = vmatpush1.msra.mxu0 0.0
      %755 = vmatprep.subr.mxu0 0.0
      %756 = vmatpush1.msra.mxu0 0.0
      %757 = vmatprep.subr.mxu0 0.0
      %758 = vmatpush1.msra.mxu0 0.0
      %759 = vmatprep.subr.mxu0 0.0
      %760 = vmatpush1.msra.mxu0 0.0
      %761 = vmatprep.subr.mxu0 0.0
      %762 = vmatpush1.msra.mxu0 0.0
      %763 = vmatprep.subr.mxu0 0.0
      %764 = vmatpush1.msra.mxu0 0.0
      %765 = vmatprep.subr.mxu0 0.0
      %766 = vmatpush1.msra.mxu0 0.0
      %767 = vmatprep.subr.mxu0 0.0
      %768 = vmatpush1.msra.mxu0 0.0
      %769 = vmatprep.subr.mxu0 0.0
      %770 = vmatpush1.msra.mxu0 0.0
      %771 = vmatprep.subr.mxu0 0.0
      %772 = vmatpush1.msra.mxu0 0.0
      %773 = vmatprep.subr.mxu0 0.0
      %774 = vmatpush1.msra.mxu0 0.0
      %775 = vmatprep.mubr.f32.mxu0 0.0
      %776 = vmatmul.mubr.f32.gmra.mrb[0].mxu0 %v707
      %v777 = vpop.f32.mrb[0].mxu0
      %v778 = vadd.f32 0.0, %v777
      %v779 = vpop.f32.mrb[0].mxu0
      %780 = vdwg.mxu0
      %v781 = vtanh.pop %v778
      %v782 = vxor.u32 %v778, 2147483648
      %v783 = vmul.f32 %v782, 1.442695
      %v784 = vpow.pop %v783
      %v785 = vadd.f32 %v784, 1.0
      %v786 = vrcp.pop %v785
      %v787 = vmul.f32 1.0, %v786
      %v789 = vrot.slane %v787, 4
      %v791 = vmul.f32 %v781, %v789
      %793 = vrot.lane.b32.xlu0 %v791, 32
      %v794 = vpop.permute.xlu0 %793
      %vm796 = vcmask 322816
      %797 = vst.msk [vmem:[#allocation3] sm:$0xf] %vm796, %v794
      %s798 = scalar_lea.vmem %s282, 40
      %v799 = vld [vmem:[%s798] sm:$0xff]
      %800 = vrot.lane.b32.xlu0 %v307, 88
      %v801 = vpop.permute.xlu0 %800
      %802 = vrot.lane.b32.xlu0 %v308, 88
      %v803 = vpop.permute.xlu0 %802
      %v806 = vsel %vm310, %v799, 0
      %v808 = vsel %vm314, %v803, 0
      %810 = vmatprep.subr.mxu0 0.0
      %811 = vmatpush1.msra.mxu0 %v801
      %812 = vmatprep.subr.mxu0 0.0
      %813 = vmatpush1.msra.mxu0 %v808
      %814 = vmatprep.subr.mxu0 0.0
      %815 = vmatpush1.msra.mxu0 0.0
      %816 = vmatprep.subr.mxu0 0.0
      %817 = vmatpush1.msra.mxu0 0.0
      %818 = vmatprep.subr.mxu0 0.0
      %819 = vmatpush1.msra.mxu0 0.0
      %820 = vmatprep.subr.mxu0 0.0
      %821 = vmatpush1.msra.mxu0 0.0
      %822 = vmatprep.subr.mxu0 0.0
      %823 = vmatpush1.msra.mxu0 0.0
      %824 = vmatprep.subr.mxu0 0.0
      %825 = vmatpush1.msra.mxu0 0.0
      %826 = vmatprep.subr.mxu0 0.0
      %827 = vmatpush1.msra.mxu0 0.0
      %828 = vmatprep.subr.mxu0 0.0
      %829 = vmatpush1.msra.mxu0 0.0
      %830 = vmatprep.subr.mxu0 0.0
      %831 = vmatpush1.msra.mxu0 0.0
      %832 = vmatprep.subr.mxu0 0.0
      %833 = vmatpush1.msra.mxu0 0.0
      %834 = vmatprep.subr.mxu0 0.0
      %835 = vmatpush1.msra.mxu0 0.0
      %836 = vmatprep.subr.mxu0 0.0
      %837 = vmatpush1.msra.mxu0 0.0
      %838 = vmatprep.subr.mxu0 0.0
      %839 = vmatpush1.msra.mxu0 0.0
      %840 = vmatprep.subr.mxu0 0.0
      %841 = vmatpush1.msra.mxu0 0.0
      %842 = vmatprep.subr.mxu0 0.0
      %843 = vmatpush1.msra.mxu0 0.0
      %844 = vmatprep.subr.mxu0 0.0
      %845 = vmatpush1.msra.mxu0 0.0
      %846 = vmatprep.subr.mxu0 0.0
      %847 = vmatpush1.msra.mxu0 0.0
      %848 = vmatprep.subr.mxu0 0.0
      %849 = vmatpush1.msra.mxu0 0.0
      %850 = vmatprep.subr.mxu0 0.0
      %851 = vmatpush1.msra.mxu0 0.0
      %852 = vmatprep.subr.mxu0 0.0
      %853 = vmatpush1.msra.mxu0 0.0
      %854 = vmatprep.subr.mxu0 0.0
      %855 = vmatpush1.msra.mxu0 0.0
      %856 = vmatprep.subr.mxu0 0.0
      %857 = vmatpush1.msra.mxu0 0.0
      %858 = vmatprep.subr.mxu0 0.0
      %859 = vmatpush1.msra.mxu0 0.0
      %860 = vmatprep.subr.mxu0 0.0
      %861 = vmatpush1.msra.mxu0 0.0
      %862 = vmatprep.subr.mxu0 0.0
      %863 = vmatpush1.msra.mxu0 0.0
      %864 = vmatprep.subr.mxu0 0.0
      %865 = vmatpush1.msra.mxu0 0.0
      %866 = vmatprep.subr.mxu0 0.0
      %867 = vmatpush1.msra.mxu0 0.0
      %868 = vmatprep.subr.mxu0 0.0
      %869 = vmatpush1.msra.mxu0 0.0
      %870 = vmatprep.subr.mxu0 0.0
      %871 = vmatpush1.msra.mxu0 0.0
      %872 = vmatprep.subr.mxu0 0.0
      %873 = vmatpush1.msra.mxu0 0.0
      %874 = vmatprep.mubr.f32.mxu0 0.0
      %875 = vmatmul.mubr.f32.gmra.mrb[0].mxu0 %v806
      %v876 = vpop.f32.mrb[0].mxu0
      %v877 = vadd.f32 0.0, %v876
      %v878 = vpop.f32.mrb[0].mxu0
      %879 = vdwg.mxu0
      %v880 = vtanh.pop %v877
      %v881 = vxor.u32 %v877, 2147483648
      %v882 = vmul.f32 %v881, 1.442695
      %v883 = vpow.pop %v882
      %v884 = vadd.f32 %v883, 1.0
      %v885 = vrcp.pop %v884
      %v886 = vmul.f32 1.0, %v885
      %v888 = vrot.slane %v886, 4
      %v890 = vmul.f32 %v880, %v888
      %892 = vrot.lane.b32.xlu0 %v890, 40
      %v893 = vpop.permute.xlu0 %892
      %vm895 = vcmask 388416
      %896 = vst.msk [vmem:[#allocation3] sm:$0xf] %vm895, %v893
      %s897 = scalar_lea.vmem %s282, 48
      %v898 = vld [vmem:[%s897] sm:$0xff]
      %899 = vrot.lane.b32.xlu0 %v307, 80
      %v900 = vpop.permute.xlu0 %899
      %901 = vrot.lane.b32.xlu0 %v308, 80
      %v902 = vpop.permute.xlu0 %901
      %v905 = vsel %vm310, %v898, 0
      %v907 = vsel %vm314, %v902, 0
      %909 = vmatprep.subr.mxu0 0.0
      %910 = vmatpush1.msra.mxu0 %v900
      %911 = vmatprep.subr.mxu0 0.0
      %912 = vmatpush1.msra.mxu0 %v907
      %913 = vmatprep.subr.mxu0 0.0
      %914 = vmatpush1.msra.mxu0 0.0
      %915 = vmatprep.subr.mxu0 0.0
      %916 = vmatpush1.msra.mxu0 0.0
      %917 = vmatprep.subr.mxu0 0.0
      %918 = vmatpush1.msra.mxu0 0.0
      %919 = vmatprep.subr.mxu0 0.0
      %920 = vmatpush1.msra.mxu0 0.0
      %921 = vmatprep.subr.mxu0 0.0
      %922 = vmatpush1.msra.mxu0 0.0
      %923 = vmatprep.subr.mxu0 0.0
      %924 = vmatpush1.msra.mxu0 0.0
      %925 = vmatprep.subr.mxu0 0.0
      %926 = vmatpush1.msra.mxu0 0.0
      %927 = vmatprep.subr.mxu0 0.0
      %928 = vmatpush1.msra.mxu0 0.0
      %929 = vmatprep.subr.mxu0 0.0
      %930 = vmatpush1.msra.mxu0 0.0
      %931 = vmatprep.subr.mxu0 0.0
      %932 = vmatpush1.msra.mxu0 0.0
      %933 = vmatprep.subr.mxu0 0.0
      %934 = vmatpush1.msra.mxu0 0.0
      %935 = vmatprep.subr.mxu0 0.0
      %936 = vmatpush1.msra.mxu0 0.0
      %937 = vmatprep.subr.mxu0 0.0
      %938 = vmatpush1.msra.mxu0 0.0
      %939 = vmatprep.subr.mxu0 0.0
      %940 = vmatpush1.msra.mxu0 0.0
      %941 = vmatprep.subr.mxu0 0.0
      %942 = vmatpush1.msra.mxu0 0.0
      %943 = vmatprep.subr.mxu0 0.0
      %944 = vmatpush1.msra.mxu0 0.0
      %945 = vmatprep.subr.mxu0 0.0
      %946 = vmatpush1.msra.mxu0 0.0
      %947 = vmatprep.subr.mxu0 0.0
      %948 = vmatpush1.msra.mxu0 0.0
      %949 = vmatprep.subr.mxu0 0.0
      %950 = vmatpush1.msra.mxu0 0.0
      %951 = vmatprep.subr.mxu0 0.0
      %952 = vmatpush1.msra.mxu0 0.0
      %953 = vmatprep.subr.mxu0 0.0
      %954 = vmatpush1.msra.mxu0 0.0
      %955 = vmatprep.subr.mxu0 0.0
      %956 = vmatpush1.msra.mxu0 0.0
      %957 = vmatprep.subr.mxu0 0.0
      %958 = vmatpush1.msra.mxu0 0.0
      %959 = vmatprep.subr.mxu0 0.0
      %960 = vmatpush1.msra.mxu0 0.0
      %961 = vmatprep.subr.mxu0 0.0
      %962 = vmatpush1.msra.mxu0 0.0
      %963 = vmatprep.subr.mxu0 0.0
      %964 = vmatpush1.msra.mxu0 0.0
      %965 = vmatprep.subr.mxu0 0.0
      %966 = vmatpush1.msra.mxu0 0.0
      %967 = vmatprep.subr.mxu0 0.0
      %968 = vmatpush1.msra.mxu0 0.0
      %969 = vmatprep.subr.mxu0 0.0
      %970 = vmatpush1.msra.mxu0 0.0
      %971 = vmatprep.subr.mxu0 0.0
      %972 = vmatpush1.msra.mxu0 0.0
      %973 = vmatprep.mubr.f32.mxu0 0.0
      %974 = vmatmul.mubr.f32.gmra.mrb[0].mxu0 %v905
      %v975 = vpop.f32.mrb[0].mxu0
      %v976 = vadd.f32 0.0, %v975
      %v977 = vpop.f32.mrb[0].mxu0
      %978 = vdwg.mxu0
      %v979 = vtanh.pop %v976
      %v980 = vxor.u32 %v976, 2147483648
      %v981 = vmul.f32 %v980, 1.442695
      %v982 = vpow.pop %v981
      %v983 = vadd.f32 %v982, 1.0
      %v984 = vrcp.pop %v983
      %v985 = vmul.f32 1.0, %v984
      %v987 = vrot.slane %v985, 4
      %v989 = vmul.f32 %v979, %v987
      %991 = vrot.lane.b32.xlu0 %v989, 48
      %v992 = vpop.permute.xlu0 %991
      %vm994 = vcmask 454016
      %995 = vst.msk [vmem:[#allocation3] sm:$0xf] %vm994, %v992
      %s996 = scalar_lea.vmem %s282, 56
      %v997 = vld [vmem:[%s996] sm:$0xff]
      %998 = vrot.lane.b32.xlu0 %v307, 72
      %v999 = vpop.permute.xlu0 %998
      %1000 = vrot.lane.b32.xlu0 %v308, 72
      %v1001 = vpop.permute.xlu0 %1000
      %v1004 = vsel %vm310, %v997, 0
      %v1006 = vsel %vm314, %v1001, 0
      %1008 = vmatprep.subr.mxu0 0.0
      %1009 = vmatpush1.msra.mxu0 %v999
      %1010 = vmatprep.subr.mxu0 0.0
      %1011 = vmatpush1.msra.mxu0 %v1006
      %1012 = vmatprep.subr.mxu0 0.0
      %1013 = vmatpush1.msra.mxu0 0.0
      %1014 = vmatprep.subr.mxu0 0.0
      %1015 = vmatpush1.msra.mxu0 0.0
      %1016 = vmatprep.subr.mxu0 0.0
      %1017 = vmatpush1.msra.mxu0 0.0
      %1018 = vmatprep.subr.mxu0 0.0
      %1019 = vmatpush1.msra.mxu0 0.0
      %1020 = vmatprep.subr.mxu0 0.0
      %1021 = vmatpush1.msra.mxu0 0.0
      %1022 = vmatprep.subr.mxu0 0.0
      %1023 = vmatpush1.msra.mxu0 0.0
      %1024 = vmatprep.subr.mxu0 0.0
      %1025 = vmatpush1.msra.mxu0 0.0
      %1026 = vmatprep.subr.mxu0 0.0
      %1027 = vmatpush1.msra.mxu0 0.0
      %1028 = vmatprep.subr.mxu0 0.0
      %1029 = vmatpush1.msra.mxu0 0.0
      %1030 = vmatprep.subr.mxu0 0.0
      %1031 = vmatpush1.msra.mxu0 0.0
      %1032 = vmatprep.subr.mxu0 0.0
      %1033 = vmatpush1.msra.mxu0 0.0
      %1034 = vmatprep.subr.mxu0 0.0
      %1035 = vmatpush1.msra.mxu0 0.0
      %1036 = vmatprep.subr.mxu0 0.0
      %1037 = vmatpush1.msra.mxu0 0.0
      %1038 = vmatprep.subr.mxu0 0.0
      %1039 = vmatpush1.msra.mxu0 0.0
      %1040 = vmatprep.subr.mxu0 0.0
      %1041 = vmatpush1.msra.mxu0 0.0
      %1042 = vmatprep.subr.mxu0 0.0
      %1043 = vmatpush1.msra.mxu0 0.0
      %1044 = vmatprep.subr.mxu0 0.0
      %1045 = vmatpush1.msra.mxu0 0.0
      %1046 = vmatprep.subr.mxu0 0.0
      %1047 = vmatpush1.msra.mxu0 0.0
      %1048 = vmatprep.subr.mxu0 0.0
      %1049 = vmatpush1.msra.mxu0 0.0
      %1050 = vmatprep.subr.mxu0 0.0
      %1051 = vmatpush1.msra.mxu0 0.0
      %1052 = vmatprep.subr.mxu0 0.0
      %1053 = vmatpush1.msra.mxu0 0.0
      %1054 = vmatprep.subr.mxu0 0.0
      %1055 = vmatpush1.msra.mxu0 0.0
      %1056 = vmatprep.subr.mxu0 0.0
      %1057 = vmatpush1.msra.mxu0 0.0
      %1058 = vmatprep.subr.mxu0 0.0
      %1059 = vmatpush1.msra.mxu0 0.0
      %1060 = vmatprep.subr.mxu0 0.0
      %1061 = vmatpush1.msra.mxu0 0.0
      %1062 = vmatprep.subr.mxu0 0.0
      %1063 = vmatpush1.msra.mxu0 0.0
      %1064 = vmatprep.subr.mxu0 0.0
      %1065 = vmatpush1.msra.mxu0 0.0
      %1066 = vmatprep.subr.mxu0 0.0
      %1067 = vmatpush1.msra.mxu0 0.0
      %1068 = vmatprep.subr.mxu0 0.0
      %1069 = vmatpush1.msra.mxu0 0.0
      %1070 = vmatprep.subr.mxu0 0.0
      %1071 = vmatpush1.msra.mxu0 0.0
      %1072 = vmatprep.mubr.f32.mxu0 0.0
      %1073 = vmatmul.mubr.f32.gmra.mrb[0].mxu0 %v1004
      %v1074 = vpop.f32.mrb[0].mxu0
      %v1075 = vadd.f32 0.0, %v1074
      %v1076 = vpop.f32.mrb[0].mxu0
      %1077 = vdwg.mxu0
      %v1078 = vtanh.pop %v1075
      %v1079 = vxor.u32 %v1075, 2147483648
      %v1080 = vmul.f32 %v1079, 1.442695
      %v1081 = vpow.pop %v1080
      %v1082 = vadd.f32 %v1081, 1.0
      %v1083 = vrcp.pop %v1082
      %v1084 = vmul.f32 1.0, %v1083
      %v1086 = vrot.slane %v1084, 4
      %v1088 = vmul.f32 %v1078, %v1086
      %1090 = vrot.lane.b32.xlu0 %v1088, 56
      %v1091 = vpop.permute.xlu0 %1090
      %vm1093 = vcmask 519616
      %1094 = vst.msk [vmem:[#allocation3] sm:$0xf] %vm1093, %v1091
      %v1095 = vld [vmem:[%s2] sm:$0xff]
      %v1096 = vld [vmem:[#allocation3] sm:$0xf]
      %v1097 = vld [vmem:[%s3] sm:$0xff]
      %1099 = vset.pattern.permute.xlu0 0
      %1100 = vperm.xlu0 %1099, %v1097
      %v1101 = vpop.permute.xlu0 %1100
      %vm1103 = vcmask 31744
      %v1105 = vsel %vm1103, %v1095, 0
      %v1108 = vsel %vm314, %v1096, 0
      %1110 = vmatprep.subr.mxu0 0.0
      %1111 = vmatpush1.msra.mxu0 %v1108
      %1112 = vmatprep.subr.mxu0 0.0
      %1113 = vmatpush1.msra.mxu0 0.0
      %1114 = vmatprep.subr.mxu0 0.0
      %1115 = vmatpush1.msra.mxu0 0.0
      %1116 = vmatprep.subr.mxu0 0.0
      %1117 = vmatpush1.msra.mxu0 0.0
      %1118 = vmatprep.subr.mxu0 0.0
      %1119 = vmatpush1.msra.mxu0 0.0
      %1120 = vmatprep.subr.mxu0 0.0
      %1121 = vmatpush1.msra.mxu0 0.0
      %1122 = vmatprep.subr.mxu0 0.0
      %1123 = vmatpush1.msra.mxu0 0.0
      %1124 = vmatprep.subr.mxu0 0.0
      %1125 = vmatpush1.msra.mxu0 0.0
      %1126 = vmatprep.subr.mxu0 0.0
      %1127 = vmatpush1.msra.mxu0 0.0
      %1128 = vmatprep.subr.mxu0 0.0
      %1129 = vmatpush1.msra.mxu0 0.0
      %1130 = vmatprep.subr.mxu0 0.0
      %1131 = vmatpush1.msra.mxu0 0.0
      %1132 = vmatprep.subr.mxu0 0.0
      %1133 = vmatpush1.msra.mxu0 0.0
      %1134 = vmatprep.subr.mxu0 0.0
      %1135 = vmatpush1.msra.mxu0 0.0
      %1136 = vmatprep.subr.mxu0 0.0
      %1137 = vmatpush1.msra.mxu0 0.0
      %1138 = vmatprep.subr.mxu0 0.0
      %1139 = vmatpush1.msra.mxu0 0.0
      %1140 = vmatprep.subr.mxu0 0.0
      %1141 = vmatpush1.msra.mxu0 0.0
      %1142 = vmatprep.subr.mxu0 0.0
      %1143 = vmatpush1.msra.mxu0 0.0
      %1144 = vmatprep.subr.mxu0 0.0
      %1145 = vmatpush1.msra.mxu0 0.0
      %1146 = vmatprep.subr.mxu0 0.0
      %1147 = vmatpush1.msra.mxu0 0.0
      %1148 = vmatprep.subr.mxu0 0.0
      %1149 = vmatpush1.msra.mxu0 0.0
      %1150 = vmatprep.subr.mxu0 0.0
      %1151 = vmatpush1.msra.mxu0 0.0
      %1152 = vmatprep.subr.mxu0 0.0
      %1153 = vmatpush1.msra.mxu0 0.0
      %1154 = vmatprep.subr.mxu0 0.0
      %1155 = vmatpush1.msra.mxu0 0.0
      %1156 = vmatprep.subr.mxu0 0.0
      %1157 = vmatpush1.msra.mxu0 0.0
      %1158 = vmatprep.subr.mxu0 0.0
      %1159 = vmatpush1.msra.mxu0 0.0
      %1160 = vmatprep.subr.mxu0 0.0
      %1161 = vmatpush1.msra.mxu0 0.0
      %1162 = vmatprep.subr.mxu0 0.0
      %1163 = vmatpush1.msra.mxu0 0.0
      %1164 = vmatprep.subr.mxu0 0.0
      %1165 = vmatpush1.msra.mxu0 0.0
      %1166 = vmatprep.subr.mxu0 0.0
      %1167 = vmatpush1.msra.mxu0 0.0
      %1168 = vmatprep.subr.mxu0 0.0
      %1169 = vmatpush1.msra.mxu0 0.0
      %1170 = vmatprep.subr.mxu0 0.0
      %1171 = vmatpush1.msra.mxu0 0.0
      %1172 = vmatprep.subr.mxu0 0.0
      %1173 = vmatpush1.msra.mxu0 0.0
      %1174 = vmatprep.mubr.f32.mxu0 0.0
      %1175 = vmatmul.mubr.f32.gmra.mrb[0].mxu0 %v1105
      %v1176 = vpop.f32.mrb[0].mxu0
      %v1177 = vadd.f32 %v1101, %v1176
      %v1178 = vpop.f32.mrb[0].mxu0
      %1179 = vdwg.mxu0
      %v1180 = vadd.f32 %v1177, %v300
      %1181 = vst.msk [vmem:[%s290] sm:$0xf] %vm296, %v1180
      %v1182 = vld [vmem:[%s286] sm:$0xf]
      %v1184 = vrot.slane %v1182, 4
      %v1186 = vadd.f32 %v1177, %v1184
      %vm1187 = vcmask 523268
      %1188 = vst.msk [vmem:[%s294 - $0x4] sm:$0xf0] %vm1187, %v1186
      %p1189 = scmp.lt.s32.totalorder %s18, 1
      %s1190 = scalar_select %p1189, %s18, 1
      %s1191 = smul.addr %s1190, 4
      %s1192 = scalar_lea.vmem %s5, %s1191
      %p1193 = scmp.lt.s32.totalorder %s18, 1
      %s1194 = scalar_select %p1193, %s18, 1
      %s1195 = smul.addr %s1194, 4
      %s1196 = scalar_lea.vmem %s6, %s1195
      // Predicated region
      $region41: #{_lambda_.17} parent=39 // pred_check
        %p1197 = pneg %p156
      $region42: #{_lambda_.17} parent=39 // pred_check_branch
        %1199 = sbr.rel (%p1197) target = $region44
      $region43: #{_lambda_.17} parent=39 // pred_region
        _
      $region44: #{_lambda_.17} parent=39 // pred_fallthru
        _
      // Predicated region
      $region45: #{_lambda_.17} parent=39 // pred_check
        %p1200 = pneg %p182
      $region46: #{_lambda_.17} parent=39 // pred_check_branch
        %1202 = sbr.rel (%p1200) target = $region48
      $region47: #{_lambda_.17} parent=39 // pred_region
        _
      $region48: #{_lambda_.17} parent=39 // pred_fallthru
        _
    $region40: #{_lambda_.17} parent=5 // pred_fallthru
      _
    %p1203 = scmp.le.s32.totalorder 2, %s13
    // Predicated region
    $region49: #{_lambda_.17} parent=5 // pred_check
      %p1204 = pneg %p1203
    $region50: #{_lambda_.17} parent=5 // pred_check_branch
      %1206 = sbr.rel (%p1204) target = $region52
    $region51: #{_lambda_.17} parent=5 // pred_region
      %s1207 = ssub.s32 %s13, 2
      // Predicated region
      $region53: #{_lambda_.17} parent=51 // pred_check
        %p1208 = pneg %p162
      $region54: #{_lambda_.17} parent=51 // pred_check_branch
        %1210 = sbr.rel (%p1208) target = $region56
      $region55: #{_lambda_.17} parent=51 // pred_region
        %p1211 = scmp.lt.s32.totalorder %s19, 1
        %s1212 = scalar_select %p1211, %s19, 1
        %s1213 = smul.addr %s1212, 4
        %s1214 = scalar_lea.vmem %s5, %s1213
      $region56: #{_lambda_.17} parent=51 // pred_fallthru
        _
      // Predicated region
      $region57: #{_lambda_.17} parent=51 // pred_check
        %p1215 = pneg %p188
      $region58: #{_lambda_.17} parent=51 // pred_check_branch
        %1217 = sbr.rel (%p1215) target = $region60
      $region59: #{_lambda_.17} parent=51 // pred_region
        %p1218 = scmp.lt.s32.totalorder %s19, 1
        %s1219 = scalar_select %p1218, %s19, 1
        %s1220 = smul.addr %s1219, 4
        %s1221 = scalar_lea.vmem %s6, %s1220
      $region60: #{_lambda_.17} parent=51 // pred_fallthru
        _
    $region52: #{_lambda_.17} parent=5 // pred_fallthru
      _
  $region6: #{_lambda_.17} parent=0 // loop_footer
    %s17 = sadd.s32 1, %s13
  $region7: #{_lambda_.17} parent=0 // loop_footer_branch
    %12 = sbr.rel target = $region3
  $region8: #{_lambda_.17} parent=0 // loop_exit
    _

// kernel: _lambda_.19
$region0: #{_lambda_.19}
  #allocation0 [shape = 'u32[]', space=smem, size = 0x4, offset = 0x4, fixed_abs, tag = 'smem constant byte address 0x4 - core index']
  #allocation1 [shape = 'u32[144,128]{1,0:T(1,128)}', space=vmem, size = 0x12000, scoped, tag = 'internal scratch']
  %s0 = inlined_call_operand.vmem [shape: f32[2,4,64], index: 0, kind: input, shape index: {}]
  %s1 = inlined_call_operand.vmem [shape: f32[4,4], index: 1, kind: input, shape index: {}]
  %s2 = inlined_call_operand.vmem [shape: f32[4,1], index: 2, kind: input, shape index: {}]
  %s3 = inlined_call_operand.vmem [shape: f32[2,4,64], index: 3, kind: output, shape index: {}]
  %s4 = sld [smem:[#allocation0]]
  $region45: #{_lambda_.19} parent=0
    _
  %s6 = ssub.s32 1, %s4
  %s7 = scalar_select 0, %s6, %s4
  loop: start=0, step=1, limit=4
  $region2: #{_lambda_.19} parent=0 // loop_pre_header
    _
  $region3: #{_lambda_.19} parent=0 // loop_header
    %s9 = sphi 0, %s13
    %p10 = scmp.ge.s32.totalorder %s9, 4
    %s19 = sphi 0, %s21
    %s22 = sphi 0, %s19
    %s23 = sphi 0, %s22
    %s39 = sphi 0, %s23
    %s43 = sphi 0, %s43
    %s45 = sphi 0, %s43
    %s46 = sphi 0, %s45
    %s60 = sphi 0, %s46
    %s64 = sphi 0, %s64
    %s66 = sphi 0, %s64
    %s67 = sphi 0, %s66
    %s81 = sphi 0, %s67
    %s87 = sphi 0, %s89
    %s90 = sphi 0, %s87
    %s91 = sphi 0, %s90
    %s107 = sphi 0, %s91
  $region4: #{_lambda_.19} parent=0 // loop_header_branch
    %12 = sbr.rel (%p10) target = $region8
  $region5: #{_lambda_.19} parent=0 // loop_body
    %s14 = ssub.s32 %s9, 1
    %s15 = ssub.s32 %s9, 2
    %s16 = sadd.s32 %s9, 1
    %s17 = ssub.s32 %s9, %s16
    %p18 = scmp.eq.s32.totalorder %s17, 0
    %s20 = sadd.s32 %s19, 1
    %s21 = scalar_select %p18, %s19, %s20
    %p24 = pneg %p18
    %p25 = scmp.eq.s32.totalorder %s9, 1
    %p26 = por %p24, %p25
    %p27 = scmp.ne.s32.totalorder %s19, %s22
    %p28 = scmp.eq.s32.totalorder %s9, 0
    %p29 = por %p27, %p28
    %p30 = scmp.ne.s32.totalorder %s19, %s22
    %p31 = scmp.eq.s32.totalorder %s14, 1
    %p32 = por %p30, %p31
    %p33 = scmp.ne.s32.totalorder %s22, %s23
    %p34 = scmp.eq.s32.totalorder %s14, 0
    %p35 = por %p33, %p34
    %p36 = scmp.ne.s32.totalorder %s22, %s23
    %p37 = scmp.eq.s32.totalorder %s15, 1
    %p38 = por %p36, %p37
    %p40 = scmp.ne.s32.totalorder %s23, %s39
    %p41 = scmp.eq.s32.totalorder %s15, 0
    %p42 = por %p40, %p41
    %s44 = sadd.s32 %s43, 1
    %p47 = scmp.eq.s32.totalorder %s9, 1
    %p48 = scmp.ne.s32.totalorder %s43, %s45
    %p49 = scmp.eq.s32.totalorder %s9, 0
    %p50 = por %p48, %p49
    %p51 = scmp.ne.s32.totalorder %s43, %s45
    %p52 = scmp.eq.s32.totalorder %s14, 1
    %p53 = por %p51, %p52
    %p54 = scmp.ne.s32.totalorder %s45, %s46
    %p55 = scmp.eq.s32.totalorder %s14, 0
    %p56 = por %p54, %p55
    %p57 = scmp.ne.s32.totalorder %s45, %s46
    %p58 = scmp.eq.s32.totalorder %s15, 1
    %p59 = por %p57, %p58
    %p61 = scmp.ne.s32.totalorder %s46, %s60
    %p62 = scmp.eq.s32.totalorder %s15, 0
    %p63 = por %p61, %p62
    %s65 = sadd.s32 %s64, 1
    %p68 = scmp.eq.s32.totalorder %s9, 1
    %p69 = scmp.ne.s32.totalorder %s64, %s66
    %p70 = scmp.eq.s32.totalorder %s9, 0
    %p71 = por %p69, %p70
    %p72 = scmp.ne.s32.totalorder %s64, %s66
    %p73 = scmp.eq.s32.totalorder %s14, 1
    %p74 = por %p72, %p73
    %p75 = scmp.ne.s32.totalorder %s66, %s67
    %p76 = scmp.eq.s32.totalorder %s14, 0
    %p77 = por %p75, %p76
    %p78 = scmp.ne.s32.totalorder %s66, %s67
    %p79 = scmp.eq.s32.totalorder %s15, 1
    %p80 = por %p78, %p79
    %p82 = scmp.ne.s32.totalorder %s67, %s81
    %p83 = scmp.eq.s32.totalorder %s15, 0
    %p84 = por %p82, %p83
    %s85 = ssub.s32 %s9, %s16
    %p86 = scmp.eq.s32.totalorder %s85, 0
    %s88 = sadd.s32 %s87, 1
    %s89 = scalar_select %p86, %s87, %s88
    %p92 = pneg %p86
    %p93 = scmp.eq.s32.totalorder %s9, 1
    %p94 = por %p92, %p93
    %p95 = scmp.ne.s32.totalorder %s87, %s90
    %p96 = scmp.eq.s32.totalorder %s9, 0
    %p97 = por %p95, %p96
    %p98 = scmp.ne.s32.totalorder %s87, %s90
    %p99 = scmp.eq.s32.totalorder %s14, 1
    %p100 = por %p98, %p99
    %p101 = scmp.ne.s32.totalorder %s90, %s91
    %p102 = scmp.eq.s32.totalorder %s14, 0
    %p103 = por %p101, %p102
    %p104 = scmp.ne.s32.totalorder %s90, %s91
    %p105 = scmp.eq.s32.totalorder %s15, 1
    %p106 = por %p104, %p105
    %p108 = scmp.ne.s32.totalorder %s91, %s107
    %p109 = scmp.eq.s32.totalorder %s15, 0
    %p110 = por %p108, %p109
    %p111 = scmp.le.s32.totalorder 1, %s9
    %p112 = scmp.lt.s32.totalorder %s9, 3
    %p113 = pnand %p111, %p112
    %p114 = pneg %p113
    // Predicated region
    $region9: #{_lambda_.19} parent=5 // pred_check
      _
    $region10: #{_lambda_.19} parent=5 // pred_check_branch
      %116 = sbr.rel (%p113) target = $region12
    $region11: #{_lambda_.19} parent=5 // pred_region
      %s117 = ssub.s32 %s9, 1
      // Predicated region
      $region13: #{_lambda_.19} parent=11 // pred_check
        %p118 = pneg %p56
      $region14: #{_lambda_.19} parent=11 // pred_check_branch
        %120 = sbr.rel (%p118) target = $region16
      $region15: #{_lambda_.19} parent=11 // pred_region
        _
      $region16: #{_lambda_.19} parent=11 // pred_fallthru
        _
      // Predicated region
      $region17: #{_lambda_.19} parent=11 // pred_check
        %p121 = pneg %p77
      $region18: #{_lambda_.19} parent=11 // pred_check_branch
        %123 = sbr.rel (%p121) target = $region20
      $region19: #{_lambda_.19} parent=11 // pred_region
        _
      $region20: #{_lambda_.19} parent=11 // pred_fallthru
        _
    $region12: #{_lambda_.19} parent=5 // pred_fallthru
      _
    %p124 = scmp.lt.s32.totalorder %s9, 2
    // Predicated region
    $region21: #{_lambda_.19} parent=5 // pred_check
      %p125 = pneg %p124
    $region22: #{_lambda_.19} parent=5 // pred_check_branch
      %127 = sbr.rel (%p125) target = $region24
    $region23: #{_lambda_.19} parent=5 // pred_region
      // Predicated region
      $region25: #{_lambda_.19} parent=23 // pred_check
        %p128 = pneg %p29
      $region26: #{_lambda_.19} parent=23 // pred_check_branch
        %130 = sbr.rel (%p128) target = $region28
      $region27: #{_lambda_.19} parent=23 // pred_region
        %p131 = scmp.lt.s32.totalorder %s9, 1
        %s132 = scalar_select %p131, %s9, 1
        %s133 = smul.addr %s132, 4
        %s134 = scalar_lea.vmem %s0, %s133
      $region28: #{_lambda_.19} parent=23 // pred_fallthru
        _
    $region24: #{_lambda_.19} parent=5 // pred_fallthru
      _
    %p135 = scmp.le.s32.totalorder 1, %s9
    %p136 = scmp.lt.s32.totalorder %s9, 3
    %p137 = pnand %p135, %p136
    %p138 = pneg %p137
    // Predicated region
    $region29: #{_lambda_.19} parent=5 // pred_check
      _
    $region30: #{_lambda_.19} parent=5 // pred_check_branch
      %140 = sbr.rel (%p137) target = $region32
    $region31: #{_lambda_.19} parent=5 // pred_region
      %s141 = ssub.s32 %s9, 1
      %p142 = scmp.lt.s32.totalorder %s14, 1
      %s143 = scalar_select %p142, %s14, 1
      %s144 = smul.addr %s143, 4
      %s145 = scalar_lea.vmem %s0, %s144
      %p146 = pneg %p35
      %p147 = pneg %p32
      %p148 = pneg %p56
      %p149 = pneg %p53
      %p150 = pneg %p77
      %p151 = pneg %p74
      %p152 = pneg %p103
      %p153 = pneg %p100
      %p154 = scmp.lt.s32.totalorder %s14, 1
      %s155 = scalar_select %p154, %s14, 1
      %s156 = smul.addr %s155, 4
      %s157 = scalar_lea.vmem %s3, %s156
      %p158 = scmp.lt.s32.totalorder %s14, 1
      %s159 = scalar_select %p158, %s14, 1
      %s160 = smul.addr %s159, 4
      %s161 = scalar_lea.vmem %s0, %s160
      %p162 = scmp.lt.s32.totalorder %s14, 1
      %s163 = scalar_select %p162, %s14, 1
      %s164 = smul.addr %s163, 4
      %s165 = scalar_lea.vmem %s3, %s164
      %v166 = vld [vmem:[%s1] sm:$0xf]
      %v167 = vld [vmem:[%s161] sm:$0xf]
      %v168 = vld [vmem:[%s2] sm:$0xf]
      %170 = vset.pattern.permute.xlu0 0
      %171 = vperm.xlu0 %170, %v168
      %v172 = vpop.permute.xlu0 %171
      %vm174 = vcmask 31744
      %v176 = vsel %vm174, %v166, 0
      %vm178 = vcmask 1043456
      %v180 = vsel %vm178, %v167, 0
      %182 = vmatprep.subr.mxu0 0.0
      %183 = vmatpush1.msra.mxu0 %v180
      %184 = vmatprep.subr.mxu0 0.0
      %185 = vmatpush1.msra.mxu0 0.0
      %186 = vmatprep.subr.mxu0 0.0
      %187 = vmatpush1.msra.mxu0 0.0
      %188 = vmatprep.subr.mxu0 0.0
      %189 = vmatpush1.msra.mxu0 0.0
      %190 = vmatprep.subr.mxu0 0.0
      %191 = vmatpush1.msra.mxu0 0.0
      %192 = vmatprep.subr.mxu0 0.0
      %193 = vmatpush1.msra.mxu0 0.0
      %194 = vmatprep.subr.mxu0 0.0
      %195 = vmatpush1.msra.mxu0 0.0
      %196 = vmatprep.subr.mxu0 0.0
      %197 = vmatpush1.msra.mxu0 0.0
      %198 = vmatprep.subr.mxu0 0.0
      %199 = vmatpush1.msra.mxu0 0.0
      %200 = vmatprep.subr.mxu0 0.0
      %201 = vmatpush1.msra.mxu0 0.0
      %202 = vmatprep.subr.mxu0 0.0
      %203 = vmatpush1.msra.mxu0 0.0
      %204 = vmatprep.subr.mxu0 0.0
      %205 = vmatpush1.msra.mxu0 0.0
      %206 = vmatprep.subr.mxu0 0.0
      %207 = vmatpush1.msra.mxu0 0.0
      %208 = vmatprep.subr.mxu0 0.0
      %209 = vmatpush1.msra.mxu0 0.0
      %210 = vmatprep.subr.mxu0 0.0
      %211 = vmatpush1.msra.mxu0 0.0
      %212 = vmatprep.subr.mxu0 0.0
      %213 = vmatpush1.msra.mxu0 0.0
      %214 = vmatprep.subr.mxu0 0.0
      %215 = vmatpush1.msra.mxu0 0.0
      %216 = vmatprep.subr.mxu0 0.0
      %217 = vmatpush1.msra.mxu0 0.0
      %218 = vmatprep.subr.mxu0 0.0
      %219 = vmatpush1.msra.mxu0 0.0
      %220 = vmatprep.subr.mxu0 0.0
      %221 = vmatpush1.msra.mxu0 0.0
      %222 = vmatprep.subr.mxu0 0.0
      %223 = vmatpush1.msra.mxu0 0.0
      %224 = vmatprep.subr.mxu0 0.0
      %225 = vmatpush1.msra.mxu0 0.0
      %226 = vmatprep.subr.mxu0 0.0
      %227 = vmatpush1.msra.mxu0 0.0
      %228 = vmatprep.subr.mxu0 0.0
      %229 = vmatpush1.msra.mxu0 0.0
      %230 = vmatprep.subr.mxu0 0.0
      %231 = vmatpush1.msra.mxu0 0.0
      %232 = vmatprep.subr.mxu0 0.0
      %233 = vmatpush1.msra.mxu0 0.0
      %234 = vmatprep.subr.mxu0 0.0
      %235 = vmatpush1.msra.mxu0 0.0
      %236 = vmatprep.subr.mxu0 0.0
      %237 = vmatpush1.msra.mxu0 0.0
      %238 = vmatprep.subr.mxu0 0.0
      %239 = vmatpush1.msra.mxu0 0.0
      %240 = vmatprep.subr.mxu0 0.0
      %241 = vmatpush1.msra.mxu0 0.0
      %242 = vmatprep.subr.mxu0 0.0
      %243 = vmatpush1.msra.mxu0 0.0
      %244 = vmatprep.subr.mxu0 0.0
      %245 = vmatpush1.msra.mxu0 0.0
      %246 = vmatprep.mubr.f32.mxu0 0.0
      %247 = vmatmul.mubr.f32.gmra.mrb[0].mxu0 %v176
      %v248 = vpop.f32.mrb[0].mxu0
      %v249 = vadd.f32 %v172, %v248
      %v250 = vpop.f32.mrb[0].mxu0
      %251 = vdwg.mxu0
      %vm252 = vcmask 519168
      %253 = vst.msk [vmem:[%s165] sm:$0xf] %vm252, %v249
      %p254 = scmp.lt.s32.totalorder %s14, 1
      %s255 = scalar_select %p254, %s14, 1
      %s256 = smul.addr %s255, 4
      %s257 = scalar_lea.vmem %s3, %s256
      // Predicated region
      $region33: #{_lambda_.19} parent=31 // pred_check
        %p258 = pneg %p100
      $region34: #{_lambda_.19} parent=31 // pred_check_branch
        %260 = sbr.rel (%p258) target = $region36
      $region35: #{_lambda_.19} parent=31 // pred_region
        _
      $region36: #{_lambda_.19} parent=31 // pred_fallthru
        _
    $region32: #{_lambda_.19} parent=5 // pred_fallthru
      _
    %p261 = scmp.le.s32.totalorder 2, %s9
    // Predicated region
    $region37: #{_lambda_.19} parent=5 // pred_check
      %p262 = pneg %p261
    $region38: #{_lambda_.19} parent=5 // pred_check_branch
      %264 = sbr.rel (%p262) target = $region40
    $region39: #{_lambda_.19} parent=5 // pred_region
      %s265 = ssub.s32 %s9, 2
      // Predicated region
      $region41: #{_lambda_.19} parent=39 // pred_check
        %p266 = pneg %p106
      $region42: #{_lambda_.19} parent=39 // pred_check_branch
        %268 = sbr.rel (%p266) target = $region44
      $region43: #{_lambda_.19} parent=39 // pred_region
        %p269 = scmp.lt.s32.totalorder %s15, 1
        %s270 = scalar_select %p269, %s15, 1
        %s271 = smul.addr %s270, 4
        %s272 = scalar_lea.vmem %s3, %s271
      $region44: #{_lambda_.19} parent=39 // pred_fallthru
        _
    $region40: #{_lambda_.19} parent=5 // pred_fallthru
      _
  $region6: #{_lambda_.19} parent=0 // loop_footer
    %s13 = sadd.s32 1, %s9
  $region7: #{_lambda_.19} parent=0 // loop_footer_branch
    %8 = sbr.rel target = $region3
  $region8: #{_lambda_.19} parent=0 // loop_exit
    _

// kernel: _lambda_.18
$region0: #{_lambda_.18}
  #allocation0 [shape = 'u32[]', space=smem, size = 0x4, offset = 0x4, fixed_abs, tag = 'smem constant byte address 0x4 - core index']
  #allocation1 [shape = 'u32[144,128]{1,0:T(1,128)}', space=vmem, size = 0x12000, scoped, tag = 'internal scratch']
  #allocation2 [shape = 'f32[12,64]{1,0:T(8,128)}', space=vmem, size = 0x2000, scoped, tag = 'scratch operand']
  #allocation3 [shape = 'f32[4,64]{1,0:T(4,128)}', space=vmem, size = 0x800, scoped, tag = 'scratch operand']
  %s0 = inlined_call_operand.vmem [shape: f32[2,4,80], index: 0, kind: input, shape index: {}]
  %s1 = inlined_call_operand.vmem [shape: f32[2,8,8,12], index: 1, kind: input, shape index: {}]
  %s2 = inlined_call_operand.vmem [shape: f32[4,4], index: 2, kind: input, shape index: {}]
  %s3 = inlined_call_operand.vmem [shape: f32[4,1], index: 3, kind: input, shape index: {}]
  %s4 = inlined_call_operand.vmem [shape: f32[2,4,64], index: 4, kind: input, shape index: {}, may-alias: {4,5}]
  %s5 = inlined_call_operand.vmem [shape: f32[2,4,64], index: 5, kind: output, shape index: {}, may-alias: {4,5}]
  %s6 = sld [smem:[#allocation0]]
  $region53: #{_lambda_.18} parent=0
    _
  %s8 = ssub.s32 1, %s6
  %s9 = scalar_select 0, %s8, %s6
  loop: start=0, step=1, limit=4
  $region2: #{_lambda_.18} parent=0 // loop_pre_header
    _
  $region3: #{_lambda_.18} parent=0 // loop_header
    %s11 = sphi 0, %s15
    %p12 = scmp.ge.s32.totalorder %s11, 4
    %s21 = sphi 0, %s23
    %s24 = sphi 0, %s21
    %s25 = sphi 0, %s24
    %s41 = sphi 0, %s25
    %s47 = sphi 0, %s49
    %s50 = sphi 0, %s47
    %s51 = sphi 0, %s50
    %s67 = sphi 0, %s51
    %s71 = sphi 0, %s71
    %s73 = sphi 0, %s71
    %s74 = sphi 0, %s73
    %s88 = sphi 0, %s74
    %s92 = sphi 0, %s92
    %s94 = sphi 0, %s92
    %s95 = sphi 0, %s94
    %s109 = sphi 0, %s95
    %s115 = sphi 0, %s117
    %s118 = sphi 0, %s115
    %s119 = sphi 0, %s118
    %s135 = sphi 0, %s119
    %s141 = sphi 0, %s143
    %s144 = sphi 0, %s141
    %s145 = sphi 0, %s144
    %s161 = sphi 0, %s145
  $region4: #{_lambda_.18} parent=0 // loop_header_branch
    %14 = sbr.rel (%p12) target = $region8
  $region5: #{_lambda_.18} parent=0 // loop_body
    %s16 = ssub.s32 %s11, 1
    %s17 = ssub.s32 %s11, 2
    %s18 = sadd.s32 %s11, 1
    %s19 = ssub.s32 %s11, %s18
    %p20 = scmp.eq.s32.totalorder %s19, 0
    %s22 = sadd.s32 %s21, 1
    %s23 = scalar_select %p20, %s21, %s22
    %p26 = pneg %p20
    %p27 = scmp.eq.s32.totalorder %s11, 1
    %p28 = por %p26, %p27
    %p29 = scmp.ne.s32.totalorder %s21, %s24
    %p30 = scmp.eq.s32.totalorder %s11, 0
    %p31 = por %p29, %p30
    %p32 = scmp.ne.s32.totalorder %s21, %s24
    %p33 = scmp.eq.s32.totalorder %s16, 1
    %p34 = por %p32, %p33
    %p35 = scmp.ne.s32.totalorder %s24, %s25
    %p36 = scmp.eq.s32.totalorder %s16, 0
    %p37 = por %p35, %p36
    %p38 = scmp.ne.s32.totalorder %s24, %s25
    %p39 = scmp.eq.s32.totalorder %s17, 1
    %p40 = por %p38, %p39
    %p42 = scmp.ne.s32.totalorder %s25, %s41
    %p43 = scmp.eq.s32.totalorder %s17, 0
    %p44 = por %p42, %p43
    %s45 = ssub.s32 %s11, %s18
    %p46 = scmp.eq.s32.totalorder %s45, 0
    %s48 = sadd.s32 %s47, 1
    %s49 = scalar_select %p46, %s47, %s48
    %p52 = pneg %p46
    %p53 = scmp.eq.s32.totalorder %s11, 1
    %p54 = por %p52, %p53
    %p55 = scmp.ne.s32.totalorder %s47, %s50
    %p56 = scmp.eq.s32.totalorder %s11, 0
    %p57 = por %p55, %p56
    %p58 = scmp.ne.s32.totalorder %s47, %s50
    %p59 = scmp.eq.s32.totalorder %s16, 1
    %p60 = por %p58, %p59
    %p61 = scmp.ne.s32.totalorder %s50, %s51
    %p62 = scmp.eq.s32.totalorder %s16, 0
    %p63 = por %p61, %p62
    %p64 = scmp.ne.s32.totalorder %s50, %s51
    %p65 = scmp.eq.s32.totalorder %s17, 1
    %p66 = por %p64, %p65
    %p68 = scmp.ne.s32.totalorder %s51, %s67
    %p69 = scmp.eq.s32.totalorder %s17, 0
    %p70 = por %p68, %p69
    %s72 = sadd.s32 %s71, 1
    %p75 = scmp.eq.s32.totalorder %s11, 1
    %p76 = scmp.ne.s32.totalorder %s71, %s73
    %p77 = scmp.eq.s32.totalorder %s11, 0
    %p78 = por %p76, %p77
    %p79 = scmp.ne.s32.totalorder %s71, %s73
    %p80 = scmp.eq.s32.totalorder %s16, 1
    %p81 = por %p79, %p80
    %p82 = scmp.ne.s32.totalorder %s73, %s74
    %p83 = scmp.eq.s32.totalorder %s16, 0
    %p84 = por %p82, %p83
    %p85 = scmp.ne.s32.totalorder %s73, %s74
    %p86 = scmp.eq.s32.totalorder %s17, 1
    %p87 = por %p85, %p86
    %p89 = scmp.ne.s32.totalorder %s74, %s88
    %p90 = scmp.eq.s32.totalorder %s17, 0
    %p91 = por %p89, %p90
    %s93 = sadd.s32 %s92, 1
    %p96 = scmp.eq.s32.totalorder %s11, 1
    %p97 = scmp.ne.s32.totalorder %s92, %s94
    %p98 = scmp.eq.s32.totalorder %s11, 0
    %p99 = por %p97, %p98
    %p100 = scmp.ne.s32.totalorder %s92, %s94
    %p101 = scmp.eq.s32.totalorder %s16, 1
    %p102 = por %p100, %p101
    %p103 = scmp.ne.s32.totalorder %s94, %s95
    %p104 = scmp.eq.s32.totalorder %s16, 0
    %p105 = por %p103, %p104
    %p106 = scmp.ne.s32.totalorder %s94, %s95
    %p107 = scmp.eq.s32.totalorder %s17, 1
    %p108 = por %p106, %p107
    %p110 = scmp.ne.s32.totalorder %s95, %s109
    %p111 = scmp.eq.s32.totalorder %s17, 0
    %p112 = por %p110, %p111
    %s113 = ssub.s32 %s11, %s18
    %p114 = scmp.eq.s32.totalorder %s113, 0
    %s116 = sadd.s32 %s115, 1
    %s117 = scalar_select %p114, %s115, %s116
    %p120 = pneg %p114
    %p121 = scmp.eq.s32.totalorder %s11, 1
    %p122 = por %p120, %p121
    %p123 = scmp.ne.s32.totalorder %s115, %s118
    %p124 = scmp.eq.s32.totalorder %s11, 0
    %p125 = por %p123, %p124
    %p126 = scmp.ne.s32.totalorder %s115, %s118
    %p127 = scmp.eq.s32.totalorder %s16, 1
    %p128 = por %p126, %p127
    %p129 = scmp.ne.s32.totalorder %s118, %s119
    %p130 = scmp.eq.s32.totalorder %s16, 0
    %p131 = por %p129, %p130
    %p132 = scmp.ne.s32.totalorder %s118, %s119
    %p133 = scmp.eq.s32.totalorder %s17, 1
    %p134 = por %p132, %p133
    %p136 = scmp.ne.s32.totalorder %s119, %s135
    %p137 = scmp.eq.s32.totalorder %s17, 0
    %p138 = por %p136, %p137
    %s139 = ssub.s32 %s11, %s18
    %p140 = scmp.eq.s32.totalorder %s139, 0
    %s142 = sadd.s32 %s141, 1
    %s143 = scalar_select %p140, %s141, %s142
    %p146 = pneg %p140
    %p147 = scmp.eq.s32.totalorder %s11, 1
    %p148 = por %p146, %p147
    %p149 = scmp.ne.s32.totalorder %s141, %s144
    %p150 = scmp.eq.s32.totalorder %s11, 0
    %p151 = por %p149, %p150
    %p152 = scmp.ne.s32.totalorder %s141, %s144
    %p153 = scmp.eq.s32.totalorder %s16, 1
    %p154 = por %p152, %p153
    %p155 = scmp.ne.s32.totalorder %s144, %s145
    %p156 = scmp.eq.s32.totalorder %s16, 0
    %p157 = por %p155, %p156
    %p158 = scmp.ne.s32.totalorder %s144, %s145
    %p159 = scmp.eq.s32.totalorder %s17, 1
    %p160 = por %p158, %p159
    %p162 = scmp.ne.s32.totalorder %s145, %s161
    %p163 = scmp.eq.s32.totalorder %s17, 0
    %p164 = por %p162, %p163
    %p165 = scmp.le.s32.totalorder 1, %s11
    %p166 = scmp.lt.s32.totalorder %s11, 3
    %p167 = pnand %p165, %p166
    %p168 = pneg %p167
    // Predicated region
    $region9: #{_lambda_.18} parent=5 // pred_check
      _
    $region10: #{_lambda_.18} parent=5 // pred_check_branch
      %170 = sbr.rel (%p167) target = $region12
    $region11: #{_lambda_.18} parent=5 // pred_region
      %s171 = ssub.s32 %s11, 1
      // Predicated region
      $region13: #{_lambda_.18} parent=11 // pred_check
        %p172 = pneg %p84
      $region14: #{_lambda_.18} parent=11 // pred_check_branch
        %174 = sbr.rel (%p172) target = $region16
      $region15: #{_lambda_.18} parent=11 // pred_region
        _
      $region16: #{_lambda_.18} parent=11 // pred_fallthru
        _
      // Predicated region
      $region17: #{_lambda_.18} parent=11 // pred_check
        %p175 = pneg %p105
      $region18: #{_lambda_.18} parent=11 // pred_check_branch
        %177 = sbr.rel (%p175) target = $region20
      $region19: #{_lambda_.18} parent=11 // pred_region
        _
      $region20: #{_lambda_.18} parent=11 // pred_fallthru
        _
    $region12: #{_lambda_.18} parent=5 // pred_fallthru
      _
    %p178 = scmp.lt.s32.totalorder %s11, 2
    // Predicated region
    $region21: #{_lambda_.18} parent=5 // pred_check
      %p179 = pneg %p178
    $region22: #{_lambda_.18} parent=5 // pred_check_branch
      %181 = sbr.rel (%p179) target = $region24
    $region23: #{_lambda_.18} parent=5 // pred_region
      // Predicated region
      $region25: #{_lambda_.18} parent=23 // pred_check
        %p182 = pneg %p31
      $region26: #{_lambda_.18} parent=23 // pred_check_branch
        %184 = sbr.rel (%p182) target = $region28
      $region27: #{_lambda_.18} parent=23 // pred_region
        %p185 = scmp.lt.s32.totalorder %s11, 1
        %s186 = scalar_select %p185, %s11, 1
        %s187 = smul.addr %s186, 4
        %s188 = scalar_lea.vmem %s0, %s187
      $region28: #{_lambda_.18} parent=23 // pred_fallthru
        _
      // Predicated region
      $region29: #{_lambda_.18} parent=23 // pred_check
        %p189 = pneg %p57
      $region30: #{_lambda_.18} parent=23 // pred_check_branch
        %191 = sbr.rel (%p189) target = $region32
      $region31: #{_lambda_.18} parent=23 // pred_region
        %p192 = scmp.lt.s32.totalorder %s11, 1
        %s193 = scalar_select %p192, %s11, 1
        %s194 = smul.addr %s193, 8
        %s195 = smul.addr %s194, 8
        %s196 = scalar_lea.vmem %s1, %s195
      $region32: #{_lambda_.18} parent=23 // pred_fallthru
        _
      // Predicated region
      $region33: #{_lambda_.18} parent=23 // pred_check
        %p197 = pneg %p125
      $region34: #{_lambda_.18} parent=23 // pred_check_branch
        %199 = sbr.rel (%p197) target = $region36
      $region35: #{_lambda_.18} parent=23 // pred_region
        %p200 = scmp.lt.s32.totalorder %s11, 1
        %s201 = scalar_select %p200, %s11, 1
        %s202 = smul.addr %s201, 4
        %s203 = scalar_lea.vmem %s4, %s202
      $region36: #{_lambda_.18} parent=23 // pred_fallthru
        _
    $region24: #{_lambda_.18} parent=5 // pred_fallthru
      _
    %p204 = scmp.le.s32.totalorder 1, %s11
    %p205 = scmp.lt.s32.totalorder %s11, 3
    %p206 = pnand %p204, %p205
    %p207 = pneg %p206
    // Predicated region
    $region37: #{_lambda_.18} parent=5 // pred_check
      _
    $region38: #{_lambda_.18} parent=5 // pred_check_branch
      %209 = sbr.rel (%p206) target = $region40
    $region39: #{_lambda_.18} parent=5 // pred_region
      %s210 = ssub.s32 %s11, 1
      %p211 = scmp.lt.s32.totalorder %s16, 1
      %s212 = scalar_select %p211, %s16, 1
      %s213 = smul.addr %s212, 4
      %s214 = scalar_lea.vmem %s0, %s213
      %p215 = pneg %p37
      %p216 = pneg %p34
      %p217 = scmp.lt.s32.totalorder %s16, 1
      %s218 = scalar_select %p217, %s16, 1
      %s219 = smul.addr %s218, 8
      %s220 = smul.addr %s219, 8
      %s221 = scalar_lea.vmem %s1, %s220
      %p222 = pneg %p63
      %p223 = pneg %p60
      %p224 = pneg %p84
      %p225 = pneg %p81
      %p226 = pneg %p105
      %p227 = pneg %p102
      %p228 = scmp.lt.s32.totalorder %s16, 1
      %s229 = scalar_select %p228, %s16, 1
      %s230 = smul.addr %s229, 4
      %s231 = scalar_lea.vmem %s4, %s230
      %p232 = pneg %p131
      %p233 = pneg %p128
      %p234 = pneg %p157
      %p235 = pneg %p154
      %p236 = scmp.lt.s32.totalorder %s16, 1
      %s237 = scalar_select %p236, %s16, 1
      %s238 = smul.addr %s237, 4
      %s239 = scalar_lea.vmem %s5, %s238
      %p240 = scmp.lt.s32.totalorder %s16, 1
      %s241 = scalar_select %p240, %s16, 1
      %s242 = smul.addr %s241, 4
      %s243 = scalar_lea.vmem %s0, %s242
      %p244 = scmp.lt.s32.totalorder %s16, 1
      %s245 = scalar_select %p244, %s16, 1
      %s246 = smul.addr %s245, 8
      %s247 = smul.addr %s246, 8
      %s248 = scalar_lea.vmem %s1, %s247
      %p249 = scmp.lt.s32.totalorder %s16, 1
      %s250 = scalar_select %p249, %s16, 1
      %s251 = smul.addr %s250, 4
      %s252 = scalar_lea.vmem %s4, %s251
      %p253 = scmp.lt.s32.totalorder %s16, 1
      %s254 = scalar_select %p253, %s16, 1
      %s255 = smul.addr %s254, 4
      %s256 = scalar_lea.vmem %s5, %s255
      %v257 = vld [vmem:[%s243] sm:$0xf]
      %vm258 = vcmask 519168
      %259 = vst.msk [vmem:[#allocation2] sm:$0xf] %vm258, %v257
      %261 = vrot.lane.b32.xlu0 %v257, 120
      %v262 = vpop.permute.xlu0 %261
      %264 = vst.msk [vmem:[#allocation2 + $0x4] sm:$0xf] %vm258, %v262
      %265 = vrot.lane.b32.xlu0 %v257, 112
      %v266 = vpop.permute.xlu0 %265
      %268 = vst.msk [vmem:[#allocation2 + $0x8] sm:$0xf] %vm258, %v266
      %v269 = vld [vmem:[#allocation2] sm:$0xff]
      %v270 = vld [vmem:[#allocation2 + $0x8] sm:$0xf]
      %v271 = vld [vmem:[%s248] sm:$0xff]
      %vm272 = vcmask 97280
      %v274 = vsel %vm272, %v271, 0
      %vm276 = vcmask 1043456
      %v278 = vsel %vm276, %v270, 0
      %280 = vmatprep.subr.mxu0 0.0
      %281 = vmatpush1.msra.mxu0 %v269
      %282 = vmatprep.subr.mxu0 0.0
      %283 = vmatpush1.msra.mxu0 %v278
      %284 = vmatprep.subr.mxu0 0.0
      %285 = vmatpush1.msra.mxu0 0.0
      %286 = vmatprep.subr.mxu0 0.0
      %287 = vmatpush1.msra.mxu0 0.0
      %288 = vmatprep.subr.mxu0 0.0
      %289 = vmatpush1.msra.mxu0 0.0
      %290 = vmatprep.subr.mxu0 0.0
      %291 = vmatpush1.msra.mxu0 0.0
      %292 = vmatprep.subr.mxu0 0.0
      %293 = vmatpush1.msra.mxu0 0.0
      %294 = vmatprep.subr.mxu0 0.0
      %295 = vmatpush1.msra.mxu0 0.0
      %296 = vmatprep.subr.mxu0 0.0
      %297 = vmatpush1.msra.mxu0 0.0
      %298 = vmatprep.subr.mxu0 0.0
      %299 = vmatpush1.msra.mxu0 0.0
      %300 = vmatprep.subr.mxu0 0.0
      %301 = vmatpush1.msra.mxu0 0.0
      %302 = vmatprep.subr.mxu0 0.0
      %303 = vmatpush1.msra.mxu0 0.0
      %304 = vmatprep.subr.mxu0 0.0
      %305 = vmatpush1.msra.mxu0 0.0
      %306 = vmatprep.subr.mxu0 0.0
      %307 = vmatpush1.msra.mxu0 0.0
      %308 = vmatprep.subr.mxu0 0.0
      %309 = vmatpush1.msra.mxu0 0.0
      %310 = vmatprep.subr.mxu0 0.0
      %311 = vmatpush1.msra.mxu0 0.0
      %312 = vmatprep.subr.mxu0 0.0
      %313 = vmatpush1.msra.mxu0 0.0
      %314 = vmatprep.subr.mxu0 0.0
      %315 = vmatpush1.msra.mxu0 0.0
      %316 = vmatprep.subr.mxu0 0.0
      %317 = vmatpush1.msra.mxu0 0.0
      %318 = vmatprep.subr.mxu0 0.0
      %319 = vmatpush1.msra.mxu0 0.0
      %320 = vmatprep.subr.mxu0 0.0
      %321 = vmatpush1.msra.mxu0 0.0
      %322 = vmatprep.subr.mxu0 0.0
      %323 = vmatpush1.msra.mxu0 0.0
      %324 = vmatprep.subr.mxu0 0.0
      %325 = vmatpush1.msra.mxu0 0.0
      %326 = vmatprep.subr.mxu0 0.0
      %327 = vmatpush1.msra.mxu0 0.0
      %328 = vmatprep.subr.mxu0 0.0
      %329 = vmatpush1.msra.mxu0 0.0
      %330 = vmatprep.subr.mxu0 0.0
      %331 = vmatpush1.msra.mxu0 0.0
      %332 = vmatprep.subr.mxu0 0.0
      %333 = vmatpush1.msra.mxu0 0.0
      %334 = vmatprep.subr.mxu0 0.0
      %335 = vmatpush1.msra.mxu0 0.0
      %336 = vmatprep.subr.mxu0 0.0
      %337 = vmatpush1.msra.mxu0 0.0
      %338 = vmatprep.subr.mxu0 0.0
      %339 = vmatpush1.msra.mxu0 0.0
      %340 = vmatprep.subr.mxu0 0.0
      %341 = vmatpush1.msra.mxu0 0.0
      %342 = vmatprep.subr.mxu0 0.0
      %343 = vmatpush1.msra.mxu0 0.0
      %344 = vmatprep.mubr.f32.mxu0 0.0
      %345 = vmatmul.mubr.f32.gmra.mrb[0].mxu0 %v274
      %v346 = vpop.f32.mrb[0].mxu0
      %v347 = vadd.f32 0.0, %v346
      %v348 = vpop.f32.mrb[0].mxu0
      %349 = vdwg.mxu0
      %v350 = vtanh.pop %v347
      %v351 = vxor.u32 %v347, 2147483648
      %v352 = vmul.f32 %v351, 1.442695
      %v353 = vpow.pop %v352
      %v354 = vadd.f32 %v353, 1.0
      %v355 = vrcp.pop %v354
      %v356 = vmul.f32 1.0, %v355
      %v358 = vrot.slane %v356, 4
      %v360 = vmul.f32 %v350, %v358
      %vm361 = vcmask 60416
      %362 = vst.msk [vmem:[#allocation3] sm:$0xf] %vm361, %v360
      %s363 = scalar_lea.vmem %s248, 8
      %v364 = vld [vmem:[%s363] sm:$0xff]
      %366 = vrot.lane.b32.xlu0 %v269, 120
      %v367 = vpop.permute.xlu0 %366
      %368 = vrot.lane.b32.xlu0 %v270, 120
      %v369 = vpop.permute.xlu0 %368
      %v372 = vsel %vm272, %v364, 0
      %v374 = vsel %vm276, %v369, 0
      %376 = vmatprep.subr.mxu0 0.0
      %377 = vmatpush1.msra.mxu0 %v367
      %378 = vmatprep.subr.mxu0 0.0
      %379 = vmatpush1.msra.mxu0 %v374
      %380 = vmatprep.subr.mxu0 0.0
      %381 = vmatpush1.msra.mxu0 0.0
      %382 = vmatprep.subr.mxu0 0.0
      %383 = vmatpush1.msra.mxu0 0.0
      %384 = vmatprep.subr.mxu0 0.0
      %385 = vmatpush1.msra.mxu0 0.0
      %386 = vmatprep.subr.mxu0 0.0
      %387 = vmatpush1.msra.mxu0 0.0
      %388 = vmatprep.subr.mxu0 0.0
      %389 = vmatpush1.msra.mxu0 0.0
      %390 = vmatprep.subr.mxu0 0.0
      %391 = vmatpush1.msra.mxu0 0.0
      %392 = vmatprep.subr.mxu0 0.0
      %393 = vmatpush1.msra.mxu0 0.0
      %394 = vmatprep.subr.mxu0 0.0
      %395 = vmatpush1.msra.mxu0 0.0
      %396 = vmatprep.subr.mxu0 0.0
      %397 = vmatpush1.msra.mxu0 0.0
      %398 = vmatprep.subr.mxu0 0.0
      %399 = vmatpush1.msra.mxu0 0.0
      %400 = vmatprep.subr.mxu0 0.0
      %401 = vmatpush1.msra.mxu0 0.0
      %402 = vmatprep.subr.mxu0 0.0
      %403 = vmatpush1.msra.mxu0 0.0
      %404 = vmatprep.subr.mxu0 0.0
      %405 = vmatpush1.msra.mxu0 0.0
      %406 = vmatprep.subr.mxu0 0.0
      %407 = vmatpush1.msra.mxu0 0.0
      %408 = vmatprep.subr.mxu0 0.0
      %409 = vmatpush1.msra.mxu0 0.0
      %410 = vmatprep.subr.mxu0 0.0
      %411 = vmatpush1.msra.mxu0 0.0
      %412 = vmatprep.subr.mxu0 0.0
      %413 = vmatpush1.msra.mxu0 0.0
      %414 = vmatprep.subr.mxu0 0.0
      %415 = vmatpush1.msra.mxu0 0.0
      %416 = vmatprep.subr.mxu0 0.0
      %417 = vmatpush1.msra.mxu0 0.0
      %418 = vmatprep.subr.mxu0 0.0
      %419 = vmatpush1.msra.mxu0 0.0
      %420 = vmatprep.subr.mxu0 0.0
      %421 = vmatpush1.msra.mxu0 0.0
      %422 = vmatprep.subr.mxu0 0.0
      %423 = vmatpush1.msra.mxu0 0.0
      %424 = vmatprep.subr.mxu0 0.0
      %425 = vmatpush1.msra.mxu0 0.0
      %426 = vmatprep.subr.mxu0 0.0
      %427 = vmatpush1.msra.mxu0 0.0
      %428 = vmatprep.subr.mxu0 0.0
      %429 = vmatpush1.msra.mxu0 0.0
      %430 = vmatprep.subr.mxu0 0.0
      %431 = vmatpush1.msra.mxu0 0.0
      %432 = vmatprep.subr.mxu0 0.0
      %433 = vmatpush1.msra.mxu0 0.0
      %434 = vmatprep.subr.mxu0 0.0
      %435 = vmatpush1.msra.mxu0 0.0
      %436 = vmatprep.subr.mxu0 0.0
      %437 = vmatpush1.msra.mxu0 0.0
      %438 = vmatprep.subr.mxu0 0.0
      %439 = vmatpush1.msra.mxu0 0.0
      %440 = vmatprep.mubr.f32.mxu0 0.0
      %441 = vmatmul.mubr.f32.gmra.mrb[0].mxu0 %v372
      %v442 = vpop.f32.mrb[0].mxu0
      %v443 = vadd.f32 0.0, %v442
      %v444 = vpop.f32.mrb[0].mxu0
      %445 = vdwg.mxu0
      %v446 = vtanh.pop %v443
      %v447 = vxor.u32 %v443, 2147483648
      %v448 = vmul.f32 %v447, 1.442695
      %v449 = vpow.pop %v448
      %v450 = vadd.f32 %v449, 1.0
      %v451 = vrcp.pop %v450
      %v452 = vmul.f32 1.0, %v451
      %v454 = vrot.slane %v452, 4
      %v456 = vmul.f32 %v446, %v454
      %458 = vrot.lane.b32.xlu0 %v456, 8
      %v459 = vpop.permute.xlu0 %458
      %vm461 = vcmask 126016
      %462 = vst.msk [vmem:[#allocation3] sm:$0xf] %vm461, %v459
      %s463 = scalar_lea.vmem %s248, 16
      %v464 = vld [vmem:[%s463] sm:$0xff]
      %465 = vrot.lane.b32.xlu0 %v269, 112
      %v466 = vpop.permute.xlu0 %465
      %467 = vrot.lane.b32.xlu0 %v270, 112
      %v468 = vpop.permute.xlu0 %467
      %v471 = vsel %vm272, %v464, 0
      %v473 = vsel %vm276, %v468, 0
      %475 = vmatprep.subr.mxu0 0.0
      %476 = vmatpush1.msra.mxu0 %v466
      %477 = vmatprep.subr.mxu0 0.0
      %478 = vmatpush1.msra.mxu0 %v473
      %479 = vmatprep.subr.mxu0 0.0
      %480 = vmatpush1.msra.mxu0 0.0
      %481 = vmatprep.subr.mxu0 0.0
      %482 = vmatpush1.msra.mxu0 0.0
      %483 = vmatprep.subr.mxu0 0.0
      %484 = vmatpush1.msra.mxu0 0.0
      %485 = vmatprep.subr.mxu0 0.0
      %486 = vmatpush1.msra.mxu0 0.0
      %487 = vmatprep.subr.mxu0 0.0
      %488 = vmatpush1.msra.mxu0 0.0
      %489 = vmatprep.subr.mxu0 0.0
      %490 = vmatpush1.msra.mxu0 0.0
      %491 = vmatprep.subr.mxu0 0.0
      %492 = vmatpush1.msra.mxu0 0.0
      %493 = vmatprep.subr.mxu0 0.0
      %494 = vmatpush1.msra.mxu0 0.0
      %495 = vmatprep.subr.mxu0 0.0
      %496 = vmatpush1.msra.mxu0 0.0
      %497 = vmatprep.subr.mxu0 0.0
      %498 = vmatpush1.msra.mxu0 0.0
      %499 = vmatprep.subr.mxu0 0.0
      %500 = vmatpush1.msra.mxu0 0.0
      %501 = vmatprep.subr.mxu0 0.0
      %502 = vmatpush1.msra.mxu0 0.0
      %503 = vmatprep.subr.mxu0 0.0
      %504 = vmatpush1.msra.mxu0 0.0
      %505 = vmatprep.subr.mxu0 0.0
      %506 = vmatpush1.msra.mxu0 0.0
      %507 = vmatprep.subr.mxu0 0.0
      %508 = vmatpush1.msra.mxu0 0.0
      %509 = vmatprep.subr.mxu0 0.0
      %510 = vmatpush1.msra.mxu0 0.0
      %511 = vmatprep.subr.mxu0 0.0
      %512 = vmatpush1.msra.mxu0 0.0
      %513 = vmatprep.subr.mxu0 0.0
      %514 = vmatpush1.msra.mxu0 0.0
      %515 = vmatprep.subr.mxu0 0.0
      %516 = vmatpush1.msra.mxu0 0.0
      %517 = vmatprep.subr.mxu0 0.0
      %518 = vmatpush1.msra.mxu0 0.0
      %519 = vmatprep.subr.mxu0 0.0
      %520 = vmatpush1.msra.mxu0 0.0
      %521 = vmatprep.subr.mxu0 0.0
      %522 = vmatpush1.msra.mxu0 0.0
      %523 = vmatprep.subr.mxu0 0.0
      %524 = vmatpush1.msra.mxu0 0.0
      %525 = vmatprep.subr.mxu0 0.0
      %526 = vmatpush1.msra.mxu0 0.0
      %527 = vmatprep.subr.mxu0 0.0
      %528 = vmatpush1.msra.mxu0 0.0
      %529 = vmatprep.subr.mxu0 0.0
      %530 = vmatpush1.msra.mxu0 0.0
      %531 = vmatprep.subr.mxu0 0.0
      %532 = vmatpush1.msra.mxu0 0.0
      %533 = vmatprep.subr.mxu0 0.0
      %534 = vmatpush1.msra.mxu0 0.0
      %535 = vmatprep.subr.mxu0 0.0
      %536 = vmatpush1.msra.mxu0 0.0
      %537 = vmatprep.subr.mxu0 0.0
      %538 = vmatpush1.msra.mxu0 0.0
      %539 = vmatprep.mubr.f32.mxu0 0.0
      %540 = vmatmul.mubr.f32.gmra.mrb[0].mxu0 %v471
      %v541 = vpop.f32.mrb[0].mxu0
      %v542 = vadd.f32 0.0, %v541
      %v543 = vpop.f32.mrb[0].mxu0
      %544 = vdwg.mxu0
      %v545 = vtanh.pop %v542
      %v546 = vxor.u32 %v542, 2147483648
      %v547 = vmul.f32 %v546, 1.442695
      %v548 = vpow.pop %v547
      %v549 = vadd.f32 %v548, 1.0
      %v550 = vrcp.pop %v549
      %v551 = vmul.f32 1.0, %v550
      %v553 = vrot.slane %v551, 4
      %v555 = vmul.f32 %v545, %v553
      %557 = vrot.lane.b32.xlu0 %v555, 16
      %v558 = vpop.permute.xlu0 %557
      %vm560 = vcmask 191616
      %561 = vst.msk [vmem:[#allocation3] sm:$0xf] %vm560, %v558
      %s562 = scalar_lea.vmem %s248, 24
      %v563 = vld [vmem:[%s562] sm:$0xff]
      %564 = vrot.lane.b32.xlu0 %v269, 104
      %v565 = vpop.permute.xlu0 %564
      %566 = vrot.lane.b32.xlu0 %v270, 104
      %v567 = vpop.permute.xlu0 %566
      %v570 = vsel %vm272, %v563, 0
      %v572 = vsel %vm276, %v567, 0
      %574 = vmatprep.subr.mxu0 0.0
      %575 = vmatpush1.msra.mxu0 %v565
      %576 = vmatprep.subr.mxu0 0.0
      %577 = vmatpush1.msra.mxu0 %v572
      %578 = vmatprep.subr.mxu0 0.0
      %579 = vmatpush1.msra.mxu0 0.0
      %580 = vmatprep.subr.mxu0 0.0
      %581 = vmatpush1.msra.mxu0 0.0
      %582 = vmatprep.subr.mxu0 0.0
      %583 = vmatpush1.msra.mxu0 0.0
      %584 = vmatprep.subr.mxu0 0.0
      %585 = vmatpush1.msra.mxu0 0.0
      %586 = vmatprep.subr.mxu0 0.0
      %587 = vmatpush1.msra.mxu0 0.0
      %588 = vmatprep.subr.mxu0 0.0
      %589 = vmatpush1.msra.mxu0 0.0
      %590 = vmatprep.subr.mxu0 0.0
      %591 = vmatpush1.msra.mxu0 0.0
      %592 = vmatprep.subr.mxu0 0.0
      %593 = vmatpush1.msra.mxu0 0.0
      %594 = vmatprep.subr.mxu0 0.0
      %595 = vmatpush1.msra.mxu0 0.0
      %596 = vmatprep.subr.mxu0 0.0
      %597 = vmatpush1.msra.mxu0 0.0
      %598 = vmatprep.subr.mxu0 0.0
      %599 = vmatpush1.msra.mxu0 0.0
      %600 = vmatprep.subr.mxu0 0.0
      %601 = vmatpush1.msra.mxu0 0.0
      %602 = vmatprep.subr.mxu0 0.0
      %603 = vmatpush1.msra.mxu0 0.0
      %604 = vmatprep.subr.mxu0 0.0
      %605 = vmatpush1.msra.mxu0 0.0
      %606 = vmatprep.subr.mxu0 0.0
      %607 = vmatpush1.msra.mxu0 0.0
      %608 = vmatprep.subr.mxu0 0.0
      %609 = vmatpush1.msra.mxu0 0.0
      %610 = vmatprep.subr.mxu0 0.0
      %611 = vmatpush1.msra.mxu0 0.0
      %612 = vmatprep.subr.mxu0 0.0
      %613 = vmatpush1.msra.mxu0 0.0
      %614 = vmatprep.subr.mxu0 0.0
      %615 = vmatpush1.msra.mxu0 0.0
      %616 = vmatprep.subr.mxu0 0.0
      %617 = vmatpush1.msra.mxu0 0.0
      %618 = vmatprep.subr.mxu0 0.0
      %619 = vmatpush1.msra.mxu0 0.0
      %620 = vmatprep.subr.mxu0 0.0
      %621 = vmatpush1.msra.mxu0 0.0
      %622 = vmatprep.subr.mxu0 0.0
      %623 = vmatpush1.msra.mxu0 0.0
      %624 = vmatprep.subr.mxu0 0.0
      %625 = vmatpush1.msra.mxu0 0.0
      %626 = vmatprep.subr.mxu0 0.0
      %627 = vmatpush1.msra.mxu0 0.0
      %628 = vmatprep.subr.mxu0 0.0
      %629 = vmatpush1.msra.mxu0 0.0
      %630 = vmatprep.subr.mxu0 0.0
      %631 = vmatpush1.msra.mxu0 0.0
      %632 = vmatprep.subr.mxu0 0.0
      %633 = vmatpush1.msra.mxu0 0.0
      %634 = vmatprep.subr.mxu0 0.0
      %635 = vmatpush1.msra.mxu0 0.0
      %636 = vmatprep.subr.mxu0 0.0
      %637 = vmatpush1.msra.mxu0 0.0
      %638 = vmatprep.mubr.f32.mxu0 0.0
      %639 = vmatmul.mubr.f32.gmra.mrb[0].mxu0 %v570
      %v640 = vpop.f32.mrb[0].mxu0
      %v641 = vadd.f32 0.0, %v640
      %v642 = vpop.f32.mrb[0].mxu0
      %643 = vdwg.mxu0
      %v644 = vtanh.pop %v641
      %v645 = vxor.u32 %v641, 2147483648
      %v646 = vmul.f32 %v645, 1.442695
      %v647 = vpow.pop %v646
      %v648 = vadd.f32 %v647, 1.0
      %v649 = vrcp.pop %v648
      %v650 = vmul.f32 1.0, %v649
      %v652 = vrot.slane %v650, 4
      %v654 = vmul.f32 %v644, %v652
      %656 = vrot.lane.b32.xlu0 %v654, 24
      %v657 = vpop.permute.xlu0 %656
      %vm659 = vcmask 257216
      %660 = vst.msk [vmem:[#allocation3] sm:$0xf] %vm659, %v657
      %s661 = scalar_lea.vmem %s248, 32
      %v662 = vld [vmem:[%s661] sm:$0xff]
      %663 = vrot.lane.b32.xlu0 %v269, 96
      %v664 = vpop.permute.xlu0 %663
      %665 = vrot.lane.b32.xlu0 %v270, 96
      %v666 = vpop.permute.xlu0 %665
      %v669 = vsel %vm272, %v662, 0
      %v671 = vsel %vm276, %v666, 0
      %673 = vmatprep.subr.mxu0 0.0
      %674 = vmatpush1.msra.mxu0 %v664
      %675 = vmatprep.subr.mxu0 0.0
      %676 = vmatpush1.msra.mxu0 %v671
      %677 = vmatprep.subr.mxu0 0.0
      %678 = vmatpush1.msra.mxu0 0.0
      %679 = vmatprep.subr.mxu0 0.0
      %680 = vmatpush1.msra.mxu0 0.0
      %681 = vmatprep.subr.mxu0 0.0
      %682 = vmatpush1.msra.mxu0 0.0
      %683 = vmatprep.subr.mxu0 0.0
      %684 = vmatpush1.msra.mxu0 0.0
      %685 = vmatprep.subr.mxu0 0.0
      %686 = vmatpush1.msra.mxu0 0.0
      %687 = vmatprep.subr.mxu0 0.0
      %688 = vmatpush1.msra.mxu0 0.0
      %689 = vmatprep.subr.mxu0 0.0
      %690 = vmatpush1.msra.mxu0 0.0
      %691 = vmatprep.subr.mxu0 0.0
      %692 = vmatpush1.msra.mxu0 0.0
      %693 = vmatprep.subr.mxu0 0.0
      %694 = vmatpush1.msra.mxu0 0.0
      %695 = vmatprep.subr.mxu0 0.0
      %696 = vmatpush1.msra.mxu0 0.0
      %697 = vmatprep.subr.mxu0 0.0
      %698 = vmatpush1.msra.mxu0 0.0
      %699 = vmatprep.subr.mxu0 0.0
      %700 = vmatpush1.msra.mxu0 0.0
      %701 = vmatprep.subr.mxu0 0.0
      %702 = vmatpush1.msra.mxu0 0.0
      %703 = vmatprep.subr.mxu0 0.0
      %704 = vmatpush1.msra.mxu0 0.0
      %705 = vmatprep.subr.mxu0 0.0
      %706 = vmatpush1.msra.mxu0 0.0
      %707 = vmatprep.subr.mxu0 0.0
      %708 = vmatpush1.msra.mxu0 0.0
      %709 = vmatprep.subr.mxu0 0.0
      %710 = vmatpush1.msra.mxu0 0.0
      %711 = vmatprep.subr.mxu0 0.0
      %712 = vmatpush1.msra.mxu0 0.0
      %713 = vmatprep.subr.mxu0 0.0
      %714 = vmatpush1.msra.mxu0 0.0
      %715 = vmatprep.subr.mxu0 0.0
      %716 = vmatpush1.msra.mxu0 0.0
      %717 = vmatprep.subr.mxu0 0.0
      %718 = vmatpush1.msra.mxu0 0.0
      %719 = vmatprep.subr.mxu0 0.0
      %720 = vmatpush1.msra.mxu0 0.0
      %721 = vmatprep.subr.mxu0 0.0
      %722 = vmatpush1.msra.mxu0 0.0
      %723 = vmatprep.subr.mxu0 0.0
      %724 = vmatpush1.msra.mxu0 0.0
      %725 = vmatprep.subr.mxu0 0.0
      %726 = vmatpush1.msra.mxu0 0.0
      %727 = vmatprep.subr.mxu0 0.0
      %728 = vmatpush1.msra.mxu0 0.0
      %729 = vmatprep.subr.mxu0 0.0
      %730 = vmatpush1.msra.mxu0 0.0
      %731 = vmatprep.subr.mxu0 0.0
      %732 = vmatpush1.msra.mxu0 0.0
      %733 = vmatprep.subr.mxu0 0.0
      %734 = vmatpush1.msra.mxu0 0.0
      %735 = vmatprep.subr.mxu0 0.0
      %736 = vmatpush1.msra.mxu0 0.0
      %737 = vmatprep.mubr.f32.mxu0 0.0
      %738 = vmatmul.mubr.f32.gmra.mrb[0].mxu0 %v669
      %v739 = vpop.f32.mrb[0].mxu0
      %v740 = vadd.f32 0.0, %v739
      %v741 = vpop.f32.mrb[0].mxu0
      %742 = vdwg.mxu0
      %v743 = vtanh.pop %v740
      %v744 = vxor.u32 %v740, 2147483648
      %v745 = vmul.f32 %v744, 1.442695
      %v746 = vpow.pop %v745
      %v747 = vadd.f32 %v746, 1.0
      %v748 = vrcp.pop %v747
      %v749 = vmul.f32 1.0, %v748
      %v751 = vrot.slane %v749, 4
      %v753 = vmul.f32 %v743, %v751
      %755 = vrot.lane.b32.xlu0 %v753, 32
      %v756 = vpop.permute.xlu0 %755
      %vm758 = vcmask 322816
      %759 = vst.msk [vmem:[#allocation3] sm:$0xf] %vm758, %v756
      %s760 = scalar_lea.vmem %s248, 40
      %v761 = vld [vmem:[%s760] sm:$0xff]
      %762 = vrot.lane.b32.xlu0 %v269, 88
      %v763 = vpop.permute.xlu0 %762
      %764 = vrot.lane.b32.xlu0 %v270, 88
      %v765 = vpop.permute.xlu0 %764
      %v768 = vsel %vm272, %v761, 0
      %v770 = vsel %vm276, %v765, 0
      %772 = vmatprep.subr.mxu0 0.0
      %773 = vmatpush1.msra.mxu0 %v763
      %774 = vmatprep.subr.mxu0 0.0
      %775 = vmatpush1.msra.mxu0 %v770
      %776 = vmatprep.subr.mxu0 0.0
      %777 = vmatpush1.msra.mxu0 0.0
      %778 = vmatprep.subr.mxu0 0.0
      %779 = vmatpush1.msra.mxu0 0.0
      %780 = vmatprep.subr.mxu0 0.0
      %781 = vmatpush1.msra.mxu0 0.0
      %782 = vmatprep.subr.mxu0 0.0
      %783 = vmatpush1.msra.mxu0 0.0
      %784 = vmatprep.subr.mxu0 0.0
      %785 = vmatpush1.msra.mxu0 0.0
      %786 = vmatprep.subr.mxu0 0.0
      %787 = vmatpush1.msra.mxu0 0.0
      %788 = vmatprep.subr.mxu0 0.0
      %789 = vmatpush1.msra.mxu0 0.0
      %790 = vmatprep.subr.mxu0 0.0
      %791 = vmatpush1.msra.mxu0 0.0
      %792 = vmatprep.subr.mxu0 0.0
      %793 = vmatpush1.msra.mxu0 0.0
      %794 = vmatprep.subr.mxu0 0.0
      %795 = vmatpush1.msra.mxu0 0.0
      %796 = vmatprep.subr.mxu0 0.0
      %797 = vmatpush1.msra.mxu0 0.0
      %798 = vmatprep.subr.mxu0 0.0
      %799 = vmatpush1.msra.mxu0 0.0
      %800 = vmatprep.subr.mxu0 0.0
      %801 = vmatpush1.msra.mxu0 0.0
      %802 = vmatprep.subr.mxu0 0.0
      %803 = vmatpush1.msra.mxu0 0.0
      %804 = vmatprep.subr.mxu0 0.0
      %805 = vmatpush1.msra.mxu0 0.0
      %806 = vmatprep.subr.mxu0 0.0
      %807 = vmatpush1.msra.mxu0 0.0
      %808 = vmatprep.subr.mxu0 0.0
      %809 = vmatpush1.msra.mxu0 0.0
      %810 = vmatprep.subr.mxu0 0.0
      %811 = vmatpush1.msra.mxu0 0.0
      %812 = vmatprep.subr.mxu0 0.0
      %813 = vmatpush1.msra.mxu0 0.0
      %814 = vmatprep.subr.mxu0 0.0
      %815 = vmatpush1.msra.mxu0 0.0
      %816 = vmatprep.subr.mxu0 0.0
      %817 = vmatpush1.msra.mxu0 0.0
      %818 = vmatprep.subr.mxu0 0.0
      %819 = vmatpush1.msra.mxu0 0.0
      %820 = vmatprep.subr.mxu0 0.0
      %821 = vmatpush1.msra.mxu0 0.0
      %822 = vmatprep.subr.mxu0 0.0
      %823 = vmatpush1.msra.mxu0 0.0
      %824 = vmatprep.subr.mxu0 0.0
      %825 = vmatpush1.msra.mxu0 0.0
      %826 = vmatprep.subr.mxu0 0.0
      %827 = vmatpush1.msra.mxu0 0.0
      %828 = vmatprep.subr.mxu0 0.0
      %829 = vmatpush1.msra.mxu0 0.0
      %830 = vmatprep.subr.mxu0 0.0
      %831 = vmatpush1.msra.mxu0 0.0
      %832 = vmatprep.subr.mxu0 0.0
      %833 = vmatpush1.msra.mxu0 0.0
      %834 = vmatprep.subr.mxu0 0.0
      %835 = vmatpush1.msra.mxu0 0.0
      %836 = vmatprep.mubr.f32.mxu0 0.0
      %837 = vmatmul.mubr.f32.gmra.mrb[0].mxu0 %v768
      %v838 = vpop.f32.mrb[0].mxu0
      %v839 = vadd.f32 0.0, %v838
      %v840 = vpop.f32.mrb[0].mxu0
      %841 = vdwg.mxu0
      %v842 = vtanh.pop %v839
      %v843 = vxor.u32 %v839, 2147483648
      %v844 = vmul.f32 %v843, 1.442695
      %v845 = vpow.pop %v844
      %v846 = vadd.f32 %v845, 1.0
      %v847 = vrcp.pop %v846
      %v848 = vmul.f32 1.0, %v847
      %v850 = vrot.slane %v848, 4
      %v852 = vmul.f32 %v842, %v850
      %854 = vrot.lane.b32.xlu0 %v852, 40
      %v855 = vpop.permute.xlu0 %854
      %vm857 = vcmask 388416
      %858 = vst.msk [vmem:[#allocation3] sm:$0xf] %vm857, %v855
      %s859 = scalar_lea.vmem %s248, 48
      %v860 = vld [vmem:[%s859] sm:$0xff]
      %861 = vrot.lane.b32.xlu0 %v269, 80
      %v862 = vpop.permute.xlu0 %861
      %863 = vrot.lane.b32.xlu0 %v270, 80
      %v864 = vpop.permute.xlu0 %863
      %v867 = vsel %vm272, %v860, 0
      %v869 = vsel %vm276, %v864, 0
      %871 = vmatprep.subr.mxu0 0.0
      %872 = vmatpush1.msra.mxu0 %v862
      %873 = vmatprep.subr.mxu0 0.0
      %874 = vmatpush1.msra.mxu0 %v869
      %875 = vmatprep.subr.mxu0 0.0
      %876 = vmatpush1.msra.mxu0 0.0
      %877 = vmatprep.subr.mxu0 0.0
      %878 = vmatpush1.msra.mxu0 0.0
      %879 = vmatprep.subr.mxu0 0.0
      %880 = vmatpush1.msra.mxu0 0.0
      %881 = vmatprep.subr.mxu0 0.0
      %882 = vmatpush1.msra.mxu0 0.0
      %883 = vmatprep.subr.mxu0 0.0
      %884 = vmatpush1.msra.mxu0 0.0
      %885 = vmatprep.subr.mxu0 0.0
      %886 = vmatpush1.msra.mxu0 0.0
      %887 = vmatprep.subr.mxu0 0.0
      %888 = vmatpush1.msra.mxu0 0.0
      %889 = vmatprep.subr.mxu0 0.0
      %890 = vmatpush1.msra.mxu0 0.0
      %891 = vmatprep.subr.mxu0 0.0
      %892 = vmatpush1.msra.mxu0 0.0
      %893 = vmatprep.subr.mxu0 0.0
      %894 = vmatpush1.msra.mxu0 0.0
      %895 = vmatprep.subr.mxu0 0.0
      %896 = vmatpush1.msra.mxu0 0.0
      %897 = vmatprep.subr.mxu0 0.0
      %898 = vmatpush1.msra.mxu0 0.0
      %899 = vmatprep.subr.mxu0 0.0
      %900 = vmatpush1.msra.mxu0 0.0
      %901 = vmatprep.subr.mxu0 0.0
      %902 = vmatpush1.msra.mxu0 0.0
      %903 = vmatprep.subr.mxu0 0.0
      %904 = vmatpush1.msra.mxu0 0.0
      %905 = vmatprep.subr.mxu0 0.0
      %906 = vmatpush1.msra.mxu0 0.0
      %907 = vmatprep.subr.mxu0 0.0
      %908 = vmatpush1.msra.mxu0 0.0
      %909 = vmatprep.subr.mxu0 0.0
      %910 = vmatpush1.msra.mxu0 0.0
      %911 = vmatprep.subr.mxu0 0.0
      %912 = vmatpush1.msra.mxu0 0.0
      %913 = vmatprep.subr.mxu0 0.0
      %914 = vmatpush1.msra.mxu0 0.0
      %915 = vmatprep.subr.mxu0 0.0
      %916 = vmatpush1.msra.mxu0 0.0
      %917 = vmatprep.subr.mxu0 0.0
      %918 = vmatpush1.msra.mxu0 0.0
      %919 = vmatprep.subr.mxu0 0.0
      %920 = vmatpush1.msra.mxu0 0.0
      %921 = vmatprep.subr.mxu0 0.0
      %922 = vmatpush1.msra.mxu0 0.0
      %923 = vmatprep.subr.mxu0 0.0
      %924 = vmatpush1.msra.mxu0 0.0
      %925 = vmatprep.subr.mxu0 0.0
      %926 = vmatpush1.msra.mxu0 0.0
      %927 = vmatprep.subr.mxu0 0.0
      %928 = vmatpush1.msra.mxu0 0.0
      %929 = vmatprep.subr.mxu0 0.0
      %930 = vmatpush1.msra.mxu0 0.0
      %931 = vmatprep.subr.mxu0 0.0
      %932 = vmatpush1.msra.mxu0 0.0
      %933 = vmatprep.subr.mxu0 0.0
      %934 = vmatpush1.msra.mxu0 0.0
      %935 = vmatprep.mubr.f32.mxu0 0.0
      %936 = vmatmul.mubr.f32.gmra.mrb[0].mxu0 %v867
      %v937 = vpop.f32.mrb[0].mxu0
      %v938 = vadd.f32 0.0, %v937
      %v939 = vpop.f32.mrb[0].mxu0
      %940 = vdwg.mxu0
      %v941 = vtanh.pop %v938
      %v942 = vxor.u32 %v938, 2147483648
      %v943 = vmul.f32 %v942, 1.442695
      %v944 = vpow.pop %v943
      %v945 = vadd.f32 %v944, 1.0
      %v946 = vrcp.pop %v945
      %v947 = vmul.f32 1.0, %v946
      %v949 = vrot.slane %v947, 4
      %v951 = vmul.f32 %v941, %v949
      %953 = vrot.lane.b32.xlu0 %v951, 48
      %v954 = vpop.permute.xlu0 %953
      %vm956 = vcmask 454016
      %957 = vst.msk [vmem:[#allocation3] sm:$0xf] %vm956, %v954
      %s958 = scalar_lea.vmem %s248, 56
      %v959 = vld [vmem:[%s958] sm:$0xff]
      %960 = vrot.lane.b32.xlu0 %v269, 72
      %v961 = vpop.permute.xlu0 %960
      %962 = vrot.lane.b32.xlu0 %v270, 72
      %v963 = vpop.permute.xlu0 %962
      %v966 = vsel %vm272, %v959, 0
      %v968 = vsel %vm276, %v963, 0
      %970 = vmatprep.subr.mxu0 0.0
      %971 = vmatpush1.msra.mxu0 %v961
      %972 = vmatprep.subr.mxu0 0.0
      %973 = vmatpush1.msra.mxu0 %v968
      %974 = vmatprep.subr.mxu0 0.0
      %975 = vmatpush1.msra.mxu0 0.0
      %976 = vmatprep.subr.mxu0 0.0
      %977 = vmatpush1.msra.mxu0 0.0
      %978 = vmatprep.subr.mxu0 0.0
      %979 = vmatpush1.msra.mxu0 0.0
      %980 = vmatprep.subr.mxu0 0.0
      %981 = vmatpush1.msra.mxu0 0.0
      %982 = vmatprep.subr.mxu0 0.0
      %983 = vmatpush1.msra.mxu0 0.0
      %984 = vmatprep.subr.mxu0 0.0
      %985 = vmatpush1.msra.mxu0 0.0
      %986 = vmatprep.subr.mxu0 0.0
      %987 = vmatpush1.msra.mxu0 0.0
      %988 = vmatprep.subr.mxu0 0.0
      %989 = vmatpush1.msra.mxu0 0.0
      %990 = vmatprep.subr.mxu0 0.0
      %991 = vmatpush1.msra.mxu0 0.0
      %992 = vmatprep.subr.mxu0 0.0
      %993 = vmatpush1.msra.mxu0 0.0
      %994 = vmatprep.subr.mxu0 0.0
      %995 = vmatpush1.msra.mxu0 0.0
      %996 = vmatprep.subr.mxu0 0.0
      %997 = vmatpush1.msra.mxu0 0.0
      %998 = vmatprep.subr.mxu0 0.0
      %999 = vmatpush1.msra.mxu0 0.0
      %1000 = vmatprep.subr.mxu0 0.0
      %1001 = vmatpush1.msra.mxu0 0.0
      %1002 = vmatprep.subr.mxu0 0.0
      %1003 = vmatpush1.msra.mxu0 0.0
      %1004 = vmatprep.subr.mxu0 0.0
      %1005 = vmatpush1.msra.mxu0 0.0
      %1006 = vmatprep.subr.mxu0 0.0
      %1007 = vmatpush1.msra.mxu0 0.0
      %1008 = vmatprep.subr.mxu0 0.0
      %1009 = vmatpush1.msra.mxu0 0.0
      %1010 = vmatprep.subr.mxu0 0.0
      %1011 = vmatpush1.msra.mxu0 0.0
      %1012 = vmatprep.subr.mxu0 0.0
      %1013 = vmatpush1.msra.mxu0 0.0
      %1014 = vmatprep.subr.mxu0 0.0
      %1015 = vmatpush1.msra.mxu0 0.0
      %1016 = vmatprep.subr.mxu0 0.0
      %1017 = vmatpush1.msra.mxu0 0.0
      %1018 = vmatprep.subr.mxu0 0.0
      %1019 = vmatpush1.msra.mxu0 0.0
      %1020 = vmatprep.subr.mxu0 0.0
      %1021 = vmatpush1.msra.mxu0 0.0
      %1022 = vmatprep.subr.mxu0 0.0
      %1023 = vmatpush1.msra.mxu0 0.0
      %1024 = vmatprep.subr.mxu0 0.0
      %1025 = vmatpush1.msra.mxu0 0.0
      %1026 = vmatprep.subr.mxu0 0.0
      %1027 = vmatpush1.msra.mxu0 0.0
      %1028 = vmatprep.subr.mxu0 0.0
      %1029 = vmatpush1.msra.mxu0 0.0
      %1030 = vmatprep.subr.mxu0 0.0
      %1031 = vmatpush1.msra.mxu0 0.0
      %1032 = vmatprep.subr.mxu0 0.0
      %1033 = vmatpush1.msra.mxu0 0.0
      %1034 = vmatprep.mubr.f32.mxu0 0.0
      %1035 = vmatmul.mubr.f32.gmra.mrb[0].mxu0 %v966
      %v1036 = vpop.f32.mrb[0].mxu0
      %v1037 = vadd.f32 0.0, %v1036
      %v1038 = vpop.f32.mrb[0].mxu0
      %1039 = vdwg.mxu0
      %v1040 = vtanh.pop %v1037
      %v1041 = vxor.u32 %v1037, 2147483648
      %v1042 = vmul.f32 %v1041, 1.442695
      %v1043 = vpow.pop %v1042
      %v1044 = vadd.f32 %v1043, 1.0
      %v1045 = vrcp.pop %v1044
      %v1046 = vmul.f32 1.0, %v1045
      %v1048 = vrot.slane %v1046, 4
      %v1050 = vmul.f32 %v1040, %v1048
      %1052 = vrot.lane.b32.xlu0 %v1050, 56
      %v1053 = vpop.permute.xlu0 %1052
      %vm1055 = vcmask 519616
      %1056 = vst.msk [vmem:[#allocation3] sm:$0xf] %vm1055, %v1053
      %v1057 = vld [vmem:[%s2] sm:$0xf]
      %v1058 = vld [vmem:[#allocation3] sm:$0xf]
      %v1059 = vld [vmem:[%s3] sm:$0xf]
      %1061 = vset.pattern.permute.xlu0 0
      %1062 = vperm.xlu0 %1061, %v1059
      %v1063 = vpop.permute.xlu0 %1062
      %vm1065 = vcmask 31744
      %v1067 = vsel %vm1065, %v1057, 0
      %v1070 = vsel %vm276, %v1058, 0
      %1072 = vmatprep.subr.mxu0 0.0
      %1073 = vmatpush1.msra.mxu0 %v1070
      %1074 = vmatprep.subr.mxu0 0.0
      %1075 = vmatpush1.msra.mxu0 0.0
      %1076 = vmatprep.subr.mxu0 0.0
      %1077 = vmatpush1.msra.mxu0 0.0
      %1078 = vmatprep.subr.mxu0 0.0
      %1079 = vmatpush1.msra.mxu0 0.0
      %1080 = vmatprep.subr.mxu0 0.0
      %1081 = vmatpush1.msra.mxu0 0.0
      %1082 = vmatprep.subr.mxu0 0.0
      %1083 = vmatpush1.msra.mxu0 0.0
      %1084 = vmatprep.subr.mxu0 0.0
      %1085 = vmatpush1.msra.mxu0 0.0
      %1086 = vmatprep.subr.mxu0 0.0
      %1087 = vmatpush1.msra.mxu0 0.0
      %1088 = vmatprep.subr.mxu0 0.0
      %1089 = vmatpush1.msra.mxu0 0.0
      %1090 = vmatprep.subr.mxu0 0.0
      %1091 = vmatpush1.msra.mxu0 0.0
      %1092 = vmatprep.subr.mxu0 0.0
      %1093 = vmatpush1.msra.mxu0 0.0
      %1094 = vmatprep.subr.mxu0 0.0
      %1095 = vmatpush1.msra.mxu0 0.0
      %1096 = vmatprep.subr.mxu0 0.0
      %1097 = vmatpush1.msra.mxu0 0.0
      %1098 = vmatprep.subr.mxu0 0.0
      %1099 = vmatpush1.msra.mxu0 0.0
      %1100 = vmatprep.subr.mxu0 0.0
      %1101 = vmatpush1.msra.mxu0 0.0
      %1102 = vmatprep.subr.mxu0 0.0
      %1103 = vmatpush1.msra.mxu0 0.0
      %1104 = vmatprep.subr.mxu0 0.0
      %1105 = vmatpush1.msra.mxu0 0.0
      %1106 = vmatprep.subr.mxu0 0.0
      %1107 = vmatpush1.msra.mxu0 0.0
      %1108 = vmatprep.subr.mxu0 0.0
      %1109 = vmatpush1.msra.mxu0 0.0
      %1110 = vmatprep.subr.mxu0 0.0
      %1111 = vmatpush1.msra.mxu0 0.0
      %1112 = vmatprep.subr.mxu0 0.0
      %1113 = vmatpush1.msra.mxu0 0.0
      %1114 = vmatprep.subr.mxu0 0.0
      %1115 = vmatpush1.msra.mxu0 0.0
      %1116 = vmatprep.subr.mxu0 0.0
      %1117 = vmatpush1.msra.mxu0 0.0
      %1118 = vmatprep.subr.mxu0 0.0
      %1119 = vmatpush1.msra.mxu0 0.0
      %1120 = vmatprep.subr.mxu0 0.0
      %1121 = vmatpush1.msra.mxu0 0.0
      %1122 = vmatprep.subr.mxu0 0.0
      %1123 = vmatpush1.msra.mxu0 0.0
      %1124 = vmatprep.subr.mxu0 0.0
      %1125 = vmatpush1.msra.mxu0 0.0
      %1126 = vmatprep.subr.mxu0 0.0
      %1127 = vmatpush1.msra.mxu0 0.0
      %1128 = vmatprep.subr.mxu0 0.0
      %1129 = vmatpush1.msra.mxu0 0.0
      %1130 = vmatprep.subr.mxu0 0.0
      %1131 = vmatpush1.msra.mxu0 0.0
      %1132 = vmatprep.subr.mxu0 0.0
      %1133 = vmatpush1.msra.mxu0 0.0
      %1134 = vmatprep.subr.mxu0 0.0
      %1135 = vmatpush1.msra.mxu0 0.0
      %1136 = vmatprep.mubr.f32.mxu0 0.0
      %1137 = vmatmul.mubr.f32.gmra.mrb[0].mxu0 %v1067
      %v1138 = vpop.f32.mrb[0].mxu0
      %v1139 = vadd.f32 %v1063, %v1138
      %v1140 = vpop.f32.mrb[0].mxu0
      %1141 = vdwg.mxu0
      %v1142 = vld [vmem:[%s252] sm:$0xf]
      %v1143 = vadd.f32 %v1139, %v1142
      %1144 = vst.msk [vmem:[%s256] sm:$0xf] %vm258, %v1143
      %p1145 = scmp.lt.s32.totalorder %s16, 1
      %s1146 = scalar_select %p1145, %s16, 1
      %s1147 = smul.addr %s1146, 4
      %s1148 = scalar_lea.vmem %s5, %s1147
      // Predicated region
      $region41: #{_lambda_.18} parent=39 // pred_check
        %p1149 = pneg %p154
      $region42: #{_lambda_.18} parent=39 // pred_check_branch
        %1151 = sbr.rel (%p1149) target = $region44
      $region43: #{_lambda_.18} parent=39 // pred_region
        _
      $region44: #{_lambda_.18} parent=39 // pred_fallthru
        _
    $region40: #{_lambda_.18} parent=5 // pred_fallthru
      _
    %p1152 = scmp.le.s32.totalorder 2, %s11
    // Predicated region
    $region45: #{_lambda_.18} parent=5 // pred_check
      %p1153 = pneg %p1152
    $region46: #{_lambda_.18} parent=5 // pred_check_branch
      %1155 = sbr.rel (%p1153) target = $region48
    $region47: #{_lambda_.18} parent=5 // pred_region
      %s1156 = ssub.s32 %s11, 2
      // Predicated region
      $region49: #{_lambda_.18} parent=47 // pred_check
        %p1157 = pneg %p160
      $region50: #{_lambda_.18} parent=47 // pred_check_branch
        %1159 = sbr.rel (%p1157) target = $region52
      $region51: #{_lambda_.18} parent=47 // pred_region
        %p1160 = scmp.lt.s32.totalorder %s17, 1
        %s1161 = scalar_select %p1160, %s17, 1
        %s1162 = smul.addr %s1161, 4
        %s1163 = scalar_lea.vmem %s5, %s1162
      $region52: #{_lambda_.18} parent=47 // pred_fallthru
        _
    $region48: #{_lambda_.18} parent=5 // pred_fallthru
      _
  $region6: #{_lambda_.18} parent=0 // loop_footer
    %s15 = sadd.s32 1, %s11
  $region7: #{_lambda_.18} parent=0 // loop_footer_branch
    %10 = sbr.rel target = $region3
  $region8: #{_lambda_.18} parent=0 // loop_exit
    _

</llo_original>
